<compile_context>
chip_gen: v7x
topology: tpu7x:2x2x1
jax: 0.10.0
libtpu: 0.0.40
codegen_flags: <defaults>
</compile_context>

<pallas_src>
import math
from functools import partial

import jax
import jax.numpy as jnp
from jax.experimental import pallas as pl
from jax.experimental.pallas import tpu as pltpu


# ----------------------------- kernel helpers ------------------------------

def _layernorm(x, gamma, beta, eps=1e-5):
    mu = jnp.mean(x, axis=-1, keepdims=True)
    var = jnp.mean((x - mu) ** 2, axis=-1, keepdims=True)
    return (x - mu) * jax.lax.rsqrt(var + eps) * gamma + beta


# -------------------------------- kernel -----------------------------------

def decoder_layer_kernel(
    # per-block activations (K/V/self-Q pre-projected & head-split in wrapper)
    tgt_ref,      # (1, tq, D)      f32   residual / LayerNorm path
    qself_ref,    # (1, H, tq, dk)  bf16  pre-scaled self-attention Q
    kselfT_ref,   # (1, H, dk, T)   bf16
    vself_ref,    # (1, H, T, dk)   bf16
    kencT_ref,    # (1, H, dk, S)   bf16
    venc_ref,     # (1, H, S, dk)   bf16
    sbias_ref,    # (1, tq, T)      f32   additive self-attn mask bias
    mbias_ref,    # (1, tq, S)      f32   additive enc-dec mask bias
    # weights (constant blocks)
    sa_wo, sa_bo,
    ed_wq, ed_bq, ed_wo, ed_bo,
    ffn_w1, ffn_b1, ffn_w2, ffn_b2,
    g1, be1, g2, be2, g3, be3,
    # outputs
    out_ref, sattn_ref, eattn_ref,
    *, num_heads,
):
    H = num_heads
    D = tgt_ref.shape[2]
    dk = D // H
    bf16 = jnp.bfloat16
    f32 = jnp.float32

    x_q = tgt_ref[0]                                    # (tq, D) f32

    def attend(qh, khT, vh, bias, attn_out_ref):
        # qh (H,tq,dk) bf16, khT (H,dk,S) bf16, vh (H,S,dk) bf16, bias (tq,S)
        scores = jnp.einsum('htd,hds->hts', qh, khT,
                            preferred_element_type=f32)  # (H, tq, S)
        scores = scores + bias[None, :, :]               # additive mask bias
        m = jnp.max(scores, axis=-1, keepdims=True)
        e = jnp.exp(scores - m)
        inv = pl.reciprocal(jnp.sum(e, axis=-1, keepdims=True), approx=False)
        attn = e * inv
        # store attention maps as soon as they are available
        attn_out_ref[0] = attn.astype(attn_out_ref.dtype)
        ctx = jnp.einsum('hts,hsd->htd', attn.astype(bf16), vh,
                         preferred_element_type=f32)     # (H, tq, dk)
        return jnp.concatenate([ctx[h] for h in range(H)], axis=-1)  # (tq, D)

    # 1) masked self-attention + residual + norm1 (dropout = identity, eval)
    ctx = attend(qself_ref[0], kselfT_ref[0], vself_ref[0],
                 sbias_ref[0], sattn_ref)
    sa_out = jnp.dot(ctx.astype(bf16), sa_wo[...],
                     preferred_element_type=f32) + sa_bo[...]
    x = _layernorm(x_q + sa_out, g1[...], be1[...])

    # 2) encoder-decoder attention + residual + norm2
    #    (K/V hoisted; Q must be projected here because it depends on x)
    q2d = jnp.dot(x.astype(bf16), ed_wq[...],
                  preferred_element_type=f32) + ed_bq[...]
    qh = jnp.stack([q2d[:, h * dk:(h + 1) * dk] for h in range(H)],
                   axis=0).astype(bf16)                  # (H, tq, dk)
    ctx = attend(qh, kencT_ref[0], venc_ref[0], mbias_ref[0], eattn_ref)
    ed_out = jnp.dot(ctx.astype(bf16), ed_wo[...],
                     preferred_element_type=f32) + ed_bo[...]
    x = _layernorm(x + ed_out, g2[...], be2[...])

    # 3) FFN (Linear -> ReLU -> [Dropout=identity] -> Linear) + residual + norm3
    hdn = jnp.maximum(
        jnp.dot(x.astype(bf16), ffn_w1[...],
                preferred_element_type=f32) + ffn_b1[...], 0.0)
    f = jnp.dot(hdn.astype(bf16), ffn_w2[...],
                preferred_element_type=f32) + ffn_b2[...]
    x = _layernorm(x + f, g3[...], be3[...])

    out_ref[0] = x.astype(out_ref.dtype)


# ------------------------------- wrapper ------------------------------------

def decoder_layer(tgt, enc_output, tgt_mask, memory_mask, params, num_heads,
                  block_tq=None, attn_dtype=jnp.float32):
    # attn_dtype=jnp.bfloat16 halves the attention-map HBM writes / VMEM
    # footprint (biggest lever at production sizes); f32 kept as the default
    # to match the PyTorch module's float outputs.
    B, T, D = tgt.shape
    S = enc_output.shape[1]
    H = num_heads
    dk = D // H
    scale = 1.0 / math.sqrt(dk)
    bf16 = jnp.bfloat16
    f32 = jnp.float32

    if block_tq is None:
        block_tq = T if T <= 128 else 128   # sweep 256-512 on v6e if VMEM allows
    assert T % block_tq == 0, "tgt_seq_len must be divisible by block_tq"
    n_qblk = T // block_tq

    if tgt_mask is None:
        tgt_mask = jnp.ones((B, 1, T, T), f32)
    if memory_mask is None:
        memory_mask = jnp.ones((B, 1, T, S), f32)
    # additive biases: 0 where keep, -1e9 where masked
    sbias = (tgt_mask.astype(f32).reshape(B, T, T) - 1.0) * 1e9
    mbias = (memory_mask.astype(f32).reshape(B, T, S) - 1.0) * 1e9

    def split_heads(x):  # (B, N, D) -> (B, H, N, dk)
        return x.reshape(B, -1, H, dk).transpose(0, 2, 1, 3)

    # --- hoisted projections: computed ONCE per call, never per query block ---
    q_self = split_heads(tgt @ (params["sa_wq"] * scale)
                         + params["sa_bq"] * scale).astype(bf16)         # (B,H,T,dk)
    k_selfT = split_heads(tgt @ params["sa_wk"] + params["sa_bk"]
                          ).transpose(0, 1, 3, 2).astype(bf16)           # (B,H,dk,T)
    v_self = split_heads(tgt @ params["sa_wv"] + params["sa_bv"]).astype(bf16)
    k_encT = split_heads(enc_output @ params["ed_wk"] + params["ed_bk"]
                         ).transpose(0, 1, 3, 2).astype(bf16)            # (B,H,dk,S)
    v_enc = split_heads(enc_output @ params["ed_wv"] + params["ed_bv"]).astype(bf16)

    weight_args = [
        params["sa_wo"].astype(bf16), params["sa_bo"].astype(f32),
        (params["ed_wq"] * scale).astype(bf16),
        (params["ed_bq"] * scale).astype(f32),
        params["ed_wo"].astype(bf16), params["ed_bo"].astype(f32),
        params["ffn_w1"].astype(bf16), params["ffn_b1"].astype(f32),
        params["ffn_w2"].astype(bf16), params["ffn_b2"].astype(f32),
        params["g1"].astype(f32), params["be1"].astype(f32),
        params["g2"].astype(f32), params["be2"].astype(f32),
        params["g3"].astype(f32), params["be3"].astype(f32),
    ]

    data_args = [tgt.astype(f32), q_self, k_selfT, v_self, k_encT, v_enc,
                 sbias, mbias]

    data_specs = [
        pl.BlockSpec((1, block_tq, D), lambda b, q: (b, q, 0)),         # tgt blk
        pl.BlockSpec((1, H, block_tq, dk), lambda b, q: (b, 0, q, 0)),  # q_self
        pl.BlockSpec((1, H, dk, T), lambda b, q: (b, 0, 0, 0)),         # k_selfT
        pl.BlockSpec((1, H, T, dk), lambda b, q: (b, 0, 0, 0)),         # v_self
        pl.BlockSpec((1, H, dk, S), lambda b, q: (b, 0, 0, 0)),         # k_encT
        pl.BlockSpec((1, H, S, dk), lambda b, q: (b, 0, 0, 0)),         # v_enc
        pl.BlockSpec((1, block_tq, T), lambda b, q: (b, q, 0)),         # sbias
        pl.BlockSpec((1, block_tq, S), lambda b, q: (b, q, 0)),         # mbias
    ]

    out_specs = [
        pl.BlockSpec((1, block_tq, D), lambda b, q: (b, q, 0)),
        pl.BlockSpec((1, H, block_tq, T), lambda b, q: (b, 0, q, 0)),
        pl.BlockSpec((1, H, block_tq, S), lambda b, q: (b, 0, q, 0)),
    ]

    out_shape = (
        jax.ShapeDtypeStruct((B, T, D), f32),
        jax.ShapeDtypeStruct((B, H, T, T), attn_dtype),
        jax.ShapeDtypeStruct((B, H, T, S), attn_dtype),
    )

    # --- VMEM budget, derived from the actual chip capacity ---
    attn_isz = jnp.dtype(attn_dtype).itemsize
    weight_bytes = sum(int(w.size) * w.dtype.itemsize for w in weight_args)
    in_block_bytes = (block_tq * D * 4                      # f32 tgt block
                      + H * block_tq * dk * 2               # bf16 q_self block
                      + 2 * H * T * dk * 2                  # bf16 self K^T/V
                      + 2 * H * S * dk * 2                  # bf16 enc  K^T/V
                      + block_tq * (T + S) * 4)             # f32 mask biases
    out_block_bytes = block_tq * D * 4 + H * block_tq * (T + S) * attn_isz
    interm_bytes = 5 * H * block_tq * (T + S) * 4           # scores/e/attn + bf16
    try:
        vmem_cap = int(pltpu.get_tpu_info().vmem_capacity_bytes)
    except Exception:
        vmem_cap = 64 * 1024 * 1024                         # v7x per-TC floor
    vmem_need = (2 * (in_block_bytes + out_block_bytes)     # double-buffered
                 + 2 * weight_bytes                         # worst case (fallback)
                 + interm_bytes + 4 * 1024 * 1024)          # headroom
    vmem_limit = int(min(max(vmem_need, 16 * 1024 * 1024),
                         int(vmem_cap * 0.75)))

    def build_and_run(weight_pipeline_mode):
        wspecs = []
        for w in weight_args:
            idx_map = (lambda b, q, _nd=w.ndim: (0,) * _nd)
            if weight_pipeline_mode is None:
                wspecs.append(pl.BlockSpec(w.shape, idx_map))
            else:
                wspecs.append(pl.BlockSpec(w.shape, idx_map,
                                           pipeline_mode=weight_pipeline_mode))
        return pl.pallas_call(
            partial(decoder_layer_kernel, num_heads=H),
            out_shape=out_shape,
            grid_spec=pltpu.PrefetchScalarGridSpec(
                num_scalar_prefetch=0,
                grid=(B, n_qblk),
                in_specs=data_specs + wspecs,
                out_specs=out_specs,
            ),
            compiler_params=pltpu.CompilerParams(
                dimension_semantics=("parallel", "parallel"),
                vmem_limit_bytes=vmem_limit),
        )(*data_args, *weight_args)

    try:
        # Constant-index weight blocks: single-buffer them (fetched once).
        return build_and_run(pl.Buffered(1))
    except Exception:
        # Fallback to default double-buffering if Buffered(1) is unsupported.
        return build_and_run(None)


# --------------------------- pure-JAX reference ------------------------------

def decoder_layer_ref(tgt, enc_output, tgt_mask, memory_mask, params, num_heads):
    def ln(x, g, b, eps=1e-5):
        mu = x.mean(-1, keepdims=True)
        var = ((x - mu) ** 2).mean(-1, keepdims=True)
        return (x - mu) / jnp.sqrt(var + eps) * g + b

    def mha(xq, xkv, mask, wq, bq, wk, bk, wv, bv, wo, bo):
        D = xq.shape[-1]
        dk = D // num_heads
        scale = 1.0 / math.sqrt(dk)
        Q = xq @ wq + bq
        K = xkv @ wk + bk
        V = xkv @ wv + bv
        outs, attns = [], []
        for h in range(num_heads):
            qh = Q[:, h * dk:(h + 1) * dk]
            kh = K[:, h * dk:(h + 1) * dk]
            vh = V[:, h * dk:(h + 1) * dk]
            s = qh @ kh.T * scale
            s = jnp.where(mask == 0.0, -1e9, s)
            a = jax.nn.softmax(s, axis=-1)
            outs.append(a @ vh)
            attns.append(a)
        return jnp.concatenate(outs, -1) @ wo + bo, jnp.stack(attns, 0)

    def single(x, enc, tm, mm):
        tm = tm[0]
        mm = mm[0]
        sa, sa_a = mha(x, x, tm,
                       params["sa_wq"], params["sa_bq"], params["sa_wk"],
                       params["sa_bk"], params["sa_wv"], params["sa_bv"],
                       params["sa_wo"], params["sa_bo"])
        x = ln(x + sa, params["g1"], params["be1"])
        ed, ed_a = mha(x, enc, mm,
                       params["ed_wq"], params["ed_bq"], params["ed_wk"],
                       params["ed_bk"], params["ed_wv"], params["ed_bv"],
                       params["ed_wo"], params["ed_bo"])
        x = ln(x + ed, params["g2"], params["be2"])
        h = jnp.maximum(x @ params["ffn_w1"] + params["ffn_b1"], 0.0)
        x = ln(x + h @ params["ffn_w2"] + params["ffn_b2"],
               params["g3"], params["be3"])
        return x, sa_a, ed_a

    return jax.vmap(single)(tgt, enc_output, tgt_mask, memory_mask)


# --------------------------------- main --------------------------------------

if __name__ == "__main__":
    B, T, S, D, H, DFF = 2, 8, 16, 32, 4, 64

    key = jax.random.PRNGKey(0)
    keys = jax.random.split(key, 32)
    ki = iter(keys)

    def w(shape, scale=0.05):
        return jax.random.normal(next(ki), shape, jnp.float32) * scale

    params = {
        # self-attention
        "sa_wq": w((D, D)), "sa_bq": w((1, D), 0.02),
        "sa_wk": w((D, D)), "sa_bk": w((1, D), 0.02),
        "sa_wv": w((D, D)), "sa_bv": w((1, D), 0.02),
        "sa_wo": w((D, D)), "sa_bo": w((1, D), 0.02),
        # encoder-decoder attention
        "ed_wq": w((D, D)), "ed_bq": w((1, D), 0.02),
        "ed_wk": w((D, D)), "ed_bk": w((1, D), 0.02),
        "ed_wv": w((D, D)), "ed_bv": w((1, D), 0.02),
        "ed_wo": w((D, D)), "ed_bo": w((1, D), 0.02),
        # FFN
        "ffn_w1": w((D, DFF)), "ffn_b1": w((1, DFF), 0.02),
        "ffn_w2": w((DFF, D)), "ffn_b2": w((1, D), 0.02),
        # layernorms
        "g1": 1.0 + w((1, D), 0.1), "be1": w((1, D), 0.1),
        "g2": 1.0 + w((1, D), 0.1), "be2": w((1, D), 0.1),
        "g3": 1.0 + w((1, D), 0.1), "be3": w((1, D), 0.1),
    }

    tgt = jax.random.normal(next(ki), (B, T, D), jnp.float32)
    enc = jax.random.normal(next(ki), (B, S, D), jnp.float32)

    # causal mask for the target, full visibility for the encoder memory
    causal = jnp.tril(jnp.ones((T, T), jnp.float32))
    tgt_mask = jnp.broadcast_to(causal, (B, 1, T, T))
    memory_mask = jnp.ones((B, 1, T, S), jnp.float32)

    out, self_attn, enc_dec_attn = jax.block_until_ready(
        decoder_layer(tgt, enc, tgt_mask, memory_mask, params, H))

    ref_out, ref_sa, ref_ea = decoder_layer_ref(
        tgt, enc, tgt_mask, memory_mask, params, H)

    assert out.shape == (B, T, D)
    assert self_attn.shape == (B, H, T, T)
    assert enc_dec_attn.shape == (B, H, T, S)
    # bf16 MXU inputs vs f32 reference -> loose tolerance
    assert jnp.allclose(out, ref_out, atol=2e-2, rtol=2e-2)
    assert jnp.allclose(self_attn, ref_sa, atol=2e-2, rtol=2e-2)
    assert jnp.allclose(enc_dec_attn, ref_ea, atol=2e-2, rtol=2e-2)

    # TODO(synk): dropout is modeled as identity (eval mode); training-mode
    # stochastic dropout would need pltpu.prng_seed/prng_random_bits.
    print("KERNEL_OK")
</pallas_src>

<mosaic_0001>
module attributes {stable_mosaic.version = 11 : i64} {
  func.func @decoder_layer_kernel(%arg0: i32, %arg1: i32, %arg2: memref<1x8x32xf32, #tpu.memory_space<vmem>>, %arg3: memref<1x4x8x8xbf16, #tpu.memory_space<vmem>>, %arg4: memref<1x4x8x8xbf16, #tpu.memory_space<vmem>>, %arg5: memref<1x4x8x8xbf16, #tpu.memory_space<vmem>>, %arg6: memref<1x4x8x16xbf16, #tpu.memory_space<vmem>>, %arg7: memref<1x4x16x8xbf16, #tpu.memory_space<vmem>>, %arg8: memref<1x8x8xf32, #tpu.memory_space<vmem>>, %arg9: memref<1x8x16xf32, #tpu.memory_space<vmem>>, %arg10: memref<32x32xbf16, #tpu.memory_space<vmem>>, %arg11: memref<1x32xf32, #tpu.memory_space<vmem>>, %arg12: memref<32x32xbf16, #tpu.memory_space<vmem>>, %arg13: memref<1x32xf32, #tpu.memory_space<vmem>>, %arg14: memref<32x32xbf16, #tpu.memory_space<vmem>>, %arg15: memref<1x32xf32, #tpu.memory_space<vmem>>, %arg16: memref<32x64xbf16, #tpu.memory_space<vmem>>, %arg17: memref<1x64xf32, #tpu.memory_space<vmem>>, %arg18: memref<64x32xbf16, #tpu.memory_space<vmem>>, %arg19: memref<1x32xf32, #tpu.memory_space<vmem>>, %arg20: memref<1x32xf32, #tpu.memory_space<vmem>>, %arg21: memref<1x32xf32, #tpu.memory_space<vmem>>, %arg22: memref<1x32xf32, #tpu.memory_space<vmem>>, %arg23: memref<1x32xf32, #tpu.memory_space<vmem>>, %arg24: memref<1x32xf32, #tpu.memory_space<vmem>>, %arg25: memref<1x32xf32, #tpu.memory_space<vmem>>, %arg26: memref<1x8x32xf32, #tpu.memory_space<vmem>>, %arg27: memref<1x4x8x8xf32, #tpu.memory_space<vmem>>, %arg28: memref<1x4x8x16xf32, #tpu.memory_space<vmem>>) attributes {dimension_semantics = [#tpu.dimension_semantics<parallel>, #tpu.dimension_semantics<parallel>], iteration_bounds = array<i64: 2, 1>, scalar_prefetch = 0 : i64, scratch_operands = 0 : i64, tpu.core_type = #tpu.core_type<tc>, window_params = [{transform_indices = @transform_0, window_bounds = array<i64: 1, 8, 32>}, {transform_indices = @transform_1, window_bounds = array<i64: 1, 4, 8, 8>}, {transform_indices = @transform_2, window_bounds = array<i64: 1, 4, 8, 8>}, {transform_indices = @transform_3, window_bounds = array<i64: 1, 4, 8, 8>}, {transform_indices = @transform_4, window_bounds = array<i64: 1, 4, 8, 16>}, {transform_indices = @transform_5, window_bounds = array<i64: 1, 4, 16, 8>}, {transform_indices = @transform_6, window_bounds = array<i64: 1, 8, 8>}, {transform_indices = @transform_7, window_bounds = array<i64: 1, 8, 16>}, {pipeline_mode = #tpu.pipeline_mode<synchronous>, transform_indices = @transform_8, window_bounds = array<i64: 32, 32>}, {pipeline_mode = #tpu.pipeline_mode<synchronous>, transform_indices = @transform_9, window_bounds = array<i64: 1, 32>}, {pipeline_mode = #tpu.pipeline_mode<synchronous>, transform_indices = @transform_10, window_bounds = array<i64: 32, 32>}, {pipeline_mode = #tpu.pipeline_mode<synchronous>, transform_indices = @transform_11, window_bounds = array<i64: 1, 32>}, {pipeline_mode = #tpu.pipeline_mode<synchronous>, transform_indices = @transform_12, window_bounds = array<i64: 32, 32>}, {pipeline_mode = #tpu.pipeline_mode<synchronous>, transform_indices = @transform_13, window_bounds = array<i64: 1, 32>}, {pipeline_mode = #tpu.pipeline_mode<synchronous>, transform_indices = @transform_14, window_bounds = array<i64: 32, 64>}, {pipeline_mode = #tpu.pipeline_mode<synchronous>, transform_indices = @transform_15, window_bounds = array<i64: 1, 64>}, {pipeline_mode = #tpu.pipeline_mode<synchronous>, transform_indices = @transform_16, window_bounds = array<i64: 64, 32>}, {pipeline_mode = #tpu.pipeline_mode<synchronous>, transform_indices = @transform_17, window_bounds = array<i64: 1, 32>}, {pipeline_mode = #tpu.pipeline_mode<synchronous>, transform_indices = @transform_18, window_bounds = array<i64: 1, 32>}, {pipeline_mode = #tpu.pipeline_mode<synchronous>, transform_indices = @transform_19, window_bounds = array<i64: 1, 32>}, {pipeline_mode = #tpu.pipeline_mode<synchronous>, transform_indices = @transform_20, window_bounds = array<i64: 1, 32>}, {pipeline_mode = #tpu.pipeline_mode<synchronous>, transform_indices = @transform_21, window_bounds = array<i64: 1, 32>}, {pipeline_mode = #tpu.pipeline_mode<synchronous>, transform_indices = @transform_22, window_bounds = array<i64: 1, 32>}, {pipeline_mode = #tpu.pipeline_mode<synchronous>, transform_indices = @transform_23, window_bounds = array<i64: 1, 32>}, {transform_indices = @transform_24, window_bounds = array<i64: 1, 8, 32>}, {transform_indices = @transform_25, window_bounds = array<i64: 1, 4, 8, 8>}, {transform_indices = @transform_26, window_bounds = array<i64: 1, 4, 8, 16>}]} {
    %c0 = arith.constant 0 : index
    %c0_0 = arith.constant 0 : index
    %c0_1 = arith.constant 0 : index
    %0 = vector.load %arg2[%c0, %c0_0, %c0_1] : memref<1x8x32xf32, #tpu.memory_space<vmem>>, vector<1x8x32xf32>
    %1 = vector.shape_cast %0 : vector<1x8x32xf32> to vector<8x32xf32>
    %c0_2 = arith.constant 0 : index
    %c0_3 = arith.constant 0 : index
    %c0_4 = arith.constant 0 : index
    %c0_5 = arith.constant 0 : index
    %2 = vector.load %arg3[%c0_2, %c0_3, %c0_4, %c0_5] : memref<1x4x8x8xbf16, #tpu.memory_space<vmem>>, vector<1x4x8x8xbf16>
    %3 = vector.shape_cast %2 : vector<1x4x8x8xbf16> to vector<4x8x8xbf16>
    %c0_6 = arith.constant 0 : index
    %c0_7 = arith.constant 0 : index
    %c0_8 = arith.constant 0 : index
    %c0_9 = arith.constant 0 : index
    %4 = vector.load %arg4[%c0_6, %c0_7, %c0_8, %c0_9] : memref<1x4x8x8xbf16, #tpu.memory_space<vmem>>, vector<1x4x8x8xbf16>
    %5 = vector.shape_cast %4 : vector<1x4x8x8xbf16> to vector<4x8x8xbf16>
    %c0_10 = arith.constant 0 : index
    %c0_11 = arith.constant 0 : index
    %c0_12 = arith.constant 0 : index
    %c0_13 = arith.constant 0 : index
    %6 = vector.load %arg5[%c0_10, %c0_11, %c0_12, %c0_13] : memref<1x4x8x8xbf16, #tpu.memory_space<vmem>>, vector<1x4x8x8xbf16>
    %7 = vector.shape_cast %6 : vector<1x4x8x8xbf16> to vector<4x8x8xbf16>
    %c0_14 = arith.constant 0 : index
    %c0_15 = arith.constant 0 : index
    %c0_16 = arith.constant 0 : index
    %8 = vector.load %arg8[%c0_14, %c0_15, %c0_16] : memref<1x8x8xf32, #tpu.memory_space<vmem>>, vector<1x8x8xf32>
    %9 = vector.shape_cast %8 : vector<1x8x8xf32> to vector<8x8xf32>
    "tpu.trace_start"() <{level = 10 : i32, message = "htd,hds->hts"}> : () -> ()
    %cst = arith.constant dense<0.000000e+00> : vector<4x8x8xf32>
    %10 = tpu.matmul %3, %5, %cst {dimension_numbers = #tpu.dot_dimension_numbers<[2], [1], [1], [2], [0, 0, 0, 1, 1, 2], [0], [0]>} : vector<4x8x8xbf16>, vector<4x8x8xbf16>, vector<4x8x8xf32> -> vector<4x8x8xf32>
    "tpu.trace_stop"() : () -> ()
    %11 = vector.shape_cast %9 : vector<8x8xf32> to vector<1x8x8xf32>
    %12 = vector.broadcast %11 : vector<1x8x8xf32> to vector<4x8x8xf32>
    %13 = arith.addf %10, %12 : vector<4x8x8xf32>
    %cst_17 = arith.constant dense<0xFF800000> : vector<4x8xf32>
    %14 = vector.multi_reduction <maximumf>, %13, %cst_17 [2] : vector<4x8x8xf32> to vector<4x8xf32>
    %15 = vector.shape_cast %14 : vector<4x8xf32> to vector<4x8x1xf32>
    %16 = vector.broadcast %15 : vector<4x8x1xf32> to vector<4x8x8xf32>
    %17 = arith.subf %13, %16 : vector<4x8x8xf32>
    %18 = math.exp %17 : vector<4x8x8xf32>
    %cst_18 = arith.constant dense<0.000000e+00> : vector<4x8xf32>
    %19 = vector.multi_reduction <add>, %18, %cst_18 [2] : vector<4x8x8xf32> to vector<4x8xf32>
    %20 = vector.shape_cast %19 : vector<4x8xf32> to vector<4x8x1xf32>
    %21 = tpu.reciprocal %20 : vector<4x8x1xf32> -> vector<4x8x1xf32>
    %22 = vector.broadcast %21 : vector<4x8x1xf32> to vector<4x8x8xf32>
    %23 = arith.mulf %18, %22 : vector<4x8x8xf32>
    %c0_19 = arith.constant 0 : index
    %c0_20 = arith.constant 0 : index
    %c0_21 = arith.constant 0 : index
    %c0_22 = arith.constant 0 : index
    %24 = vector.load %arg27[%c0_19, %c0_20, %c0_21, %c0_22] : memref<1x4x8x8xf32, #tpu.memory_space<vmem>>, vector<1x4x8x8xf32>
    %25 = vector.shape_cast %24 : vector<1x4x8x8xf32> to vector<4x8x8xf32>
    %26 = vector.shape_cast %23 : vector<4x8x8xf32> to vector<1x4x8x8xf32>
    tpu.vector_store %arg27[%c0_19, %c0_20, %c0_21, %c0_22], %26 {strides = array<i32>} : memref<1x4x8x8xf32, #tpu.memory_space<vmem>>, vector<1x4x8x8xf32>,
    %27 = arith.truncf %23 : vector<4x8x8xf32> to vector<4x8x8xbf16>
    "tpu.trace_start"() <{level = 10 : i32, message = "hts,hsd->htd"}> : () -> ()
    %cst_23 = arith.constant dense<0.000000e+00> : vector<4x8x8xf32>
    %28 = tpu.matmul %27, %7, %cst_23 {dimension_numbers = #tpu.dot_dimension_numbers<[2], [1], [1], [2], [0, 0, 0, 1, 1, 2], [0], [0]>} : vector<4x8x8xbf16>, vector<4x8x8xbf16>, vector<4x8x8xf32> -> vector<4x8x8xf32>
    "tpu.trace_stop"() : () -> ()
    %29 = vector.extract_strided_slice %28 {offsets = [0, 0, 0], sizes = [1, 8, 8], strides = [1, 1, 1]} : vector<4x8x8xf32> to vector<1x8x8xf32>
    %30 = vector.shape_cast %29 : vector<1x8x8xf32> to vector<8x8xf32>
    %31 = vector.extract_strided_slice %28 {offsets = [1, 0, 0], sizes = [1, 8, 8], strides = [1, 1, 1]} : vector<4x8x8xf32> to vector<1x8x8xf32>
    %32 = vector.shape_cast %31 : vector<1x8x8xf32> to vector<8x8xf32>
    %33 = vector.extract_strided_slice %28 {offsets = [2, 0, 0], sizes = [1, 8, 8], strides = [1, 1, 1]} : vector<4x8x8xf32> to vector<1x8x8xf32>
    %34 = vector.shape_cast %33 : vector<1x8x8xf32> to vector<8x8xf32>
    %35 = vector.extract_strided_slice %28 {offsets = [3, 0, 0], sizes = [1, 8, 8], strides = [1, 1, 1]} : vector<4x8x8xf32> to vector<1x8x8xf32>
    %36 = vector.shape_cast %35 : vector<1x8x8xf32> to vector<8x8xf32>
    %37 = tpu.concatenate %30, %32, %34, %36 in 1 : vector<8x8xf32>, vector<8x8xf32>, vector<8x8xf32>, vector<8x8xf32> -> vector<8x32xf32>
    %38 = arith.truncf %37 : vector<8x32xf32> to vector<8x32xbf16>
    %c0_24 = arith.constant 0 : index
    %c0_25 = arith.constant 0 : index
    %39 = vector.load %arg10[%c0_24, %c0_25] : memref<32x32xbf16, #tpu.memory_space<vmem>>, vector<32x32xbf16>
    %cst_26 = arith.constant dense<0.000000e+00> : vector<8x32xf32>
    %40 = tpu.matmul %38, %39, %cst_26 {dimension_numbers = #tpu.dot_dimension_numbers<[1], [0], [0], [1], [0, 0, 1, 1], [], []>} : vector<8x32xbf16>, vector<32x32xbf16>, vector<8x32xf32> -> vector<8x32xf32>
    %c0_27 = arith.constant 0 : index
    %c0_28 = arith.constant 0 : index
    %41 = vector.load %arg11[%c0_27, %c0_28] : memref<1x32xf32, #tpu.memory_space<vmem>>, vector<1x32xf32>
    %42 = vector.broadcast %41 : vector<1x32xf32> to vector<8x32xf32>
    %43 = arith.addf %40, %42 : vector<8x32xf32>
    %44 = arith.addf %1, %43 : vector<8x32xf32>
    %c0_29 = arith.constant 0 : index
    %c0_30 = arith.constant 0 : index
    %45 = vector.load %arg20[%c0_29, %c0_30] : memref<1x32xf32, #tpu.memory_space<vmem>>, vector<1x32xf32>
    %c0_31 = arith.constant 0 : index
    %c0_32 = arith.constant 0 : index
    %46 = vector.load %arg21[%c0_31, %c0_32] : memref<1x32xf32, #tpu.memory_space<vmem>>, vector<1x32xf32>
    %cst_33 = arith.constant dense<0.000000e+00> : vector<8xf32>
    %47 = vector.multi_reduction <add>, %44, %cst_33 [1] : vector<8x32xf32> to vector<8xf32>
    %48 = vector.shape_cast %47 : vector<8xf32> to vector<8x1xf32>
    %cst_34 = arith.constant 3.200000e+01 : f32
    %49 = vector.broadcast %cst_34 : f32 to vector<8x1xf32>
    %50 = arith.divf %48, %49 : vector<8x1xf32>
    %51 = vector.broadcast %50 : vector<8x1xf32> to vector<8x32xf32>
    %52 = arith.subf %44, %51 : vector<8x32xf32>
    %53 = arith.mulf %52, %52 : vector<8x32xf32>
    %cst_35 = arith.constant dense<0.000000e+00> : vector<8xf32>
    %54 = vector.multi_reduction <add>, %53, %cst_35 [1] : vector<8x32xf32> to vector<8xf32>
    %55 = vector.shape_cast %54 : vector<8xf32> to vector<8x1xf32>
    %cst_36 = arith.constant 3.200000e+01 : f32
    %56 = vector.broadcast %cst_36 : f32 to vector<8x1xf32>
    %57 = arith.divf %55, %56 : vector<8x1xf32>
    %58 = vector.broadcast %50 : vector<8x1xf32> to vector<8x32xf32>
    %59 = arith.subf %44, %58 : vector<8x32xf32>
    %cst_37 = arith.constant 9.99999974E-6 : f32
    %60 = vector.broadcast %cst_37 : f32 to vector<8x1xf32>
    %61 = arith.addf %57, %60 : vector<8x1xf32>
    %62 = math.rsqrt %61 : vector<8x1xf32>
    %63 = vector.broadcast %62 : vector<8x1xf32> to vector<8x32xf32>
    %64 = arith.mulf %59, %63 : vector<8x32xf32>
    %65 = vector.broadcast %45 : vector<1x32xf32> to vector<8x32xf32>
    %66 = arith.mulf %64, %65 : vector<8x32xf32>
    %67 = vector.broadcast %46 : vector<1x32xf32> to vector<8x32xf32>
    %68 = arith.addf %66, %67 : vector<8x32xf32>
    %69 = arith.truncf %68 : vector<8x32xf32> to vector<8x32xbf16>
    %c0_38 = arith.constant 0 : index
    %c0_39 = arith.constant 0 : index
    %70 = vector.load %arg12[%c0_38, %c0_39] : memref<32x32xbf16, #tpu.memory_space<vmem>>, vector<32x32xbf16>
    %cst_40 = arith.constant dense<0.000000e+00> : vector<8x32xf32>
    %71 = tpu.matmul %69, %70, %cst_40 {dimension_numbers = #tpu.dot_dimension_numbers<[1], [0], [0], [1], [0, 0, 1, 1], [], []>} : vector<8x32xbf16>, vector<32x32xbf16>, vector<8x32xf32> -> vector<8x32xf32>
    %c0_41 = arith.constant 0 : index
    %c0_42 = arith.constant 0 : index
    %72 = vector.load %arg13[%c0_41, %c0_42] : memref<1x32xf32, #tpu.memory_space<vmem>>, vector<1x32xf32>
    %73 = vector.broadcast %72 : vector<1x32xf32> to vector<8x32xf32>
    %74 = arith.addf %71, %73 : vector<8x32xf32>
    %75 = vector.extract_strided_slice %74 {offsets = [0, 0], sizes = [8, 8], strides = [1, 1]} : vector<8x32xf32> to vector<8x8xf32>
    %76 = vector.extract_strided_slice %74 {offsets = [0, 8], sizes = [8, 8], strides = [1, 1]} : vector<8x32xf32> to vector<8x8xf32>
    %77 = vector.extract_strided_slice %74 {offsets = [0, 16], sizes = [8, 8], strides = [1, 1]} : vector<8x32xf32> to vector<8x8xf32>
    %78 = vector.extract_strided_slice %74 {offsets = [0, 24], sizes = [8, 8], strides = [1, 1]} : vector<8x32xf32> to vector<8x8xf32>
    %79 = vector.shape_cast %75 : vector<8x8xf32> to vector<1x8x8xf32>
    %80 = vector.shape_cast %76 : vector<8x8xf32> to vector<1x8x8xf32>
    %81 = vector.shape_cast %77 : vector<8x8xf32> to vector<1x8x8xf32>
    %82 = vector.shape_cast %78 : vector<8x8xf32> to vector<1x8x8xf32>
    %83 = tpu.concatenate %79, %80, %81, %82 in 0 : vector<1x8x8xf32>, vector<1x8x8xf32>, vector<1x8x8xf32>, vector<1x8x8xf32> -> vector<4x8x8xf32>
    %84 = arith.truncf %83 : vector<4x8x8xf32> to vector<4x8x8xbf16>
    %c0_43 = arith.constant 0 : index
    %c0_44 = arith.constant 0 : index
    %c0_45 = arith.constant 0 : index
    %c0_46 = arith.constant 0 : index
    %85 = vector.load %arg6[%c0_43, %c0_44, %c0_45, %c0_46] : memref<1x4x8x16xbf16, #tpu.memory_space<vmem>>, vector<1x4x8x16xbf16>
    %86 = vector.shape_cast %85 : vector<1x4x8x16xbf16> to vector<4x8x16xbf16>
    %c0_47 = arith.constant 0 : index
    %c0_48 = arith.constant 0 : index
    %c0_49 = arith.constant 0 : index
    %c0_50 = arith.constant 0 : index
    %87 = vector.load %arg7[%c0_47, %c0_48, %c0_49, %c0_50] : memref<1x4x16x8xbf16, #tpu.memory_space<vmem>>, vector<1x4x16x8xbf16>
    %88 = vector.shape_cast %87 : vector<1x4x16x8xbf16> to vector<4x16x8xbf16>
    %c0_51 = arith.constant 0 : index
    %c0_52 = arith.constant 0 : index
    %c0_53 = arith.constant 0 : index
    %89 = vector.load %arg9[%c0_51, %c0_52, %c0_53] : memref<1x8x16xf32, #tpu.memory_space<vmem>>, vector<1x8x16xf32>
    %90 = vector.shape_cast %89 : vector<1x8x16xf32> to vector<8x16xf32>
    "tpu.trace_start"() <{level = 10 : i32, message = "htd,hds->hts"}> : () -> ()
    %cst_54 = arith.constant dense<0.000000e+00> : vector<4x8x16xf32>
    %91 = tpu.matmul %84, %86, %cst_54 {dimension_numbers = #tpu.dot_dimension_numbers<[2], [1], [1], [2], [0, 0, 0, 1, 1, 2], [0], [0]>} : vector<4x8x8xbf16>, vector<4x8x16xbf16>, vector<4x8x16xf32> -> vector<4x8x16xf32>
    "tpu.trace_stop"() : () -> ()
    %92 = vector.shape_cast %90 : vector<8x16xf32> to vector<1x8x16xf32>
    %93 = vector.broadcast %92 : vector<1x8x16xf32> to vector<4x8x16xf32>
    %94 = arith.addf %91, %93 : vector<4x8x16xf32>
    %cst_55 = arith.constant dense<0xFF800000> : vector<4x8xf32>
    %95 = vector.multi_reduction <maximumf>, %94, %cst_55 [2] : vector<4x8x16xf32> to vector<4x8xf32>
    %96 = vector.shape_cast %95 : vector<4x8xf32> to vector<4x8x1xf32>
    %97 = vector.broadcast %96 : vector<4x8x1xf32> to vector<4x8x16xf32>
    %98 = arith.subf %94, %97 : vector<4x8x16xf32>
    %99 = math.exp %98 : vector<4x8x16xf32>
    %cst_56 = arith.constant dense<0.000000e+00> : vector<4x8xf32>
    %100 = vector.multi_reduction <add>, %99, %cst_56 [2] : vector<4x8x16xf32> to vector<4x8xf32>
    %101 = vector.shape_cast %100 : vector<4x8xf32> to vector<4x8x1xf32>
    %102 = tpu.reciprocal %101 : vector<4x8x1xf32> -> vector<4x8x1xf32>
    %103 = vector.broadcast %102 : vector<4x8x1xf32> to vector<4x8x16xf32>
    %104 = arith.mulf %99, %103 : vector<4x8x16xf32>
    %c0_57 = arith.constant 0 : index
    %c0_58 = arith.constant 0 : index
    %c0_59 = arith.constant 0 : index
    %c0_60 = arith.constant 0 : index
    %105 = vector.load %arg28[%c0_57, %c0_58, %c0_59, %c0_60] : memref<1x4x8x16xf32, #tpu.memory_space<vmem>>, vector<1x4x8x16xf32>
    %106 = vector.shape_cast %105 : vector<1x4x8x16xf32> to vector<4x8x16xf32>
    %107 = vector.shape_cast %104 : vector<4x8x16xf32> to vector<1x4x8x16xf32>
    tpu.vector_store %arg28[%c0_57, %c0_58, %c0_59, %c0_60], %107 {strides = array<i32>} : memref<1x4x8x16xf32, #tpu.memory_space<vmem>>, vector<1x4x8x16xf32>,
    %108 = arith.truncf %104 : vector<4x8x16xf32> to vector<4x8x16xbf16>
    "tpu.trace_start"() <{level = 10 : i32, message = "hts,hsd->htd"}> : () -> ()
    %cst_61 = arith.constant dense<0.000000e+00> : vector<4x8x8xf32>
    %109 = tpu.matmul %108, %88, %cst_61 {dimension_numbers = #tpu.dot_dimension_numbers<[2], [1], [1], [2], [0, 0, 0, 1, 1, 2], [0], [0]>} : vector<4x8x16xbf16>, vector<4x16x8xbf16>, vector<4x8x8xf32> -> vector<4x8x8xf32>
    "tpu.trace_stop"() : () -> ()
    %110 = vector.extract_strided_slice %109 {offsets = [0, 0, 0], sizes = [1, 8, 8], strides = [1, 1, 1]} : vector<4x8x8xf32> to vector<1x8x8xf32>
    %111 = vector.shape_cast %110 : vector<1x8x8xf32> to vector<8x8xf32>
    %112 = vector.extract_strided_slice %109 {offsets = [1, 0, 0], sizes = [1, 8, 8], strides = [1, 1, 1]} : vector<4x8x8xf32> to vector<1x8x8xf32>
    %113 = vector.shape_cast %112 : vector<1x8x8xf32> to vector<8x8xf32>
    %114 = vector.extract_strided_slice %109 {offsets = [2, 0, 0], sizes = [1, 8, 8], strides = [1, 1, 1]} : vector<4x8x8xf32> to vector<1x8x8xf32>
    %115 = vector.shape_cast %114 : vector<1x8x8xf32> to vector<8x8xf32>
    %116 = vector.extract_strided_slice %109 {offsets = [3, 0, 0], sizes = [1, 8, 8], strides = [1, 1, 1]} : vector<4x8x8xf32> to vector<1x8x8xf32>
    %117 = vector.shape_cast %116 : vector<1x8x8xf32> to vector<8x8xf32>
    %118 = tpu.concatenate %111, %113, %115, %117 in 1 : vector<8x8xf32>, vector<8x8xf32>, vector<8x8xf32>, vector<8x8xf32> -> vector<8x32xf32>
    %119 = arith.truncf %118 : vector<8x32xf32> to vector<8x32xbf16>
    %c0_62 = arith.constant 0 : index
    %c0_63 = arith.constant 0 : index
    %120 = vector.load %arg14[%c0_62, %c0_63] : memref<32x32xbf16, #tpu.memory_space<vmem>>, vector<32x32xbf16>
    %cst_64 = arith.constant dense<0.000000e+00> : vector<8x32xf32>
    %121 = tpu.matmul %119, %120, %cst_64 {dimension_numbers = #tpu.dot_dimension_numbers<[1], [0], [0], [1], [0, 0, 1, 1], [], []>} : vector<8x32xbf16>, vector<32x32xbf16>, vector<8x32xf32> -> vector<8x32xf32>
    %c0_65 = arith.constant 0 : index
    %c0_66 = arith.constant 0 : index
    %122 = vector.load %arg15[%c0_65, %c0_66] : memref<1x32xf32, #tpu.memory_space<vmem>>, vector<1x32xf32>
    %123 = vector.broadcast %122 : vector<1x32xf32> to vector<8x32xf32>
    %124 = arith.addf %121, %123 : vector<8x32xf32>
    %125 = arith.addf %68, %124 : vector<8x32xf32>
    %c0_67 = arith.constant 0 : index
    %c0_68 = arith.constant 0 : index
    %126 = vector.load %arg22[%c0_67, %c0_68] : memref<1x32xf32, #tpu.memory_space<vmem>>, vector<1x32xf32>
    %c0_69 = arith.constant 0 : index
    %c0_70 = arith.constant 0 : index
    %127 = vector.load %arg23[%c0_69, %c0_70] : memref<1x32xf32, #tpu.memory_space<vmem>>, vector<1x32xf32>
    %cst_71 = arith.constant dense<0.000000e+00> : vector<8xf32>
    %128 = vector.multi_reduction <add>, %125, %cst_71 [1] : vector<8x32xf32> to vector<8xf32>
    %129 = vector.shape_cast %128 : vector<8xf32> to vector<8x1xf32>
    %cst_72 = arith.constant 3.200000e+01 : f32
    %130 = vector.broadcast %cst_72 : f32 to vector<8x1xf32>
    %131 = arith.divf %129, %130 : vector<8x1xf32>
    %132 = vector.broadcast %131 : vector<8x1xf32> to vector<8x32xf32>
    %133 = arith.subf %125, %132 : vector<8x32xf32>
    %134 = arith.mulf %133, %133 : vector<8x32xf32>
    %cst_73 = arith.constant dense<0.000000e+00> : vector<8xf32>
    %135 = vector.multi_reduction <add>, %134, %cst_73 [1] : vector<8x32xf32> to vector<8xf32>
    %136 = vector.shape_cast %135 : vector<8xf32> to vector<8x1xf32>
    %cst_74 = arith.constant 3.200000e+01 : f32
    %137 = vector.broadcast %cst_74 : f32 to vector<8x1xf32>
    %138 = arith.divf %136, %137 : vector<8x1xf32>
    %139 = vector.broadcast %131 : vector<8x1xf32> to vector<8x32xf32>
    %140 = arith.subf %125, %139 : vector<8x32xf32>
    %cst_75 = arith.constant 9.99999974E-6 : f32
    %141 = vector.broadcast %cst_75 : f32 to vector<8x1xf32>
    %142 = arith.addf %138, %141 : vector<8x1xf32>
    %143 = math.rsqrt %142 : vector<8x1xf32>
    %144 = vector.broadcast %143 : vector<8x1xf32> to vector<8x32xf32>
    %145 = arith.mulf %140, %144 : vector<8x32xf32>
    %146 = vector.broadcast %126 : vector<1x32xf32> to vector<8x32xf32>
    %147 = arith.mulf %145, %146 : vector<8x32xf32>
    %148 = vector.broadcast %127 : vector<1x32xf32> to vector<8x32xf32>
    %149 = arith.addf %147, %148 : vector<8x32xf32>
    %150 = arith.truncf %149 : vector<8x32xf32> to vector<8x32xbf16>
    %c0_76 = arith.constant 0 : index
    %c0_77 = arith.constant 0 : index
    %151 = vector.load %arg16[%c0_76, %c0_77] : memref<32x64xbf16, #tpu.memory_space<vmem>>, vector<32x64xbf16>
    %cst_78 = arith.constant dense<0.000000e+00> : vector<8x64xf32>
    %152 = tpu.matmul %150, %151, %cst_78 {dimension_numbers = #tpu.dot_dimension_numbers<[1], [0], [0], [1], [0, 0, 1, 1], [], []>} : vector<8x32xbf16>, vector<32x64xbf16>, vector<8x64xf32> -> vector<8x64xf32>
    %c0_79 = arith.constant 0 : index
    %c0_80 = arith.constant 0 : index
    %153 = vector.load %arg17[%c0_79, %c0_80] : memref<1x64xf32, #tpu.memory_space<vmem>>, vector<1x64xf32>
    %154 = vector.broadcast %153 : vector<1x64xf32> to vector<8x64xf32>
    %155 = arith.addf %152, %154 : vector<8x64xf32>
    %cst_81 = arith.constant 0.000000e+00 : f32
    %156 = vector.broadcast %cst_81 : f32 to vector<8x64xf32>
    %157 = arith.maximumf %155, %156 : vector<8x64xf32>
    %158 = arith.truncf %157 : vector<8x64xf32> to vector<8x64xbf16>
    %c0_82 = arith.constant 0 : index
    %c0_83 = arith.constant 0 : index
    %159 = vector.load %arg18[%c0_82, %c0_83] : memref<64x32xbf16, #tpu.memory_space<vmem>>, vector<64x32xbf16>
    %cst_84 = arith.constant dense<0.000000e+00> : vector<8x32xf32>
    %160 = tpu.matmul %158, %159, %cst_84 {dimension_numbers = #tpu.dot_dimension_numbers<[1], [0], [0], [1], [0, 0, 1, 1], [], []>} : vector<8x64xbf16>, vector<64x32xbf16>, vector<8x32xf32> -> vector<8x32xf32>
    %c0_85 = arith.constant 0 : index
    %c0_86 = arith.constant 0 : index
    %161 = vector.load %arg19[%c0_85, %c0_86] : memref<1x32xf32, #tpu.memory_space<vmem>>, vector<1x32xf32>
    %162 = vector.broadcast %161 : vector<1x32xf32> to vector<8x32xf32>
    %163 = arith.addf %160, %162 : vector<8x32xf32>
    %164 = arith.addf %149, %163 : vector<8x32xf32>
    %c0_87 = arith.constant 0 : index
    %c0_88 = arith.constant 0 : index
    %165 = vector.load %arg24[%c0_87, %c0_88] : memref<1x32xf32, #tpu.memory_space<vmem>>, vector<1x32xf32>
    %c0_89 = arith.constant 0 : index
    %c0_90 = arith.constant 0 : index
    %166 = vector.load %arg25[%c0_89, %c0_90] : memref<1x32xf32, #tpu.memory_space<vmem>>, vector<1x32xf32>
    %cst_91 = arith.constant dense<0.000000e+00> : vector<8xf32>
    %167 = vector.multi_reduction <add>, %164, %cst_91 [1] : vector<8x32xf32> to vector<8xf32>
    %168 = vector.shape_cast %167 : vector<8xf32> to vector<8x1xf32>
    %cst_92 = arith.constant 3.200000e+01 : f32
    %169 = vector.broadcast %cst_92 : f32 to vector<8x1xf32>
    %170 = arith.divf %168, %169 : vector<8x1xf32>
    %171 = vector.broadcast %170 : vector<8x1xf32> to vector<8x32xf32>
    %172 = arith.subf %164, %171 : vector<8x32xf32>
    %173 = arith.mulf %172, %172 : vector<8x32xf32>
    %cst_93 = arith.constant dense<0.000000e+00> : vector<8xf32>
    %174 = vector.multi_reduction <add>, %173, %cst_93 [1] : vector<8x32xf32> to vector<8xf32>
    %175 = vector.shape_cast %174 : vector<8xf32> to vector<8x1xf32>
    %cst_94 = arith.constant 3.200000e+01 : f32
    %176 = vector.broadcast %cst_94 : f32 to vector<8x1xf32>
    %177 = arith.divf %175, %176 : vector<8x1xf32>
    %178 = vector.broadcast %170 : vector<8x1xf32> to vector<8x32xf32>
    %179 = arith.subf %164, %178 : vector<8x32xf32>
    %cst_95 = arith.constant 9.99999974E-6 : f32
    %180 = vector.broadcast %cst_95 : f32 to vector<8x1xf32>
    %181 = arith.addf %177, %180 : vector<8x1xf32>
    %182 = math.rsqrt %181 : vector<8x1xf32>
    %183 = vector.broadcast %182 : vector<8x1xf32> to vector<8x32xf32>
    %184 = arith.mulf %179, %183 : vector<8x32xf32>
    %185 = vector.broadcast %165 : vector<1x32xf32> to vector<8x32xf32>
    %186 = arith.mulf %184, %185 : vector<8x32xf32>
    %187 = vector.broadcast %166 : vector<1x32xf32> to vector<8x32xf32>
    %188 = arith.addf %186, %187 : vector<8x32xf32>
    %c0_96 = arith.constant 0 : index
    %c0_97 = arith.constant 0 : index
    %c0_98 = arith.constant 0 : index
    %189 = vector.load %arg26[%c0_96, %c0_97, %c0_98] : memref<1x8x32xf32, #tpu.memory_space<vmem>>, vector<1x8x32xf32>
    %190 = vector.shape_cast %189 : vector<1x8x32xf32> to vector<8x32xf32>
    %191 = vector.shape_cast %188 : vector<8x32xf32> to vector<1x8x32xf32>
    tpu.vector_store %arg26[%c0_96, %c0_97, %c0_98], %191 {strides = array<i32>} : memref<1x8x32xf32, #tpu.memory_space<vmem>>, vector<1x8x32xf32>,
    return
  }
  func.func @transform_0(%arg0: i32, %arg1: i32) -> (i32, i32, i32) {
    %c0_i32 = arith.constant 0 : i32
    %c0_i32_0 = arith.constant 0 : i32
    return %arg0, %arg1, %c0_i32 : i32, i32, i32
  }
  func.func @transform_1(%arg0: i32, %arg1: i32) -> (i32, i32, i32, i32) {
    %c0_i32 = arith.constant 0 : i32
    %c0_i32_0 = arith.constant 0 : i32
    %c0_i32_1 = arith.constant 0 : i32
    return %arg0, %c0_i32, %arg1, %c0_i32_0 : i32, i32, i32, i32
  }
  func.func @transform_2(%arg0: i32, %arg1: i32) -> (i32, i32, i32, i32) {
    %c0_i32 = arith.constant 0 : i32
    %c0_i32_0 = arith.constant 0 : i32
    %c0_i32_1 = arith.constant 0 : i32
    %c0_i32_2 = arith.constant 0 : i32
    return %arg0, %c0_i32, %c0_i32_0, %c0_i32_1 : i32, i32, i32, i32
  }
  func.func @transform_3(%arg0: i32, %arg1: i32) -> (i32, i32, i32, i32) {
    %c0_i32 = arith.constant 0 : i32
    %c0_i32_0 = arith.constant 0 : i32
    %c0_i32_1 = arith.constant 0 : i32
    %c0_i32_2 = arith.constant 0 : i32
    return %arg0, %c0_i32, %c0_i32_0, %c0_i32_1 : i32, i32, i32, i32
  }
  func.func @transform_4(%arg0: i32, %arg1: i32) -> (i32, i32, i32, i32) {
    %c0_i32 = arith.constant 0 : i32
    %c0_i32_0 = arith.constant 0 : i32
    %c0_i32_1 = arith.constant 0 : i32
    %c0_i32_2 = arith.constant 0 : i32
    return %arg0, %c0_i32, %c0_i32_0, %c0_i32_1 : i32, i32, i32, i32
  }
  func.func @transform_5(%arg0: i32, %arg1: i32) -> (i32, i32, i32, i32) {
    %c0_i32 = arith.constant 0 : i32
    %c0_i32_0 = arith.constant 0 : i32
    %c0_i32_1 = arith.constant 0 : i32
    %c0_i32_2 = arith.constant 0 : i32
    return %arg0, %c0_i32, %c0_i32_0, %c0_i32_1 : i32, i32, i32, i32
  }
  func.func @transform_6(%arg0: i32, %arg1: i32) -> (i32, i32, i32) {
    %c0_i32 = arith.constant 0 : i32
    %c0_i32_0 = arith.constant 0 : i32
    return %arg0, %arg1, %c0_i32 : i32, i32, i32
  }
  func.func @transform_7(%arg0: i32, %arg1: i32) -> (i32, i32, i32) {
    %c0_i32 = arith.constant 0 : i32
    %c0_i32_0 = arith.constant 0 : i32
    return %arg0, %arg1, %c0_i32 : i32, i32, i32
  }
  func.func @transform_8(%arg0: i32, %arg1: i32) -> (i32, i32) {
    %c0_i32 = arith.constant 0 : i32
    %c0_i32_0 = arith.constant 0 : i32
    %c0_i32_1 = arith.constant 0 : i32
    return %c0_i32, %c0_i32_0 : i32, i32
  }
  func.func @transform_9(%arg0: i32, %arg1: i32) -> (i32, i32) {
    %c0_i32 = arith.constant 0 : i32
    %c0_i32_0 = arith.constant 0 : i32
    %c0_i32_1 = arith.constant 0 : i32
    return %c0_i32, %c0_i32_0 : i32, i32
  }
  func.func @transform_10(%arg0: i32, %arg1: i32) -> (i32, i32) {
    %c0_i32 = arith.constant 0 : i32
    %c0_i32_0 = arith.constant 0 : i32
    %c0_i32_1 = arith.constant 0 : i32
    return %c0_i32, %c0_i32_0 : i32, i32
  }
  func.func @transform_11(%arg0: i32, %arg1: i32) -> (i32, i32) {
    %c0_i32 = arith.constant 0 : i32
    %c0_i32_0 = arith.constant 0 : i32
    %c0_i32_1 = arith.constant 0 : i32
    return %c0_i32, %c0_i32_0 : i32, i32
  }
  func.func @transform_12(%arg0: i32, %arg1: i32) -> (i32, i32) {
    %c0_i32 = arith.constant 0 : i32
    %c0_i32_0 = arith.constant 0 : i32
    %c0_i32_1 = arith.constant 0 : i32
    return %c0_i32, %c0_i32_0 : i32, i32
  }
  func.func @transform_13(%arg0: i32, %arg1: i32) -> (i32, i32) {
    %c0_i32 = arith.constant 0 : i32
    %c0_i32_0 = arith.constant 0 : i32
    %c0_i32_1 = arith.constant 0 : i32
    return %c0_i32, %c0_i32_0 : i32, i32
  }
  func.func @transform_14(%arg0: i32, %arg1: i32) -> (i32, i32) {
    %c0_i32 = arith.constant 0 : i32
    %c0_i32_0 = arith.constant 0 : i32
    %c0_i32_1 = arith.constant 0 : i32
    return %c0_i32, %c0_i32_0 : i32, i32
  }
  func.func @transform_15(%arg0: i32, %arg1: i32) -> (i32, i32) {
    %c0_i32 = arith.constant 0 : i32
    %c0_i32_0 = arith.constant 0 : i32
    %c0_i32_1 = arith.constant 0 : i32
    return %c0_i32, %c0_i32_0 : i32, i32
  }
  func.func @transform_16(%arg0: i32, %arg1: i32) -> (i32, i32) {
    %c0_i32 = arith.constant 0 : i32
    %c0_i32_0 = arith.constant 0 : i32
    %c0_i32_1 = arith.constant 0 : i32
    return %c0_i32, %c0_i32_0 : i32, i32
  }
  func.func @transform_17(%arg0: i32, %arg1: i32) -> (i32, i32) {
    %c0_i32 = arith.constant 0 : i32
    %c0_i32_0 = arith.constant 0 : i32
    %c0_i32_1 = arith.constant 0 : i32
    return %c0_i32, %c0_i32_0 : i32, i32
  }
  func.func @transform_18(%arg0: i32, %arg1: i32) -> (i32, i32) {
    %c0_i32 = arith.constant 0 : i32
    %c0_i32_0 = arith.constant 0 : i32
    %c0_i32_1 = arith.constant 0 : i32
    return %c0_i32, %c0_i32_0 : i32, i32
  }
  func.func @transform_19(%arg0: i32, %arg1: i32) -> (i32, i32) {
    %c0_i32 = arith.constant 0 : i32
    %c0_i32_0 = arith.constant 0 : i32
    %c0_i32_1 = arith.constant 0 : i32
    return %c0_i32, %c0_i32_0 : i32, i32
  }
  func.func @transform_20(%arg0: i32, %arg1: i32) -> (i32, i32) {
    %c0_i32 = arith.constant 0 : i32
    %c0_i32_0 = arith.constant 0 : i32
    %c0_i32_1 = arith.constant 0 : i32
    return %c0_i32, %c0_i32_0 : i32, i32
  }
  func.func @transform_21(%arg0: i32, %arg1: i32) -> (i32, i32) {
    %c0_i32 = arith.constant 0 : i32
    %c0_i32_0 = arith.constant 0 : i32
    %c0_i32_1 = arith.constant 0 : i32
    return %c0_i32, %c0_i32_0 : i32, i32
  }
  func.func @transform_22(%arg0: i32, %arg1: i32) -> (i32, i32) {
    %c0_i32 = arith.constant 0 : i32
    %c0_i32_0 = arith.constant 0 : i32
    %c0_i32_1 = arith.constant 0 : i32
    return %c0_i32, %c0_i32_0 : i32, i32
  }
  func.func @transform_23(%arg0: i32, %arg1: i32) -> (i32, i32) {
    %c0_i32 = arith.constant 0 : i32
    %c0_i32_0 = arith.constant 0 : i32
    %c0_i32_1 = arith.constant 0 : i32
    return %c0_i32, %c0_i32_0 : i32, i32
  }
  func.func @transform_24(%arg0: i32, %arg1: i32) -> (i32, i32, i32) {
    %c0_i32 = arith.constant 0 : i32
    %c0_i32_0 = arith.constant 0 : i32
    return %arg0, %arg1, %c0_i32 : i32, i32, i32
  }
  func.func @transform_25(%arg0: i32, %arg1: i32) -> (i32, i32, i32, i32) {
    %c0_i32 = arith.constant 0 : i32
    %c0_i32_0 = arith.constant 0 : i32
    %c0_i32_1 = arith.constant 0 : i32
    return %arg0, %c0_i32, %arg1, %c0_i32_0 : i32, i32, i32, i32
  }
  func.func @transform_26(%arg0: i32, %arg1: i32) -> (i32, i32, i32, i32) {
    %c0_i32 = arith.constant 0 : i32
    %c0_i32_0 = arith.constant 0 : i32
    %c0_i32_1 = arith.constant 0 : i32
    return %arg0, %c0_i32, %arg1, %c0_i32_0 : i32, i32, i32, i32
  }
}

module attributes {stable_mosaic.version = 11 : i64} {
  func.func @decoder_layer_kernel(%arg0: i32, %arg1: i32, %arg2: memref<1x8x32xf32, #tpu.memory_space<vmem>>, %arg3: memref<1x4x8x8xbf16, #tpu.memory_space<vmem>>, %arg4: memref<1x4x8x8xbf16, #tpu.memory_space<vmem>>, %arg5: memref<1x4x8x8xbf16, #tpu.memory_space<vmem>>, %arg6: memref<1x4x8x16xbf16, #tpu.memory_space<vmem>>, %arg7: memref<1x4x16x8xbf16, #tpu.memory_space<vmem>>, %arg8: memref<1x8x8xf32, #tpu.memory_space<vmem>>, %arg9: memref<1x8x16xf32, #tpu.memory_space<vmem>>, %arg10: memref<32x32xbf16, #tpu.memory_space<vmem>>, %arg11: memref<1x32xf32, #tpu.memory_space<vmem>>, %arg12: memref<32x32xbf16, #tpu.memory_space<vmem>>, %arg13: memref<1x32xf32, #tpu.memory_space<vmem>>, %arg14: memref<32x32xbf16, #tpu.memory_space<vmem>>, %arg15: memref<1x32xf32, #tpu.memory_space<vmem>>, %arg16: memref<32x64xbf16, #tpu.memory_space<vmem>>, %arg17: memref<1x64xf32, #tpu.memory_space<vmem>>, %arg18: memref<64x32xbf16, #tpu.memory_space<vmem>>, %arg19: memref<1x32xf32, #tpu.memory_space<vmem>>, %arg20: memref<1x32xf32, #tpu.memory_space<vmem>>, %arg21: memref<1x32xf32, #tpu.memory_space<vmem>>, %arg22: memref<1x32xf32, #tpu.memory_space<vmem>>, %arg23: memref<1x32xf32, #tpu.memory_space<vmem>>, %arg24: memref<1x32xf32, #tpu.memory_space<vmem>>, %arg25: memref<1x32xf32, #tpu.memory_space<vmem>>, %arg26: memref<1x8x32xf32, #tpu.memory_space<vmem>>, %arg27: memref<1x4x8x8xf32, #tpu.memory_space<vmem>>, %arg28: memref<1x4x8x16xf32, #tpu.memory_space<vmem>>) attributes {dimension_semantics = [#tpu.dimension_semantics<parallel>, #tpu.dimension_semantics<parallel>], iteration_bounds = array<i64: 2, 1>, scalar_prefetch = 0 : i64, scratch_operands = 0 : i64, tpu.core_type = #tpu.core_type<tc>, window_params = [{transform_indices = @transform_0, window_bounds = array<i64: 1, 8, 32>}, {transform_indices = @transform_1, window_bounds = array<i64: 1, 4, 8, 8>}, {transform_indices = @transform_2, window_bounds = array<i64: 1, 4, 8, 8>}, {transform_indices = @transform_3, window_bounds = array<i64: 1, 4, 8, 8>}, {transform_indices = @transform_4, window_bounds = array<i64: 1, 4, 8, 16>}, {transform_indices = @transform_5, window_bounds = array<i64: 1, 4, 16, 8>}, {transform_indices = @transform_6, window_bounds = array<i64: 1, 8, 8>}, {transform_indices = @transform_7, window_bounds = array<i64: 1, 8, 16>}, {pipeline_mode = #tpu.pipeline_mode<synchronous>, transform_indices = @transform_8, window_bounds = array<i64: 32, 32>}, {pipeline_mode = #tpu.pipeline_mode<synchronous>, transform_indices = @transform_9, window_bounds = array<i64: 1, 32>}, {pipeline_mode = #tpu.pipeline_mode<synchronous>, transform_indices = @transform_10, window_bounds = array<i64: 32, 32>}, {pipeline_mode = #tpu.pipeline_mode<synchronous>, transform_indices = @transform_11, window_bounds = array<i64: 1, 32>}, {pipeline_mode = #tpu.pipeline_mode<synchronous>, transform_indices = @transform_12, window_bounds = array<i64: 32, 32>}, {pipeline_mode = #tpu.pipeline_mode<synchronous>, transform_indices = @transform_13, window_bounds = array<i64: 1, 32>}, {pipeline_mode = #tpu.pipeline_mode<synchronous>, transform_indices = @transform_14, window_bounds = array<i64: 32, 64>}, {pipeline_mode = #tpu.pipeline_mode<synchronous>, transform_indices = @transform_15, window_bounds = array<i64: 1, 64>}, {pipeline_mode = #tpu.pipeline_mode<synchronous>, transform_indices = @transform_16, window_bounds = array<i64: 64, 32>}, {pipeline_mode = #tpu.pipeline_mode<synchronous>, transform_indices = @transform_17, window_bounds = array<i64: 1, 32>}, {pipeline_mode = #tpu.pipeline_mode<synchronous>, transform_indices = @transform_18, window_bounds = array<i64: 1, 32>}, {pipeline_mode = #tpu.pipeline_mode<synchronous>, transform_indices = @transform_19, window_bounds = array<i64: 1, 32>}, {pipeline_mode = #tpu.pipeline_mode<synchronous>, transform_indices = @transform_20, window_bounds = array<i64: 1, 32>}, {pipeline_mode = #tpu.pipeline_mode<synchronous>, transform_indices = @transform_21, window_bounds = array<i64: 1, 32>}, {pipeline_mode = #tpu.pipeline_mode<synchronous>, transform_indices = @transform_22, window_bounds = array<i64: 1, 32>}, {pipeline_mode = #tpu.pipeline_mode<synchronous>, transform_indices = @transform_23, window_bounds = array<i64: 1, 32>}, {transform_indices = @transform_24, window_bounds = array<i64: 1, 8, 32>}, {transform_indices = @transform_25, window_bounds = array<i64: 1, 4, 8, 8>}, {transform_indices = @transform_26, window_bounds = array<i64: 1, 4, 8, 16>}]} {
    %c0 = arith.constant 0 : index
    %c0_0 = arith.constant 0 : index
    %c0_1 = arith.constant 0 : index
    %0 = vector.load %arg2[%c0, %c0_0, %c0_1] : memref<1x8x32xf32, #tpu.memory_space<vmem>>, vector<1x8x32xf32>
    %1 = vector.shape_cast %0 : vector<1x8x32xf32> to vector<8x32xf32>
    %c0_2 = arith.constant 0 : index
    %c0_3 = arith.constant 0 : index
    %c0_4 = arith.constant 0 : index
    %c0_5 = arith.constant 0 : index
    %2 = vector.load %arg3[%c0_2, %c0_3, %c0_4, %c0_5] : memref<1x4x8x8xbf16, #tpu.memory_space<vmem>>, vector<1x4x8x8xbf16>
    %3 = vector.shape_cast %2 : vector<1x4x8x8xbf16> to vector<4x8x8xbf16>
    %c0_6 = arith.constant 0 : index
    %c0_7 = arith.constant 0 : index
    %c0_8 = arith.constant 0 : index
    %c0_9 = arith.constant 0 : index
    %4 = vector.load %arg4[%c0_6, %c0_7, %c0_8, %c0_9] : memref<1x4x8x8xbf16, #tpu.memory_space<vmem>>, vector<1x4x8x8xbf16>
    %5 = vector.shape_cast %4 : vector<1x4x8x8xbf16> to vector<4x8x8xbf16>
    %c0_10 = arith.constant 0 : index
    %c0_11 = arith.constant 0 : index
    %c0_12 = arith.constant 0 : index
    %c0_13 = arith.constant 0 : index
    %6 = vector.load %arg5[%c0_10, %c0_11, %c0_12, %c0_13] : memref<1x4x8x8xbf16, #tpu.memory_space<vmem>>, vector<1x4x8x8xbf16>
    %7 = vector.shape_cast %6 : vector<1x4x8x8xbf16> to vector<4x8x8xbf16>
    %c0_14 = arith.constant 0 : index
    %c0_15 = arith.constant 0 : index
    %c0_16 = arith.constant 0 : index
    %8 = vector.load %arg8[%c0_14, %c0_15, %c0_16] : memref<1x8x8xf32, #tpu.memory_space<vmem>>, vector<1x8x8xf32>
    %9 = vector.shape_cast %8 : vector<1x8x8xf32> to vector<8x8xf32>
    "tpu.trace_start"() <{level = 10 : i32, message = "htd,hds->hts"}> : () -> ()
    %cst = arith.constant dense<0.000000e+00> : vector<4x8x8xf32>
    %10 = tpu.matmul %3, %5, %cst {dimension_numbers = #tpu.dot_dimension_numbers<[2], [1], [1], [2], [0, 0, 0, 1, 1, 2], [0], [0]>} : vector<4x8x8xbf16>, vector<4x8x8xbf16>, vector<4x8x8xf32> -> vector<4x8x8xf32>
    "tpu.trace_stop"() : () -> ()
    %11 = vector.shape_cast %9 : vector<8x8xf32> to vector<1x8x8xf32>
    %12 = vector.broadcast %11 : vector<1x8x8xf32> to vector<4x8x8xf32>
    %13 = arith.addf %10, %12 : vector<4x8x8xf32>
    %cst_17 = arith.constant dense<0xFF800000> : vector<4x8xf32>
    %14 = vector.multi_reduction <maximumf>, %13, %cst_17 [2] : vector<4x8x8xf32> to vector<4x8xf32>
    %15 = vector.shape_cast %14 : vector<4x8xf32> to vector<4x8x1xf32>
    %16 = vector.broadcast %15 : vector<4x8x1xf32> to vector<4x8x8xf32>
    %17 = arith.subf %13, %16 : vector<4x8x8xf32>
    %18 = math.exp %17 : vector<4x8x8xf32>
    %cst_18 = arith.constant dense<0.000000e+00> : vector<4x8xf32>
    %19 = vector.multi_reduction <add>, %18, %cst_18 [2] : vector<4x8x8xf32> to vector<4x8xf32>
    %20 = vector.shape_cast %19 : vector<4x8xf32> to vector<4x8x1xf32>
    %21 = tpu.reciprocal %20 : vector<4x8x1xf32> -> vector<4x8x1xf32>
    %22 = vector.broadcast %21 : vector<4x8x1xf32> to vector<4x8x8xf32>
    %23 = arith.mulf %18, %22 : vector<4x8x8xf32>
    %c0_19 = arith.constant 0 : index
    %c0_20 = arith.constant 0 : index
    %c0_21 = arith.constant 0 : index
    %c0_22 = arith.constant 0 : index
    %24 = vector.load %arg27[%c0_19, %c0_20, %c0_21, %c0_22] : memref<1x4x8x8xf32, #tpu.memory_space<vmem>>, vector<1x4x8x8xf32>
    %25 = vector.shape_cast %24 : vector<1x4x8x8xf32> to vector<4x8x8xf32>
    %26 = vector.shape_cast %23 : vector<4x8x8xf32> to vector<1x4x8x8xf32>
    tpu.vector_store %arg27[%c0_19, %c0_20, %c0_21, %c0_22], %26 {strides = array<i32>} : memref<1x4x8x8xf32, #tpu.memory_space<vmem>>, vector<1x4x8x8xf32>,
    %27 = arith.truncf %23 : vector<4x8x8xf32> to vector<4x8x8xbf16>
    "tpu.trace_start"() <{level = 10 : i32, message = "hts,hsd->htd"}> : () -> ()
    %cst_23 = arith.constant dense<0.000000e+00> : vector<4x8x8xf32>
    %28 = tpu.matmul %27, %7, %cst_23 {dimension_numbers = #tpu.dot_dimension_numbers<[2], [1], [1], [2], [0, 0, 0, 1, 1, 2], [0], [0]>} : vector<4x8x8xbf16>, vector<4x8x8xbf16>, vector<4x8x8xf32> -> vector<4x8x8xf32>
    "tpu.trace_stop"() : () -> ()
    %29 = vector.extract_strided_slice %28 {offsets = [0, 0, 0], sizes = [1, 8, 8], strides = [1, 1, 1]} : vector<4x8x8xf32> to vector<1x8x8xf32>
    %30 = vector.shape_cast %29 : vector<1x8x8xf32> to vector<8x8xf32>
    %31 = vector.extract_strided_slice %28 {offsets = [1, 0, 0], sizes = [1, 8, 8], strides = [1, 1, 1]} : vector<4x8x8xf32> to vector<1x8x8xf32>
    %32 = vector.shape_cast %31 : vector<1x8x8xf32> to vector<8x8xf32>
    %33 = vector.extract_strided_slice %28 {offsets = [2, 0, 0], sizes = [1, 8, 8], strides = [1, 1, 1]} : vector<4x8x8xf32> to vector<1x8x8xf32>
    %34 = vector.shape_cast %33 : vector<1x8x8xf32> to vector<8x8xf32>
    %35 = vector.extract_strided_slice %28 {offsets = [3, 0, 0], sizes = [1, 8, 8], strides = [1, 1, 1]} : vector<4x8x8xf32> to vector<1x8x8xf32>
    %36 = vector.shape_cast %35 : vector<1x8x8xf32> to vector<8x8xf32>
    %37 = tpu.concatenate %30, %32, %34, %36 in 1 : vector<8x8xf32>, vector<8x8xf32>, vector<8x8xf32>, vector<8x8xf32> -> vector<8x32xf32>
    %38 = arith.truncf %37 : vector<8x32xf32> to vector<8x32xbf16>
    %c0_24 = arith.constant 0 : index
    %c0_25 = arith.constant 0 : index
    %39 = vector.load %arg10[%c0_24, %c0_25] : memref<32x32xbf16, #tpu.memory_space<vmem>>, vector<32x32xbf16>
    %cst_26 = arith.constant dense<0.000000e+00> : vector<8x32xf32>
    %40 = tpu.matmul %38, %39, %cst_26 {dimension_numbers = #tpu.dot_dimension_numbers<[1], [0], [0], [1], [0, 0, 1, 1], [], []>} : vector<8x32xbf16>, vector<32x32xbf16>, vector<8x32xf32> -> vector<8x32xf32>
    %c0_27 = arith.constant 0 : index
    %c0_28 = arith.constant 0 : index
    %41 = vector.load %arg11[%c0_27, %c0_28] : memref<1x32xf32, #tpu.memory_space<vmem>>, vector<1x32xf32>
    %42 = vector.broadcast %41 : vector<1x32xf32> to vector<8x32xf32>
    %43 = arith.addf %40, %42 : vector<8x32xf32>
    %44 = arith.addf %1, %43 : vector<8x32xf32>
    %c0_29 = arith.constant 0 : index
    %c0_30 = arith.constant 0 : index
    %45 = vector.load %arg20[%c0_29, %c0_30] : memref<1x32xf32, #tpu.memory_space<vmem>>, vector<1x32xf32>
    %c0_31 = arith.constant 0 : index
    %c0_32 = arith.constant 0 : index
    %46 = vector.load %arg21[%c0_31, %c0_32] : memref<1x32xf32, #tpu.memory_space<vmem>>, vector<1x32xf32>
    %cst_33 = arith.constant dense<0.000000e+00> : vector<8xf32>
    %47 = vector.multi_reduction <add>, %44, %cst_33 [1] : vector<8x32xf32> to vector<8xf32>
    %48 = vector.shape_cast %47 : vector<8xf32> to vector<8x1xf32>
    %cst_34 = arith.constant 3.200000e+01 : f32
    %49 = vector.broadcast %cst_34 : f32 to vector<8x1xf32>
    %50 = arith.divf %48, %49 : vector<8x1xf32>
    %51 = vector.broadcast %50 : vector<8x1xf32> to vector<8x32xf32>
    %52 = arith.subf %44, %51 : vector<8x32xf32>
    %53 = arith.mulf %52, %52 : vector<8x32xf32>
    %cst_35 = arith.constant dense<0.000000e+00> : vector<8xf32>
    %54 = vector.multi_reduction <add>, %53, %cst_35 [1] : vector<8x32xf32> to vector<8xf32>
    %55 = vector.shape_cast %54 : vector<8xf32> to vector<8x1xf32>
    %cst_36 = arith.constant 3.200000e+01 : f32
    %56 = vector.broadcast %cst_36 : f32 to vector<8x1xf32>
    %57 = arith.divf %55, %56 : vector<8x1xf32>
    %58 = vector.broadcast %50 : vector<8x1xf32> to vector<8x32xf32>
    %59 = arith.subf %44, %58 : vector<8x32xf32>
    %cst_37 = arith.constant 9.99999974E-6 : f32
    %60 = vector.broadcast %cst_37 : f32 to vector<8x1xf32>
    %61 = arith.addf %57, %60 : vector<8x1xf32>
    %62 = math.rsqrt %61 : vector<8x1xf32>
    %63 = vector.broadcast %62 : vector<8x1xf32> to vector<8x32xf32>
    %64 = arith.mulf %59, %63 : vector<8x32xf32>
    %65 = vector.broadcast %45 : vector<1x32xf32> to vector<8x32xf32>
    %66 = arith.mulf %64, %65 : vector<8x32xf32>
    %67 = vector.broadcast %46 : vector<1x32xf32> to vector<8x32xf32>
    %68 = arith.addf %66, %67 : vector<8x32xf32>
    %69 = arith.truncf %68 : vector<8x32xf32> to vector<8x32xbf16>
    %c0_38 = arith.constant 0 : index
    %c0_39 = arith.constant 0 : index
    %70 = vector.load %arg12[%c0_38, %c0_39] : memref<32x32xbf16, #tpu.memory_space<vmem>>, vector<32x32xbf16>
    %cst_40 = arith.constant dense<0.000000e+00> : vector<8x32xf32>
    %71 = tpu.matmul %69, %70, %cst_40 {dimension_numbers = #tpu.dot_dimension_numbers<[1], [0], [0], [1], [0, 0, 1, 1], [], []>} : vector<8x32xbf16>, vector<32x32xbf16>, vector<8x32xf32> -> vector<8x32xf32>
    %c0_41 = arith.constant 0 : index
    %c0_42 = arith.constant 0 : index
    %72 = vector.load %arg13[%c0_41, %c0_42] : memref<1x32xf32, #tpu.memory_space<vmem>>, vector<1x32xf32>
    %73 = vector.broadcast %72 : vector<1x32xf32> to vector<8x32xf32>
    %74 = arith.addf %71, %73 : vector<8x32xf32>
    %75 = vector.extract_strided_slice %74 {offsets = [0, 0], sizes = [8, 8], strides = [1, 1]} : vector<8x32xf32> to vector<8x8xf32>
    %76 = vector.extract_strided_slice %74 {offsets = [0, 8], sizes = [8, 8], strides = [1, 1]} : vector<8x32xf32> to vector<8x8xf32>
    %77 = vector.extract_strided_slice %74 {offsets = [0, 16], sizes = [8, 8], strides = [1, 1]} : vector<8x32xf32> to vector<8x8xf32>
    %78 = vector.extract_strided_slice %74 {offsets = [0, 24], sizes = [8, 8], strides = [1, 1]} : vector<8x32xf32> to vector<8x8xf32>
    %79 = vector.shape_cast %75 : vector<8x8xf32> to vector<1x8x8xf32>
    %80 = vector.shape_cast %76 : vector<8x8xf32> to vector<1x8x8xf32>
    %81 = vector.shape_cast %77 : vector<8x8xf32> to vector<1x8x8xf32>
    %82 = vector.shape_cast %78 : vector<8x8xf32> to vector<1x8x8xf32>
    %83 = tpu.concatenate %79, %80, %81, %82 in 0 : vector<1x8x8xf32>, vector<1x8x8xf32>, vector<1x8x8xf32>, vector<1x8x8xf32> -> vector<4x8x8xf32>
    %84 = arith.truncf %83 : vector<4x8x8xf32> to vector<4x8x8xbf16>
    %c0_43 = arith.constant 0 : index
    %c0_44 = arith.constant 0 : index
    %c0_45 = arith.constant 0 : index
    %c0_46 = arith.constant 0 : index
    %85 = vector.load %arg6[%c0_43, %c0_44, %c0_45, %c0_46] : memref<1x4x8x16xbf16, #tpu.memory_space<vmem>>, vector<1x4x8x16xbf16>
    %86 = vector.shape_cast %85 : vector<1x4x8x16xbf16> to vector<4x8x16xbf16>
    %c0_47 = arith.constant 0 : index
    %c0_48 = arith.constant 0 : index
    %c0_49 = arith.constant 0 : index
    %c0_50 = arith.constant 0 : index
    %87 = vector.load %arg7[%c0_47, %c0_48, %c0_49, %c0_50] : memref<1x4x16x8xbf16, #tpu.memory_space<vmem>>, vector<1x4x16x8xbf16>
    %88 = vector.shape_cast %87 : vector<1x4x16x8xbf16> to vector<4x16x8xbf16>
    %c0_51 = arith.constant 0 : index
    %c0_52 = arith.constant 0 : index
    %c0_53 = arith.constant 0 : index
    %89 = vector.load %arg9[%c0_51, %c0_52, %c0_53] : memref<1x8x16xf32, #tpu.memory_space<vmem>>, vector<1x8x16xf32>
    %90 = vector.shape_cast %89 : vector<1x8x16xf32> to vector<8x16xf32>
    "tpu.trace_start"() <{level = 10 : i32, message = "htd,hds->hts"}> : () -> ()
    %cst_54 = arith.constant dense<0.000000e+00> : vector<4x8x16xf32>
    %91 = tpu.matmul %84, %86, %cst_54 {dimension_numbers = #tpu.dot_dimension_numbers<[2], [1], [1], [2], [0, 0, 0, 1, 1, 2], [0], [0]>} : vector<4x8x8xbf16>, vector<4x8x16xbf16>, vector<4x8x16xf32> -> vector<4x8x16xf32>
    "tpu.trace_stop"() : () -> ()
    %92 = vector.shape_cast %90 : vector<8x16xf32> to vector<1x8x16xf32>
    %93 = vector.broadcast %92 : vector<1x8x16xf32> to vector<4x8x16xf32>
    %94 = arith.addf %91, %93 : vector<4x8x16xf32>
    %cst_55 = arith.constant dense<0xFF800000> : vector<4x8xf32>
    %95 = vector.multi_reduction <maximumf>, %94, %cst_55 [2] : vector<4x8x16xf32> to vector<4x8xf32>
    %96 = vector.shape_cast %95 : vector<4x8xf32> to vector<4x8x1xf32>
    %97 = vector.broadcast %96 : vector<4x8x1xf32> to vector<4x8x16xf32>
    %98 = arith.subf %94, %97 : vector<4x8x16xf32>
    %99 = math.exp %98 : vector<4x8x16xf32>
    %cst_56 = arith.constant dense<0.000000e+00> : vector<4x8xf32>
    %100 = vector.multi_reduction <add>, %99, %cst_56 [2] : vector<4x8x16xf32> to vector<4x8xf32>
    %101 = vector.shape_cast %100 : vector<4x8xf32> to vector<4x8x1xf32>
    %102 = tpu.reciprocal %101 : vector<4x8x1xf32> -> vector<4x8x1xf32>
    %103 = vector.broadcast %102 : vector<4x8x1xf32> to vector<4x8x16xf32>
    %104 = arith.mulf %99, %103 : vector<4x8x16xf32>
    %c0_57 = arith.constant 0 : index
    %c0_58 = arith.constant 0 : index
    %c0_59 = arith.constant 0 : index
    %c0_60 = arith.constant 0 : index
    %105 = vector.load %arg28[%c0_57, %c0_58, %c0_59, %c0_60] : memref<1x4x8x16xf32, #tpu.memory_space<vmem>>, vector<1x4x8x16xf32>
    %106 = vector.shape_cast %105 : vector<1x4x8x16xf32> to vector<4x8x16xf32>
    %107 = vector.shape_cast %104 : vector<4x8x16xf32> to vector<1x4x8x16xf32>
    tpu.vector_store %arg28[%c0_57, %c0_58, %c0_59, %c0_60], %107 {strides = array<i32>} : memref<1x4x8x16xf32, #tpu.memory_space<vmem>>, vector<1x4x8x16xf32>,
    %108 = arith.truncf %104 : vector<4x8x16xf32> to vector<4x8x16xbf16>
    "tpu.trace_start"() <{level = 10 : i32, message = "hts,hsd->htd"}> : () -> ()
    %cst_61 = arith.constant dense<0.000000e+00> : vector<4x8x8xf32>
    %109 = tpu.matmul %108, %88, %cst_61 {dimension_numbers = #tpu.dot_dimension_numbers<[2], [1], [1], [2], [0, 0, 0, 1, 1, 2], [0], [0]>} : vector<4x8x16xbf16>, vector<4x16x8xbf16>, vector<4x8x8xf32> -> vector<4x8x8xf32>
    "tpu.trace_stop"() : () -> ()
    %110 = vector.extract_strided_slice %109 {offsets = [0, 0, 0], sizes = [1, 8, 8], strides = [1, 1, 1]} : vector<4x8x8xf32> to vector<1x8x8xf32>
    %111 = vector.shape_cast %110 : vector<1x8x8xf32> to vector<8x8xf32>
    %112 = vector.extract_strided_slice %109 {offsets = [1, 0, 0], sizes = [1, 8, 8], strides = [1, 1, 1]} : vector<4x8x8xf32> to vector<1x8x8xf32>
    %113 = vector.shape_cast %112 : vector<1x8x8xf32> to vector<8x8xf32>
    %114 = vector.extract_strided_slice %109 {offsets = [2, 0, 0], sizes = [1, 8, 8], strides = [1, 1, 1]} : vector<4x8x8xf32> to vector<1x8x8xf32>
    %115 = vector.shape_cast %114 : vector<1x8x8xf32> to vector<8x8xf32>
    %116 = vector.extract_strided_slice %109 {offsets = [3, 0, 0], sizes = [1, 8, 8], strides = [1, 1, 1]} : vector<4x8x8xf32> to vector<1x8x8xf32>
    %117 = vector.shape_cast %116 : vector<1x8x8xf32> to vector<8x8xf32>
    %118 = tpu.concatenate %111, %113, %115, %117 in 1 : vector<8x8xf32>, vector<8x8xf32>, vector<8x8xf32>, vector<8x8xf32> -> vector<8x32xf32>
    %119 = arith.truncf %118 : vector<8x32xf32> to vector<8x32xbf16>
    %c0_62 = arith.constant 0 : index
    %c0_63 = arith.constant 0 : index
    %120 = vector.load %arg14[%c0_62, %c0_63] : memref<32x32xbf16, #tpu.memory_space<vmem>>, vector<32x32xbf16>
    %cst_64 = arith.constant dense<0.000000e+00> : vector<8x32xf32>
    %121 = tpu.matmul %119, %120, %cst_64 {dimension_numbers = #tpu.dot_dimension_numbers<[1], [0], [0], [1], [0, 0, 1, 1], [], []>} : vector<8x32xbf16>, vector<32x32xbf16>, vector<8x32xf32> -> vector<8x32xf32>
    %c0_65 = arith.constant 0 : index
    %c0_66 = arith.constant 0 : index
    %122 = vector.load %arg15[%c0_65, %c0_66] : memref<1x32xf32, #tpu.memory_space<vmem>>, vector<1x32xf32>
    %123 = vector.broadcast %122 : vector<1x32xf32> to vector<8x32xf32>
    %124 = arith.addf %121, %123 : vector<8x32xf32>
    %125 = arith.addf %68, %124 : vector<8x32xf32>
    %c0_67 = arith.constant 0 : index
    %c0_68 = arith.constant 0 : index
    %126 = vector.load %arg22[%c0_67, %c0_68] : memref<1x32xf32, #tpu.memory_space<vmem>>, vector<1x32xf32>
    %c0_69 = arith.constant 0 : index
    %c0_70 = arith.constant 0 : index
    %127 = vector.load %arg23[%c0_69, %c0_70] : memref<1x32xf32, #tpu.memory_space<vmem>>, vector<1x32xf32>
    %cst_71 = arith.constant dense<0.000000e+00> : vector<8xf32>
    %128 = vector.multi_reduction <add>, %125, %cst_71 [1] : vector<8x32xf32> to vector<8xf32>
    %129 = vector.shape_cast %128 : vector<8xf32> to vector<8x1xf32>
    %cst_72 = arith.constant 3.200000e+01 : f32
    %130 = vector.broadcast %cst_72 : f32 to vector<8x1xf32>
    %131 = arith.divf %129, %130 : vector<8x1xf32>
    %132 = vector.broadcast %131 : vector<8x1xf32> to vector<8x32xf32>
    %133 = arith.subf %125, %132 : vector<8x32xf32>
    %134 = arith.mulf %133, %133 : vector<8x32xf32>
    %cst_73 = arith.constant dense<0.000000e+00> : vector<8xf32>
    %135 = vector.multi_reduction <add>, %134, %cst_73 [1] : vector<8x32xf32> to vector<8xf32>
    %136 = vector.shape_cast %135 : vector<8xf32> to vector<8x1xf32>
    %cst_74 = arith.constant 3.200000e+01 : f32
    %137 = vector.broadcast %cst_74 : f32 to vector<8x1xf32>
    %138 = arith.divf %136, %137 : vector<8x1xf32>
    %139 = vector.broadcast %131 : vector<8x1xf32> to vector<8x32xf32>
    %140 = arith.subf %125, %139 : vector<8x32xf32>
    %cst_75 = arith.constant 9.99999974E-6 : f32
    %141 = vector.broadcast %cst_75 : f32 to vector<8x1xf32>
    %142 = arith.addf %138, %141 : vector<8x1xf32>
    %143 = math.rsqrt %142 : vector<8x1xf32>
    %144 = vector.broadcast %143 : vector<8x1xf32> to vector<8x32xf32>
    %145 = arith.mulf %140, %144 : vector<8x32xf32>
    %146 = vector.broadcast %126 : vector<1x32xf32> to vector<8x32xf32>
    %147 = arith.mulf %145, %146 : vector<8x32xf32>
    %148 = vector.broadcast %127 : vector<1x32xf32> to vector<8x32xf32>
    %149 = arith.addf %147, %148 : vector<8x32xf32>
    %150 = arith.truncf %149 : vector<8x32xf32> to vector<8x32xbf16>
    %c0_76 = arith.constant 0 : index
    %c0_77 = arith.constant 0 : index
    %151 = vector.load %arg16[%c0_76, %c0_77] : memref<32x64xbf16, #tpu.memory_space<vmem>>, vector<32x64xbf16>
    %cst_78 = arith.constant dense<0.000000e+00> : vector<8x64xf32>
    %152 = tpu.matmul %150, %151, %cst_78 {dimension_numbers = #tpu.dot_dimension_numbers<[1], [0], [0], [1], [0, 0, 1, 1], [], []>} : vector<8x32xbf16>, vector<32x64xbf16>, vector<8x64xf32> -> vector<8x64xf32>
    %c0_79 = arith.constant 0 : index
    %c0_80 = arith.constant 0 : index
    %153 = vector.load %arg17[%c0_79, %c0_80] : memref<1x64xf32, #tpu.memory_space<vmem>>, vector<1x64xf32>
    %154 = vector.broadcast %153 : vector<1x64xf32> to vector<8x64xf32>
    %155 = arith.addf %152, %154 : vector<8x64xf32>
    %cst_81 = arith.constant 0.000000e+00 : f32
    %156 = vector.broadcast %cst_81 : f32 to vector<8x64xf32>
    %157 = arith.maximumf %155, %156 : vector<8x64xf32>
    %158 = arith.truncf %157 : vector<8x64xf32> to vector<8x64xbf16>
    %c0_82 = arith.constant 0 : index
    %c0_83 = arith.constant 0 : index
    %159 = vector.load %arg18[%c0_82, %c0_83] : memref<64x32xbf16, #tpu.memory_space<vmem>>, vector<64x32xbf16>
    %cst_84 = arith.constant dense<0.000000e+00> : vector<8x32xf32>
    %160 = tpu.matmul %158, %159, %cst_84 {dimension_numbers = #tpu.dot_dimension_numbers<[1], [0], [0], [1], [0, 0, 1, 1], [], []>} : vector<8x64xbf16>, vector<64x32xbf16>, vector<8x32xf32> -> vector<8x32xf32>
    %c0_85 = arith.constant 0 : index
    %c0_86 = arith.constant 0 : index
    %161 = vector.load %arg19[%c0_85, %c0_86] : memref<1x32xf32, #tpu.memory_space<vmem>>, vector<1x32xf32>
    %162 = vector.broadcast %161 : vector<1x32xf32> to vector<8x32xf32>
    %163 = arith.addf %160, %162 : vector<8x32xf32>
    %164 = arith.addf %149, %163 : vector<8x32xf32>
    %c0_87 = arith.constant 0 : index
    %c0_88 = arith.constant 0 : index
    %165 = vector.load %arg24[%c0_87, %c0_88] : memref<1x32xf32, #tpu.memory_space<vmem>>, vector<1x32xf32>
    %c0_89 = arith.constant 0 : index
    %c0_90 = arith.constant 0 : index
    %166 = vector.load %arg25[%c0_89, %c0_90] : memref<1x32xf32, #tpu.memory_space<vmem>>, vector<1x32xf32>
    %cst_91 = arith.constant dense<0.000000e+00> : vector<8xf32>
    %167 = vector.multi_reduction <add>, %164, %cst_91 [1] : vector<8x32xf32> to vector<8xf32>
    %168 = vector.shape_cast %167 : vector<8xf32> to vector<8x1xf32>
    %cst_92 = arith.constant 3.200000e+01 : f32
    %169 = vector.broadcast %cst_92 : f32 to vector<8x1xf32>
    %170 = arith.divf %168, %169 : vector<8x1xf32>
    %171 = vector.broadcast %170 : vector<8x1xf32> to vector<8x32xf32>
    %172 = arith.subf %164, %171 : vector<8x32xf32>
    %173 = arith.mulf %172, %172 : vector<8x32xf32>
    %cst_93 = arith.constant dense<0.000000e+00> : vector<8xf32>
    %174 = vector.multi_reduction <add>, %173, %cst_93 [1] : vector<8x32xf32> to vector<8xf32>
    %175 = vector.shape_cast %174 : vector<8xf32> to vector<8x1xf32>
    %cst_94 = arith.constant 3.200000e+01 : f32
    %176 = vector.broadcast %cst_94 : f32 to vector<8x1xf32>
    %177 = arith.divf %175, %176 : vector<8x1xf32>
    %178 = vector.broadcast %170 : vector<8x1xf32> to vector<8x32xf32>
    %179 = arith.subf %164, %178 : vector<8x32xf32>
    %cst_95 = arith.constant 9.99999974E-6 : f32
    %180 = vector.broadcast %cst_95 : f32 to vector<8x1xf32>
    %181 = arith.addf %177, %180 : vector<8x1xf32>
    %182 = math.rsqrt %181 : vector<8x1xf32>
    %183 = vector.broadcast %182 : vector<8x1xf32> to vector<8x32xf32>
    %184 = arith.mulf %179, %183 : vector<8x32xf32>
    %185 = vector.broadcast %165 : vector<1x32xf32> to vector<8x32xf32>
    %186 = arith.mulf %184, %185 : vector<8x32xf32>
    %187 = vector.broadcast %166 : vector<1x32xf32> to vector<8x32xf32>
    %188 = arith.addf %186, %187 : vector<8x32xf32>
    %c0_96 = arith.constant 0 : index
    %c0_97 = arith.constant 0 : index
    %c0_98 = arith.constant 0 : index
    %189 = vector.load %arg26[%c0_96, %c0_97, %c0_98] : memref<1x8x32xf32, #tpu.memory_space<vmem>>, vector<1x8x32xf32>
    %190 = vector.shape_cast %189 : vector<1x8x32xf32> to vector<8x32xf32>
    %191 = vector.shape_cast %188 : vector<8x32xf32> to vector<1x8x32xf32>
    tpu.vector_store %arg26[%c0_96, %c0_97, %c0_98], %191 {strides = array<i32>} : memref<1x8x32xf32, #tpu.memory_space<vmem>>, vector<1x8x32xf32>,
    return
  }
  func.func @transform_0(%arg0: i32, %arg1: i32) -> (i32, i32, i32) {
    %c0_i32 = arith.constant 0 : i32
    %c0_i32_0 = arith.constant 0 : i32
    return %arg0, %arg1, %c0_i32 : i32, i32, i32
  }
  func.func @transform_1(%arg0: i32, %arg1: i32) -> (i32, i32, i32, i32) {
    %c0_i32 = arith.constant 0 : i32
    %c0_i32_0 = arith.constant 0 : i32
    %c0_i32_1 = arith.constant 0 : i32
    return %arg0, %c0_i32, %arg1, %c0_i32_0 : i32, i32, i32, i32
  }
  func.func @transform_2(%arg0: i32, %arg1: i32) -> (i32, i32, i32, i32) {
    %c0_i32 = arith.constant 0 : i32
    %c0_i32_0 = arith.constant 0 : i32
    %c0_i32_1 = arith.constant 0 : i32
    %c0_i32_2 = arith.constant 0 : i32
    return %arg0, %c0_i32, %c0_i32_0, %c0_i32_1 : i32, i32, i32, i32
  }
  func.func @transform_3(%arg0: i32, %arg1: i32) -> (i32, i32, i32, i32) {
    %c0_i32 = arith.constant 0 : i32
    %c0_i32_0 = arith.constant 0 : i32
    %c0_i32_1 = arith.constant 0 : i32
    %c0_i32_2 = arith.constant 0 : i32
    return %arg0, %c0_i32, %c0_i32_0, %c0_i32_1 : i32, i32, i32, i32
  }
  func.func @transform_4(%arg0: i32, %arg1: i32) -> (i32, i32, i32, i32) {
    %c0_i32 = arith.constant 0 : i32
    %c0_i32_0 = arith.constant 0 : i32
    %c0_i32_1 = arith.constant 0 : i32
    %c0_i32_2 = arith.constant 0 : i32
    return %arg0, %c0_i32, %c0_i32_0, %c0_i32_1 : i32, i32, i32, i32
  }
  func.func @transform_5(%arg0: i32, %arg1: i32) -> (i32, i32, i32, i32) {
    %c0_i32 = arith.constant 0 : i32
    %c0_i32_0 = arith.constant 0 : i32
    %c0_i32_1 = arith.constant 0 : i32
    %c0_i32_2 = arith.constant 0 : i32
    return %arg0, %c0_i32, %c0_i32_0, %c0_i32_1 : i32, i32, i32, i32
  }
  func.func @transform_6(%arg0: i32, %arg1: i32) -> (i32, i32, i32) {
    %c0_i32 = arith.constant 0 : i32
    %c0_i32_0 = arith.constant 0 : i32
    return %arg0, %arg1, %c0_i32 : i32, i32, i32
  }
  func.func @transform_7(%arg0: i32, %arg1: i32) -> (i32, i32, i32) {
    %c0_i32 = arith.constant 0 : i32
    %c0_i32_0 = arith.constant 0 : i32
    return %arg0, %arg1, %c0_i32 : i32, i32, i32
  }
  func.func @transform_8(%arg0: i32, %arg1: i32) -> (i32, i32) {
    %c0_i32 = arith.constant 0 : i32
    %c0_i32_0 = arith.constant 0 : i32
    %c0_i32_1 = arith.constant 0 : i32
    return %c0_i32, %c0_i32_0 : i32, i32
  }
  func.func @transform_9(%arg0: i32, %arg1: i32) -> (i32, i32) {
    %c0_i32 = arith.constant 0 : i32
    %c0_i32_0 = arith.constant 0 : i32
    %c0_i32_1 = arith.constant 0 : i32
    return %c0_i32, %c0_i32_0 : i32, i32
  }
  func.func @transform_10(%arg0: i32, %arg1: i32) -> (i32, i32) {
    %c0_i32 = arith.constant 0 : i32
    %c0_i32_0 = arith.constant 0 : i32
    %c0_i32_1 = arith.constant 0 : i32
    return %c0_i32, %c0_i32_0 : i32, i32
  }
  func.func @transform_11(%arg0: i32, %arg1: i32) -> (i32, i32) {
    %c0_i32 = arith.constant 0 : i32
    %c0_i32_0 = arith.constant 0 : i32
    %c0_i32_1 = arith.constant 0 : i32
    return %c0_i32, %c0_i32_0 : i32, i32
  }
  func.func @transform_12(%arg0: i32, %arg1: i32) -> (i32, i32) {
    %c0_i32 = arith.constant 0 : i32
    %c0_i32_0 = arith.constant 0 : i32
    %c0_i32_1 = arith.constant 0 : i32
    return %c0_i32, %c0_i32_0 : i32, i32
  }
  func.func @transform_13(%arg0: i32, %arg1: i32) -> (i32, i32) {
    %c0_i32 = arith.constant 0 : i32
    %c0_i32_0 = arith.constant 0 : i32
    %c0_i32_1 = arith.constant 0 : i32
    return %c0_i32, %c0_i32_0 : i32, i32
  }
  func.func @transform_14(%arg0: i32, %arg1: i32) -> (i32, i32) {
    %c0_i32 = arith.constant 0 : i32
    %c0_i32_0 = arith.constant 0 : i32
    %c0_i32_1 = arith.constant 0 : i32
    return %c0_i32, %c0_i32_0 : i32, i32
  }
  func.func @transform_15(%arg0: i32, %arg1: i32) -> (i32, i32) {
    %c0_i32 = arith.constant 0 : i32
    %c0_i32_0 = arith.constant 0 : i32
    %c0_i32_1 = arith.constant 0 : i32
    return %c0_i32, %c0_i32_0 : i32, i32
  }
  func.func @transform_16(%arg0: i32, %arg1: i32) -> (i32, i32) {
    %c0_i32 = arith.constant 0 : i32
    %c0_i32_0 = arith.constant 0 : i32
    %c0_i32_1 = arith.constant 0 : i32
    return %c0_i32, %c0_i32_0 : i32, i32
  }
  func.func @transform_17(%arg0: i32, %arg1: i32) -> (i32, i32) {
    %c0_i32 = arith.constant 0 : i32
    %c0_i32_0 = arith.constant 0 : i32
    %c0_i32_1 = arith.constant 0 : i32
    return %c0_i32, %c0_i32_0 : i32, i32
  }
  func.func @transform_18(%arg0: i32, %arg1: i32) -> (i32, i32) {
    %c0_i32 = arith.constant 0 : i32
    %c0_i32_0 = arith.constant 0 : i32
    %c0_i32_1 = arith.constant 0 : i32
    return %c0_i32, %c0_i32_0 : i32, i32
  }
  func.func @transform_19(%arg0: i32, %arg1: i32) -> (i32, i32) {
    %c0_i32 = arith.constant 0 : i32
    %c0_i32_0 = arith.constant 0 : i32
    %c0_i32_1 = arith.constant 0 : i32
    return %c0_i32, %c0_i32_0 : i32, i32
  }
  func.func @transform_20(%arg0: i32, %arg1: i32) -> (i32, i32) {
    %c0_i32 = arith.constant 0 : i32
    %c0_i32_0 = arith.constant 0 : i32
    %c0_i32_1 = arith.constant 0 : i32
    return %c0_i32, %c0_i32_0 : i32, i32
  }
  func.func @transform_21(%arg0: i32, %arg1: i32) -> (i32, i32) {
    %c0_i32 = arith.constant 0 : i32
    %c0_i32_0 = arith.constant 0 : i32
    %c0_i32_1 = arith.constant 0 : i32
    return %c0_i32, %c0_i32_0 : i32, i32
  }
  func.func @transform_22(%arg0: i32, %arg1: i32) -> (i32, i32) {
    %c0_i32 = arith.constant 0 : i32
    %c0_i32_0 = arith.constant 0 : i32
    %c0_i32_1 = arith.constant 0 : i32
    return %c0_i32, %c0_i32_0 : i32, i32
  }
  func.func @transform_23(%arg0: i32, %arg1: i32) -> (i32, i32) {
    %c0_i32 = arith.constant 0 : i32
    %c0_i32_0 = arith.constant 0 : i32
    %c0_i32_1 = arith.constant 0 : i32
    return %c0_i32, %c0_i32_0 : i32, i32
  }
  func.func @transform_24(%arg0: i32, %arg1: i32) -> (i32, i32, i32) {
    %c0_i32 = arith.constant 0 : i32
    %c0_i32_0 = arith.constant 0 : i32
    return %arg0, %arg1, %c0_i32 : i32, i32, i32
  }
  func.func @transform_25(%arg0: i32, %arg1: i32) -> (i32, i32, i32, i32) {
    %c0_i32 = arith.constant 0 : i32
    %c0_i32_0 = arith.constant 0 : i32
    %c0_i32_1 = arith.constant 0 : i32
    return %arg0, %c0_i32, %arg1, %c0_i32_0 : i32, i32, i32, i32
  }
  func.func @transform_26(%arg0: i32, %arg1: i32) -> (i32, i32, i32, i32) {
    %c0_i32 = arith.constant 0 : i32
    %c0_i32_0 = arith.constant 0 : i32
    %c0_i32_1 = arith.constant 0 : i32
    return %arg0, %c0_i32, %arg1, %c0_i32_0 : i32, i32, i32, i32
  }
}

</mosaic_0001>

<llo_original>
// kernel: tpu_custom_call.1
$region0: #{tpu_custom_call.1}
  #allocation0 [shape = 'u32[]', space=smem, size = 0x4, offset = 0x4, fixed_abs, tag = 'smem constant byte address 0x4 - core index']
  #allocation1 [shape = 'u32[144,128]{1,0:T(1,128)}', space=vmem, size = 0x12000, scoped, tag = 'internal scratch']
  %s0 = inlined_call_operand.vmem [shape: f32[2,8,32], index: 0, kind: input, shape index: {}]
  %s1 = inlined_call_operand.vmem [shape: bf16[2,4,8,8], index: 1, kind: input, shape index: {}]
  %s2 = inlined_call_operand.vmem [shape: bf16[2,4,8,8], index: 2, kind: input, shape index: {}]
  %s3 = inlined_call_operand.vmem [shape: bf16[2,4,8,8], index: 3, kind: input, shape index: {}]
  %s4 = inlined_call_operand.hbm [shape: bf16[2,4,8,16], index: 4, kind: input, shape index: {}]
  %s5 = inlined_call_operand.vmem [shape: bf16[2,4,16,8], index: 5, kind: input, shape index: {}]
  %s6 = inlined_call_operand.hbm [shape: f32[2,8,8], index: 6, kind: input, shape index: {}]
  %s7 = inlined_call_operand.hbm [shape: f32[2,8,16], index: 7, kind: input, shape index: {}]
  %s8 = inlined_call_operand.hbm [shape: bf16[32,32], index: 8, kind: input, shape index: {}]
  %s9 = inlined_call_operand.vmem [shape: f32[1,32], index: 9, kind: input, shape index: {}]
  %s10 = inlined_call_operand.vmem [shape: bf16[32,32], index: 10, kind: input, shape index: {}]
  %s11 = inlined_call_operand.hbm [shape: f32[1,32], index: 11, kind: input, shape index: {}]
  %s12 = inlined_call_operand.hbm [shape: bf16[32,32], index: 12, kind: input, shape index: {}]
  %s13 = inlined_call_operand.hbm [shape: f32[1,32], index: 13, kind: input, shape index: {}]
  %s14 = inlined_call_operand.vmem [shape: bf16[32,64], index: 14, kind: input, shape index: {}]
  %s15 = inlined_call_operand.vmem [shape: f32[1,64], index: 15, kind: input, shape index: {}]
  %s16 = inlined_call_operand.vmem [shape: bf16[64,32], index: 16, kind: input, shape index: {}]
  %s17 = inlined_call_operand.vmem [shape: f32[1,32], index: 17, kind: input, shape index: {}]
  %s18 = inlined_call_operand.vmem [shape: f32[1,32], index: 18, kind: input, shape index: {}]
  %s19 = inlined_call_operand.vmem [shape: f32[1,32], index: 19, kind: input, shape index: {}]
  %s20 = inlined_call_operand.vmem [shape: f32[1,32], index: 20, kind: input, shape index: {}]
  %s21 = inlined_call_operand.vmem [shape: f32[1,32], index: 21, kind: input, shape index: {}]
  %s22 = inlined_call_operand.vmem [shape: f32[1,32], index: 22, kind: input, shape index: {}]
  %s23 = inlined_call_operand.vmem [shape: f32[1,32], index: 23, kind: input, shape index: {}]
  %s24 = inlined_call_operand.hbm [shape: f32[2,8,32], index: 24, kind: output, shape index: {0}]
  %s25 = inlined_call_operand.hbm [shape: f32[2,4,8,8], index: 25, kind: output, shape index: {1}]
  %s26 = inlined_call_operand.hbm [shape: f32[2,4,8,16], index: 26, kind: output, shape index: {2}]
  %27 = xla_tuple %s24, %s25, %s26
  %s28 = sld [smem:[#allocation0]]
  $region173: #{tpu_custom_call.1} parent=0
    _
  %s30 = ssub.s32 1, %s28
  %s31 = scalar_select 0, %s30, %s28
  $region1: #{tpu_custom_call.1} parent=0
    #allocation2 [shape = 'u8[16384]{0}', space=vmem, size = 0x4000, scoped, tag = 'input window, operand 4']
    #allocation3 [shape = 's32[2]{0}', space=sflag, size = 0x8, scoped, tag = 'scoped memory for tpu_custom_call.1']
    #allocation4 [shape = 's32[2]{0}', space=sflag, size = 0x8, scoped, tag = 'scoped memory for tpu_custom_call.1']
    #allocation5 [shape = 'u8[8192]{0}', space=vmem, size = 0x2000, scoped, tag = 'input window, operand 6']
    #allocation6 [shape = 's32[2]{0}', space=sflag, size = 0x8, scoped, tag = 'scoped memory for tpu_custom_call.1']
    #allocation7 [shape = 'u8[8192]{0}', space=vmem, size = 0x2000, scoped, tag = 'input window, operand 7']
    #allocation8 [shape = 'u8[8192]{0}', space=vmem, size = 0x2000, scoped, tag = 'input window, operand 8, single buffered']
    #allocation9 [shape = 's32[1]{0}', space=sflag, size = 0x4, scoped, tag = 'scoped memory for tpu_custom_call.1']
    #allocation10 [shape = 'u8[512]{0}', space=vmem, size = 0x400, scoped, tag = 'input window, operand 11, single buffered']
    #allocation11 [shape = 'u8[8192]{0}', space=vmem, size = 0x2000, scoped, tag = 'input window, operand 12, single buffered']
    #allocation12 [shape = 's32[1]{0}', space=sflag, size = 0x4, scoped, tag = 'scoped memory for tpu_custom_call.1']
    #allocation13 [shape = 'u8[512]{0}', space=vmem, size = 0x400, scoped, tag = 'input window, operand 13, single buffered']
    #allocation14 [shape = 'u8[8192]{0}', space=vmem, size = 0x2000, scoped, tag = 'output window, operand 0']
    #allocation15 [shape = 'u8[32768]{0}', space=vmem, size = 0x8000, scoped, tag = 'output window, operand 1']
    #allocation16 [shape = 's32[2]{0}', space=sflag, size = 0x8, scoped, tag = 'scoped memory for tpu_custom_call.1']
    #allocation17 [shape = 'u8[32768]{0}', space=vmem, size = 0x8000, scoped, tag = 'output window, operand 2']
    %32 = vsyncpa [#allocation3], 0
    %s33 = scalar_lea.sflag [#allocation3], 1
    %34 = vsyncpa %s33, 0
    %35 = vsyncpa [#allocation6], 0
    %s36 = scalar_lea.sflag [#allocation6], 1
    %37 = vsyncpa %s36, 0
    %38 = vsyncpa [#allocation9], 0
    %39 = vsyncpa [#allocation12], 0
    %40 = vsyncpa [#allocation4], 0
    %s41 = scalar_lea.sflag [#allocation4], 1
    %42 = vsyncpa %s41, 0
    %43 = vsyncpa [#allocation16], 0
    %s44 = scalar_lea.sflag [#allocation16], 1
    %45 = vsyncpa %s44, 0
    loop: start=0, step=1, limit=4
    $region2: #{tpu_custom_call.1} parent=1 // loop_pre_header
      _
    $region3: #{tpu_custom_call.1} parent=1 // loop_header
      %s47 = sphi 0, %s51
      %p48 = scmp.ge.s32.totalorder %s47, 4
      %s54 = sphi 0, %s66
      %s55 = sphi 0, %s62
      %s56 = sphi 0, %s54
      %s57 = sphi 0, %s55
      %s58 = sphi 0, %s56
      %s59 = sphi 0, %s57
      %s71 = sphi 0, %s73
      %s74 = sphi 0, %s71
      %s75 = sphi 0, %s74
      %s91 = sphi 0, %s75
      %s99 = sphi 0, %s101
      %s102 = sphi 0, %s99
      %s103 = sphi 0, %s102
      %s119 = sphi 0, %s103
      %s125 = sphi 0, %s127
      %s128 = sphi 0, %s125
      %s129 = sphi 0, %s128
      %s145 = sphi 0, %s129
      %s151 = sphi 0, %s153
      %s154 = sphi 0, %s151
      %s155 = sphi 0, %s154
      %s171 = sphi 0, %s155
      %s177 = sphi 0, %s179
      %s180 = sphi 0, %s177
      %s181 = sphi 0, %s180
      %s197 = sphi 0, %s181
      %s203 = sphi 0, %s205
      %s206 = sphi 0, %s203
      %s207 = sphi 0, %s206
      %s223 = sphi 0, %s207
      %s231 = sphi 0, %s233
      %s234 = sphi 0, %s231
      %s235 = sphi 0, %s234
      %s251 = sphi 0, %s235
      %s259 = sphi 0, %s261
      %s262 = sphi 0, %s259
      %s263 = sphi 0, %s262
      %s279 = sphi 0, %s263
      %s283 = sphi 0, %s283
      %s285 = sphi 0, %s283
      %s286 = sphi 0, %s285
      %s300 = sphi 0, %s286
      %s304 = sphi 0, %s304
      %s306 = sphi 0, %s304
      %s307 = sphi 0, %s306
      %s321 = sphi 0, %s307
      %s325 = sphi 0, %s325
      %s327 = sphi 0, %s325
      %s328 = sphi 0, %s327
      %s342 = sphi 0, %s328
      %s346 = sphi 0, %s346
      %s348 = sphi 0, %s346
      %s349 = sphi 0, %s348
      %s363 = sphi 0, %s349
      %s367 = sphi 0, %s367
      %s369 = sphi 0, %s367
      %s370 = sphi 0, %s369
      %s384 = sphi 0, %s370
      %s388 = sphi 0, %s388
      %s390 = sphi 0, %s388
      %s391 = sphi 0, %s390
      %s405 = sphi 0, %s391
      %s409 = sphi 0, %s409
      %s411 = sphi 0, %s409
      %s412 = sphi 0, %s411
      %s426 = sphi 0, %s412
      %s430 = sphi 0, %s430
      %s432 = sphi 0, %s430
      %s433 = sphi 0, %s432
      %s447 = sphi 0, %s433
      %s451 = sphi 0, %s451
      %s453 = sphi 0, %s451
      %s454 = sphi 0, %s453
      %s468 = sphi 0, %s454
      %s472 = sphi 0, %s472
      %s474 = sphi 0, %s472
      %s475 = sphi 0, %s474
      %s489 = sphi 0, %s475
      %s493 = sphi 0, %s493
      %s495 = sphi 0, %s493
      %s496 = sphi 0, %s495
      %s510 = sphi 0, %s496
      %s514 = sphi 0, %s514
      %s516 = sphi 0, %s514
      %s517 = sphi 0, %s516
      %s531 = sphi 0, %s517
      %s535 = sphi 0, %s535
      %s537 = sphi 0, %s535
      %s538 = sphi 0, %s537
      %s552 = sphi 0, %s538
      %s556 = sphi 0, %s556
      %s558 = sphi 0, %s556
      %s559 = sphi 0, %s558
      %s573 = sphi 0, %s559
      %s577 = sphi 0, %s577
      %s579 = sphi 0, %s577
      %s580 = sphi 0, %s579
      %s594 = sphi 0, %s580
      %s598 = sphi 0, %s598
      %s600 = sphi 0, %s598
      %s601 = sphi 0, %s600
      %s615 = sphi 0, %s601
      %s623 = sphi 0, %s625
      %s626 = sphi 0, %s623
      %s627 = sphi 0, %s626
      %s643 = sphi 0, %s627
      %s651 = sphi 0, %s653
      %s654 = sphi 0, %s651
      %s655 = sphi 0, %s654
      %s671 = sphi 0, %s655
      %s679 = sphi 0, %s681
      %s682 = sphi 0, %s679
      %s683 = sphi 0, %s682
      %s699 = sphi 0, %s683
    $region4: #{tpu_custom_call.1} parent=1 // loop_header_branch
      %50 = sbr.rel (%p48) target = $region8
    $region5: #{tpu_custom_call.1} parent=1 // loop_body
      %s52 = ssub.s32 %s47, 1
      %s53 = ssub.s32 %s47, 2
      %s60 = sadd.s32 1, %s55
      %p61 = scmp.ge.s32.totalorder %s60, 1
      %s62 = scalar_select %p61, 0, %s60
      %s63 = sadd.s32 1, %s54
      %s64 = scalar_select %p61, %s63, %s54
      %p65 = scmp.ge.s32.totalorder %s64, 2
      %s66 = scalar_select %p65, 0, %s64
      %s67 = ssub.s32 %s54, %s66
      %s68 = ssub.s32 %s55, %s62
      %s69 = sor.u32 %s67, %s68
      %p70 = scmp.eq.s32.totalorder %s69, 0
      %s72 = sadd.s32 %s71, 1
      %s73 = scalar_select %p70, %s71, %s72
      %p76 = pneg %p70
      %p77 = scmp.eq.s32.totalorder %s47, 1
      %p78 = por %p76, %p77
      %p79 = scmp.ne.s32.totalorder %s71, %s74
      %p80 = scmp.eq.s32.totalorder %s47, 0
      %p81 = por %p79, %p80
      %p82 = scmp.ne.s32.totalorder %s71, %s74
      %p83 = scmp.eq.s32.totalorder %s52, 1
      %p84 = por %p82, %p83
      %p85 = scmp.ne.s32.totalorder %s74, %s75
      %p86 = scmp.eq.s32.totalorder %s52, 0
      %p87 = por %p85, %p86
      %p88 = scmp.ne.s32.totalorder %s74, %s75
      %p89 = scmp.eq.s32.totalorder %s53, 1
      %p90 = por %p88, %p89
      %p92 = scmp.ne.s32.totalorder %s75, %s91
      %p93 = scmp.eq.s32.totalorder %s53, 0
      %p94 = por %p92, %p93
      %s95 = ssub.s32 %s54, %s66
      %s96 = ssub.s32 %s55, %s62
      %s97 = sor.u32 %s95, %s96
      %p98 = scmp.eq.s32.totalorder %s97, 0
      %s100 = sadd.s32 %s99, 1
      %s101 = scalar_select %p98, %s99, %s100
      %p104 = pneg %p98
      %p105 = scmp.eq.s32.totalorder %s47, 1
      %p106 = por %p104, %p105
      %p107 = scmp.ne.s32.totalorder %s99, %s102
      %p108 = scmp.eq.s32.totalorder %s47, 0
      %p109 = por %p107, %p108
      %p110 = scmp.ne.s32.totalorder %s99, %s102
      %p111 = scmp.eq.s32.totalorder %s52, 1
      %p112 = por %p110, %p111
      %p113 = scmp.ne.s32.totalorder %s102, %s103
      %p114 = scmp.eq.s32.totalorder %s52, 0
      %p115 = por %p113, %p114
      %p116 = scmp.ne.s32.totalorder %s102, %s103
      %p117 = scmp.eq.s32.totalorder %s53, 1
      %p118 = por %p116, %p117
      %p120 = scmp.ne.s32.totalorder %s103, %s119
      %p121 = scmp.eq.s32.totalorder %s53, 0
      %p122 = por %p120, %p121
      %s123 = ssub.s32 %s54, %s66
      %p124 = scmp.eq.s32.totalorder %s123, 0
      %s126 = sadd.s32 %s125, 1
      %s127 = scalar_select %p124, %s125, %s126
      %p130 = pneg %p124
      %p131 = scmp.eq.s32.totalorder %s47, 1
      %p132 = por %p130, %p131
      %p133 = scmp.ne.s32.totalorder %s125, %s128
      %p134 = scmp.eq.s32.totalorder %s47, 0
      %p135 = por %p133, %p134
      %p136 = scmp.ne.s32.totalorder %s125, %s128
      %p137 = scmp.eq.s32.totalorder %s52, 1
      %p138 = por %p136, %p137
      %p139 = scmp.ne.s32.totalorder %s128, %s129
      %p140 = scmp.eq.s32.totalorder %s52, 0
      %p141 = por %p139, %p140
      %p142 = scmp.ne.s32.totalorder %s128, %s129
      %p143 = scmp.eq.s32.totalorder %s53, 1
      %p144 = por %p142, %p143
      %p146 = scmp.ne.s32.totalorder %s129, %s145
      %p147 = scmp.eq.s32.totalorder %s53, 0
      %p148 = por %p146, %p147
      %s149 = ssub.s32 %s54, %s66
      %p150 = scmp.eq.s32.totalorder %s149, 0
      %s152 = sadd.s32 %s151, 1
      %s153 = scalar_select %p150, %s151, %s152
      %p156 = pneg %p150
      %p157 = scmp.eq.s32.totalorder %s47, 1
      %p158 = por %p156, %p157
      %p159 = scmp.ne.s32.totalorder %s151, %s154
      %p160 = scmp.eq.s32.totalorder %s47, 0
      %p161 = por %p159, %p160
      %p162 = scmp.ne.s32.totalorder %s151, %s154
      %p163 = scmp.eq.s32.totalorder %s52, 1
      %p164 = por %p162, %p163
      %p165 = scmp.ne.s32.totalorder %s154, %s155
      %p166 = scmp.eq.s32.totalorder %s52, 0
      %p167 = por %p165, %p166
      %p168 = scmp.ne.s32.totalorder %s154, %s155
      %p169 = scmp.eq.s32.totalorder %s53, 1
      %p170 = por %p168, %p169
      %p172 = scmp.ne.s32.totalorder %s155, %s171
      %p173 = scmp.eq.s32.totalorder %s53, 0
      %p174 = por %p172, %p173
      %s175 = ssub.s32 %s54, %s66
      %p176 = scmp.eq.s32.totalorder %s175, 0
      %s178 = sadd.s32 %s177, 1
      %s179 = scalar_select %p176, %s177, %s178
      %p182 = pneg %p176
      %p183 = scmp.eq.s32.totalorder %s47, 1
      %p184 = por %p182, %p183
      %p185 = scmp.ne.s32.totalorder %s177, %s180
      %p186 = scmp.eq.s32.totalorder %s47, 0
      %p187 = por %p185, %p186
      %p188 = scmp.ne.s32.totalorder %s177, %s180
      %p189 = scmp.eq.s32.totalorder %s52, 1
      %p190 = por %p188, %p189
      %p191 = scmp.ne.s32.totalorder %s180, %s181
      %p192 = scmp.eq.s32.totalorder %s52, 0
      %p193 = por %p191, %p192
      %p194 = scmp.ne.s32.totalorder %s180, %s181
      %p195 = scmp.eq.s32.totalorder %s53, 1
      %p196 = por %p194, %p195
      %p198 = scmp.ne.s32.totalorder %s181, %s197
      %p199 = scmp.eq.s32.totalorder %s53, 0
      %p200 = por %p198, %p199
      %s201 = ssub.s32 %s54, %s66
      %p202 = scmp.eq.s32.totalorder %s201, 0
      %s204 = sadd.s32 %s203, 1
      %s205 = scalar_select %p202, %s203, %s204
      %p208 = pneg %p202
      %p209 = scmp.eq.s32.totalorder %s47, 1
      %p210 = por %p208, %p209
      %p211 = scmp.ne.s32.totalorder %s203, %s206
      %p212 = scmp.eq.s32.totalorder %s47, 0
      %p213 = por %p211, %p212
      %p214 = scmp.ne.s32.totalorder %s203, %s206
      %p215 = scmp.eq.s32.totalorder %s52, 1
      %p216 = por %p214, %p215
      %p217 = scmp.ne.s32.totalorder %s206, %s207
      %p218 = scmp.eq.s32.totalorder %s52, 0
      %p219 = por %p217, %p218
      %p220 = scmp.ne.s32.totalorder %s206, %s207
      %p221 = scmp.eq.s32.totalorder %s53, 1
      %p222 = por %p220, %p221
      %p224 = scmp.ne.s32.totalorder %s207, %s223
      %p225 = scmp.eq.s32.totalorder %s53, 0
      %p226 = por %p224, %p225
      %s227 = ssub.s32 %s54, %s66
      %s228 = ssub.s32 %s55, %s62
      %s229 = sor.u32 %s227, %s228
      %p230 = scmp.eq.s32.totalorder %s229, 0
      %s232 = sadd.s32 %s231, 1
      %s233 = scalar_select %p230, %s231, %s232
      %p236 = pneg %p230
      %p237 = scmp.eq.s32.totalorder %s47, 1
      %p238 = por %p236, %p237
      %p239 = scmp.ne.s32.totalorder %s231, %s234
      %p240 = scmp.eq.s32.totalorder %s47, 0
      %p241 = por %p239, %p240
      %p242 = scmp.ne.s32.totalorder %s231, %s234
      %p243 = scmp.eq.s32.totalorder %s52, 1
      %p244 = por %p242, %p243
      %p245 = scmp.ne.s32.totalorder %s234, %s235
      %p246 = scmp.eq.s32.totalorder %s52, 0
      %p247 = por %p245, %p246
      %p248 = scmp.ne.s32.totalorder %s234, %s235
      %p249 = scmp.eq.s32.totalorder %s53, 1
      %p250 = por %p248, %p249
      %p252 = scmp.ne.s32.totalorder %s235, %s251
      %p253 = scmp.eq.s32.totalorder %s53, 0
      %p254 = por %p252, %p253
      %s255 = ssub.s32 %s54, %s66
      %s256 = ssub.s32 %s55, %s62
      %s257 = sor.u32 %s255, %s256
      %p258 = scmp.eq.s32.totalorder %s257, 0
      %s260 = sadd.s32 %s259, 1
      %s261 = scalar_select %p258, %s259, %s260
      %p264 = pneg %p258
      %p265 = scmp.eq.s32.totalorder %s47, 1
      %p266 = por %p264, %p265
      %p267 = scmp.ne.s32.totalorder %s259, %s262
      %p268 = scmp.eq.s32.totalorder %s47, 0
      %p269 = por %p267, %p268
      %p270 = scmp.ne.s32.totalorder %s259, %s262
      %p271 = scmp.eq.s32.totalorder %s52, 1
      %p272 = por %p270, %p271
      %p273 = scmp.ne.s32.totalorder %s262, %s263
      %p274 = scmp.eq.s32.totalorder %s52, 0
      %p275 = por %p273, %p274
      %p276 = scmp.ne.s32.totalorder %s262, %s263
      %p277 = scmp.eq.s32.totalorder %s53, 1
      %p278 = por %p276, %p277
      %p280 = scmp.ne.s32.totalorder %s263, %s279
      %p281 = scmp.eq.s32.totalorder %s53, 0
      %p282 = por %p280, %p281
      %s284 = sadd.s32 %s283, 1
      %p287 = scmp.eq.s32.totalorder %s47, 1
      %p288 = scmp.ne.s32.totalorder %s283, %s285
      %p289 = scmp.eq.s32.totalorder %s47, 0
      %p290 = por %p288, %p289
      %p291 = scmp.ne.s32.totalorder %s283, %s285
      %p292 = scmp.eq.s32.totalorder %s52, 1
      %p293 = por %p291, %p292
      %p294 = scmp.ne.s32.totalorder %s285, %s286
      %p295 = scmp.eq.s32.totalorder %s52, 0
      %p296 = por %p294, %p295
      %p297 = scmp.ne.s32.totalorder %s285, %s286
      %p298 = scmp.eq.s32.totalorder %s53, 1
      %p299 = por %p297, %p298
      %p301 = scmp.ne.s32.totalorder %s286, %s300
      %p302 = scmp.eq.s32.totalorder %s53, 0
      %p303 = por %p301, %p302
      %s305 = sadd.s32 %s304, 1
      %p308 = scmp.eq.s32.totalorder %s47, 1
      %p309 = scmp.ne.s32.totalorder %s304, %s306
      %p310 = scmp.eq.s32.totalorder %s47, 0
      %p311 = por %p309, %p310
      %p312 = scmp.ne.s32.totalorder %s304, %s306
      %p313 = scmp.eq.s32.totalorder %s52, 1
      %p314 = por %p312, %p313
      %p315 = scmp.ne.s32.totalorder %s306, %s307
      %p316 = scmp.eq.s32.totalorder %s52, 0
      %p317 = por %p315, %p316
      %p318 = scmp.ne.s32.totalorder %s306, %s307
      %p319 = scmp.eq.s32.totalorder %s53, 1
      %p320 = por %p318, %p319
      %p322 = scmp.ne.s32.totalorder %s307, %s321
      %p323 = scmp.eq.s32.totalorder %s53, 0
      %p324 = por %p322, %p323
      %s326 = sadd.s32 %s325, 1
      %p329 = scmp.eq.s32.totalorder %s47, 1
      %p330 = scmp.ne.s32.totalorder %s325, %s327
      %p331 = scmp.eq.s32.totalorder %s47, 0
      %p332 = por %p330, %p331
      %p333 = scmp.ne.s32.totalorder %s325, %s327
      %p334 = scmp.eq.s32.totalorder %s52, 1
      %p335 = por %p333, %p334
      %p336 = scmp.ne.s32.totalorder %s327, %s328
      %p337 = scmp.eq.s32.totalorder %s52, 0
      %p338 = por %p336, %p337
      %p339 = scmp.ne.s32.totalorder %s327, %s328
      %p340 = scmp.eq.s32.totalorder %s53, 1
      %p341 = por %p339, %p340
      %p343 = scmp.ne.s32.totalorder %s328, %s342
      %p344 = scmp.eq.s32.totalorder %s53, 0
      %p345 = por %p343, %p344
      %s347 = sadd.s32 %s346, 1
      %p350 = scmp.eq.s32.totalorder %s47, 1
      %p351 = scmp.ne.s32.totalorder %s346, %s348
      %p352 = scmp.eq.s32.totalorder %s47, 0
      %p353 = por %p351, %p352
      %p354 = scmp.ne.s32.totalorder %s346, %s348
      %p355 = scmp.eq.s32.totalorder %s52, 1
      %p356 = por %p354, %p355
      %p357 = scmp.ne.s32.totalorder %s348, %s349
      %p358 = scmp.eq.s32.totalorder %s52, 0
      %p359 = por %p357, %p358
      %p360 = scmp.ne.s32.totalorder %s348, %s349
      %p361 = scmp.eq.s32.totalorder %s53, 1
      %p362 = por %p360, %p361
      %p364 = scmp.ne.s32.totalorder %s349, %s363
      %p365 = scmp.eq.s32.totalorder %s53, 0
      %p366 = por %p364, %p365
      %s368 = sadd.s32 %s367, 1
      %p371 = scmp.eq.s32.totalorder %s47, 1
      %p372 = scmp.ne.s32.totalorder %s367, %s369
      %p373 = scmp.eq.s32.totalorder %s47, 0
      %p374 = por %p372, %p373
      %p375 = scmp.ne.s32.totalorder %s367, %s369
      %p376 = scmp.eq.s32.totalorder %s52, 1
      %p377 = por %p375, %p376
      %p378 = scmp.ne.s32.totalorder %s369, %s370
      %p379 = scmp.eq.s32.totalorder %s52, 0
      %p380 = por %p378, %p379
      %p381 = scmp.ne.s32.totalorder %s369, %s370
      %p382 = scmp.eq.s32.totalorder %s53, 1
      %p383 = por %p381, %p382
      %p385 = scmp.ne.s32.totalorder %s370, %s384
      %p386 = scmp.eq.s32.totalorder %s53, 0
      %p387 = por %p385, %p386
      %s389 = sadd.s32 %s388, 1
      %p392 = scmp.eq.s32.totalorder %s47, 1
      %p393 = scmp.ne.s32.totalorder %s388, %s390
      %p394 = scmp.eq.s32.totalorder %s47, 0
      %p395 = por %p393, %p394
      %p396 = scmp.ne.s32.totalorder %s388, %s390
      %p397 = scmp.eq.s32.totalorder %s52, 1
      %p398 = por %p396, %p397
      %p399 = scmp.ne.s32.totalorder %s390, %s391
      %p400 = scmp.eq.s32.totalorder %s52, 0
      %p401 = por %p399, %p400
      %p402 = scmp.ne.s32.totalorder %s390, %s391
      %p403 = scmp.eq.s32.totalorder %s53, 1
      %p404 = por %p402, %p403
      %p406 = scmp.ne.s32.totalorder %s391, %s405
      %p407 = scmp.eq.s32.totalorder %s53, 0
      %p408 = por %p406, %p407
      %s410 = sadd.s32 %s409, 1
      %p413 = scmp.eq.s32.totalorder %s47, 1
      %p414 = scmp.ne.s32.totalorder %s409, %s411
      %p415 = scmp.eq.s32.totalorder %s47, 0
      %p416 = por %p414, %p415
      %p417 = scmp.ne.s32.totalorder %s409, %s411
      %p418 = scmp.eq.s32.totalorder %s52, 1
      %p419 = por %p417, %p418
      %p420 = scmp.ne.s32.totalorder %s411, %s412
      %p421 = scmp.eq.s32.totalorder %s52, 0
      %p422 = por %p420, %p421
      %p423 = scmp.ne.s32.totalorder %s411, %s412
      %p424 = scmp.eq.s32.totalorder %s53, 1
      %p425 = por %p423, %p424
      %p427 = scmp.ne.s32.totalorder %s412, %s426
      %p428 = scmp.eq.s32.totalorder %s53, 0
      %p429 = por %p427, %p428
      %s431 = sadd.s32 %s430, 1
      %p434 = scmp.eq.s32.totalorder %s47, 1
      %p435 = scmp.ne.s32.totalorder %s430, %s432
      %p436 = scmp.eq.s32.totalorder %s47, 0
      %p437 = por %p435, %p436
      %p438 = scmp.ne.s32.totalorder %s430, %s432
      %p439 = scmp.eq.s32.totalorder %s52, 1
      %p440 = por %p438, %p439
      %p441 = scmp.ne.s32.totalorder %s432, %s433
      %p442 = scmp.eq.s32.totalorder %s52, 0
      %p443 = por %p441, %p442
      %p444 = scmp.ne.s32.totalorder %s432, %s433
      %p445 = scmp.eq.s32.totalorder %s53, 1
      %p446 = por %p444, %p445
      %p448 = scmp.ne.s32.totalorder %s433, %s447
      %p449 = scmp.eq.s32.totalorder %s53, 0
      %p450 = por %p448, %p449
      %s452 = sadd.s32 %s451, 1
      %p455 = scmp.eq.s32.totalorder %s47, 1
      %p456 = scmp.ne.s32.totalorder %s451, %s453
      %p457 = scmp.eq.s32.totalorder %s47, 0
      %p458 = por %p456, %p457
      %p459 = scmp.ne.s32.totalorder %s451, %s453
      %p460 = scmp.eq.s32.totalorder %s52, 1
      %p461 = por %p459, %p460
      %p462 = scmp.ne.s32.totalorder %s453, %s454
      %p463 = scmp.eq.s32.totalorder %s52, 0
      %p464 = por %p462, %p463
      %p465 = scmp.ne.s32.totalorder %s453, %s454
      %p466 = scmp.eq.s32.totalorder %s53, 1
      %p467 = por %p465, %p466
      %p469 = scmp.ne.s32.totalorder %s454, %s468
      %p470 = scmp.eq.s32.totalorder %s53, 0
      %p471 = por %p469, %p470
      %s473 = sadd.s32 %s472, 1
      %p476 = scmp.eq.s32.totalorder %s47, 1
      %p477 = scmp.ne.s32.totalorder %s472, %s474
      %p478 = scmp.eq.s32.totalorder %s47, 0
      %p479 = por %p477, %p478
      %p480 = scmp.ne.s32.totalorder %s472, %s474
      %p481 = scmp.eq.s32.totalorder %s52, 1
      %p482 = por %p480, %p481
      %p483 = scmp.ne.s32.totalorder %s474, %s475
      %p484 = scmp.eq.s32.totalorder %s52, 0
      %p485 = por %p483, %p484
      %p486 = scmp.ne.s32.totalorder %s474, %s475
      %p487 = scmp.eq.s32.totalorder %s53, 1
      %p488 = por %p486, %p487
      %p490 = scmp.ne.s32.totalorder %s475, %s489
      %p491 = scmp.eq.s32.totalorder %s53, 0
      %p492 = por %p490, %p491
      %s494 = sadd.s32 %s493, 1
      %p497 = scmp.eq.s32.totalorder %s47, 1
      %p498 = scmp.ne.s32.totalorder %s493, %s495
      %p499 = scmp.eq.s32.totalorder %s47, 0
      %p500 = por %p498, %p499
      %p501 = scmp.ne.s32.totalorder %s493, %s495
      %p502 = scmp.eq.s32.totalorder %s52, 1
      %p503 = por %p501, %p502
      %p504 = scmp.ne.s32.totalorder %s495, %s496
      %p505 = scmp.eq.s32.totalorder %s52, 0
      %p506 = por %p504, %p505
      %p507 = scmp.ne.s32.totalorder %s495, %s496
      %p508 = scmp.eq.s32.totalorder %s53, 1
      %p509 = por %p507, %p508
      %p511 = scmp.ne.s32.totalorder %s496, %s510
      %p512 = scmp.eq.s32.totalorder %s53, 0
      %p513 = por %p511, %p512
      %s515 = sadd.s32 %s514, 1
      %p518 = scmp.eq.s32.totalorder %s47, 1
      %p519 = scmp.ne.s32.totalorder %s514, %s516
      %p520 = scmp.eq.s32.totalorder %s47, 0
      %p521 = por %p519, %p520
      %p522 = scmp.ne.s32.totalorder %s514, %s516
      %p523 = scmp.eq.s32.totalorder %s52, 1
      %p524 = por %p522, %p523
      %p525 = scmp.ne.s32.totalorder %s516, %s517
      %p526 = scmp.eq.s32.totalorder %s52, 0
      %p527 = por %p525, %p526
      %p528 = scmp.ne.s32.totalorder %s516, %s517
      %p529 = scmp.eq.s32.totalorder %s53, 1
      %p530 = por %p528, %p529
      %p532 = scmp.ne.s32.totalorder %s517, %s531
      %p533 = scmp.eq.s32.totalorder %s53, 0
      %p534 = por %p532, %p533
      %s536 = sadd.s32 %s535, 1
      %p539 = scmp.eq.s32.totalorder %s47, 1
      %p540 = scmp.ne.s32.totalorder %s535, %s537
      %p541 = scmp.eq.s32.totalorder %s47, 0
      %p542 = por %p540, %p541
      %p543 = scmp.ne.s32.totalorder %s535, %s537
      %p544 = scmp.eq.s32.totalorder %s52, 1
      %p545 = por %p543, %p544
      %p546 = scmp.ne.s32.totalorder %s537, %s538
      %p547 = scmp.eq.s32.totalorder %s52, 0
      %p548 = por %p546, %p547
      %p549 = scmp.ne.s32.totalorder %s537, %s538
      %p550 = scmp.eq.s32.totalorder %s53, 1
      %p551 = por %p549, %p550
      %p553 = scmp.ne.s32.totalorder %s538, %s552
      %p554 = scmp.eq.s32.totalorder %s53, 0
      %p555 = por %p553, %p554
      %s557 = sadd.s32 %s556, 1
      %p560 = scmp.eq.s32.totalorder %s47, 1
      %p561 = scmp.ne.s32.totalorder %s556, %s558
      %p562 = scmp.eq.s32.totalorder %s47, 0
      %p563 = por %p561, %p562
      %p564 = scmp.ne.s32.totalorder %s556, %s558
      %p565 = scmp.eq.s32.totalorder %s52, 1
      %p566 = por %p564, %p565
      %p567 = scmp.ne.s32.totalorder %s558, %s559
      %p568 = scmp.eq.s32.totalorder %s52, 0
      %p569 = por %p567, %p568
      %p570 = scmp.ne.s32.totalorder %s558, %s559
      %p571 = scmp.eq.s32.totalorder %s53, 1
      %p572 = por %p570, %p571
      %p574 = scmp.ne.s32.totalorder %s559, %s573
      %p575 = scmp.eq.s32.totalorder %s53, 0
      %p576 = por %p574, %p575
      %s578 = sadd.s32 %s577, 1
      %p581 = scmp.eq.s32.totalorder %s47, 1
      %p582 = scmp.ne.s32.totalorder %s577, %s579
      %p583 = scmp.eq.s32.totalorder %s47, 0
      %p584 = por %p582, %p583
      %p585 = scmp.ne.s32.totalorder %s577, %s579
      %p586 = scmp.eq.s32.totalorder %s52, 1
      %p587 = por %p585, %p586
      %p588 = scmp.ne.s32.totalorder %s579, %s580
      %p589 = scmp.eq.s32.totalorder %s52, 0
      %p590 = por %p588, %p589
      %p591 = scmp.ne.s32.totalorder %s579, %s580
      %p592 = scmp.eq.s32.totalorder %s53, 1
      %p593 = por %p591, %p592
      %p595 = scmp.ne.s32.totalorder %s580, %s594
      %p596 = scmp.eq.s32.totalorder %s53, 0
      %p597 = por %p595, %p596
      %s599 = sadd.s32 %s598, 1
      %p602 = scmp.eq.s32.totalorder %s47, 1
      %p603 = scmp.ne.s32.totalorder %s598, %s600
      %p604 = scmp.eq.s32.totalorder %s47, 0
      %p605 = por %p603, %p604
      %p606 = scmp.ne.s32.totalorder %s598, %s600
      %p607 = scmp.eq.s32.totalorder %s52, 1
      %p608 = por %p606, %p607
      %p609 = scmp.ne.s32.totalorder %s600, %s601
      %p610 = scmp.eq.s32.totalorder %s52, 0
      %p611 = por %p609, %p610
      %p612 = scmp.ne.s32.totalorder %s600, %s601
      %p613 = scmp.eq.s32.totalorder %s53, 1
      %p614 = por %p612, %p613
      %p616 = scmp.ne.s32.totalorder %s601, %s615
      %p617 = scmp.eq.s32.totalorder %s53, 0
      %p618 = por %p616, %p617
      %s619 = ssub.s32 %s54, %s66
      %s620 = ssub.s32 %s55, %s62
      %s621 = sor.u32 %s619, %s620
      %p622 = scmp.eq.s32.totalorder %s621, 0
      %s624 = sadd.s32 %s623, 1
      %s625 = scalar_select %p622, %s623, %s624
      %p628 = pneg %p622
      %p629 = scmp.eq.s32.totalorder %s47, 1
      %p630 = por %p628, %p629
      %p631 = scmp.ne.s32.totalorder %s623, %s626
      %p632 = scmp.eq.s32.totalorder %s47, 0
      %p633 = por %p631, %p632
      %p634 = scmp.ne.s32.totalorder %s623, %s626
      %p635 = scmp.eq.s32.totalorder %s52, 1
      %p636 = por %p634, %p635
      %p637 = scmp.ne.s32.totalorder %s626, %s627
      %p638 = scmp.eq.s32.totalorder %s52, 0
      %p639 = por %p637, %p638
      %p640 = scmp.ne.s32.totalorder %s626, %s627
      %p641 = scmp.eq.s32.totalorder %s53, 1
      %p642 = por %p640, %p641
      %p644 = scmp.ne.s32.totalorder %s627, %s643
      %p645 = scmp.eq.s32.totalorder %s53, 0
      %p646 = por %p644, %p645
      %s647 = ssub.s32 %s54, %s66
      %s648 = ssub.s32 %s55, %s62
      %s649 = sor.u32 %s647, %s648
      %p650 = scmp.eq.s32.totalorder %s649, 0
      %s652 = sadd.s32 %s651, 1
      %s653 = scalar_select %p650, %s651, %s652
      %p656 = pneg %p650
      %p657 = scmp.eq.s32.totalorder %s47, 1
      %p658 = por %p656, %p657
      %p659 = scmp.ne.s32.totalorder %s651, %s654
      %p660 = scmp.eq.s32.totalorder %s47, 0
      %p661 = por %p659, %p660
      %p662 = scmp.ne.s32.totalorder %s651, %s654
      %p663 = scmp.eq.s32.totalorder %s52, 1
      %p664 = por %p662, %p663
      %p665 = scmp.ne.s32.totalorder %s654, %s655
      %p666 = scmp.eq.s32.totalorder %s52, 0
      %p667 = por %p665, %p666
      %p668 = scmp.ne.s32.totalorder %s654, %s655
      %p669 = scmp.eq.s32.totalorder %s53, 1
      %p670 = por %p668, %p669
      %p672 = scmp.ne.s32.totalorder %s655, %s671
      %p673 = scmp.eq.s32.totalorder %s53, 0
      %p674 = por %p672, %p673
      %s675 = ssub.s32 %s54, %s66
      %s676 = ssub.s32 %s55, %s62
      %s677 = sor.u32 %s675, %s676
      %p678 = scmp.eq.s32.totalorder %s677, 0
      %s680 = sadd.s32 %s679, 1
      %s681 = scalar_select %p678, %s679, %s680
      %p684 = pneg %p678
      %p685 = scmp.eq.s32.totalorder %s47, 1
      %p686 = por %p684, %p685
      %p687 = scmp.ne.s32.totalorder %s679, %s682
      %p688 = scmp.eq.s32.totalorder %s47, 0
      %p689 = por %p687, %p688
      %p690 = scmp.ne.s32.totalorder %s679, %s682
      %p691 = scmp.eq.s32.totalorder %s52, 1
      %p692 = por %p690, %p691
      %p693 = scmp.ne.s32.totalorder %s682, %s683
      %p694 = scmp.eq.s32.totalorder %s52, 0
      %p695 = por %p693, %p694
      %p696 = scmp.ne.s32.totalorder %s682, %s683
      %p697 = scmp.eq.s32.totalorder %s53, 1
      %p698 = por %p696, %p697
      %p700 = scmp.ne.s32.totalorder %s683, %s699
      %p701 = scmp.eq.s32.totalorder %s53, 0
      %p702 = por %p700, %p701
      %p703 = scmp.le.s32.totalorder 1, %s47
      %p704 = scmp.lt.s32.totalorder %s47, 3
      %p705 = pnand %p703, %p704
      %p706 = pneg %p705
      // Predicated region
      $region9: #{tpu_custom_call.1} parent=5 // pred_check
        _
      $region10: #{tpu_custom_call.1} parent=5 // pred_check_branch
        %708 = sbr.rel (%p705) target = $region12
      $region11: #{tpu_custom_call.1} parent=5 // pred_region
        %s709 = ssub.s32 %s47, 1
        // Predicated region
        $region13: #{tpu_custom_call.1} parent=11 // pred_check
          %p710 = pneg %p296
        $region14: #{tpu_custom_call.1} parent=11 // pred_check_branch
          %712 = sbr.rel (%p710) target = $region16
        $region15: #{tpu_custom_call.1} parent=11 // pred_region
          %s714 = ssub.s32 256, 256
          %715 = vsyncadd [#allocation9], %s714
          %s716 = sshll.u32 [#allocation8], 4
          %s717 = int_to_ptr.vmem [resolvable:$true] %s716
          %722 = dma.hbm_to_vmem [thread:$0]  %s8, 256, %s717, [#allocation9], 64, 64, 4
        $region16: #{tpu_custom_call.1} parent=11 // pred_fallthru
          _
        // Predicated region
        $region17: #{tpu_custom_call.1} parent=11 // pred_check
          %p723 = pneg %p317
        $region18: #{tpu_custom_call.1} parent=11 // pred_check_branch
          %725 = sbr.rel (%p723) target = $region20
        $region19: #{tpu_custom_call.1} parent=11 // pred_region
          _
        $region20: #{tpu_custom_call.1} parent=11 // pred_fallthru
          _
        // Predicated region
        $region21: #{tpu_custom_call.1} parent=11 // pred_check
          %p726 = pneg %p338
        $region22: #{tpu_custom_call.1} parent=11 // pred_check_branch
          %728 = sbr.rel (%p726) target = $region24
        $region23: #{tpu_custom_call.1} parent=11 // pred_region
          _
        $region24: #{tpu_custom_call.1} parent=11 // pred_fallthru
          _
        // Predicated region
        $region25: #{tpu_custom_call.1} parent=11 // pred_check
          %p729 = pneg %p359
        $region26: #{tpu_custom_call.1} parent=11 // pred_check_branch
          %731 = sbr.rel (%p729) target = $region28
        $region27: #{tpu_custom_call.1} parent=11 // pred_region
          %s733 = ssub.s32 16, 16
          %734 = vsyncadd [#allocation9], %s733
          %s736 = sshll.u32 [#allocation10], 4
          %s737 = int_to_ptr.vmem [resolvable:$true] %s736
          %739 = dma.hbm_to_vmem [thread:$0]  %s11, 16, %s737, [#allocation9]
        $region28: #{tpu_custom_call.1} parent=11 // pred_fallthru
          _
        // Predicated region
        $region29: #{tpu_custom_call.1} parent=11 // pred_check
          %p740 = pneg %p380
        $region30: #{tpu_custom_call.1} parent=11 // pred_check_branch
          %742 = sbr.rel (%p740) target = $region32
        $region31: #{tpu_custom_call.1} parent=11 // pred_region
          %s744 = ssub.s32 256, 256
          %745 = vsyncadd [#allocation12], %s744
          %s746 = sshll.u32 [#allocation11], 4
          %s747 = int_to_ptr.vmem [resolvable:$true] %s746
          %752 = dma.hbm_to_vmem [thread:$0]  %s12, 256, %s747, [#allocation12], 64, 64, 4
        $region32: #{tpu_custom_call.1} parent=11 // pred_fallthru
          _
        // Predicated region
        $region33: #{tpu_custom_call.1} parent=11 // pred_check
          %p753 = pneg %p401
        $region34: #{tpu_custom_call.1} parent=11 // pred_check_branch
          %755 = sbr.rel (%p753) target = $region36
        $region35: #{tpu_custom_call.1} parent=11 // pred_region
          %s757 = ssub.s32 16, 16
          %758 = vsyncadd [#allocation12], %s757
          %s760 = sshll.u32 [#allocation13], 4
          %s761 = int_to_ptr.vmem [resolvable:$true] %s760
          %763 = dma.hbm_to_vmem [thread:$0]  %s13, 16, %s761, [#allocation12]
        $region36: #{tpu_custom_call.1} parent=11 // pred_fallthru
          _
        // Predicated region
        $region37: #{tpu_custom_call.1} parent=11 // pred_check
          %p764 = pneg %p422
        $region38: #{tpu_custom_call.1} parent=11 // pred_check_branch
          %766 = sbr.rel (%p764) target = $region40
        $region39: #{tpu_custom_call.1} parent=11 // pred_region
          _
        $region40: #{tpu_custom_call.1} parent=11 // pred_fallthru
          _
        // Predicated region
        $region41: #{tpu_custom_call.1} parent=11 // pred_check
          %p767 = pneg %p443
        $region42: #{tpu_custom_call.1} parent=11 // pred_check_branch
          %769 = sbr.rel (%p767) target = $region44
        $region43: #{tpu_custom_call.1} parent=11 // pred_region
          _
        $region44: #{tpu_custom_call.1} parent=11 // pred_fallthru
          _
        // Predicated region
        $region45: #{tpu_custom_call.1} parent=11 // pred_check
          %p770 = pneg %p464
        $region46: #{tpu_custom_call.1} parent=11 // pred_check_branch
          %772 = sbr.rel (%p770) target = $region48
        $region47: #{tpu_custom_call.1} parent=11 // pred_region
          _
        $region48: #{tpu_custom_call.1} parent=11 // pred_fallthru
          _
        // Predicated region
        $region49: #{tpu_custom_call.1} parent=11 // pred_check
          %p773 = pneg %p485
        $region50: #{tpu_custom_call.1} parent=11 // pred_check_branch
          %775 = sbr.rel (%p773) target = $region52
        $region51: #{tpu_custom_call.1} parent=11 // pred_region
          _
        $region52: #{tpu_custom_call.1} parent=11 // pred_fallthru
          _
        // Predicated region
        $region53: #{tpu_custom_call.1} parent=11 // pred_check
          %p776 = pneg %p506
        $region54: #{tpu_custom_call.1} parent=11 // pred_check_branch
          %778 = sbr.rel (%p776) target = $region56
        $region55: #{tpu_custom_call.1} parent=11 // pred_region
          _
        $region56: #{tpu_custom_call.1} parent=11 // pred_fallthru
          _
        // Predicated region
        $region57: #{tpu_custom_call.1} parent=11 // pred_check
          %p779 = pneg %p527
        $region58: #{tpu_custom_call.1} parent=11 // pred_check_branch
          %781 = sbr.rel (%p779) target = $region60
        $region59: #{tpu_custom_call.1} parent=11 // pred_region
          _
        $region60: #{tpu_custom_call.1} parent=11 // pred_fallthru
          _
        // Predicated region
        $region61: #{tpu_custom_call.1} parent=11 // pred_check
          %p782 = pneg %p548
        $region62: #{tpu_custom_call.1} parent=11 // pred_check_branch
          %784 = sbr.rel (%p782) target = $region64
        $region63: #{tpu_custom_call.1} parent=11 // pred_region
          _
        $region64: #{tpu_custom_call.1} parent=11 // pred_fallthru
          _
        // Predicated region
        $region65: #{tpu_custom_call.1} parent=11 // pred_check
          %p785 = pneg %p569
        $region66: #{tpu_custom_call.1} parent=11 // pred_check_branch
          %787 = sbr.rel (%p785) target = $region68
        $region67: #{tpu_custom_call.1} parent=11 // pred_region
          _
        $region68: #{tpu_custom_call.1} parent=11 // pred_fallthru
          _
        // Predicated region
        $region69: #{tpu_custom_call.1} parent=11 // pred_check
          %p788 = pneg %p590
        $region70: #{tpu_custom_call.1} parent=11 // pred_check_branch
          %790 = sbr.rel (%p788) target = $region72
        $region71: #{tpu_custom_call.1} parent=11 // pred_region
          _
        $region72: #{tpu_custom_call.1} parent=11 // pred_fallthru
          _
        // Predicated region
        $region73: #{tpu_custom_call.1} parent=11 // pred_check
          %p791 = pneg %p611
        $region74: #{tpu_custom_call.1} parent=11 // pred_check_branch
          %793 = sbr.rel (%p791) target = $region76
        $region75: #{tpu_custom_call.1} parent=11 // pred_region
          _
        $region76: #{tpu_custom_call.1} parent=11 // pred_fallthru
          _
      $region12: #{tpu_custom_call.1} parent=5 // pred_fallthru
        _
      %p794 = scmp.lt.s32.totalorder %s47, 2
      // Predicated region
      $region77: #{tpu_custom_call.1} parent=5 // pred_check
        %p795 = pneg %p794
      $region78: #{tpu_custom_call.1} parent=5 // pred_check_branch
        %797 = sbr.rel (%p795) target = $region80
      $region79: #{tpu_custom_call.1} parent=5 // pred_region
        // Predicated region
        $region81: #{tpu_custom_call.1} parent=79 // pred_check
          %p798 = pneg %p81
        $region82: #{tpu_custom_call.1} parent=79 // pred_check_branch
          %800 = sbr.rel (%p798) target = $region84
        $region83: #{tpu_custom_call.1} parent=79 // pred_region
          %p801 = scmp.lt.s32.totalorder %s54, 1
          %s802 = scalar_select %p801, %s54, 1
          %p803 = scmp.lt.s32.totalorder %s55, 0
          %s804 = scalar_select %p803, %s55, 0
          %s805 = sadd.s32 %s804, %s802
          %s806 = smul.addr %s805, 8
          %s807 = scalar_lea.vmem %s0, %s806
        $region84: #{tpu_custom_call.1} parent=79 // pred_fallthru
          _
        // Predicated region
        $region85: #{tpu_custom_call.1} parent=79 // pred_check
          %p808 = pneg %p109
        $region86: #{tpu_custom_call.1} parent=79 // pred_check_branch
          %810 = sbr.rel (%p808) target = $region88
        $region87: #{tpu_custom_call.1} parent=79 // pred_region
          %p811 = scmp.lt.s32.totalorder %s54, 1
          %s812 = scalar_select %p811, %s54, 1
          %p813 = scmp.lt.s32.totalorder %s55, 0
          %s814 = scalar_select %p813, %s55, 0
          %s815 = smul.addr %s812, 4
          %s816 = sadd.s32 %s814, %s815
          %s817 = smul.addr %s816, 4
          %s818 = scalar_lea.vmem %s1, %s817
        $region88: #{tpu_custom_call.1} parent=79 // pred_fallthru
          _
        // Predicated region
        $region89: #{tpu_custom_call.1} parent=79 // pred_check
          %p819 = pneg %p135
        $region90: #{tpu_custom_call.1} parent=79 // pred_check_branch
          %821 = sbr.rel (%p819) target = $region92
        $region91: #{tpu_custom_call.1} parent=79 // pred_region
          %p822 = scmp.lt.s32.totalorder %s54, 1
          %s823 = scalar_select %p822, %s54, 1
          %s824 = smul.addr %s823, 4
          %s825 = smul.addr %s824, 4
          %s826 = scalar_lea.vmem %s2, %s825
        $region92: #{tpu_custom_call.1} parent=79 // pred_fallthru
          _
        // Predicated region
        $region93: #{tpu_custom_call.1} parent=79 // pred_check
          %p827 = pneg %p161
        $region94: #{tpu_custom_call.1} parent=79 // pred_check_branch
          %829 = sbr.rel (%p827) target = $region96
        $region95: #{tpu_custom_call.1} parent=79 // pred_region
          %p830 = scmp.lt.s32.totalorder %s54, 1
          %s831 = scalar_select %p830, %s54, 1
          %s832 = smul.addr %s831, 4
          %s833 = smul.addr %s832, 4
          %s834 = scalar_lea.vmem %s3, %s833
        $region96: #{tpu_custom_call.1} parent=79 // pred_fallthru
          _
        // Predicated region
        $region97: #{tpu_custom_call.1} parent=79 // pred_check
          %p835 = pneg %p187
        $region98: #{tpu_custom_call.1} parent=79 // pred_check_branch
          %837 = sbr.rel (%p835) target = $region100
        $region99: #{tpu_custom_call.1} parent=79 // pred_region
          %s838 = sand.u32 %s177, 1
          %s839 = scalar_lea.sflag [#allocation3], %s838
          %s840 = sand.u32 %s177, 1
          %s841 = smul.addr %s840, 16
          %s842 = scalar_lea.vmem [#allocation2], %s841
          %s844 = ssub.s32 256, 256
          %845 = vsyncadd %s839, %s844
          %s846 = smul.addr %s54, 4
          %s847 = smul.addr %s846, 64
          %s848 = scalar_lea.hbm %s4, %s847
          %s849 = sshll.u32 %s842, 4
          %s850 = int_to_ptr.vmem [resolvable:$true] %s849
          %855 = dma.hbm_to_vmem [thread:$0]  %s848, 256, %s850, %s839, 64, 64, 4
        $region100: #{tpu_custom_call.1} parent=79 // pred_fallthru
          _
        // Predicated region
        $region101: #{tpu_custom_call.1} parent=79 // pred_check
          %p856 = pneg %p213
        $region102: #{tpu_custom_call.1} parent=79 // pred_check_branch
          %858 = sbr.rel (%p856) target = $region104
        $region103: #{tpu_custom_call.1} parent=79 // pred_region
          %p859 = scmp.lt.s32.totalorder %s54, 1
          %s860 = scalar_select %p859, %s54, 1
          %s861 = smul.addr %s860, 8
          %s862 = smul.addr %s861, 4
          %s863 = scalar_lea.vmem %s5, %s862
        $region104: #{tpu_custom_call.1} parent=79 // pred_fallthru
          _
        // Predicated region
        $region105: #{tpu_custom_call.1} parent=79 // pred_check
          %p864 = pneg %p241
        $region106: #{tpu_custom_call.1} parent=79 // pred_check_branch
          %866 = sbr.rel (%p864) target = $region108
        $region107: #{tpu_custom_call.1} parent=79 // pred_region
          %s867 = sand.u32 %s47, 1
          %s868 = scalar_lea.sflag [#allocation6], %s867
          %s869 = sand.u32 %s231, 1
          %s870 = smul.addr %s869, 8
          %s871 = scalar_lea.vmem [#allocation5], %s870
          %s873 = ssub.s32 128, 128
          %874 = vsyncadd %s868, %s873
          %s875 = sadd.s32 %s55, %s54
          %s876 = smul.addr %s875, 128
          %s877 = scalar_lea.hbm %s6, %s876
          %s879 = sshll.u32 %s871, 4
          %s880 = int_to_ptr.vmem [resolvable:$true] %s879
          %882 = dma.hbm_to_vmem [thread:$0]  %s877, 128, %s880, %s868
        $region108: #{tpu_custom_call.1} parent=79 // pred_fallthru
          _
        // Predicated region
        $region109: #{tpu_custom_call.1} parent=79 // pred_check
          %p883 = pneg %p269
        $region110: #{tpu_custom_call.1} parent=79 // pred_check_branch
          %885 = sbr.rel (%p883) target = $region112
        $region111: #{tpu_custom_call.1} parent=79 // pred_region
          %s886 = sand.u32 %s47, 1
          %s887 = scalar_lea.sflag [#allocation6], %s886
          %s888 = sand.u32 %s259, 1
          %s889 = smul.addr %s888, 8
          %s890 = scalar_lea.vmem [#allocation7], %s889
          %s892 = ssub.s32 128, 128
          %893 = vsyncadd %s887, %s892
          %s894 = sadd.s32 %s55, %s54
          %s895 = smul.addr %s894, 128
          %s896 = scalar_lea.hbm %s7, %s895
          %s898 = sshll.u32 %s890, 4
          %s899 = int_to_ptr.vmem [resolvable:$true] %s898
          %901 = dma.hbm_to_vmem [thread:$0]  %s896, 128, %s899, %s887
        $region112: #{tpu_custom_call.1} parent=79 // pred_fallthru
          _
      $region80: #{tpu_custom_call.1} parent=5 // pred_fallthru
        _
      %p902 = scmp.le.s32.totalorder 1, %s47
      %p903 = scmp.lt.s32.totalorder %s47, 3
      %p904 = pnand %p902, %p903
      %p905 = pneg %p904
      // Predicated region
      $region113: #{tpu_custom_call.1} parent=5 // pred_check
        _
      $region114: #{tpu_custom_call.1} parent=5 // pred_check_branch
        %907 = sbr.rel (%p904) target = $region116
      $region115: #{tpu_custom_call.1} parent=5 // pred_region
        %s908 = ssub.s32 %s47, 1
        %s909 = sand.u32 %s180, 1
        %s910 = scalar_lea.sflag [#allocation3], %s909
        %s911 = sand.u32 %s180, 1
        %s912 = smul.addr %s911, 16
        %s913 = scalar_lea.vmem [#allocation2], %s912
        // Predicated region
        $region117: #{tpu_custom_call.1} parent=115 // pred_check
          %p914 = pneg %p193
        $region118: #{tpu_custom_call.1} parent=115 // pred_check_branch
          %916 = sbr.rel (%p914) target = $region120
        $region119: #{tpu_custom_call.1} parent=115 // pred_region
          %917 = dma.done %s910, 256
        $region120: #{tpu_custom_call.1} parent=115 // pred_fallthru
          _
        %s918 = sand.u32 %s52, 1
        %s919 = scalar_lea.sflag [#allocation6], %s918
        %s920 = sand.u32 %s234, 1
        %s921 = smul.addr %s920, 8
        %s922 = scalar_lea.vmem [#allocation5], %s921
        // Predicated region
        $region121: #{tpu_custom_call.1} parent=115 // pred_check
          %p923 = pneg %p247
        $region122: #{tpu_custom_call.1} parent=115 // pred_check_branch
          %925 = sbr.rel (%p923) target = $region124
        $region123: #{tpu_custom_call.1} parent=115 // pred_region
          %926 = dma.done %s919, 128
        $region124: #{tpu_custom_call.1} parent=115 // pred_fallthru
          _
        %s927 = sand.u32 %s52, 1
        %s928 = scalar_lea.sflag [#allocation6], %s927
        %s929 = sand.u32 %s262, 1
        %s930 = smul.addr %s929, 8
        %s931 = scalar_lea.vmem [#allocation7], %s930
        // Predicated region
        $region125: #{tpu_custom_call.1} parent=115 // pred_check
          %p932 = pneg %p275
        $region126: #{tpu_custom_call.1} parent=115 // pred_check_branch
          %934 = sbr.rel (%p932) target = $region128
        $region127: #{tpu_custom_call.1} parent=115 // pred_region
          %935 = dma.done %s928, 128
        $region128: #{tpu_custom_call.1} parent=115 // pred_fallthru
          _
        // Predicated region
        $region129: #{tpu_custom_call.1} parent=115 // pred_check
          %p936 = pneg %p296
        $region130: #{tpu_custom_call.1} parent=115 // pred_check_branch
          %938 = sbr.rel (%p936) target = $region132
        $region131: #{tpu_custom_call.1} parent=115 // pred_region
          %939 = dma.done [#allocation9], 256
        $region132: #{tpu_custom_call.1} parent=115 // pred_fallthru
          _
        // Predicated region
        $region133: #{tpu_custom_call.1} parent=115 // pred_check
          %p940 = pneg %p359
        $region134: #{tpu_custom_call.1} parent=115 // pred_check_branch
          %942 = sbr.rel (%p940) target = $region136
        $region135: #{tpu_custom_call.1} parent=115 // pred_region
          %943 = dma.done [#allocation9], 16
        $region136: #{tpu_custom_call.1} parent=115 // pred_fallthru
          _
        // Predicated region
        $region137: #{tpu_custom_call.1} parent=115 // pred_check
          %p944 = pneg %p380
        $region138: #{tpu_custom_call.1} parent=115 // pred_check_branch
          %946 = sbr.rel (%p944) target = $region140
        $region139: #{tpu_custom_call.1} parent=115 // pred_region
          %947 = dma.done [#allocation12], 256
        $region140: #{tpu_custom_call.1} parent=115 // pred_fallthru
          _
        // Predicated region
        $region141: #{tpu_custom_call.1} parent=115 // pred_check
          %p948 = pneg %p401
        $region142: #{tpu_custom_call.1} parent=115 // pred_check_branch
          %950 = sbr.rel (%p948) target = $region144
        $region143: #{tpu_custom_call.1} parent=115 // pred_region
          %951 = dma.done [#allocation12], 16
        $region144: #{tpu_custom_call.1} parent=115 // pred_fallthru
          _
        %p952 = scmp.lt.s32.totalorder %s56, 1
        %s953 = scalar_select %p952, %s56, 1
        %p954 = scmp.lt.s32.totalorder %s57, 0
        %s955 = scalar_select %p954, %s57, 0
        %s956 = sadd.s32 %s955, %s953
        %s957 = smul.addr %s956, 8
        %s958 = scalar_lea.vmem %s0, %s957
        %p959 = pneg %p87
        %p960 = pneg %p84
        %p961 = scmp.lt.s32.totalorder %s56, 1
        %s962 = scalar_select %p961, %s56, 1
        %p963 = scmp.lt.s32.totalorder %s57, 0
        %s964 = scalar_select %p963, %s57, 0
        %s965 = smul.addr %s962, 4
        %s966 = sadd.s32 %s964, %s965
        %s967 = smul.addr %s966, 4
        %s968 = scalar_lea.vmem %s1, %s967
        %p969 = pneg %p115
        %p970 = pneg %p112
        %p971 = scmp.lt.s32.totalorder %s56, 1
        %s972 = scalar_select %p971, %s56, 1
        %s973 = smul.addr %s972, 4
        %s974 = smul.addr %s973, 4
        %s975 = scalar_lea.vmem %s2, %s974
        %p976 = pneg %p141
        %p977 = pneg %p138
        %p978 = scmp.lt.s32.totalorder %s56, 1
        %s979 = scalar_select %p978, %s56, 1
        %s980 = smul.addr %s979, 4
        %s981 = smul.addr %s980, 4
        %s982 = scalar_lea.vmem %s3, %s981
        %p983 = pneg %p167
        %p984 = pneg %p164
        %s985 = sand.u32 %s180, 1
        %s986 = scalar_lea.sflag [#allocation3], %s985
        %s987 = sand.u32 %s180, 1
        %s988 = smul.addr %s987, 16
        %s989 = scalar_lea.vmem [#allocation2], %s988
        %p990 = pneg %p193
        %p991 = pneg %p190
        %p992 = scmp.lt.s32.totalorder %s56, 1
        %s993 = scalar_select %p992, %s56, 1
        %s994 = smul.addr %s993, 8
        %s995 = smul.addr %s994, 4
        %s996 = scalar_lea.vmem %s5, %s995
        %p997 = pneg %p219
        %p998 = pneg %p216
        %s999 = sand.u32 %s52, 1
        %s1000 = scalar_lea.sflag [#allocation6], %s999
        %s1001 = sand.u32 %s234, 1
        %s1002 = smul.addr %s1001, 8
        %s1003 = scalar_lea.vmem [#allocation5], %s1002
        %p1004 = pneg %p247
        %p1005 = pneg %p244
        %s1006 = sand.u32 %s52, 1
        %s1007 = scalar_lea.sflag [#allocation6], %s1006
        %s1008 = sand.u32 %s262, 1
        %s1009 = smul.addr %s1008, 8
        %s1010 = scalar_lea.vmem [#allocation7], %s1009
        %p1011 = pneg %p275
        %p1012 = pneg %p272
        %p1013 = pneg %p296
        %p1014 = pneg %p293
        %p1015 = pneg %p317
        %p1016 = pneg %p314
        %p1017 = pneg %p338
        %p1018 = pneg %p335
        %p1019 = pneg %p359
        %p1020 = pneg %p356
        %p1021 = pneg %p380
        %p1022 = pneg %p377
        %p1023 = pneg %p401
        %p1024 = pneg %p398
        %p1025 = pneg %p422
        %p1026 = pneg %p419
        %p1027 = pneg %p443
        %p1028 = pneg %p440
        %p1029 = pneg %p464
        %p1030 = pneg %p461
        %p1031 = pneg %p485
        %p1032 = pneg %p482
        %p1033 = pneg %p506
        %p1034 = pneg %p503
        %p1035 = pneg %p527
        %p1036 = pneg %p524
        %p1037 = pneg %p548
        %p1038 = pneg %p545
        %p1039 = pneg %p569
        %p1040 = pneg %p566
        %p1041 = pneg %p590
        %p1042 = pneg %p587
        %p1043 = pneg %p611
        %p1044 = pneg %p608
        %p1045 = pneg %p639
        %p1046 = pneg %p636
        %s1047 = sand.u32 %s626, 1
        %s1048 = scalar_lea.sflag [#allocation4], %s1047
        %s1049 = sand.u32 %s626, 1
        %s1050 = smul.addr %s1049, 8
        %s1051 = scalar_lea.vmem [#allocation14], %s1050
        %p1052 = pneg %p667
        %p1053 = pneg %p664
        %s1054 = sand.u32 %s52, 1
        %s1055 = scalar_lea.sflag [#allocation16], %s1054
        %s1056 = sand.u32 %s654, 1
        %s1057 = smul.addr %s1056, 32
        %s1058 = scalar_lea.vmem [#allocation15], %s1057
        %p1059 = pneg %p695
        %p1060 = pneg %p692
        %s1061 = sand.u32 %s52, 1
        %s1062 = scalar_lea.sflag [#allocation16], %s1061
        %s1063 = sand.u32 %s682, 1
        %s1064 = smul.addr %s1063, 32
        %s1065 = scalar_lea.vmem [#allocation17], %s1064
        %p1066 = scmp.lt.s32.totalorder %s56, 1
        %s1067 = scalar_select %p1066, %s56, 1
        %p1068 = scmp.lt.s32.totalorder %s57, 0
        %s1069 = scalar_select %p1068, %s57, 0
        %s1070 = sadd.s32 %s1069, %s1067
        %s1071 = smul.addr %s1070, 8
        %s1072 = scalar_lea.vmem %s0, %s1071
        %p1073 = scmp.lt.s32.totalorder %s56, 1
        %s1074 = scalar_select %p1073, %s56, 1
        %p1075 = scmp.lt.s32.totalorder %s57, 0
        %s1076 = scalar_select %p1075, %s57, 0
        %s1077 = smul.addr %s1074, 4
        %s1078 = sadd.s32 %s1076, %s1077
        %s1079 = smul.addr %s1078, 4
        %s1080 = scalar_lea.vmem %s1, %s1079
        %p1081 = scmp.lt.s32.totalorder %s56, 1
        %s1082 = scalar_select %p1081, %s56, 1
        %s1083 = smul.addr %s1082, 4
        %s1084 = smul.addr %s1083, 4
        %s1085 = scalar_lea.vmem %s2, %s1084
        %p1086 = scmp.lt.s32.totalorder %s56, 1
        %s1087 = scalar_select %p1086, %s56, 1
        %s1088 = smul.addr %s1087, 4
        %s1089 = smul.addr %s1088, 4
        %s1090 = scalar_lea.vmem %s3, %s1089
        %p1091 = scmp.lt.s32.totalorder %s56, 1
        %s1092 = scalar_select %p1091, %s56, 1
        %s1093 = smul.addr %s1092, 8
        %s1094 = smul.addr %s1093, 4
        %s1095 = scalar_lea.vmem %s5, %s1094
        %v1097 = vld [vmem:[%s1072] sm:$0xff]
        %v1098 = vld [vmem:[%s1080] sm:$0xf]
        %v1099 = vld [vmem:[%s1080 + $0x4] sm:$0xf]
        %v1100 = vld [vmem:[%s1080 + $0x8] sm:$0xf]
        %v1101 = vld [vmem:[%s1080 + $0xc] sm:$0xf]
        %v1102 = vld [vmem:[%s1085] sm:$0xf]
        %v1103 = vld [vmem:[%s1085 + $0x4] sm:$0xf]
        %v1104 = vld [vmem:[%s1085 + $0x8] sm:$0xf]
        %v1105 = vld [vmem:[%s1085 + $0xc] sm:$0xf]
        %v1106 = vld [vmem:[%s1090] sm:$0xf]
        %v1107 = vld [vmem:[%s1090 + $0x4] sm:$0xf]
        %v1108 = vld [vmem:[%s1090 + $0x8] sm:$0xf]
        %v1109 = vld [vmem:[%s1090 + $0xc] sm:$0xf]
        %v1110 = vld [vmem:[%s922] sm:$0xff]
        %vm1111 = vcmask 64512
        %v1113 = vsel %vm1111, %v1098, 0
        %vm1115 = vcmask 1043456
        %v1117 = vsel %vm1115, %v1102, 0
        %1119 = vmatprep.subr.bf16.mxu0 0
        %1120 = vmatpush1.bf16.msra.mxu0 %v1117
        %1121 = vmatprep.subr.bf16.mxu0 0
        %1122 = vmatpush1.bf16.msra.mxu0 0
        %1123 = vmatprep.subr.bf16.mxu0 0
        %1124 = vmatpush1.bf16.msra.mxu0 0
        %1125 = vmatprep.subr.bf16.mxu0 0
        %1126 = vmatpush1.bf16.msra.mxu0 0
        %1127 = vmatprep.subr.bf16.mxu0 0
        %1128 = vmatpush1.bf16.msra.mxu0 0
        %1129 = vmatprep.subr.bf16.mxu0 0
        %1130 = vmatpush1.bf16.msra.mxu0 0
        %1131 = vmatprep.subr.bf16.mxu0 0
        %1132 = vmatpush1.bf16.msra.mxu0 0
        %1133 = vmatprep.subr.bf16.mxu0 0
        %1134 = vmatpush1.bf16.msra.mxu0 0
        %1135 = vmatprep.subr.bf16.mxu0 0
        %1136 = vmatpush1.bf16.msra.mxu0 0
        %1137 = vmatprep.subr.bf16.mxu0 0
        %1138 = vmatpush1.bf16.msra.mxu0 0
        %1139 = vmatprep.subr.bf16.mxu0 0
        %1140 = vmatpush1.bf16.msra.mxu0 0
        %1141 = vmatprep.subr.bf16.mxu0 0
        %1142 = vmatpush1.bf16.msra.mxu0 0
        %1143 = vmatprep.subr.bf16.mxu0 0
        %1144 = vmatpush1.bf16.msra.mxu0 0
        %1145 = vmatprep.subr.bf16.mxu0 0
        %1146 = vmatpush1.bf16.msra.mxu0 0
        %1147 = vmatprep.subr.bf16.mxu0 0
        %1148 = vmatpush1.bf16.msra.mxu0 0
        %1149 = vmatprep.subr.bf16.mxu0 0
        %1150 = vmatpush1.bf16.msra.mxu0 0
        %1151 = vmatprep.mubr.bf16.mxu0 0
        %1152 = vmatmul.mubr.bf16.gmra.mrb[0].mxu0 %v1113
        %v1153 = vpop.f32.mrb[0].mxu0
        %v1154 = vadd.f32 %v1110, %v1153
        %v1155 = vpop.f32.mrb[0].mxu0
        %v1156 = vpop.f32.mrb[0].mxu0
        %v1157 = vpop.f32.mrb[0].mxu0
        %1158 = vdwg.mxu0
        %v1160 = vsel %vm1111, %v1099, 0
        %v1163 = vsel %vm1115, %v1103, 0
        %1165 = vmatprep.subr.bf16.mxu0 0
        %1166 = vmatpush1.bf16.msra.mxu0 %v1163
        %1167 = vmatprep.subr.bf16.mxu0 0
        %1168 = vmatpush1.bf16.msra.mxu0 0
        %1169 = vmatprep.subr.bf16.mxu0 0
        %1170 = vmatpush1.bf16.msra.mxu0 0
        %1171 = vmatprep.subr.bf16.mxu0 0
        %1172 = vmatpush1.bf16.msra.mxu0 0
        %1173 = vmatprep.subr.bf16.mxu0 0
        %1174 = vmatpush1.bf16.msra.mxu0 0
        %1175 = vmatprep.subr.bf16.mxu0 0
        %1176 = vmatpush1.bf16.msra.mxu0 0
        %1177 = vmatprep.subr.bf16.mxu0 0
        %1178 = vmatpush1.bf16.msra.mxu0 0
        %1179 = vmatprep.subr.bf16.mxu0 0
        %1180 = vmatpush1.bf16.msra.mxu0 0
        %1181 = vmatprep.subr.bf16.mxu0 0
        %1182 = vmatpush1.bf16.msra.mxu0 0
        %1183 = vmatprep.subr.bf16.mxu0 0
        %1184 = vmatpush1.bf16.msra.mxu0 0
        %1185 = vmatprep.subr.bf16.mxu0 0
        %1186 = vmatpush1.bf16.msra.mxu0 0
        %1187 = vmatprep.subr.bf16.mxu0 0
        %1188 = vmatpush1.bf16.msra.mxu0 0
        %1189 = vmatprep.subr.bf16.mxu0 0
        %1190 = vmatpush1.bf16.msra.mxu0 0
        %1191 = vmatprep.subr.bf16.mxu0 0
        %1192 = vmatpush1.bf16.msra.mxu0 0
        %1193 = vmatprep.subr.bf16.mxu0 0
        %1194 = vmatpush1.bf16.msra.mxu0 0
        %1195 = vmatprep.subr.bf16.mxu0 0
        %1196 = vmatpush1.bf16.msra.mxu0 0
        %1197 = vmatprep.mubr.bf16.mxu0 0
        %1198 = vmatmul.mubr.bf16.gmra.mrb[0].mxu0 %v1160
        %v1199 = vpop.f32.mrb[0].mxu0
        %v1200 = vadd.f32 %v1110, %v1199
        %v1201 = vpop.f32.mrb[0].mxu0
        %v1202 = vpop.f32.mrb[0].mxu0
        %v1203 = vpop.f32.mrb[0].mxu0
        %1204 = vdwg.mxu0
        %v1206 = vsel %vm1111, %v1100, 0
        %v1209 = vsel %vm1115, %v1104, 0
        %1211 = vmatprep.subr.bf16.mxu0 0
        %1212 = vmatpush1.bf16.msra.mxu0 %v1209
        %1213 = vmatprep.subr.bf16.mxu0 0
        %1214 = vmatpush1.bf16.msra.mxu0 0
        %1215 = vmatprep.subr.bf16.mxu0 0
        %1216 = vmatpush1.bf16.msra.mxu0 0
        %1217 = vmatprep.subr.bf16.mxu0 0
        %1218 = vmatpush1.bf16.msra.mxu0 0
        %1219 = vmatprep.subr.bf16.mxu0 0
        %1220 = vmatpush1.bf16.msra.mxu0 0
        %1221 = vmatprep.subr.bf16.mxu0 0
        %1222 = vmatpush1.bf16.msra.mxu0 0
        %1223 = vmatprep.subr.bf16.mxu0 0
        %1224 = vmatpush1.bf16.msra.mxu0 0
        %1225 = vmatprep.subr.bf16.mxu0 0
        %1226 = vmatpush1.bf16.msra.mxu0 0
        %1227 = vmatprep.subr.bf16.mxu0 0
        %1228 = vmatpush1.bf16.msra.mxu0 0
        %1229 = vmatprep.subr.bf16.mxu0 0
        %1230 = vmatpush1.bf16.msra.mxu0 0
        %1231 = vmatprep.subr.bf16.mxu0 0
        %1232 = vmatpush1.bf16.msra.mxu0 0
        %1233 = vmatprep.subr.bf16.mxu0 0
        %1234 = vmatpush1.bf16.msra.mxu0 0
        %1235 = vmatprep.subr.bf16.mxu0 0
        %1236 = vmatpush1.bf16.msra.mxu0 0
        %1237 = vmatprep.subr.bf16.mxu0 0
        %1238 = vmatpush1.bf16.msra.mxu0 0
        %1239 = vmatprep.subr.bf16.mxu0 0
        %1240 = vmatpush1.bf16.msra.mxu0 0
        %1241 = vmatprep.subr.bf16.mxu0 0
        %1242 = vmatpush1.bf16.msra.mxu0 0
        %1243 = vmatprep.mubr.bf16.mxu0 0
        %1244 = vmatmul.mubr.bf16.gmra.mrb[0].mxu0 %v1206
        %v1245 = vpop.f32.mrb[0].mxu0
        %v1246 = vadd.f32 %v1110, %v1245
        %v1247 = vpop.f32.mrb[0].mxu0
        %v1248 = vpop.f32.mrb[0].mxu0
        %v1249 = vpop.f32.mrb[0].mxu0
        %1250 = vdwg.mxu0
        %v1252 = vsel %vm1111, %v1101, 0
        %v1255 = vsel %vm1115, %v1105, 0
        %1257 = vmatprep.subr.bf16.mxu0 0
        %1258 = vmatpush1.bf16.msra.mxu0 %v1255
        %1259 = vmatprep.subr.bf16.mxu0 0
        %1260 = vmatpush1.bf16.msra.mxu0 0
        %1261 = vmatprep.subr.bf16.mxu0 0
        %1262 = vmatpush1.bf16.msra.mxu0 0
        %1263 = vmatprep.subr.bf16.mxu0 0
        %1264 = vmatpush1.bf16.msra.mxu0 0
        %1265 = vmatprep.subr.bf16.mxu0 0
        %1266 = vmatpush1.bf16.msra.mxu0 0
        %1267 = vmatprep.subr.bf16.mxu0 0
        %1268 = vmatpush1.bf16.msra.mxu0 0
        %1269 = vmatprep.subr.bf16.mxu0 0
        %1270 = vmatpush1.bf16.msra.mxu0 0
        %1271 = vmatprep.subr.bf16.mxu0 0
        %1272 = vmatpush1.bf16.msra.mxu0 0
        %1273 = vmatprep.subr.bf16.mxu0 0
        %1274 = vmatpush1.bf16.msra.mxu0 0
        %1275 = vmatprep.subr.bf16.mxu0 0
        %1276 = vmatpush1.bf16.msra.mxu0 0
        %1277 = vmatprep.subr.bf16.mxu0 0
        %1278 = vmatpush1.bf16.msra.mxu0 0
        %1279 = vmatprep.subr.bf16.mxu0 0
        %1280 = vmatpush1.bf16.msra.mxu0 0
        %1281 = vmatprep.subr.bf16.mxu0 0
        %1282 = vmatpush1.bf16.msra.mxu0 0
        %1283 = vmatprep.subr.bf16.mxu0 0
        %1284 = vmatpush1.bf16.msra.mxu0 0
        %1285 = vmatprep.subr.bf16.mxu0 0
        %1286 = vmatpush1.bf16.msra.mxu0 0
        %1287 = vmatprep.subr.bf16.mxu0 0
        %1288 = vmatpush1.bf16.msra.mxu0 0
        %1289 = vmatprep.mubr.bf16.mxu0 0
        %1290 = vmatmul.mubr.bf16.gmra.mrb[0].mxu0 %v1252
        %v1291 = vpop.f32.mrb[0].mxu0
        %v1292 = vadd.f32 %v1110, %v1291
        %v1293 = vpop.f32.mrb[0].mxu0
        %v1294 = vpop.f32.mrb[0].mxu0
        %v1295 = vpop.f32.mrb[0].mxu0
        %1296 = vdwg.mxu0
        %v1297 = vsel %vm1111, %v1154, -inf
        %1298 = vmax.xlane.f32.xlu0 %v1297
        %v1299 = vpop.xlane.xlu0 %1298
        %v1300 = vsel %vm1111, %v1200, -inf
        %1301 = vmax.xlane.f32.xlu0 %v1300
        %v1302 = vpop.xlane.xlu0 %1301
        %v1303 = vsel %vm1111, %v1246, -inf
        %1304 = vmax.xlane.f32.xlu0 %v1303
        %v1305 = vpop.xlane.xlu0 %1304
        %v1306 = vsel %vm1111, %v1292, -inf
        %1307 = vmax.xlane.f32.xlu0 %v1306
        %v1308 = vpop.xlane.xlu0 %1307
        %v1309 = vsub.f32 %v1154, %v1299
        %v1310 = vsub.f32 %v1200, %v1302
        %v1311 = vsub.f32 %v1246, %v1305
        %v1312 = vsub.f32 %v1292, %v1308
        %v1313 = vmul.f32 %v1309, 1.442695
        %v1314 = vpow.pop %v1313
        %v1315 = vmul.f32 %v1310, 1.442695
        %v1316 = vpow.pop %v1315
        %v1317 = vmul.f32 %v1311, 1.442695
        %v1318 = vpow.pop %v1317
        %v1319 = vmul.f32 %v1312, 1.442695
        %v1320 = vpow.pop %v1319
        %v1321 = vsel %vm1111, %v1314, 0.0
        %1322 = vadd.xlane.f32.xlu0 %v1321
        %v1323 = vpop.xlane.xlu0 %1322
        %v1324 = vsel %vm1111, %v1316, 0.0
        %1325 = vadd.xlane.f32.xlu0 %v1324
        %v1326 = vpop.xlane.xlu0 %1325
        %v1327 = vsel %vm1111, %v1318, 0.0
        %1328 = vadd.xlane.f32.xlu0 %v1327
        %v1329 = vpop.xlane.xlu0 %1328
        %v1330 = vsel %vm1111, %v1320, 0.0
        %1331 = vadd.xlane.f32.xlu0 %v1330
        %v1332 = vpop.xlane.xlu0 %1331
        %v1333 = vrcp.pop %v1323
        %v1334 = vrcp.pop %v1326
        %v1335 = vrcp.pop %v1329
        %v1336 = vrcp.pop %v1332
        %v1337 = vmul.f32 %v1314, %v1333
        %v1338 = vmul.f32 %v1316, %v1334
        %v1339 = vmul.f32 %v1318, %v1335
        %v1340 = vmul.f32 %v1320, %v1336
        %1341 = vst.msk [vmem:[%s1058] sm:$0xff] %vm1111, %v1337
        %1342 = vst.msk [vmem:[%s1058 + $0x8] sm:$0xff] %vm1111, %v1338
        %1343 = vst.msk [vmem:[%s1058 + $0x10] sm:$0xff] %vm1111, %v1339
        %1344 = vst.msk [vmem:[%s1058 + $0x18] sm:$0xff] %vm1111, %v1340
        %v1345 = vpack.c.bf16 %v1337, %v1337
        %v1346 = vpack.c.bf16 %v1338, %v1338
        %v1347 = vpack.c.bf16 %v1339, %v1339
        %v1348 = vpack.c.bf16 %v1340, %v1340
        %v1350 = vsel %vm1111, %v1345, 0
        %v1353 = vsel %vm1115, %v1106, 0
        %1355 = vmatprep.subr.bf16.mxu0 0
        %1356 = vmatpush1.bf16.msra.mxu0 %v1353
        %1357 = vmatprep.subr.bf16.mxu0 0
        %1358 = vmatpush1.bf16.msra.mxu0 0
        %1359 = vmatprep.subr.bf16.mxu0 0
        %1360 = vmatpush1.bf16.msra.mxu0 0
        %1361 = vmatprep.subr.bf16.mxu0 0
        %1362 = vmatpush1.bf16.msra.mxu0 0
        %1363 = vmatprep.subr.bf16.mxu0 0
        %1364 = vmatpush1.bf16.msra.mxu0 0
        %1365 = vmatprep.subr.bf16.mxu0 0
        %1366 = vmatpush1.bf16.msra.mxu0 0
        %1367 = vmatprep.subr.bf16.mxu0 0
        %1368 = vmatpush1.bf16.msra.mxu0 0
        %1369 = vmatprep.subr.bf16.mxu0 0
        %1370 = vmatpush1.bf16.msra.mxu0 0
        %1371 = vmatprep.subr.bf16.mxu0 0
        %1372 = vmatpush1.bf16.msra.mxu0 0
        %1373 = vmatprep.subr.bf16.mxu0 0
        %1374 = vmatpush1.bf16.msra.mxu0 0
        %1375 = vmatprep.subr.bf16.mxu0 0
        %1376 = vmatpush1.bf16.msra.mxu0 0
        %1377 = vmatprep.subr.bf16.mxu0 0
        %1378 = vmatpush1.bf16.msra.mxu0 0
        %1379 = vmatprep.subr.bf16.mxu0 0
        %1380 = vmatpush1.bf16.msra.mxu0 0
        %1381 = vmatprep.subr.bf16.mxu0 0
        %1382 = vmatpush1.bf16.msra.mxu0 0
        %1383 = vmatprep.subr.bf16.mxu0 0
        %1384 = vmatpush1.bf16.msra.mxu0 0
        %1385 = vmatprep.subr.bf16.mxu0 0
        %1386 = vmatpush1.bf16.msra.mxu0 0
        %1387 = vmatprep.mubr.bf16.mxu0 0
        %1388 = vmatmul.mubr.bf16.gmra.mrb[0].mxu0 %v1350
        %v1389 = vpop.f32.mrb[0].mxu0
        %v1390 = vadd.f32 0.0, %v1389
        %v1391 = vpop.f32.mrb[0].mxu0
        %v1392 = vpop.f32.mrb[0].mxu0
        %v1393 = vpop.f32.mrb[0].mxu0
        %1394 = vdwg.mxu0
        %v1396 = vsel %vm1111, %v1346, 0
        %v1399 = vsel %vm1115, %v1107, 0
        %1401 = vmatprep.subr.bf16.mxu0 0
        %1402 = vmatpush1.bf16.msra.mxu0 %v1399
        %1403 = vmatprep.subr.bf16.mxu0 0
        %1404 = vmatpush1.bf16.msra.mxu0 0
        %1405 = vmatprep.subr.bf16.mxu0 0
        %1406 = vmatpush1.bf16.msra.mxu0 0
        %1407 = vmatprep.subr.bf16.mxu0 0
        %1408 = vmatpush1.bf16.msra.mxu0 0
        %1409 = vmatprep.subr.bf16.mxu0 0
        %1410 = vmatpush1.bf16.msra.mxu0 0
        %1411 = vmatprep.subr.bf16.mxu0 0
        %1412 = vmatpush1.bf16.msra.mxu0 0
        %1413 = vmatprep.subr.bf16.mxu0 0
        %1414 = vmatpush1.bf16.msra.mxu0 0
        %1415 = vmatprep.subr.bf16.mxu0 0
        %1416 = vmatpush1.bf16.msra.mxu0 0
        %1417 = vmatprep.subr.bf16.mxu0 0
        %1418 = vmatpush1.bf16.msra.mxu0 0
        %1419 = vmatprep.subr.bf16.mxu0 0
        %1420 = vmatpush1.bf16.msra.mxu0 0
        %1421 = vmatprep.subr.bf16.mxu0 0
        %1422 = vmatpush1.bf16.msra.mxu0 0
        %1423 = vmatprep.subr.bf16.mxu0 0
        %1424 = vmatpush1.bf16.msra.mxu0 0
        %1425 = vmatprep.subr.bf16.mxu0 0
        %1426 = vmatpush1.bf16.msra.mxu0 0
        %1427 = vmatprep.subr.bf16.mxu0 0
        %1428 = vmatpush1.bf16.msra.mxu0 0
        %1429 = vmatprep.subr.bf16.mxu0 0
        %1430 = vmatpush1.bf16.msra.mxu0 0
        %1431 = vmatprep.subr.bf16.mxu0 0
        %1432 = vmatpush1.bf16.msra.mxu0 0
        %1433 = vmatprep.mubr.bf16.mxu0 0
        %1434 = vmatmul.mubr.bf16.gmra.mrb[0].mxu0 %v1396
        %v1435 = vpop.f32.mrb[0].mxu0
        %v1436 = vadd.f32 0.0, %v1435
        %v1437 = vpop.f32.mrb[0].mxu0
        %v1438 = vpop.f32.mrb[0].mxu0
        %v1439 = vpop.f32.mrb[0].mxu0
        %1440 = vdwg.mxu0
        %v1442 = vsel %vm1111, %v1347, 0
        %v1445 = vsel %vm1115, %v1108, 0
        %1447 = vmatprep.subr.bf16.mxu0 0
        %1448 = vmatpush1.bf16.msra.mxu0 %v1445
        %1449 = vmatprep.subr.bf16.mxu0 0
        %1450 = vmatpush1.bf16.msra.mxu0 0
        %1451 = vmatprep.subr.bf16.mxu0 0
        %1452 = vmatpush1.bf16.msra.mxu0 0
        %1453 = vmatprep.subr.bf16.mxu0 0
        %1454 = vmatpush1.bf16.msra.mxu0 0
        %1455 = vmatprep.subr.bf16.mxu0 0
        %1456 = vmatpush1.bf16.msra.mxu0 0
        %1457 = vmatprep.subr.bf16.mxu0 0
        %1458 = vmatpush1.bf16.msra.mxu0 0
        %1459 = vmatprep.subr.bf16.mxu0 0
        %1460 = vmatpush1.bf16.msra.mxu0 0
        %1461 = vmatprep.subr.bf16.mxu0 0
        %1462 = vmatpush1.bf16.msra.mxu0 0
        %1463 = vmatprep.subr.bf16.mxu0 0
        %1464 = vmatpush1.bf16.msra.mxu0 0
        %1465 = vmatprep.subr.bf16.mxu0 0
        %1466 = vmatpush1.bf16.msra.mxu0 0
        %1467 = vmatprep.subr.bf16.mxu0 0
        %1468 = vmatpush1.bf16.msra.mxu0 0
        %1469 = vmatprep.subr.bf16.mxu0 0
        %1470 = vmatpush1.bf16.msra.mxu0 0
        %1471 = vmatprep.subr.bf16.mxu0 0
        %1472 = vmatpush1.bf16.msra.mxu0 0
        %1473 = vmatprep.subr.bf16.mxu0 0
        %1474 = vmatpush1.bf16.msra.mxu0 0
        %1475 = vmatprep.subr.bf16.mxu0 0
        %1476 = vmatpush1.bf16.msra.mxu0 0
        %1477 = vmatprep.subr.bf16.mxu0 0
        %1478 = vmatpush1.bf16.msra.mxu0 0
        %1479 = vmatprep.mubr.bf16.mxu0 0
        %1480 = vmatmul.mubr.bf16.gmra.mrb[0].mxu0 %v1442
        %v1481 = vpop.f32.mrb[0].mxu0
        %v1482 = vadd.f32 0.0, %v1481
        %v1483 = vpop.f32.mrb[0].mxu0
        %v1484 = vpop.f32.mrb[0].mxu0
        %v1485 = vpop.f32.mrb[0].mxu0
        %1486 = vdwg.mxu0
        %v1488 = vsel %vm1111, %v1348, 0
        %v1491 = vsel %vm1115, %v1109, 0
        %1493 = vmatprep.subr.bf16.mxu0 0
        %1494 = vmatpush1.bf16.msra.mxu0 %v1491
        %1495 = vmatprep.subr.bf16.mxu0 0
        %1496 = vmatpush1.bf16.msra.mxu0 0
        %1497 = vmatprep.subr.bf16.mxu0 0
        %1498 = vmatpush1.bf16.msra.mxu0 0
        %1499 = vmatprep.subr.bf16.mxu0 0
        %1500 = vmatpush1.bf16.msra.mxu0 0
        %1501 = vmatprep.subr.bf16.mxu0 0
        %1502 = vmatpush1.bf16.msra.mxu0 0
        %1503 = vmatprep.subr.bf16.mxu0 0
        %1504 = vmatpush1.bf16.msra.mxu0 0
        %1505 = vmatprep.subr.bf16.mxu0 0
        %1506 = vmatpush1.bf16.msra.mxu0 0
        %1507 = vmatprep.subr.bf16.mxu0 0
        %1508 = vmatpush1.bf16.msra.mxu0 0
        %1509 = vmatprep.subr.bf16.mxu0 0
        %1510 = vmatpush1.bf16.msra.mxu0 0
        %1511 = vmatprep.subr.bf16.mxu0 0
        %1512 = vmatpush1.bf16.msra.mxu0 0
        %1513 = vmatprep.subr.bf16.mxu0 0
        %1514 = vmatpush1.bf16.msra.mxu0 0
        %1515 = vmatprep.subr.bf16.mxu0 0
        %1516 = vmatpush1.bf16.msra.mxu0 0
        %1517 = vmatprep.subr.bf16.mxu0 0
        %1518 = vmatpush1.bf16.msra.mxu0 0
        %1519 = vmatprep.subr.bf16.mxu0 0
        %1520 = vmatpush1.bf16.msra.mxu0 0
        %1521 = vmatprep.subr.bf16.mxu0 0
        %1522 = vmatpush1.bf16.msra.mxu0 0
        %1523 = vmatprep.subr.bf16.mxu0 0
        %1524 = vmatpush1.bf16.msra.mxu0 0
        %1525 = vmatprep.mubr.bf16.mxu0 0
        %1526 = vmatmul.mubr.bf16.gmra.mrb[0].mxu0 %v1488
        %v1527 = vpop.f32.mrb[0].mxu0
        %v1528 = vadd.f32 0.0, %v1527
        %v1529 = vpop.f32.mrb[0].mxu0
        %v1530 = vpop.f32.mrb[0].mxu0
        %v1531 = vpop.f32.mrb[0].mxu0
        %1532 = vdwg.mxu0
        %1534 = vrot.lane.b32.xlu0 %v1436, 8
        %v1535 = vpop.permute.xlu0 %1534
        %1538 = vrot.lane.b32.xlu0 %v1482, 16
        %v1539 = vpop.permute.xlu0 %1538
        %1542 = vrot.lane.b32.xlu0 %v1528, 24
        %v1543 = vpop.permute.xlu0 %1542
        %v1545 = vsel %vm1111, %v1390, %v1535
        %vm1546 = vcmask 130048
        %v1547 = vsel %vm1546, %v1545, %v1539
        %vm1548 = vcmask 195584
        %v1549 = vsel %vm1548, %v1547, %v1543
        %v1550 = vpack.c.bf16 %v1549, %v1549
        %v1551 = vld [vmem:[#allocation8] sm:$0xf]
        %v1552 = vld [vmem:[#allocation8 + $0x4] sm:$0xf]
        %v1553 = vld [vmem:[#allocation8 + $0x8] sm:$0xf]
        %v1554 = vld [vmem:[#allocation8 + $0xc] sm:$0xf]
        %v1555 = vld [vmem:[%s9] sm:$0x1]
        %v1557 = vlaneseq
        %v1558 = vshrl.u32 %v1557, 7
        %v1559 = vsub.s32 0, %v1558
        %v1560 = vrot.slane %v1555, %v1559
        %v1566 = vunpack.c.l.b16 %v1551
        %v1567 = vunpack.c.l.b16 %v1552
        %v1568 = vunpack.c.l.b16 %v1553
        %v1569 = vunpack.c.l.b16 %v1554
        %v1570 = vpack.c.b16 %v1567, %v1566
        %v1571 = vpack.c.b16 %v1569, %v1568
        %vm1574 = vcmask 261120
        %v1576 = vsel %vm1574, %v1550, 0
        %1578 = vmatprep.subr.bf16.mxu0 0
        %1579 = vmatpush1.bf16.msra.mxu0 %v1570
        %1580 = vmatprep.subr.bf16.mxu0 0
        %1581 = vmatpush1.bf16.msra.mxu0 %v1571
        %1582 = vmatprep.subr.bf16.mxu0 0
        %1583 = vmatpush1.bf16.msra.mxu0 0
        %1584 = vmatprep.subr.bf16.mxu0 0
        %1585 = vmatpush1.bf16.msra.mxu0 0
        %1586 = vmatprep.subr.bf16.mxu0 0
        %1587 = vmatpush1.bf16.msra.mxu0 0
        %1588 = vmatprep.subr.bf16.mxu0 0
        %1589 = vmatpush1.bf16.msra.mxu0 0
        %1590 = vmatprep.subr.bf16.mxu0 0
        %1591 = vmatpush1.bf16.msra.mxu0 0
        %1592 = vmatprep.subr.bf16.mxu0 0
        %1593 = vmatpush1.bf16.msra.mxu0 0
        %1594 = vmatprep.subr.bf16.mxu0 0
        %1595 = vmatpush1.bf16.msra.mxu0 0
        %1596 = vmatprep.subr.bf16.mxu0 0
        %1597 = vmatpush1.bf16.msra.mxu0 0
        %1598 = vmatprep.subr.bf16.mxu0 0
        %1599 = vmatpush1.bf16.msra.mxu0 0
        %1600 = vmatprep.subr.bf16.mxu0 0
        %1601 = vmatpush1.bf16.msra.mxu0 0
        %1602 = vmatprep.subr.bf16.mxu0 0
        %1603 = vmatpush1.bf16.msra.mxu0 0
        %1604 = vmatprep.subr.bf16.mxu0 0
        %1605 = vmatpush1.bf16.msra.mxu0 0
        %1606 = vmatprep.subr.bf16.mxu0 0
        %1607 = vmatpush1.bf16.msra.mxu0 0
        %1608 = vmatprep.subr.bf16.mxu0 0
        %1609 = vmatpush1.bf16.msra.mxu0 0
        %1610 = vmatprep.mubr.bf16.mxu0 0
        %1611 = vmatmul.mubr.bf16.gmra.mrb[0].mxu0 %v1576
        %v1612 = vpop.f32.mrb[0].mxu0
        %v1613 = vadd.f32 %v1560, %v1612
        %v1614 = vpop.f32.mrb[0].mxu0
        %v1615 = vpop.f32.mrb[0].mxu0
        %v1616 = vpop.f32.mrb[0].mxu0
        %1617 = vdwg.mxu0
        %v1618 = vadd.f32 %v1097, %v1613
        %v1619 = vld [vmem:[%s18] sm:$0x1]
        %v1620 = vld [vmem:[%s19] sm:$0x1]
        %v1621 = vsel %vm1574, %v1618, 0.0
        %1622 = vadd.xlane.f32.xlu0 %v1621
        %v1623 = vpop.xlane.xlu0 %1622
        %v1624 = vrcp.pop 32.0
        %v1625 = vmul.f32 %v1623, %v1624
        %v1626 = vsub.f32 %v1618, %v1625
        %v1627 = vmul.f32 %v1626, %v1626
        %v1628 = vsel %vm1574, %v1627, 0.0
        %1629 = vadd.xlane.f32.xlu0 %v1628
        %v1630 = vpop.xlane.xlu0 %1629
        %v1631 = vmul.f32 %v1630, %v1624
        %v1632 = vadd.f32 %v1631, 1e-05
        %v1633 = vrsqrt.pop %v1632
        %v1634 = vmul.f32 %v1626, %v1633
        %v1636 = vlaneseq
        %v1637 = vshrl.u32 %v1636, 7
        %v1638 = vsub.s32 0, %v1637
        %v1639 = vrot.slane %v1619, %v1638
        %v1641 = vmul.f32 %v1634, %v1639
        %v1643 = vlaneseq
        %v1644 = vshrl.u32 %v1643, 7
        %v1645 = vsub.s32 0, %v1644
        %v1646 = vrot.slane %v1620, %v1645
        %v1648 = vadd.f32 %v1641, %v1646
        %v1649 = vpack.c.bf16 %v1648, %v1648
        %v1650 = vld [vmem:[%s10] sm:$0xf]
        %v1651 = vld [vmem:[%s10 + $0x4] sm:$0xf]
        %v1652 = vld [vmem:[%s10 + $0x8] sm:$0xf]
        %v1653 = vld [vmem:[%s10 + $0xc] sm:$0xf]
        %v1654 = vld [vmem:[#allocation10] sm:$0x1]
        %v1656 = vlaneseq
        %v1657 = vshrl.u32 %v1656, 7
        %v1658 = vsub.s32 0, %v1657
        %v1659 = vrot.slane %v1654, %v1658
        %v1665 = vunpack.c.l.b16 %v1650
        %v1666 = vunpack.c.l.b16 %v1651
        %v1667 = vunpack.c.l.b16 %v1652
        %v1668 = vunpack.c.l.b16 %v1653
        %v1669 = vpack.c.b16 %v1666, %v1665
        %v1670 = vpack.c.b16 %v1668, %v1667
        %v1674 = vsel %vm1574, %v1649, 0
        %1676 = vmatprep.subr.bf16.mxu0 0
        %1677 = vmatpush1.bf16.msra.mxu0 %v1669
        %1678 = vmatprep.subr.bf16.mxu0 0
        %1679 = vmatpush1.bf16.msra.mxu0 %v1670
        %1680 = vmatprep.subr.bf16.mxu0 0
        %1681 = vmatpush1.bf16.msra.mxu0 0
        %1682 = vmatprep.subr.bf16.mxu0 0
        %1683 = vmatpush1.bf16.msra.mxu0 0
        %1684 = vmatprep.subr.bf16.mxu0 0
        %1685 = vmatpush1.bf16.msra.mxu0 0
        %1686 = vmatprep.subr.bf16.mxu0 0
        %1687 = vmatpush1.bf16.msra.mxu0 0
        %1688 = vmatprep.subr.bf16.mxu0 0
        %1689 = vmatpush1.bf16.msra.mxu0 0
        %1690 = vmatprep.subr.bf16.mxu0 0
        %1691 = vmatpush1.bf16.msra.mxu0 0
        %1692 = vmatprep.subr.bf16.mxu0 0
        %1693 = vmatpush1.bf16.msra.mxu0 0
        %1694 = vmatprep.subr.bf16.mxu0 0
        %1695 = vmatpush1.bf16.msra.mxu0 0
        %1696 = vmatprep.subr.bf16.mxu0 0
        %1697 = vmatpush1.bf16.msra.mxu0 0
        %1698 = vmatprep.subr.bf16.mxu0 0
        %1699 = vmatpush1.bf16.msra.mxu0 0
        %1700 = vmatprep.subr.bf16.mxu0 0
        %1701 = vmatpush1.bf16.msra.mxu0 0
        %1702 = vmatprep.subr.bf16.mxu0 0
        %1703 = vmatpush1.bf16.msra.mxu0 0
        %1704 = vmatprep.subr.bf16.mxu0 0
        %1705 = vmatpush1.bf16.msra.mxu0 0
        %1706 = vmatprep.subr.bf16.mxu0 0
        %1707 = vmatpush1.bf16.msra.mxu0 0
        %1708 = vmatprep.mubr.bf16.mxu0 0
        %1709 = vmatmul.mubr.bf16.gmra.mrb[0].mxu0 %v1674
        %v1710 = vpop.f32.mrb[0].mxu0
        %v1711 = vadd.f32 %v1659, %v1710
        %v1712 = vpop.f32.mrb[0].mxu0
        %v1713 = vpop.f32.mrb[0].mxu0
        %v1714 = vpop.f32.mrb[0].mxu0
        %1715 = vdwg.mxu0
        %1717 = vrot.lane.b32.xlu0 %v1711, 120
        %v1718 = vpop.permute.xlu0 %1717
        %1720 = vrot.lane.b32.xlu0 %v1711, 112
        %v1721 = vpop.permute.xlu0 %1720
        %1723 = vrot.lane.b32.xlu0 %v1711, 104
        %v1724 = vpop.permute.xlu0 %1723
        %v1726 = vpack.c.bf16 %v1711, %v1711
        %v1727 = vpack.c.bf16 %v1718, %v1718
        %v1728 = vpack.c.bf16 %v1721, %v1721
        %v1729 = vpack.c.bf16 %v1724, %v1724
        %v1730 = vld [vmem:[%s913] sm:$0xf]
        %v1731 = vld [vmem:[%s913 + $0x4] sm:$0xf]
        %v1732 = vld [vmem:[%s913 + $0x8] sm:$0xf]
        %v1733 = vld [vmem:[%s913 + $0xc] sm:$0xf]
        %v1734 = vld [vmem:[%s1095] sm:$0xf]
        %v1735 = vld [vmem:[%s1095 + $0x4] sm:$0xf]
        %v1736 = vld [vmem:[%s1095 + $0x8] sm:$0xf]
        %v1737 = vld [vmem:[%s1095 + $0xc] sm:$0xf]
        %v1738 = vld [vmem:[%s1095 + $0x10] sm:$0xf]
        %v1739 = vld [vmem:[%s1095 + $0x14] sm:$0xf]
        %v1740 = vld [vmem:[%s1095 + $0x18] sm:$0xf]
        %v1741 = vld [vmem:[%s1095 + $0x1c] sm:$0xf]
        %v1742 = vld [vmem:[%s931] sm:$0xff]
        %v1744 = vsel %vm1111, %v1726, 0
        %v1747 = vsel %vm1115, %v1730, 0
        %1749 = vmatprep.subr.bf16.mxu0 0
        %1750 = vmatpush1.bf16.msra.mxu0 %v1747
        %1751 = vmatprep.subr.bf16.mxu0 0
        %1752 = vmatpush1.bf16.msra.mxu0 0
        %1753 = vmatprep.subr.bf16.mxu0 0
        %1754 = vmatpush1.bf16.msra.mxu0 0
        %1755 = vmatprep.subr.bf16.mxu0 0
        %1756 = vmatpush1.bf16.msra.mxu0 0
        %1757 = vmatprep.subr.bf16.mxu0 0
        %1758 = vmatpush1.bf16.msra.mxu0 0
        %1759 = vmatprep.subr.bf16.mxu0 0
        %1760 = vmatpush1.bf16.msra.mxu0 0
        %1761 = vmatprep.subr.bf16.mxu0 0
        %1762 = vmatpush1.bf16.msra.mxu0 0
        %1763 = vmatprep.subr.bf16.mxu0 0
        %1764 = vmatpush1.bf16.msra.mxu0 0
        %1765 = vmatprep.subr.bf16.mxu0 0
        %1766 = vmatpush1.bf16.msra.mxu0 0
        %1767 = vmatprep.subr.bf16.mxu0 0
        %1768 = vmatpush1.bf16.msra.mxu0 0
        %1769 = vmatprep.subr.bf16.mxu0 0
        %1770 = vmatpush1.bf16.msra.mxu0 0
        %1771 = vmatprep.subr.bf16.mxu0 0
        %1772 = vmatpush1.bf16.msra.mxu0 0
        %1773 = vmatprep.subr.bf16.mxu0 0
        %1774 = vmatpush1.bf16.msra.mxu0 0
        %1775 = vmatprep.subr.bf16.mxu0 0
        %1776 = vmatpush1.bf16.msra.mxu0 0
        %1777 = vmatprep.subr.bf16.mxu0 0
        %1778 = vmatpush1.bf16.msra.mxu0 0
        %1779 = vmatprep.subr.bf16.mxu0 0
        %1780 = vmatpush1.bf16.msra.mxu0 0
        %1781 = vmatprep.mubr.bf16.mxu0 0
        %1782 = vmatmul.mubr.bf16.gmra.mrb[0].mxu0 %v1744
        %v1783 = vpop.f32.mrb[0].mxu0
        %v1784 = vadd.f32 %v1742, %v1783
        %v1785 = vpop.f32.mrb[0].mxu0
        %v1786 = vpop.f32.mrb[0].mxu0
        %v1787 = vpop.f32.mrb[0].mxu0
        %1788 = vdwg.mxu0
        %v1790 = vsel %vm1111, %v1727, 0
        %v1793 = vsel %vm1115, %v1731, 0
        %1795 = vmatprep.subr.bf16.mxu0 0
        %1796 = vmatpush1.bf16.msra.mxu0 %v1793
        %1797 = vmatprep.subr.bf16.mxu0 0
        %1798 = vmatpush1.bf16.msra.mxu0 0
        %1799 = vmatprep.subr.bf16.mxu0 0
        %1800 = vmatpush1.bf16.msra.mxu0 0
        %1801 = vmatprep.subr.bf16.mxu0 0
        %1802 = vmatpush1.bf16.msra.mxu0 0
        %1803 = vmatprep.subr.bf16.mxu0 0
        %1804 = vmatpush1.bf16.msra.mxu0 0
        %1805 = vmatprep.subr.bf16.mxu0 0
        %1806 = vmatpush1.bf16.msra.mxu0 0
        %1807 = vmatprep.subr.bf16.mxu0 0
        %1808 = vmatpush1.bf16.msra.mxu0 0
        %1809 = vmatprep.subr.bf16.mxu0 0
        %1810 = vmatpush1.bf16.msra.mxu0 0
        %1811 = vmatprep.subr.bf16.mxu0 0
        %1812 = vmatpush1.bf16.msra.mxu0 0
        %1813 = vmatprep.subr.bf16.mxu0 0
        %1814 = vmatpush1.bf16.msra.mxu0 0
        %1815 = vmatprep.subr.bf16.mxu0 0
        %1816 = vmatpush1.bf16.msra.mxu0 0
        %1817 = vmatprep.subr.bf16.mxu0 0
        %1818 = vmatpush1.bf16.msra.mxu0 0
        %1819 = vmatprep.subr.bf16.mxu0 0
        %1820 = vmatpush1.bf16.msra.mxu0 0
        %1821 = vmatprep.subr.bf16.mxu0 0
        %1822 = vmatpush1.bf16.msra.mxu0 0
        %1823 = vmatprep.subr.bf16.mxu0 0
        %1824 = vmatpush1.bf16.msra.mxu0 0
        %1825 = vmatprep.subr.bf16.mxu0 0
        %1826 = vmatpush1.bf16.msra.mxu0 0
        %1827 = vmatprep.mubr.bf16.mxu0 0
        %1828 = vmatmul.mubr.bf16.gmra.mrb[0].mxu0 %v1790
        %v1829 = vpop.f32.mrb[0].mxu0
        %v1830 = vadd.f32 %v1742, %v1829
        %v1831 = vpop.f32.mrb[0].mxu0
        %v1832 = vpop.f32.mrb[0].mxu0
        %v1833 = vpop.f32.mrb[0].mxu0
        %1834 = vdwg.mxu0
        %v1836 = vsel %vm1111, %v1728, 0
        %v1839 = vsel %vm1115, %v1732, 0
        %1841 = vmatprep.subr.bf16.mxu0 0
        %1842 = vmatpush1.bf16.msra.mxu0 %v1839
        %1843 = vmatprep.subr.bf16.mxu0 0
        %1844 = vmatpush1.bf16.msra.mxu0 0
        %1845 = vmatprep.subr.bf16.mxu0 0
        %1846 = vmatpush1.bf16.msra.mxu0 0
        %1847 = vmatprep.subr.bf16.mxu0 0
        %1848 = vmatpush1.bf16.msra.mxu0 0
        %1849 = vmatprep.subr.bf16.mxu0 0
        %1850 = vmatpush1.bf16.msra.mxu0 0
        %1851 = vmatprep.subr.bf16.mxu0 0
        %1852 = vmatpush1.bf16.msra.mxu0 0
        %1853 = vmatprep.subr.bf16.mxu0 0
        %1854 = vmatpush1.bf16.msra.mxu0 0
        %1855 = vmatprep.subr.bf16.mxu0 0
        %1856 = vmatpush1.bf16.msra.mxu0 0
        %1857 = vmatprep.subr.bf16.mxu0 0
        %1858 = vmatpush1.bf16.msra.mxu0 0
        %1859 = vmatprep.subr.bf16.mxu0 0
        %1860 = vmatpush1.bf16.msra.mxu0 0
        %1861 = vmatprep.subr.bf16.mxu0 0
        %1862 = vmatpush1.bf16.msra.mxu0 0
        %1863 = vmatprep.subr.bf16.mxu0 0
        %1864 = vmatpush1.bf16.msra.mxu0 0
        %1865 = vmatprep.subr.bf16.mxu0 0
        %1866 = vmatpush1.bf16.msra.mxu0 0
        %1867 = vmatprep.subr.bf16.mxu0 0
        %1868 = vmatpush1.bf16.msra.mxu0 0
        %1869 = vmatprep.subr.bf16.mxu0 0
        %1870 = vmatpush1.bf16.msra.mxu0 0
        %1871 = vmatprep.subr.bf16.mxu0 0
        %1872 = vmatpush1.bf16.msra.mxu0 0
        %1873 = vmatprep.mubr.bf16.mxu0 0
        %1874 = vmatmul.mubr.bf16.gmra.mrb[0].mxu0 %v1836
        %v1875 = vpop.f32.mrb[0].mxu0
        %v1876 = vadd.f32 %v1742, %v1875
        %v1877 = vpop.f32.mrb[0].mxu0
        %v1878 = vpop.f32.mrb[0].mxu0
        %v1879 = vpop.f32.mrb[0].mxu0
        %1880 = vdwg.mxu0
        %v1882 = vsel %vm1111, %v1729, 0
        %v1885 = vsel %vm1115, %v1733, 0
        %1887 = vmatprep.subr.bf16.mxu0 0
        %1888 = vmatpush1.bf16.msra.mxu0 %v1885
        %1889 = vmatprep.subr.bf16.mxu0 0
        %1890 = vmatpush1.bf16.msra.mxu0 0
        %1891 = vmatprep.subr.bf16.mxu0 0
        %1892 = vmatpush1.bf16.msra.mxu0 0
        %1893 = vmatprep.subr.bf16.mxu0 0
        %1894 = vmatpush1.bf16.msra.mxu0 0
        %1895 = vmatprep.subr.bf16.mxu0 0
        %1896 = vmatpush1.bf16.msra.mxu0 0
        %1897 = vmatprep.subr.bf16.mxu0 0
        %1898 = vmatpush1.bf16.msra.mxu0 0
        %1899 = vmatprep.subr.bf16.mxu0 0
        %1900 = vmatpush1.bf16.msra.mxu0 0
        %1901 = vmatprep.subr.bf16.mxu0 0
        %1902 = vmatpush1.bf16.msra.mxu0 0
        %1903 = vmatprep.subr.bf16.mxu0 0
        %1904 = vmatpush1.bf16.msra.mxu0 0
        %1905 = vmatprep.subr.bf16.mxu0 0
        %1906 = vmatpush1.bf16.msra.mxu0 0
        %1907 = vmatprep.subr.bf16.mxu0 0
        %1908 = vmatpush1.bf16.msra.mxu0 0
        %1909 = vmatprep.subr.bf16.mxu0 0
        %1910 = vmatpush1.bf16.msra.mxu0 0
        %1911 = vmatprep.subr.bf16.mxu0 0
        %1912 = vmatpush1.bf16.msra.mxu0 0
        %1913 = vmatprep.subr.bf16.mxu0 0
        %1914 = vmatpush1.bf16.msra.mxu0 0
        %1915 = vmatprep.subr.bf16.mxu0 0
        %1916 = vmatpush1.bf16.msra.mxu0 0
        %1917 = vmatprep.subr.bf16.mxu0 0
        %1918 = vmatpush1.bf16.msra.mxu0 0
        %1919 = vmatprep.mubr.bf16.mxu0 0
        %1920 = vmatmul.mubr.bf16.gmra.mrb[0].mxu0 %v1882
        %v1921 = vpop.f32.mrb[0].mxu0
        %v1922 = vadd.f32 %v1742, %v1921
        %v1923 = vpop.f32.mrb[0].mxu0
        %v1924 = vpop.f32.mrb[0].mxu0
        %v1925 = vpop.f32.mrb[0].mxu0
        %1926 = vdwg.mxu0
        %v1927 = vsel %vm1546, %v1784, -inf
        %1928 = vmax.xlane.f32.xlu0 %v1927
        %v1929 = vpop.xlane.xlu0 %1928
        %v1930 = vsel %vm1546, %v1830, -inf
        %1931 = vmax.xlane.f32.xlu0 %v1930
        %v1932 = vpop.xlane.xlu0 %1931
        %v1933 = vsel %vm1546, %v1876, -inf
        %1934 = vmax.xlane.f32.xlu0 %v1933
        %v1935 = vpop.xlane.xlu0 %1934
        %v1936 = vsel %vm1546, %v1922, -inf
        %1937 = vmax.xlane.f32.xlu0 %v1936
        %v1938 = vpop.xlane.xlu0 %1937
        %v1939 = vsub.f32 %v1784, %v1929
        %v1940 = vsub.f32 %v1830, %v1932
        %v1941 = vsub.f32 %v1876, %v1935
        %v1942 = vsub.f32 %v1922, %v1938
        %v1943 = vmul.f32 %v1939, 1.442695
        %v1944 = vpow.pop %v1943
        %v1945 = vmul.f32 %v1940, 1.442695
        %v1946 = vpow.pop %v1945
        %v1947 = vmul.f32 %v1941, 1.442695
        %v1948 = vpow.pop %v1947
        %v1949 = vmul.f32 %v1942, 1.442695
        %v1950 = vpow.pop %v1949
        %v1951 = vsel %vm1546, %v1944, 0.0
        %1952 = vadd.xlane.f32.xlu0 %v1951
        %v1953 = vpop.xlane.xlu0 %1952
        %v1954 = vsel %vm1546, %v1946, 0.0
        %1955 = vadd.xlane.f32.xlu0 %v1954
        %v1956 = vpop.xlane.xlu0 %1955
        %v1957 = vsel %vm1546, %v1948, 0.0
        %1958 = vadd.xlane.f32.xlu0 %v1957
        %v1959 = vpop.xlane.xlu0 %1958
        %v1960 = vsel %vm1546, %v1950, 0.0
        %1961 = vadd.xlane.f32.xlu0 %v1960
        %v1962 = vpop.xlane.xlu0 %1961
        %v1963 = vrcp.pop %v1953
        %v1964 = vrcp.pop %v1956
        %v1965 = vrcp.pop %v1959
        %v1966 = vrcp.pop %v1962
        %v1967 = vmul.f32 %v1944, %v1963
        %v1968 = vmul.f32 %v1946, %v1964
        %v1969 = vmul.f32 %v1948, %v1965
        %v1970 = vmul.f32 %v1950, %v1966
        %1971 = vst.msk [vmem:[%s1065] sm:$0xff] %vm1546, %v1967
        %1972 = vst.msk [vmem:[%s1065 + $0x8] sm:$0xff] %vm1546, %v1968
        %1973 = vst.msk [vmem:[%s1065 + $0x10] sm:$0xff] %vm1546, %v1969
        %1974 = vst.msk [vmem:[%s1065 + $0x18] sm:$0xff] %vm1546, %v1970
        %v1975 = vpack.c.bf16 %v1967, %v1967
        %v1976 = vpack.c.bf16 %v1968, %v1968
        %v1977 = vpack.c.bf16 %v1969, %v1969
        %v1978 = vpack.c.bf16 %v1970, %v1970
        %v1981 = vunpack.c.l.b16 %v1734
        %v1982 = vunpack.c.l.b16 %v1735
        %v1983 = vpack.c.b16 %v1982, %v1981
        %v1986 = vsel %vm1546, %v1975, 0
        %1988 = vmatprep.subr.bf16.mxu0 0
        %1989 = vmatpush1.bf16.msra.mxu0 %v1983
        %1990 = vmatprep.subr.bf16.mxu0 0
        %1991 = vmatpush1.bf16.msra.mxu0 0
        %1992 = vmatprep.subr.bf16.mxu0 0
        %1993 = vmatpush1.bf16.msra.mxu0 0
        %1994 = vmatprep.subr.bf16.mxu0 0
        %1995 = vmatpush1.bf16.msra.mxu0 0
        %1996 = vmatprep.subr.bf16.mxu0 0
        %1997 = vmatpush1.bf16.msra.mxu0 0
        %1998 = vmatprep.subr.bf16.mxu0 0
        %1999 = vmatpush1.bf16.msra.mxu0 0
        %2000 = vmatprep.subr.bf16.mxu0 0
        %2001 = vmatpush1.bf16.msra.mxu0 0
        %2002 = vmatprep.subr.bf16.mxu0 0
        %2003 = vmatpush1.bf16.msra.mxu0 0
        %2004 = vmatprep.subr.bf16.mxu0 0
        %2005 = vmatpush1.bf16.msra.mxu0 0
        %2006 = vmatprep.subr.bf16.mxu0 0
        %2007 = vmatpush1.bf16.msra.mxu0 0
        %2008 = vmatprep.subr.bf16.mxu0 0
        %2009 = vmatpush1.bf16.msra.mxu0 0
        %2010 = vmatprep.subr.bf16.mxu0 0
        %2011 = vmatpush1.bf16.msra.mxu0 0
        %2012 = vmatprep.subr.bf16.mxu0 0
        %2013 = vmatpush1.bf16.msra.mxu0 0
        %2014 = vmatprep.subr.bf16.mxu0 0
        %2015 = vmatpush1.bf16.msra.mxu0 0
        %2016 = vmatprep.subr.bf16.mxu0 0
        %2017 = vmatpush1.bf16.msra.mxu0 0
        %2018 = vmatprep.subr.bf16.mxu0 0
        %2019 = vmatpush1.bf16.msra.mxu0 0
        %2020 = vmatprep.mubr.bf16.mxu0 0
        %2021 = vmatmul.mubr.bf16.gmra.mrb[0].mxu0 %v1986
        %v2022 = vpop.f32.mrb[0].mxu0
        %v2023 = vadd.f32 0.0, %v2022
        %v2024 = vpop.f32.mrb[0].mxu0
        %v2025 = vpop.f32.mrb[0].mxu0
        %v2026 = vpop.f32.mrb[0].mxu0
        %2027 = vdwg.mxu0
        %v2030 = vunpack.c.l.b16 %v1736
        %v2031 = vunpack.c.l.b16 %v1737
        %v2032 = vpack.c.b16 %v2031, %v2030
        %v2035 = vsel %vm1546, %v1976, 0
        %2037 = vmatprep.subr.bf16.mxu0 0
        %2038 = vmatpush1.bf16.msra.mxu0 %v2032
        %2039 = vmatprep.subr.bf16.mxu0 0
        %2040 = vmatpush1.bf16.msra.mxu0 0
        %2041 = vmatprep.subr.bf16.mxu0 0
        %2042 = vmatpush1.bf16.msra.mxu0 0
        %2043 = vmatprep.subr.bf16.mxu0 0
        %2044 = vmatpush1.bf16.msra.mxu0 0
        %2045 = vmatprep.subr.bf16.mxu0 0
        %2046 = vmatpush1.bf16.msra.mxu0 0
        %2047 = vmatprep.subr.bf16.mxu0 0
        %2048 = vmatpush1.bf16.msra.mxu0 0
        %2049 = vmatprep.subr.bf16.mxu0 0
        %2050 = vmatpush1.bf16.msra.mxu0 0
        %2051 = vmatprep.subr.bf16.mxu0 0
        %2052 = vmatpush1.bf16.msra.mxu0 0
        %2053 = vmatprep.subr.bf16.mxu0 0
        %2054 = vmatpush1.bf16.msra.mxu0 0
        %2055 = vmatprep.subr.bf16.mxu0 0
        %2056 = vmatpush1.bf16.msra.mxu0 0
        %2057 = vmatprep.subr.bf16.mxu0 0
        %2058 = vmatpush1.bf16.msra.mxu0 0
        %2059 = vmatprep.subr.bf16.mxu0 0
        %2060 = vmatpush1.bf16.msra.mxu0 0
        %2061 = vmatprep.subr.bf16.mxu0 0
        %2062 = vmatpush1.bf16.msra.mxu0 0
        %2063 = vmatprep.subr.bf16.mxu0 0
        %2064 = vmatpush1.bf16.msra.mxu0 0
        %2065 = vmatprep.subr.bf16.mxu0 0
        %2066 = vmatpush1.bf16.msra.mxu0 0
        %2067 = vmatprep.subr.bf16.mxu0 0
        %2068 = vmatpush1.bf16.msra.mxu0 0
        %2069 = vmatprep.mubr.bf16.mxu0 0
        %2070 = vmatmul.mubr.bf16.gmra.mrb[0].mxu0 %v2035
        %v2071 = vpop.f32.mrb[0].mxu0
        %v2072 = vadd.f32 0.0, %v2071
        %v2073 = vpop.f32.mrb[0].mxu0
        %v2074 = vpop.f32.mrb[0].mxu0
        %v2075 = vpop.f32.mrb[0].mxu0
        %2076 = vdwg.mxu0
        %v2079 = vunpack.c.l.b16 %v1738
        %v2080 = vunpack.c.l.b16 %v1739
        %v2081 = vpack.c.b16 %v2080, %v2079
        %v2084 = vsel %vm1546, %v1977, 0
        %2086 = vmatprep.subr.bf16.mxu0 0
        %2087 = vmatpush1.bf16.msra.mxu0 %v2081
        %2088 = vmatprep.subr.bf16.mxu0 0
        %2089 = vmatpush1.bf16.msra.mxu0 0
        %2090 = vmatprep.subr.bf16.mxu0 0
        %2091 = vmatpush1.bf16.msra.mxu0 0
        %2092 = vmatprep.subr.bf16.mxu0 0
        %2093 = vmatpush1.bf16.msra.mxu0 0
        %2094 = vmatprep.subr.bf16.mxu0 0
        %2095 = vmatpush1.bf16.msra.mxu0 0
        %2096 = vmatprep.subr.bf16.mxu0 0
        %2097 = vmatpush1.bf16.msra.mxu0 0
        %2098 = vmatprep.subr.bf16.mxu0 0
        %2099 = vmatpush1.bf16.msra.mxu0 0
        %2100 = vmatprep.subr.bf16.mxu0 0
        %2101 = vmatpush1.bf16.msra.mxu0 0
        %2102 = vmatprep.subr.bf16.mxu0 0
        %2103 = vmatpush1.bf16.msra.mxu0 0
        %2104 = vmatprep.subr.bf16.mxu0 0
        %2105 = vmatpush1.bf16.msra.mxu0 0
        %2106 = vmatprep.subr.bf16.mxu0 0
        %2107 = vmatpush1.bf16.msra.mxu0 0
        %2108 = vmatprep.subr.bf16.mxu0 0
        %2109 = vmatpush1.bf16.msra.mxu0 0
        %2110 = vmatprep.subr.bf16.mxu0 0
        %2111 = vmatpush1.bf16.msra.mxu0 0
        %2112 = vmatprep.subr.bf16.mxu0 0
        %2113 = vmatpush1.bf16.msra.mxu0 0
        %2114 = vmatprep.subr.bf16.mxu0 0
        %2115 = vmatpush1.bf16.msra.mxu0 0
        %2116 = vmatprep.subr.bf16.mxu0 0
        %2117 = vmatpush1.bf16.msra.mxu0 0
        %2118 = vmatprep.mubr.bf16.mxu0 0
        %2119 = vmatmul.mubr.bf16.gmra.mrb[0].mxu0 %v2084
        %v2120 = vpop.f32.mrb[0].mxu0
        %v2121 = vadd.f32 0.0, %v2120
        %v2122 = vpop.f32.mrb[0].mxu0
        %v2123 = vpop.f32.mrb[0].mxu0
        %v2124 = vpop.f32.mrb[0].mxu0
        %2125 = vdwg.mxu0
        %v2128 = vunpack.c.l.b16 %v1740
        %v2129 = vunpack.c.l.b16 %v1741
        %v2130 = vpack.c.b16 %v2129, %v2128
        %v2133 = vsel %vm1546, %v1978, 0
        %2135 = vmatprep.subr.bf16.mxu0 0
        %2136 = vmatpush1.bf16.msra.mxu0 %v2130
        %2137 = vmatprep.subr.bf16.mxu0 0
        %2138 = vmatpush1.bf16.msra.mxu0 0
        %2139 = vmatprep.subr.bf16.mxu0 0
        %2140 = vmatpush1.bf16.msra.mxu0 0
        %2141 = vmatprep.subr.bf16.mxu0 0
        %2142 = vmatpush1.bf16.msra.mxu0 0
        %2143 = vmatprep.subr.bf16.mxu0 0
        %2144 = vmatpush1.bf16.msra.mxu0 0
        %2145 = vmatprep.subr.bf16.mxu0 0
        %2146 = vmatpush1.bf16.msra.mxu0 0
        %2147 = vmatprep.subr.bf16.mxu0 0
        %2148 = vmatpush1.bf16.msra.mxu0 0
        %2149 = vmatprep.subr.bf16.mxu0 0
        %2150 = vmatpush1.bf16.msra.mxu0 0
        %2151 = vmatprep.subr.bf16.mxu0 0
        %2152 = vmatpush1.bf16.msra.mxu0 0
        %2153 = vmatprep.subr.bf16.mxu0 0
        %2154 = vmatpush1.bf16.msra.mxu0 0
        %2155 = vmatprep.subr.bf16.mxu0 0
        %2156 = vmatpush1.bf16.msra.mxu0 0
        %2157 = vmatprep.subr.bf16.mxu0 0
        %2158 = vmatpush1.bf16.msra.mxu0 0
        %2159 = vmatprep.subr.bf16.mxu0 0
        %2160 = vmatpush1.bf16.msra.mxu0 0
        %2161 = vmatprep.subr.bf16.mxu0 0
        %2162 = vmatpush1.bf16.msra.mxu0 0
        %2163 = vmatprep.subr.bf16.mxu0 0
        %2164 = vmatpush1.bf16.msra.mxu0 0
        %2165 = vmatprep.subr.bf16.mxu0 0
        %2166 = vmatpush1.bf16.msra.mxu0 0
        %2167 = vmatprep.mubr.bf16.mxu0 0
        %2168 = vmatmul.mubr.bf16.gmra.mrb[0].mxu0 %v2133
        %v2169 = vpop.f32.mrb[0].mxu0
        %v2170 = vadd.f32 0.0, %v2169
        %v2171 = vpop.f32.mrb[0].mxu0
        %v2172 = vpop.f32.mrb[0].mxu0
        %v2173 = vpop.f32.mrb[0].mxu0
        %2174 = vdwg.mxu0
        %2176 = vrot.lane.b32.xlu0 %v2072, 8
        %v2177 = vpop.permute.xlu0 %2176
        %2180 = vrot.lane.b32.xlu0 %v2121, 16
        %v2181 = vpop.permute.xlu0 %2180
        %2184 = vrot.lane.b32.xlu0 %v2170, 24
        %v2185 = vpop.permute.xlu0 %2184
        %v2187 = vsel %vm1111, %v2023, %v2177
        %v2188 = vsel %vm1546, %v2187, %v2181
        %v2189 = vsel %vm1548, %v2188, %v2185
        %v2190 = vpack.c.bf16 %v2189, %v2189
        %v2191 = vld [vmem:[#allocation11] sm:$0xf]
        %v2192 = vld [vmem:[#allocation11 + $0x4] sm:$0xf]
        %v2193 = vld [vmem:[#allocation11 + $0x8] sm:$0xf]
        %v2194 = vld [vmem:[#allocation11 + $0xc] sm:$0xf]
        %v2195 = vld [vmem:[#allocation13] sm:$0x1]
        %v2197 = vlaneseq
        %v2198 = vshrl.u32 %v2197, 7
        %v2199 = vsub.s32 0, %v2198
        %v2200 = vrot.slane %v2195, %v2199
        %v2206 = vunpack.c.l.b16 %v2191
        %v2207 = vunpack.c.l.b16 %v2192
        %v2208 = vunpack.c.l.b16 %v2193
        %v2209 = vunpack.c.l.b16 %v2194
        %v2210 = vpack.c.b16 %v2207, %v2206
        %v2211 = vpack.c.b16 %v2209, %v2208
        %v2215 = vsel %vm1574, %v2190, 0
        %2217 = vmatprep.subr.bf16.mxu0 0
        %2218 = vmatpush1.bf16.msra.mxu0 %v2210
        %2219 = vmatprep.subr.bf16.mxu0 0
        %2220 = vmatpush1.bf16.msra.mxu0 %v2211
        %2221 = vmatprep.subr.bf16.mxu0 0
        %2222 = vmatpush1.bf16.msra.mxu0 0
        %2223 = vmatprep.subr.bf16.mxu0 0
        %2224 = vmatpush1.bf16.msra.mxu0 0
        %2225 = vmatprep.subr.bf16.mxu0 0
        %2226 = vmatpush1.bf16.msra.mxu0 0
        %2227 = vmatprep.subr.bf16.mxu0 0
        %2228 = vmatpush1.bf16.msra.mxu0 0
        %2229 = vmatprep.subr.bf16.mxu0 0
        %2230 = vmatpush1.bf16.msra.mxu0 0
        %2231 = vmatprep.subr.bf16.mxu0 0
        %2232 = vmatpush1.bf16.msra.mxu0 0
        %2233 = vmatprep.subr.bf16.mxu0 0
        %2234 = vmatpush1.bf16.msra.mxu0 0
        %2235 = vmatprep.subr.bf16.mxu0 0
        %2236 = vmatpush1.bf16.msra.mxu0 0
        %2237 = vmatprep.subr.bf16.mxu0 0
        %2238 = vmatpush1.bf16.msra.mxu0 0
        %2239 = vmatprep.subr.bf16.mxu0 0
        %2240 = vmatpush1.bf16.msra.mxu0 0
        %2241 = vmatprep.subr.bf16.mxu0 0
        %2242 = vmatpush1.bf16.msra.mxu0 0
        %2243 = vmatprep.subr.bf16.mxu0 0
        %2244 = vmatpush1.bf16.msra.mxu0 0
        %2245 = vmatprep.subr.bf16.mxu0 0
        %2246 = vmatpush1.bf16.msra.mxu0 0
        %2247 = vmatprep.subr.bf16.mxu0 0
        %2248 = vmatpush1.bf16.msra.mxu0 0
        %2249 = vmatprep.mubr.bf16.mxu0 0
        %2250 = vmatmul.mubr.bf16.gmra.mrb[0].mxu0 %v2215
        %v2251 = vpop.f32.mrb[0].mxu0
        %v2252 = vadd.f32 %v2200, %v2251
        %v2253 = vpop.f32.mrb[0].mxu0
        %v2254 = vpop.f32.mrb[0].mxu0
        %v2255 = vpop.f32.mrb[0].mxu0
        %2256 = vdwg.mxu0
        %v2257 = vadd.f32 %v1648, %v2252
        %v2258 = vld [vmem:[%s20] sm:$0x1]
        %v2259 = vld [vmem:[%s21] sm:$0x1]
        %v2260 = vsel %vm1574, %v2257, 0.0
        %2261 = vadd.xlane.f32.xlu0 %v2260
        %v2262 = vpop.xlane.xlu0 %2261
        %v2263 = vmul.f32 %v2262, %v1624
        %v2264 = vsub.f32 %v2257, %v2263
        %v2265 = vmul.f32 %v2264, %v2264
        %v2266 = vsel %vm1574, %v2265, 0.0
        %2267 = vadd.xlane.f32.xlu0 %v2266
        %v2268 = vpop.xlane.xlu0 %2267
        %v2269 = vmul.f32 %v2268, %v1624
        %v2270 = vadd.f32 %v2269, 1e-05
        %v2271 = vrsqrt.pop %v2270
        %v2272 = vmul.f32 %v2264, %v2271
        %v2274 = vlaneseq
        %v2275 = vshrl.u32 %v2274, 7
        %v2276 = vsub.s32 0, %v2275
        %v2277 = vrot.slane %v2258, %v2276
        %v2279 = vmul.f32 %v2272, %v2277
        %v2281 = vlaneseq
        %v2282 = vshrl.u32 %v2281, 7
        %v2283 = vsub.s32 0, %v2282
        %v2284 = vrot.slane %v2259, %v2283
        %v2286 = vadd.f32 %v2279, %v2284
        %v2287 = vpack.c.bf16 %v2286, %v2286
        %v2288 = vld [vmem:[%s14] sm:$0xf]
        %v2289 = vld [vmem:[%s14 + $0x4] sm:$0xf]
        %v2290 = vld [vmem:[%s14 + $0x8] sm:$0xf]
        %v2291 = vld [vmem:[%s14 + $0xc] sm:$0xf]
        %v2292 = vld [vmem:[%s15] sm:$0x1]
        %v2294 = vlaneseq
        %v2295 = vshrl.u32 %v2294, 7
        %v2296 = vsub.s32 0, %v2295
        %v2297 = vrot.slane %v2292, %v2296
        %v2303 = vunpack.c.l.b16 %v2288
        %v2304 = vunpack.c.l.b16 %v2289
        %v2305 = vunpack.c.l.b16 %v2290
        %v2306 = vunpack.c.l.b16 %v2291
        %v2307 = vpack.c.b16 %v2304, %v2303
        %v2308 = vpack.c.b16 %v2306, %v2305
        %v2312 = vsel %vm1574, %v2287, 0
        %2314 = vmatprep.subr.bf16.mxu0 0
        %2315 = vmatpush1.bf16.msra.mxu0 %v2307
        %2316 = vmatprep.subr.bf16.mxu0 0
        %2317 = vmatpush1.bf16.msra.mxu0 %v2308
        %2318 = vmatprep.subr.bf16.mxu0 0
        %2319 = vmatpush1.bf16.msra.mxu0 0
        %2320 = vmatprep.subr.bf16.mxu0 0
        %2321 = vmatpush1.bf16.msra.mxu0 0
        %2322 = vmatprep.subr.bf16.mxu0 0
        %2323 = vmatpush1.bf16.msra.mxu0 0
        %2324 = vmatprep.subr.bf16.mxu0 0
        %2325 = vmatpush1.bf16.msra.mxu0 0
        %2326 = vmatprep.subr.bf16.mxu0 0
        %2327 = vmatpush1.bf16.msra.mxu0 0
        %2328 = vmatprep.subr.bf16.mxu0 0
        %2329 = vmatpush1.bf16.msra.mxu0 0
        %2330 = vmatprep.subr.bf16.mxu0 0
        %2331 = vmatpush1.bf16.msra.mxu0 0
        %2332 = vmatprep.subr.bf16.mxu0 0
        %2333 = vmatpush1.bf16.msra.mxu0 0
        %2334 = vmatprep.subr.bf16.mxu0 0
        %2335 = vmatpush1.bf16.msra.mxu0 0
        %2336 = vmatprep.subr.bf16.mxu0 0
        %2337 = vmatpush1.bf16.msra.mxu0 0
        %2338 = vmatprep.subr.bf16.mxu0 0
        %2339 = vmatpush1.bf16.msra.mxu0 0
        %2340 = vmatprep.subr.bf16.mxu0 0
        %2341 = vmatpush1.bf16.msra.mxu0 0
        %2342 = vmatprep.subr.bf16.mxu0 0
        %2343 = vmatpush1.bf16.msra.mxu0 0
        %2344 = vmatprep.subr.bf16.mxu0 0
        %2345 = vmatpush1.bf16.msra.mxu0 0
        %2346 = vmatprep.mubr.bf16.mxu0 0
        %2347 = vmatmul.mubr.bf16.gmra.mrb[0].mxu0 %v2312
        %v2348 = vpop.f32.mrb[0].mxu0
        %v2349 = vadd.f32 %v2297, %v2348
        %v2350 = vpop.f32.mrb[0].mxu0
        %v2351 = vpop.f32.mrb[0].mxu0
        %v2352 = vpop.f32.mrb[0].mxu0
        %2353 = vdwg.mxu0
        %v2354 = vmax.f32 %v2349, 0.0
        %v2355 = vpack.c.bf16 %v2354, %v2354
        %v2356 = vld [vmem:[%s16] sm:$0xf]
        %v2357 = vld [vmem:[%s16 + $0x4] sm:$0xf]
        %v2358 = vld [vmem:[%s16 + $0x8] sm:$0xf]
        %v2359 = vld [vmem:[%s16 + $0xc] sm:$0xf]
        %v2360 = vld [vmem:[%s16 + $0x10] sm:$0xf]
        %v2361 = vld [vmem:[%s16 + $0x14] sm:$0xf]
        %v2362 = vld [vmem:[%s16 + $0x18] sm:$0xf]
        %v2363 = vld [vmem:[%s16 + $0x1c] sm:$0xf]
        %v2364 = vld [vmem:[%s17] sm:$0x1]
        %v2366 = vlaneseq
        %v2367 = vshrl.u32 %v2366, 7
        %v2368 = vsub.s32 0, %v2367
        %v2369 = vrot.slane %v2364, %v2368
        %v2379 = vunpack.c.l.b16 %v2356
        %v2380 = vunpack.c.l.b16 %v2357
        %v2381 = vunpack.c.l.b16 %v2358
        %v2382 = vunpack.c.l.b16 %v2359
        %v2383 = vunpack.c.l.b16 %v2360
        %v2384 = vunpack.c.l.b16 %v2361
        %v2385 = vunpack.c.l.b16 %v2362
        %v2386 = vunpack.c.l.b16 %v2363
        %v2387 = vpack.c.b16 %v2380, %v2379
        %v2388 = vpack.c.b16 %v2382, %v2381
        %v2389 = vpack.c.b16 %v2384, %v2383
        %v2390 = vpack.c.b16 %v2386, %v2385
        %vm2395 = vcmask 523264
        %v2397 = vsel %vm2395, %v2355, 0
        %2399 = vmatprep.subr.bf16.mxu0 0
        %2400 = vmatpush1.bf16.msra.mxu0 %v2387
        %2401 = vmatprep.subr.bf16.mxu0 0
        %2402 = vmatpush1.bf16.msra.mxu0 %v2388
        %2403 = vmatprep.subr.bf16.mxu0 0
        %2404 = vmatpush1.bf16.msra.mxu0 %v2389
        %2405 = vmatprep.subr.bf16.mxu0 0
        %2406 = vmatpush1.bf16.msra.mxu0 %v2390
        %2407 = vmatprep.subr.bf16.mxu0 0
        %2408 = vmatpush1.bf16.msra.mxu0 0
        %2409 = vmatprep.subr.bf16.mxu0 0
        %2410 = vmatpush1.bf16.msra.mxu0 0
        %2411 = vmatprep.subr.bf16.mxu0 0
        %2412 = vmatpush1.bf16.msra.mxu0 0
        %2413 = vmatprep.subr.bf16.mxu0 0
        %2414 = vmatpush1.bf16.msra.mxu0 0
        %2415 = vmatprep.subr.bf16.mxu0 0
        %2416 = vmatpush1.bf16.msra.mxu0 0
        %2417 = vmatprep.subr.bf16.mxu0 0
        %2418 = vmatpush1.bf16.msra.mxu0 0
        %2419 = vmatprep.subr.bf16.mxu0 0
        %2420 = vmatpush1.bf16.msra.mxu0 0
        %2421 = vmatprep.subr.bf16.mxu0 0
        %2422 = vmatpush1.bf16.msra.mxu0 0
        %2423 = vmatprep.subr.bf16.mxu0 0
        %2424 = vmatpush1.bf16.msra.mxu0 0
        %2425 = vmatprep.subr.bf16.mxu0 0
        %2426 = vmatpush1.bf16.msra.mxu0 0
        %2427 = vmatprep.subr.bf16.mxu0 0
        %2428 = vmatpush1.bf16.msra.mxu0 0
        %2429 = vmatprep.subr.bf16.mxu0 0
        %2430 = vmatpush1.bf16.msra.mxu0 0
        %2431 = vmatprep.mubr.bf16.mxu0 0
        %2432 = vmatmul.mubr.bf16.gmra.mrb[0].mxu0 %v2397
        %v2433 = vpop.f32.mrb[0].mxu0
        %v2434 = vadd.f32 %v2369, %v2433
        %v2435 = vpop.f32.mrb[0].mxu0
        %v2436 = vpop.f32.mrb[0].mxu0
        %v2437 = vpop.f32.mrb[0].mxu0
        %2438 = vdwg.mxu0
        %v2439 = vadd.f32 %v2286, %v2434
        %v2440 = vld [vmem:[%s22] sm:$0x1]
        %v2441 = vld [vmem:[%s23] sm:$0x1]
        %v2442 = vsel %vm1574, %v2439, 0.0
        %2443 = vadd.xlane.f32.xlu0 %v2442
        %v2444 = vpop.xlane.xlu0 %2443
        %v2445 = vmul.f32 %v2444, %v1624
        %v2446 = vsub.f32 %v2439, %v2445
        %v2447 = vmul.f32 %v2446, %v2446
        %v2448 = vsel %vm1574, %v2447, 0.0
        %2449 = vadd.xlane.f32.xlu0 %v2448
        %v2450 = vpop.xlane.xlu0 %2449
        %v2451 = vmul.f32 %v2450, %v1624
        %v2452 = vadd.f32 %v2451, 1e-05
        %v2453 = vrsqrt.pop %v2452
        %v2454 = vmul.f32 %v2446, %v2453
        %v2456 = vlaneseq
        %v2457 = vshrl.u32 %v2456, 7
        %v2458 = vsub.s32 0, %v2457
        %v2459 = vrot.slane %v2440, %v2458
        %v2461 = vmul.f32 %v2454, %v2459
        %v2463 = vlaneseq
        %v2464 = vshrl.u32 %v2463, 7
        %v2465 = vsub.s32 0, %v2464
        %v2466 = vrot.slane %v2441, %v2465
        %v2468 = vadd.f32 %v2461, %v2466
        %2469 = vst.msk [vmem:[%s1051] sm:$0xff] %vm1574, %v2468
        %s2470 = sand.u32 %s626, 1
        %s2471 = scalar_lea.sflag [#allocation4], %s2470
        %s2472 = sand.u32 %s626, 1
        %s2473 = smul.addr %s2472, 8
        %s2474 = scalar_lea.vmem [#allocation14], %s2473
        %s2475 = sand.u32 %s52, 1
        %s2476 = scalar_lea.sflag [#allocation16], %s2475
        %s2477 = sand.u32 %s654, 1
        %s2478 = smul.addr %s2477, 32
        %s2479 = scalar_lea.vmem [#allocation15], %s2478
        %s2480 = sand.u32 %s52, 1
        %s2481 = scalar_lea.sflag [#allocation16], %s2480
        %s2482 = sand.u32 %s682, 1
        %s2483 = smul.addr %s2482, 32
        %s2484 = scalar_lea.vmem [#allocation17], %s2483
        // Predicated region
        $region145: #{tpu_custom_call.1} parent=115 // pred_check
          %p2485 = pneg %p636
        $region146: #{tpu_custom_call.1} parent=115 // pred_check_branch
          %2487 = sbr.rel (%p2485) target = $region148
        $region147: #{tpu_custom_call.1} parent=115 // pred_region
          %s2489 = ssub.s32 128, 128
          %2490 = vsyncadd %s2471, %s2489
          %s2491 = sadd.s32 %s57, %s56
          %s2492 = smul.addr %s2491, 128
          %s2493 = scalar_lea.hbm %s24, %s2492
          %s2495 = sshll.u32 %s2474, 4
          %s2496 = int_to_ptr.vmem [resolvable:$true] %s2495
          %2498 = dma.vmem_to_hbm [thread:$0]  %s2496, 128, %s2493, %s2471
        $region148: #{tpu_custom_call.1} parent=115 // pred_fallthru
          _
        // Predicated region
        $region149: #{tpu_custom_call.1} parent=115 // pred_check
          %p2499 = pneg %p664
        $region150: #{tpu_custom_call.1} parent=115 // pred_check_branch
          %2501 = sbr.rel (%p2499) target = $region152
        $region151: #{tpu_custom_call.1} parent=115 // pred_region
          %s2503 = ssub.s32 512, 512
          %2504 = vsyncadd %s2476, %s2503
          %s2505 = smul.addr %s56, 4
          %s2506 = sadd.s32 %s57, %s2505
          %s2507 = smul.addr %s2506, 128
          %s2508 = scalar_lea.hbm %s25, %s2507
          %s2509 = sshll.u32 %s2479, 4
          %s2510 = int_to_ptr.vmem [resolvable:$true] %s2509
          %2515 = dma.vmem_to_hbm [thread:$0]  %s2510, 512, %s2508, %s2476, 128, 128, 8
        $region152: #{tpu_custom_call.1} parent=115 // pred_fallthru
          _
        // Predicated region
        $region153: #{tpu_custom_call.1} parent=115 // pred_check
          %p2516 = pneg %p692
        $region154: #{tpu_custom_call.1} parent=115 // pred_check_branch
          %2518 = sbr.rel (%p2516) target = $region156
        $region155: #{tpu_custom_call.1} parent=115 // pred_region
          %s2520 = ssub.s32 512, 512
          %2521 = vsyncadd %s2481, %s2520
          %s2522 = smul.addr %s56, 4
          %s2523 = sadd.s32 %s57, %s2522
          %s2524 = smul.addr %s2523, 128
          %s2525 = scalar_lea.hbm %s26, %s2524
          %s2526 = sshll.u32 %s2484, 4
          %s2527 = int_to_ptr.vmem [resolvable:$true] %s2526
          %2532 = dma.vmem_to_hbm [thread:$0]  %s2527, 512, %s2525, %s2481, 128, 128, 8
        $region156: #{tpu_custom_call.1} parent=115 // pred_fallthru
          _
      $region116: #{tpu_custom_call.1} parent=5 // pred_fallthru
        _
      %p2533 = scmp.le.s32.totalorder 2, %s47
      // Predicated region
      $region157: #{tpu_custom_call.1} parent=5 // pred_check
        %p2534 = pneg %p2533
      $region158: #{tpu_custom_call.1} parent=5 // pred_check_branch
        %2536 = sbr.rel (%p2534) target = $region160
      $region159: #{tpu_custom_call.1} parent=5 // pred_region
        %s2537 = ssub.s32 %s47, 2
        // Predicated region
        $region161: #{tpu_custom_call.1} parent=159 // pred_check
          %p2538 = pneg %p642
        $region162: #{tpu_custom_call.1} parent=159 // pred_check_branch
          %2540 = sbr.rel (%p2538) target = $region164
        $region163: #{tpu_custom_call.1} parent=159 // pred_region
          %s2541 = sand.u32 %s627, 1
          %s2542 = scalar_lea.sflag [#allocation4], %s2541
          %s2543 = sand.u32 %s627, 1
          %s2544 = smul.addr %s2543, 8
          %s2545 = scalar_lea.vmem [#allocation14], %s2544
          %2546 = dma.done %s2542, 128
        $region164: #{tpu_custom_call.1} parent=159 // pred_fallthru
          _
        // Predicated region
        $region165: #{tpu_custom_call.1} parent=159 // pred_check
          %p2547 = pneg %p670
        $region166: #{tpu_custom_call.1} parent=159 // pred_check_branch
          %2549 = sbr.rel (%p2547) target = $region168
        $region167: #{tpu_custom_call.1} parent=159 // pred_region
          %s2550 = sand.u32 %s53, 1
          %s2551 = scalar_lea.sflag [#allocation16], %s2550
          %s2552 = sand.u32 %s655, 1
          %s2553 = smul.addr %s2552, 32
          %s2554 = scalar_lea.vmem [#allocation15], %s2553
          %2555 = dma.done %s2551, 512
        $region168: #{tpu_custom_call.1} parent=159 // pred_fallthru
          _
        // Predicated region
        $region169: #{tpu_custom_call.1} parent=159 // pred_check
          %p2556 = pneg %p698
        $region170: #{tpu_custom_call.1} parent=159 // pred_check_branch
          %2558 = sbr.rel (%p2556) target = $region172
        $region171: #{tpu_custom_call.1} parent=159 // pred_region
          %s2559 = sand.u32 %s53, 1
          %s2560 = scalar_lea.sflag [#allocation16], %s2559
          %s2561 = sand.u32 %s683, 1
          %s2562 = smul.addr %s2561, 32
          %s2563 = scalar_lea.vmem [#allocation17], %s2562
          %2564 = dma.done %s2560, 512
        $region172: #{tpu_custom_call.1} parent=159 // pred_fallthru
          _
      $region160: #{tpu_custom_call.1} parent=5 // pred_fallthru
        _
    $region6: #{tpu_custom_call.1} parent=1 // loop_footer
      %s51 = sadd.s32 1, %s47
    $region7: #{tpu_custom_call.1} parent=1 // loop_footer_branch
      %46 = sbr.rel target = $region3
    $region8: #{tpu_custom_call.1} parent=1 // loop_exit
      _
    %2565 = vsyncpa [#allocation3], 1
    %s2566 = scalar_lea.sflag [#allocation3], 1
    %2567 = vsyncpa %s2566, 1
    %2568 = vsyncpa [#allocation6], 1
    %s2569 = scalar_lea.sflag [#allocation6], 1
    %2570 = vsyncpa %s2569, 1
    %2571 = vsyncpa [#allocation9], 1
    %2572 = vsyncpa [#allocation12], 1
    %2573 = vsyncpa [#allocation4], 1
    %s2574 = scalar_lea.sflag [#allocation4], 1
    %2575 = vsyncpa %s2574, 1
    %2576 = vsyncpa [#allocation16], 1
    %s2577 = scalar_lea.sflag [#allocation16], 1
    %2578 = vsyncpa %s2577, 1

// kernel: tpu_custom_call.1
$region0: #{tpu_custom_call.1}
  #allocation0 [shape = 'u32[]', space=smem, size = 0x4, offset = 0x4, fixed_abs, tag = 'smem constant byte address 0x4 - core index']
  #allocation1 [shape = 'u32[144,128]{1,0:T(1,128)}', space=vmem, size = 0x12000, scoped, tag = 'internal scratch']
  %s0 = inlined_call_operand.vmem [shape: f32[2,8,32], index: 0, kind: input, shape index: {}]
  %s1 = inlined_call_operand.vmem [shape: bf16[2,4,8,8], index: 1, kind: input, shape index: {}]
  %s2 = inlined_call_operand.vmem [shape: bf16[2,4,8,8], index: 2, kind: input, shape index: {}]
  %s3 = inlined_call_operand.vmem [shape: bf16[2,4,8,8], index: 3, kind: input, shape index: {}]
  %s4 = inlined_call_operand.hbm [shape: bf16[2,4,8,16], index: 4, kind: input, shape index: {}]
  %s5 = inlined_call_operand.vmem [shape: bf16[2,4,16,8], index: 5, kind: input, shape index: {}]
  %s6 = inlined_call_operand.hbm [shape: f32[2,8,8], index: 6, kind: input, shape index: {}]
  %s7 = inlined_call_operand.hbm [shape: f32[2,8,16], index: 7, kind: input, shape index: {}]
  %s8 = inlined_call_operand.hbm [shape: bf16[32,32], index: 8, kind: input, shape index: {}]
  %s9 = inlined_call_operand.vmem [shape: f32[1,32], index: 9, kind: input, shape index: {}]
  %s10 = inlined_call_operand.vmem [shape: bf16[32,32], index: 10, kind: input, shape index: {}]
  %s11 = inlined_call_operand.hbm [shape: f32[1,32], index: 11, kind: input, shape index: {}]
  %s12 = inlined_call_operand.hbm [shape: bf16[32,32], index: 12, kind: input, shape index: {}]
  %s13 = inlined_call_operand.hbm [shape: f32[1,32], index: 13, kind: input, shape index: {}]
  %s14 = inlined_call_operand.vmem [shape: bf16[32,64], index: 14, kind: input, shape index: {}]
  %s15 = inlined_call_operand.vmem [shape: f32[1,64], index: 15, kind: input, shape index: {}]
  %s16 = inlined_call_operand.vmem [shape: bf16[64,32], index: 16, kind: input, shape index: {}]
  %s17 = inlined_call_operand.vmem [shape: f32[1,32], index: 17, kind: input, shape index: {}]
  %s18 = inlined_call_operand.vmem [shape: f32[1,32], index: 18, kind: input, shape index: {}]
  %s19 = inlined_call_operand.vmem [shape: f32[1,32], index: 19, kind: input, shape index: {}]
  %s20 = inlined_call_operand.vmem [shape: f32[1,32], index: 20, kind: input, shape index: {}]
  %s21 = inlined_call_operand.vmem [shape: f32[1,32], index: 21, kind: input, shape index: {}]
  %s22 = inlined_call_operand.vmem [shape: f32[1,32], index: 22, kind: input, shape index: {}]
  %s23 = inlined_call_operand.vmem [shape: f32[1,32], index: 23, kind: input, shape index: {}]
  %s24 = inlined_call_operand.hbm [shape: f32[2,8,32], index: 24, kind: output, shape index: {0}]
  %s25 = inlined_call_operand.hbm [shape: f32[2,4,8,8], index: 25, kind: output, shape index: {1}]
  %s26 = inlined_call_operand.hbm [shape: f32[2,4,8,16], index: 26, kind: output, shape index: {2}]
  %27 = xla_tuple %s24, %s25, %s26
  %s28 = sld [smem:[#allocation0]]
  $region173: #{tpu_custom_call.1} parent=0
    _
  %s30 = ssub.s32 1, %s28
  %s31 = scalar_select 0, %s30, %s28
  $region1: #{tpu_custom_call.1} parent=0
    #allocation2 [shape = 'u8[16384]{0}', space=vmem, size = 0x4000, scoped, tag = 'input window, operand 4']
    #allocation3 [shape = 's32[2]{0}', space=sflag, size = 0x8, scoped, tag = 'scoped memory for tpu_custom_call.1']
    #allocation4 [shape = 's32[2]{0}', space=sflag, size = 0x8, scoped, tag = 'scoped memory for tpu_custom_call.1']
    #allocation5 [shape = 'u8[8192]{0}', space=vmem, size = 0x2000, scoped, tag = 'input window, operand 6']
    #allocation6 [shape = 's32[2]{0}', space=sflag, size = 0x8, scoped, tag = 'scoped memory for tpu_custom_call.1']
    #allocation7 [shape = 'u8[8192]{0}', space=vmem, size = 0x2000, scoped, tag = 'input window, operand 7']
    #allocation8 [shape = 'u8[8192]{0}', space=vmem, size = 0x2000, scoped, tag = 'input window, operand 8, single buffered']
    #allocation9 [shape = 's32[1]{0}', space=sflag, size = 0x4, scoped, tag = 'scoped memory for tpu_custom_call.1']
    #allocation10 [shape = 'u8[512]{0}', space=vmem, size = 0x400, scoped, tag = 'input window, operand 11, single buffered']
    #allocation11 [shape = 'u8[8192]{0}', space=vmem, size = 0x2000, scoped, tag = 'input window, operand 12, single buffered']
    #allocation12 [shape = 's32[1]{0}', space=sflag, size = 0x4, scoped, tag = 'scoped memory for tpu_custom_call.1']
    #allocation13 [shape = 'u8[512]{0}', space=vmem, size = 0x400, scoped, tag = 'input window, operand 13, single buffered']
    #allocation14 [shape = 'u8[8192]{0}', space=vmem, size = 0x2000, scoped, tag = 'output window, operand 0']
    #allocation15 [shape = 'u8[32768]{0}', space=vmem, size = 0x8000, scoped, tag = 'output window, operand 1']
    #allocation16 [shape = 's32[2]{0}', space=sflag, size = 0x8, scoped, tag = 'scoped memory for tpu_custom_call.1']
    #allocation17 [shape = 'u8[32768]{0}', space=vmem, size = 0x8000, scoped, tag = 'output window, operand 2']
    %32 = vsyncpa [#allocation3], 0
    %s33 = scalar_lea.sflag [#allocation3], 1
    %34 = vsyncpa %s33, 0
    %35 = vsyncpa [#allocation6], 0
    %s36 = scalar_lea.sflag [#allocation6], 1
    %37 = vsyncpa %s36, 0
    %38 = vsyncpa [#allocation9], 0
    %39 = vsyncpa [#allocation12], 0
    %40 = vsyncpa [#allocation4], 0
    %s41 = scalar_lea.sflag [#allocation4], 1
    %42 = vsyncpa %s41, 0
    %43 = vsyncpa [#allocation16], 0
    %s44 = scalar_lea.sflag [#allocation16], 1
    %45 = vsyncpa %s44, 0
    loop: start=0, step=1, limit=4
    $region2: #{tpu_custom_call.1} parent=1 // loop_pre_header
      _
    $region3: #{tpu_custom_call.1} parent=1 // loop_header
      %s47 = sphi 0, %s51
      %p48 = scmp.ge.s32.totalorder %s47, 4
      %s54 = sphi 0, %s66
      %s55 = sphi 0, %s62
      %s56 = sphi 0, %s54
      %s57 = sphi 0, %s55
      %s58 = sphi 0, %s56
      %s59 = sphi 0, %s57
      %s71 = sphi 0, %s73
      %s74 = sphi 0, %s71
      %s75 = sphi 0, %s74
      %s91 = sphi 0, %s75
      %s99 = sphi 0, %s101
      %s102 = sphi 0, %s99
      %s103 = sphi 0, %s102
      %s119 = sphi 0, %s103
      %s125 = sphi 0, %s127
      %s128 = sphi 0, %s125
      %s129 = sphi 0, %s128
      %s145 = sphi 0, %s129
      %s151 = sphi 0, %s153
      %s154 = sphi 0, %s151
      %s155 = sphi 0, %s154
      %s171 = sphi 0, %s155
      %s177 = sphi 0, %s179
      %s180 = sphi 0, %s177
      %s181 = sphi 0, %s180
      %s197 = sphi 0, %s181
      %s203 = sphi 0, %s205
      %s206 = sphi 0, %s203
      %s207 = sphi 0, %s206
      %s223 = sphi 0, %s207
      %s231 = sphi 0, %s233
      %s234 = sphi 0, %s231
      %s235 = sphi 0, %s234
      %s251 = sphi 0, %s235
      %s259 = sphi 0, %s261
      %s262 = sphi 0, %s259
      %s263 = sphi 0, %s262
      %s279 = sphi 0, %s263
      %s283 = sphi 0, %s283
      %s285 = sphi 0, %s283
      %s286 = sphi 0, %s285
      %s300 = sphi 0, %s286
      %s304 = sphi 0, %s304
      %s306 = sphi 0, %s304
      %s307 = sphi 0, %s306
      %s321 = sphi 0, %s307
      %s325 = sphi 0, %s325
      %s327 = sphi 0, %s325
      %s328 = sphi 0, %s327
      %s342 = sphi 0, %s328
      %s346 = sphi 0, %s346
      %s348 = sphi 0, %s346
      %s349 = sphi 0, %s348
      %s363 = sphi 0, %s349
      %s367 = sphi 0, %s367
      %s369 = sphi 0, %s367
      %s370 = sphi 0, %s369
      %s384 = sphi 0, %s370
      %s388 = sphi 0, %s388
      %s390 = sphi 0, %s388
      %s391 = sphi 0, %s390
      %s405 = sphi 0, %s391
      %s409 = sphi 0, %s409
      %s411 = sphi 0, %s409
      %s412 = sphi 0, %s411
      %s426 = sphi 0, %s412
      %s430 = sphi 0, %s430
      %s432 = sphi 0, %s430
      %s433 = sphi 0, %s432
      %s447 = sphi 0, %s433
      %s451 = sphi 0, %s451
      %s453 = sphi 0, %s451
      %s454 = sphi 0, %s453
      %s468 = sphi 0, %s454
      %s472 = sphi 0, %s472
      %s474 = sphi 0, %s472
      %s475 = sphi 0, %s474
      %s489 = sphi 0, %s475
      %s493 = sphi 0, %s493
      %s495 = sphi 0, %s493
      %s496 = sphi 0, %s495
      %s510 = sphi 0, %s496
      %s514 = sphi 0, %s514
      %s516 = sphi 0, %s514
      %s517 = sphi 0, %s516
      %s531 = sphi 0, %s517
      %s535 = sphi 0, %s535
      %s537 = sphi 0, %s535
      %s538 = sphi 0, %s537
      %s552 = sphi 0, %s538
      %s556 = sphi 0, %s556
      %s558 = sphi 0, %s556
      %s559 = sphi 0, %s558
      %s573 = sphi 0, %s559
      %s577 = sphi 0, %s577
      %s579 = sphi 0, %s577
      %s580 = sphi 0, %s579
      %s594 = sphi 0, %s580
      %s598 = sphi 0, %s598
      %s600 = sphi 0, %s598
      %s601 = sphi 0, %s600
      %s615 = sphi 0, %s601
      %s623 = sphi 0, %s625
      %s626 = sphi 0, %s623
      %s627 = sphi 0, %s626
      %s643 = sphi 0, %s627
      %s651 = sphi 0, %s653
      %s654 = sphi 0, %s651
      %s655 = sphi 0, %s654
      %s671 = sphi 0, %s655
      %s679 = sphi 0, %s681
      %s682 = sphi 0, %s679
      %s683 = sphi 0, %s682
      %s699 = sphi 0, %s683
    $region4: #{tpu_custom_call.1} parent=1 // loop_header_branch
      %50 = sbr.rel (%p48) target = $region8
    $region5: #{tpu_custom_call.1} parent=1 // loop_body
      %s52 = ssub.s32 %s47, 1
      %s53 = ssub.s32 %s47, 2
      %s60 = sadd.s32 1, %s55
      %p61 = scmp.ge.s32.totalorder %s60, 1
      %s62 = scalar_select %p61, 0, %s60
      %s63 = sadd.s32 1, %s54
      %s64 = scalar_select %p61, %s63, %s54
      %p65 = scmp.ge.s32.totalorder %s64, 2
      %s66 = scalar_select %p65, 0, %s64
      %s67 = ssub.s32 %s54, %s66
      %s68 = ssub.s32 %s55, %s62
      %s69 = sor.u32 %s67, %s68
      %p70 = scmp.eq.s32.totalorder %s69, 0
      %s72 = sadd.s32 %s71, 1
      %s73 = scalar_select %p70, %s71, %s72
      %p76 = pneg %p70
      %p77 = scmp.eq.s32.totalorder %s47, 1
      %p78 = por %p76, %p77
      %p79 = scmp.ne.s32.totalorder %s71, %s74
      %p80 = scmp.eq.s32.totalorder %s47, 0
      %p81 = por %p79, %p80
      %p82 = scmp.ne.s32.totalorder %s71, %s74
      %p83 = scmp.eq.s32.totalorder %s52, 1
      %p84 = por %p82, %p83
      %p85 = scmp.ne.s32.totalorder %s74, %s75
      %p86 = scmp.eq.s32.totalorder %s52, 0
      %p87 = por %p85, %p86
      %p88 = scmp.ne.s32.totalorder %s74, %s75
      %p89 = scmp.eq.s32.totalorder %s53, 1
      %p90 = por %p88, %p89
      %p92 = scmp.ne.s32.totalorder %s75, %s91
      %p93 = scmp.eq.s32.totalorder %s53, 0
      %p94 = por %p92, %p93
      %s95 = ssub.s32 %s54, %s66
      %s96 = ssub.s32 %s55, %s62
      %s97 = sor.u32 %s95, %s96
      %p98 = scmp.eq.s32.totalorder %s97, 0
      %s100 = sadd.s32 %s99, 1
      %s101 = scalar_select %p98, %s99, %s100
      %p104 = pneg %p98
      %p105 = scmp.eq.s32.totalorder %s47, 1
      %p106 = por %p104, %p105
      %p107 = scmp.ne.s32.totalorder %s99, %s102
      %p108 = scmp.eq.s32.totalorder %s47, 0
      %p109 = por %p107, %p108
      %p110 = scmp.ne.s32.totalorder %s99, %s102
      %p111 = scmp.eq.s32.totalorder %s52, 1
      %p112 = por %p110, %p111
      %p113 = scmp.ne.s32.totalorder %s102, %s103
      %p114 = scmp.eq.s32.totalorder %s52, 0
      %p115 = por %p113, %p114
      %p116 = scmp.ne.s32.totalorder %s102, %s103
      %p117 = scmp.eq.s32.totalorder %s53, 1
      %p118 = por %p116, %p117
      %p120 = scmp.ne.s32.totalorder %s103, %s119
      %p121 = scmp.eq.s32.totalorder %s53, 0
      %p122 = por %p120, %p121
      %s123 = ssub.s32 %s54, %s66
      %p124 = scmp.eq.s32.totalorder %s123, 0
      %s126 = sadd.s32 %s125, 1
      %s127 = scalar_select %p124, %s125, %s126
      %p130 = pneg %p124
      %p131 = scmp.eq.s32.totalorder %s47, 1
      %p132 = por %p130, %p131
      %p133 = scmp.ne.s32.totalorder %s125, %s128
      %p134 = scmp.eq.s32.totalorder %s47, 0
      %p135 = por %p133, %p134
      %p136 = scmp.ne.s32.totalorder %s125, %s128
      %p137 = scmp.eq.s32.totalorder %s52, 1
      %p138 = por %p136, %p137
      %p139 = scmp.ne.s32.totalorder %s128, %s129
      %p140 = scmp.eq.s32.totalorder %s52, 0
      %p141 = por %p139, %p140
      %p142 = scmp.ne.s32.totalorder %s128, %s129
      %p143 = scmp.eq.s32.totalorder %s53, 1
      %p144 = por %p142, %p143
      %p146 = scmp.ne.s32.totalorder %s129, %s145
      %p147 = scmp.eq.s32.totalorder %s53, 0
      %p148 = por %p146, %p147
      %s149 = ssub.s32 %s54, %s66
      %p150 = scmp.eq.s32.totalorder %s149, 0
      %s152 = sadd.s32 %s151, 1
      %s153 = scalar_select %p150, %s151, %s152
      %p156 = pneg %p150
      %p157 = scmp.eq.s32.totalorder %s47, 1
      %p158 = por %p156, %p157
      %p159 = scmp.ne.s32.totalorder %s151, %s154
      %p160 = scmp.eq.s32.totalorder %s47, 0
      %p161 = por %p159, %p160
      %p162 = scmp.ne.s32.totalorder %s151, %s154
      %p163 = scmp.eq.s32.totalorder %s52, 1
      %p164 = por %p162, %p163
      %p165 = scmp.ne.s32.totalorder %s154, %s155
      %p166 = scmp.eq.s32.totalorder %s52, 0
      %p167 = por %p165, %p166
      %p168 = scmp.ne.s32.totalorder %s154, %s155
      %p169 = scmp.eq.s32.totalorder %s53, 1
      %p170 = por %p168, %p169
      %p172 = scmp.ne.s32.totalorder %s155, %s171
      %p173 = scmp.eq.s32.totalorder %s53, 0
      %p174 = por %p172, %p173
      %s175 = ssub.s32 %s54, %s66
      %p176 = scmp.eq.s32.totalorder %s175, 0
      %s178 = sadd.s32 %s177, 1
      %s179 = scalar_select %p176, %s177, %s178
      %p182 = pneg %p176
      %p183 = scmp.eq.s32.totalorder %s47, 1
      %p184 = por %p182, %p183
      %p185 = scmp.ne.s32.totalorder %s177, %s180
      %p186 = scmp.eq.s32.totalorder %s47, 0
      %p187 = por %p185, %p186
      %p188 = scmp.ne.s32.totalorder %s177, %s180
      %p189 = scmp.eq.s32.totalorder %s52, 1
      %p190 = por %p188, %p189
      %p191 = scmp.ne.s32.totalorder %s180, %s181
      %p192 = scmp.eq.s32.totalorder %s52, 0
      %p193 = por %p191, %p192
      %p194 = scmp.ne.s32.totalorder %s180, %s181
      %p195 = scmp.eq.s32.totalorder %s53, 1
      %p196 = por %p194, %p195
      %p198 = scmp.ne.s32.totalorder %s181, %s197
      %p199 = scmp.eq.s32.totalorder %s53, 0
      %p200 = por %p198, %p199
      %s201 = ssub.s32 %s54, %s66
      %p202 = scmp.eq.s32.totalorder %s201, 0
      %s204 = sadd.s32 %s203, 1
      %s205 = scalar_select %p202, %s203, %s204
      %p208 = pneg %p202
      %p209 = scmp.eq.s32.totalorder %s47, 1
      %p210 = por %p208, %p209
      %p211 = scmp.ne.s32.totalorder %s203, %s206
      %p212 = scmp.eq.s32.totalorder %s47, 0
      %p213 = por %p211, %p212
      %p214 = scmp.ne.s32.totalorder %s203, %s206
      %p215 = scmp.eq.s32.totalorder %s52, 1
      %p216 = por %p214, %p215
      %p217 = scmp.ne.s32.totalorder %s206, %s207
      %p218 = scmp.eq.s32.totalorder %s52, 0
      %p219 = por %p217, %p218
      %p220 = scmp.ne.s32.totalorder %s206, %s207
      %p221 = scmp.eq.s32.totalorder %s53, 1
      %p222 = por %p220, %p221
      %p224 = scmp.ne.s32.totalorder %s207, %s223
      %p225 = scmp.eq.s32.totalorder %s53, 0
      %p226 = por %p224, %p225
      %s227 = ssub.s32 %s54, %s66
      %s228 = ssub.s32 %s55, %s62
      %s229 = sor.u32 %s227, %s228
      %p230 = scmp.eq.s32.totalorder %s229, 0
      %s232 = sadd.s32 %s231, 1
      %s233 = scalar_select %p230, %s231, %s232
      %p236 = pneg %p230
      %p237 = scmp.eq.s32.totalorder %s47, 1
      %p238 = por %p236, %p237
      %p239 = scmp.ne.s32.totalorder %s231, %s234
      %p240 = scmp.eq.s32.totalorder %s47, 0
      %p241 = por %p239, %p240
      %p242 = scmp.ne.s32.totalorder %s231, %s234
      %p243 = scmp.eq.s32.totalorder %s52, 1
      %p244 = por %p242, %p243
      %p245 = scmp.ne.s32.totalorder %s234, %s235
      %p246 = scmp.eq.s32.totalorder %s52, 0
      %p247 = por %p245, %p246
      %p248 = scmp.ne.s32.totalorder %s234, %s235
      %p249 = scmp.eq.s32.totalorder %s53, 1
      %p250 = por %p248, %p249
      %p252 = scmp.ne.s32.totalorder %s235, %s251
      %p253 = scmp.eq.s32.totalorder %s53, 0
      %p254 = por %p252, %p253
      %s255 = ssub.s32 %s54, %s66
      %s256 = ssub.s32 %s55, %s62
      %s257 = sor.u32 %s255, %s256
      %p258 = scmp.eq.s32.totalorder %s257, 0
      %s260 = sadd.s32 %s259, 1
      %s261 = scalar_select %p258, %s259, %s260
      %p264 = pneg %p258
      %p265 = scmp.eq.s32.totalorder %s47, 1
      %p266 = por %p264, %p265
      %p267 = scmp.ne.s32.totalorder %s259, %s262
      %p268 = scmp.eq.s32.totalorder %s47, 0
      %p269 = por %p267, %p268
      %p270 = scmp.ne.s32.totalorder %s259, %s262
      %p271 = scmp.eq.s32.totalorder %s52, 1
      %p272 = por %p270, %p271
      %p273 = scmp.ne.s32.totalorder %s262, %s263
      %p274 = scmp.eq.s32.totalorder %s52, 0
      %p275 = por %p273, %p274
      %p276 = scmp.ne.s32.totalorder %s262, %s263
      %p277 = scmp.eq.s32.totalorder %s53, 1
      %p278 = por %p276, %p277
      %p280 = scmp.ne.s32.totalorder %s263, %s279
      %p281 = scmp.eq.s32.totalorder %s53, 0
      %p282 = por %p280, %p281
      %s284 = sadd.s32 %s283, 1
      %p287 = scmp.eq.s32.totalorder %s47, 1
      %p288 = scmp.ne.s32.totalorder %s283, %s285
      %p289 = scmp.eq.s32.totalorder %s47, 0
      %p290 = por %p288, %p289
      %p291 = scmp.ne.s32.totalorder %s283, %s285
      %p292 = scmp.eq.s32.totalorder %s52, 1
      %p293 = por %p291, %p292
      %p294 = scmp.ne.s32.totalorder %s285, %s286
      %p295 = scmp.eq.s32.totalorder %s52, 0
      %p296 = por %p294, %p295
      %p297 = scmp.ne.s32.totalorder %s285, %s286
      %p298 = scmp.eq.s32.totalorder %s53, 1
      %p299 = por %p297, %p298
      %p301 = scmp.ne.s32.totalorder %s286, %s300
      %p302 = scmp.eq.s32.totalorder %s53, 0
      %p303 = por %p301, %p302
      %s305 = sadd.s32 %s304, 1
      %p308 = scmp.eq.s32.totalorder %s47, 1
      %p309 = scmp.ne.s32.totalorder %s304, %s306
      %p310 = scmp.eq.s32.totalorder %s47, 0
      %p311 = por %p309, %p310
      %p312 = scmp.ne.s32.totalorder %s304, %s306
      %p313 = scmp.eq.s32.totalorder %s52, 1
      %p314 = por %p312, %p313
      %p315 = scmp.ne.s32.totalorder %s306, %s307
      %p316 = scmp.eq.s32.totalorder %s52, 0
      %p317 = por %p315, %p316
      %p318 = scmp.ne.s32.totalorder %s306, %s307
      %p319 = scmp.eq.s32.totalorder %s53, 1
      %p320 = por %p318, %p319
      %p322 = scmp.ne.s32.totalorder %s307, %s321
      %p323 = scmp.eq.s32.totalorder %s53, 0
      %p324 = por %p322, %p323
      %s326 = sadd.s32 %s325, 1
      %p329 = scmp.eq.s32.totalorder %s47, 1
      %p330 = scmp.ne.s32.totalorder %s325, %s327
      %p331 = scmp.eq.s32.totalorder %s47, 0
      %p332 = por %p330, %p331
      %p333 = scmp.ne.s32.totalorder %s325, %s327
      %p334 = scmp.eq.s32.totalorder %s52, 1
      %p335 = por %p333, %p334
      %p336 = scmp.ne.s32.totalorder %s327, %s328
      %p337 = scmp.eq.s32.totalorder %s52, 0
      %p338 = por %p336, %p337
      %p339 = scmp.ne.s32.totalorder %s327, %s328
      %p340 = scmp.eq.s32.totalorder %s53, 1
      %p341 = por %p339, %p340
      %p343 = scmp.ne.s32.totalorder %s328, %s342
      %p344 = scmp.eq.s32.totalorder %s53, 0
      %p345 = por %p343, %p344
      %s347 = sadd.s32 %s346, 1
      %p350 = scmp.eq.s32.totalorder %s47, 1
      %p351 = scmp.ne.s32.totalorder %s346, %s348
      %p352 = scmp.eq.s32.totalorder %s47, 0
      %p353 = por %p351, %p352
      %p354 = scmp.ne.s32.totalorder %s346, %s348
      %p355 = scmp.eq.s32.totalorder %s52, 1
      %p356 = por %p354, %p355
      %p357 = scmp.ne.s32.totalorder %s348, %s349
      %p358 = scmp.eq.s32.totalorder %s52, 0
      %p359 = por %p357, %p358
      %p360 = scmp.ne.s32.totalorder %s348, %s349
      %p361 = scmp.eq.s32.totalorder %s53, 1
      %p362 = por %p360, %p361
      %p364 = scmp.ne.s32.totalorder %s349, %s363
      %p365 = scmp.eq.s32.totalorder %s53, 0
      %p366 = por %p364, %p365
      %s368 = sadd.s32 %s367, 1
      %p371 = scmp.eq.s32.totalorder %s47, 1
      %p372 = scmp.ne.s32.totalorder %s367, %s369
      %p373 = scmp.eq.s32.totalorder %s47, 0
      %p374 = por %p372, %p373
      %p375 = scmp.ne.s32.totalorder %s367, %s369
      %p376 = scmp.eq.s32.totalorder %s52, 1
      %p377 = por %p375, %p376
      %p378 = scmp.ne.s32.totalorder %s369, %s370
      %p379 = scmp.eq.s32.totalorder %s52, 0
      %p380 = por %p378, %p379
      %p381 = scmp.ne.s32.totalorder %s369, %s370
      %p382 = scmp.eq.s32.totalorder %s53, 1
      %p383 = por %p381, %p382
      %p385 = scmp.ne.s32.totalorder %s370, %s384
      %p386 = scmp.eq.s32.totalorder %s53, 0
      %p387 = por %p385, %p386
      %s389 = sadd.s32 %s388, 1
      %p392 = scmp.eq.s32.totalorder %s47, 1
      %p393 = scmp.ne.s32.totalorder %s388, %s390
      %p394 = scmp.eq.s32.totalorder %s47, 0
      %p395 = por %p393, %p394
      %p396 = scmp.ne.s32.totalorder %s388, %s390
      %p397 = scmp.eq.s32.totalorder %s52, 1
      %p398 = por %p396, %p397
      %p399 = scmp.ne.s32.totalorder %s390, %s391
      %p400 = scmp.eq.s32.totalorder %s52, 0
      %p401 = por %p399, %p400
      %p402 = scmp.ne.s32.totalorder %s390, %s391
      %p403 = scmp.eq.s32.totalorder %s53, 1
      %p404 = por %p402, %p403
      %p406 = scmp.ne.s32.totalorder %s391, %s405
      %p407 = scmp.eq.s32.totalorder %s53, 0
      %p408 = por %p406, %p407
      %s410 = sadd.s32 %s409, 1
      %p413 = scmp.eq.s32.totalorder %s47, 1
      %p414 = scmp.ne.s32.totalorder %s409, %s411
      %p415 = scmp.eq.s32.totalorder %s47, 0
      %p416 = por %p414, %p415
      %p417 = scmp.ne.s32.totalorder %s409, %s411
      %p418 = scmp.eq.s32.totalorder %s52, 1
      %p419 = por %p417, %p418
      %p420 = scmp.ne.s32.totalorder %s411, %s412
      %p421 = scmp.eq.s32.totalorder %s52, 0
      %p422 = por %p420, %p421
      %p423 = scmp.ne.s32.totalorder %s411, %s412
      %p424 = scmp.eq.s32.totalorder %s53, 1
      %p425 = por %p423, %p424
      %p427 = scmp.ne.s32.totalorder %s412, %s426
      %p428 = scmp.eq.s32.totalorder %s53, 0
      %p429 = por %p427, %p428
      %s431 = sadd.s32 %s430, 1
      %p434 = scmp.eq.s32.totalorder %s47, 1
      %p435 = scmp.ne.s32.totalorder %s430, %s432
      %p436 = scmp.eq.s32.totalorder %s47, 0
      %p437 = por %p435, %p436
      %p438 = scmp.ne.s32.totalorder %s430, %s432
      %p439 = scmp.eq.s32.totalorder %s52, 1
      %p440 = por %p438, %p439
      %p441 = scmp.ne.s32.totalorder %s432, %s433
      %p442 = scmp.eq.s32.totalorder %s52, 0
      %p443 = por %p441, %p442
      %p444 = scmp.ne.s32.totalorder %s432, %s433
      %p445 = scmp.eq.s32.totalorder %s53, 1
      %p446 = por %p444, %p445
      %p448 = scmp.ne.s32.totalorder %s433, %s447
      %p449 = scmp.eq.s32.totalorder %s53, 0
      %p450 = por %p448, %p449
      %s452 = sadd.s32 %s451, 1
      %p455 = scmp.eq.s32.totalorder %s47, 1
      %p456 = scmp.ne.s32.totalorder %s451, %s453
      %p457 = scmp.eq.s32.totalorder %s47, 0
      %p458 = por %p456, %p457
      %p459 = scmp.ne.s32.totalorder %s451, %s453
      %p460 = scmp.eq.s32.totalorder %s52, 1
      %p461 = por %p459, %p460
      %p462 = scmp.ne.s32.totalorder %s453, %s454
      %p463 = scmp.eq.s32.totalorder %s52, 0
      %p464 = por %p462, %p463
      %p465 = scmp.ne.s32.totalorder %s453, %s454
      %p466 = scmp.eq.s32.totalorder %s53, 1
      %p467 = por %p465, %p466
      %p469 = scmp.ne.s32.totalorder %s454, %s468
      %p470 = scmp.eq.s32.totalorder %s53, 0
      %p471 = por %p469, %p470
      %s473 = sadd.s32 %s472, 1
      %p476 = scmp.eq.s32.totalorder %s47, 1
      %p477 = scmp.ne.s32.totalorder %s472, %s474
      %p478 = scmp.eq.s32.totalorder %s47, 0
      %p479 = por %p477, %p478
      %p480 = scmp.ne.s32.totalorder %s472, %s474
      %p481 = scmp.eq.s32.totalorder %s52, 1
      %p482 = por %p480, %p481
      %p483 = scmp.ne.s32.totalorder %s474, %s475
      %p484 = scmp.eq.s32.totalorder %s52, 0
      %p485 = por %p483, %p484
      %p486 = scmp.ne.s32.totalorder %s474, %s475
      %p487 = scmp.eq.s32.totalorder %s53, 1
      %p488 = por %p486, %p487
      %p490 = scmp.ne.s32.totalorder %s475, %s489
      %p491 = scmp.eq.s32.totalorder %s53, 0
      %p492 = por %p490, %p491
      %s494 = sadd.s32 %s493, 1
      %p497 = scmp.eq.s32.totalorder %s47, 1
      %p498 = scmp.ne.s32.totalorder %s493, %s495
      %p499 = scmp.eq.s32.totalorder %s47, 0
      %p500 = por %p498, %p499
      %p501 = scmp.ne.s32.totalorder %s493, %s495
      %p502 = scmp.eq.s32.totalorder %s52, 1
      %p503 = por %p501, %p502
      %p504 = scmp.ne.s32.totalorder %s495, %s496
      %p505 = scmp.eq.s32.totalorder %s52, 0
      %p506 = por %p504, %p505
      %p507 = scmp.ne.s32.totalorder %s495, %s496
      %p508 = scmp.eq.s32.totalorder %s53, 1
      %p509 = por %p507, %p508
      %p511 = scmp.ne.s32.totalorder %s496, %s510
      %p512 = scmp.eq.s32.totalorder %s53, 0
      %p513 = por %p511, %p512
      %s515 = sadd.s32 %s514, 1
      %p518 = scmp.eq.s32.totalorder %s47, 1
      %p519 = scmp.ne.s32.totalorder %s514, %s516
      %p520 = scmp.eq.s32.totalorder %s47, 0
      %p521 = por %p519, %p520
      %p522 = scmp.ne.s32.totalorder %s514, %s516
      %p523 = scmp.eq.s32.totalorder %s52, 1
      %p524 = por %p522, %p523
      %p525 = scmp.ne.s32.totalorder %s516, %s517
      %p526 = scmp.eq.s32.totalorder %s52, 0
      %p527 = por %p525, %p526
      %p528 = scmp.ne.s32.totalorder %s516, %s517
      %p529 = scmp.eq.s32.totalorder %s53, 1
      %p530 = por %p528, %p529
      %p532 = scmp.ne.s32.totalorder %s517, %s531
      %p533 = scmp.eq.s32.totalorder %s53, 0
      %p534 = por %p532, %p533
      %s536 = sadd.s32 %s535, 1
      %p539 = scmp.eq.s32.totalorder %s47, 1
      %p540 = scmp.ne.s32.totalorder %s535, %s537
      %p541 = scmp.eq.s32.totalorder %s47, 0
      %p542 = por %p540, %p541
      %p543 = scmp.ne.s32.totalorder %s535, %s537
      %p544 = scmp.eq.s32.totalorder %s52, 1
      %p545 = por %p543, %p544
      %p546 = scmp.ne.s32.totalorder %s537, %s538
      %p547 = scmp.eq.s32.totalorder %s52, 0
      %p548 = por %p546, %p547
      %p549 = scmp.ne.s32.totalorder %s537, %s538
      %p550 = scmp.eq.s32.totalorder %s53, 1
      %p551 = por %p549, %p550
      %p553 = scmp.ne.s32.totalorder %s538, %s552
      %p554 = scmp.eq.s32.totalorder %s53, 0
      %p555 = por %p553, %p554
      %s557 = sadd.s32 %s556, 1
      %p560 = scmp.eq.s32.totalorder %s47, 1
      %p561 = scmp.ne.s32.totalorder %s556, %s558
      %p562 = scmp.eq.s32.totalorder %s47, 0
      %p563 = por %p561, %p562
      %p564 = scmp.ne.s32.totalorder %s556, %s558
      %p565 = scmp.eq.s32.totalorder %s52, 1
      %p566 = por %p564, %p565
      %p567 = scmp.ne.s32.totalorder %s558, %s559
      %p568 = scmp.eq.s32.totalorder %s52, 0
      %p569 = por %p567, %p568
      %p570 = scmp.ne.s32.totalorder %s558, %s559
      %p571 = scmp.eq.s32.totalorder %s53, 1
      %p572 = por %p570, %p571
      %p574 = scmp.ne.s32.totalorder %s559, %s573
      %p575 = scmp.eq.s32.totalorder %s53, 0
      %p576 = por %p574, %p575
      %s578 = sadd.s32 %s577, 1
      %p581 = scmp.eq.s32.totalorder %s47, 1
      %p582 = scmp.ne.s32.totalorder %s577, %s579
      %p583 = scmp.eq.s32.totalorder %s47, 0
      %p584 = por %p582, %p583
      %p585 = scmp.ne.s32.totalorder %s577, %s579
      %p586 = scmp.eq.s32.totalorder %s52, 1
      %p587 = por %p585, %p586
      %p588 = scmp.ne.s32.totalorder %s579, %s580
      %p589 = scmp.eq.s32.totalorder %s52, 0
      %p590 = por %p588, %p589
      %p591 = scmp.ne.s32.totalorder %s579, %s580
      %p592 = scmp.eq.s32.totalorder %s53, 1
      %p593 = por %p591, %p592
      %p595 = scmp.ne.s32.totalorder %s580, %s594
      %p596 = scmp.eq.s32.totalorder %s53, 0
      %p597 = por %p595, %p596
      %s599 = sadd.s32 %s598, 1
      %p602 = scmp.eq.s32.totalorder %s47, 1
      %p603 = scmp.ne.s32.totalorder %s598, %s600
      %p604 = scmp.eq.s32.totalorder %s47, 0
      %p605 = por %p603, %p604
      %p606 = scmp.ne.s32.totalorder %s598, %s600
      %p607 = scmp.eq.s32.totalorder %s52, 1
      %p608 = por %p606, %p607
      %p609 = scmp.ne.s32.totalorder %s600, %s601
      %p610 = scmp.eq.s32.totalorder %s52, 0
      %p611 = por %p609, %p610
      %p612 = scmp.ne.s32.totalorder %s600, %s601
      %p613 = scmp.eq.s32.totalorder %s53, 1
      %p614 = por %p612, %p613
      %p616 = scmp.ne.s32.totalorder %s601, %s615
      %p617 = scmp.eq.s32.totalorder %s53, 0
      %p618 = por %p616, %p617
      %s619 = ssub.s32 %s54, %s66
      %s620 = ssub.s32 %s55, %s62
      %s621 = sor.u32 %s619, %s620
      %p622 = scmp.eq.s32.totalorder %s621, 0
      %s624 = sadd.s32 %s623, 1
      %s625 = scalar_select %p622, %s623, %s624
      %p628 = pneg %p622
      %p629 = scmp.eq.s32.totalorder %s47, 1
      %p630 = por %p628, %p629
      %p631 = scmp.ne.s32.totalorder %s623, %s626
      %p632 = scmp.eq.s32.totalorder %s47, 0
      %p633 = por %p631, %p632
      %p634 = scmp.ne.s32.totalorder %s623, %s626
      %p635 = scmp.eq.s32.totalorder %s52, 1
      %p636 = por %p634, %p635
      %p637 = scmp.ne.s32.totalorder %s626, %s627
      %p638 = scmp.eq.s32.totalorder %s52, 0
      %p639 = por %p637, %p638
      %p640 = scmp.ne.s32.totalorder %s626, %s627
      %p641 = scmp.eq.s32.totalorder %s53, 1
      %p642 = por %p640, %p641
      %p644 = scmp.ne.s32.totalorder %s627, %s643
      %p645 = scmp.eq.s32.totalorder %s53, 0
      %p646 = por %p644, %p645
      %s647 = ssub.s32 %s54, %s66
      %s648 = ssub.s32 %s55, %s62
      %s649 = sor.u32 %s647, %s648
      %p650 = scmp.eq.s32.totalorder %s649, 0
      %s652 = sadd.s32 %s651, 1
      %s653 = scalar_select %p650, %s651, %s652
      %p656 = pneg %p650
      %p657 = scmp.eq.s32.totalorder %s47, 1
      %p658 = por %p656, %p657
      %p659 = scmp.ne.s32.totalorder %s651, %s654
      %p660 = scmp.eq.s32.totalorder %s47, 0
      %p661 = por %p659, %p660
      %p662 = scmp.ne.s32.totalorder %s651, %s654
      %p663 = scmp.eq.s32.totalorder %s52, 1
      %p664 = por %p662, %p663
      %p665 = scmp.ne.s32.totalorder %s654, %s655
      %p666 = scmp.eq.s32.totalorder %s52, 0
      %p667 = por %p665, %p666
      %p668 = scmp.ne.s32.totalorder %s654, %s655
      %p669 = scmp.eq.s32.totalorder %s53, 1
      %p670 = por %p668, %p669
      %p672 = scmp.ne.s32.totalorder %s655, %s671
      %p673 = scmp.eq.s32.totalorder %s53, 0
      %p674 = por %p672, %p673
      %s675 = ssub.s32 %s54, %s66
      %s676 = ssub.s32 %s55, %s62
      %s677 = sor.u32 %s675, %s676
      %p678 = scmp.eq.s32.totalorder %s677, 0
      %s680 = sadd.s32 %s679, 1
      %s681 = scalar_select %p678, %s679, %s680
      %p684 = pneg %p678
      %p685 = scmp.eq.s32.totalorder %s47, 1
      %p686 = por %p684, %p685
      %p687 = scmp.ne.s32.totalorder %s679, %s682
      %p688 = scmp.eq.s32.totalorder %s47, 0
      %p689 = por %p687, %p688
      %p690 = scmp.ne.s32.totalorder %s679, %s682
      %p691 = scmp.eq.s32.totalorder %s52, 1
      %p692 = por %p690, %p691
      %p693 = scmp.ne.s32.totalorder %s682, %s683
      %p694 = scmp.eq.s32.totalorder %s52, 0
      %p695 = por %p693, %p694
      %p696 = scmp.ne.s32.totalorder %s682, %s683
      %p697 = scmp.eq.s32.totalorder %s53, 1
      %p698 = por %p696, %p697
      %p700 = scmp.ne.s32.totalorder %s683, %s699
      %p701 = scmp.eq.s32.totalorder %s53, 0
      %p702 = por %p700, %p701
      %p703 = scmp.le.s32.totalorder 1, %s47
      %p704 = scmp.lt.s32.totalorder %s47, 3
      %p705 = pnand %p703, %p704
      %p706 = pneg %p705
      // Predicated region
      $region9: #{tpu_custom_call.1} parent=5 // pred_check
        _
      $region10: #{tpu_custom_call.1} parent=5 // pred_check_branch
        %708 = sbr.rel (%p705) target = $region12
      $region11: #{tpu_custom_call.1} parent=5 // pred_region
        %s709 = ssub.s32 %s47, 1
        // Predicated region
        $region13: #{tpu_custom_call.1} parent=11 // pred_check
          %p710 = pneg %p296
        $region14: #{tpu_custom_call.1} parent=11 // pred_check_branch
          %712 = sbr.rel (%p710) target = $region16
        $region15: #{tpu_custom_call.1} parent=11 // pred_region
          %s714 = ssub.s32 256, 256
          %715 = vsyncadd [#allocation9], %s714
          %s716 = sshll.u32 [#allocation8], 4
          %s717 = int_to_ptr.vmem [resolvable:$true] %s716
          %722 = dma.hbm_to_vmem [thread:$0]  %s8, 256, %s717, [#allocation9], 64, 64, 4
        $region16: #{tpu_custom_call.1} parent=11 // pred_fallthru
          _
        // Predicated region
        $region17: #{tpu_custom_call.1} parent=11 // pred_check
          %p723 = pneg %p317
        $region18: #{tpu_custom_call.1} parent=11 // pred_check_branch
          %725 = sbr.rel (%p723) target = $region20
        $region19: #{tpu_custom_call.1} parent=11 // pred_region
          _
        $region20: #{tpu_custom_call.1} parent=11 // pred_fallthru
          _
        // Predicated region
        $region21: #{tpu_custom_call.1} parent=11 // pred_check
          %p726 = pneg %p338
        $region22: #{tpu_custom_call.1} parent=11 // pred_check_branch
          %728 = sbr.rel (%p726) target = $region24
        $region23: #{tpu_custom_call.1} parent=11 // pred_region
          _
        $region24: #{tpu_custom_call.1} parent=11 // pred_fallthru
          _
        // Predicated region
        $region25: #{tpu_custom_call.1} parent=11 // pred_check
          %p729 = pneg %p359
        $region26: #{tpu_custom_call.1} parent=11 // pred_check_branch
          %731 = sbr.rel (%p729) target = $region28
        $region27: #{tpu_custom_call.1} parent=11 // pred_region
          %s733 = ssub.s32 16, 16
          %734 = vsyncadd [#allocation9], %s733
          %s736 = sshll.u32 [#allocation10], 4
          %s737 = int_to_ptr.vmem [resolvable:$true] %s736
          %739 = dma.hbm_to_vmem [thread:$0]  %s11, 16, %s737, [#allocation9]
        $region28: #{tpu_custom_call.1} parent=11 // pred_fallthru
          _
        // Predicated region
        $region29: #{tpu_custom_call.1} parent=11 // pred_check
          %p740 = pneg %p380
        $region30: #{tpu_custom_call.1} parent=11 // pred_check_branch
          %742 = sbr.rel (%p740) target = $region32
        $region31: #{tpu_custom_call.1} parent=11 // pred_region
          %s744 = ssub.s32 256, 256
          %745 = vsyncadd [#allocation12], %s744
          %s746 = sshll.u32 [#allocation11], 4
          %s747 = int_to_ptr.vmem [resolvable:$true] %s746
          %752 = dma.hbm_to_vmem [thread:$0]  %s12, 256, %s747, [#allocation12], 64, 64, 4
        $region32: #{tpu_custom_call.1} parent=11 // pred_fallthru
          _
        // Predicated region
        $region33: #{tpu_custom_call.1} parent=11 // pred_check
          %p753 = pneg %p401
        $region34: #{tpu_custom_call.1} parent=11 // pred_check_branch
          %755 = sbr.rel (%p753) target = $region36
        $region35: #{tpu_custom_call.1} parent=11 // pred_region
          %s757 = ssub.s32 16, 16
          %758 = vsyncadd [#allocation12], %s757
          %s760 = sshll.u32 [#allocation13], 4
          %s761 = int_to_ptr.vmem [resolvable:$true] %s760
          %763 = dma.hbm_to_vmem [thread:$0]  %s13, 16, %s761, [#allocation12]
        $region36: #{tpu_custom_call.1} parent=11 // pred_fallthru
          _
        // Predicated region
        $region37: #{tpu_custom_call.1} parent=11 // pred_check
          %p764 = pneg %p422
        $region38: #{tpu_custom_call.1} parent=11 // pred_check_branch
          %766 = sbr.rel (%p764) target = $region40
        $region39: #{tpu_custom_call.1} parent=11 // pred_region
          _
        $region40: #{tpu_custom_call.1} parent=11 // pred_fallthru
          _
        // Predicated region
        $region41: #{tpu_custom_call.1} parent=11 // pred_check
          %p767 = pneg %p443
        $region42: #{tpu_custom_call.1} parent=11 // pred_check_branch
          %769 = sbr.rel (%p767) target = $region44
        $region43: #{tpu_custom_call.1} parent=11 // pred_region
          _
        $region44: #{tpu_custom_call.1} parent=11 // pred_fallthru
          _
        // Predicated region
        $region45: #{tpu_custom_call.1} parent=11 // pred_check
          %p770 = pneg %p464
        $region46: #{tpu_custom_call.1} parent=11 // pred_check_branch
          %772 = sbr.rel (%p770) target = $region48
        $region47: #{tpu_custom_call.1} parent=11 // pred_region
          _
        $region48: #{tpu_custom_call.1} parent=11 // pred_fallthru
          _
        // Predicated region
        $region49: #{tpu_custom_call.1} parent=11 // pred_check
          %p773 = pneg %p485
        $region50: #{tpu_custom_call.1} parent=11 // pred_check_branch
          %775 = sbr.rel (%p773) target = $region52
        $region51: #{tpu_custom_call.1} parent=11 // pred_region
          _
        $region52: #{tpu_custom_call.1} parent=11 // pred_fallthru
          _
        // Predicated region
        $region53: #{tpu_custom_call.1} parent=11 // pred_check
          %p776 = pneg %p506
        $region54: #{tpu_custom_call.1} parent=11 // pred_check_branch
          %778 = sbr.rel (%p776) target = $region56
        $region55: #{tpu_custom_call.1} parent=11 // pred_region
          _
        $region56: #{tpu_custom_call.1} parent=11 // pred_fallthru
          _
        // Predicated region
        $region57: #{tpu_custom_call.1} parent=11 // pred_check
          %p779 = pneg %p527
        $region58: #{tpu_custom_call.1} parent=11 // pred_check_branch
          %781 = sbr.rel (%p779) target = $region60
        $region59: #{tpu_custom_call.1} parent=11 // pred_region
          _
        $region60: #{tpu_custom_call.1} parent=11 // pred_fallthru
          _
        // Predicated region
        $region61: #{tpu_custom_call.1} parent=11 // pred_check
          %p782 = pneg %p548
        $region62: #{tpu_custom_call.1} parent=11 // pred_check_branch
          %784 = sbr.rel (%p782) target = $region64
        $region63: #{tpu_custom_call.1} parent=11 // pred_region
          _
        $region64: #{tpu_custom_call.1} parent=11 // pred_fallthru
          _
        // Predicated region
        $region65: #{tpu_custom_call.1} parent=11 // pred_check
          %p785 = pneg %p569
        $region66: #{tpu_custom_call.1} parent=11 // pred_check_branch
          %787 = sbr.rel (%p785) target = $region68
        $region67: #{tpu_custom_call.1} parent=11 // pred_region
          _
        $region68: #{tpu_custom_call.1} parent=11 // pred_fallthru
          _
        // Predicated region
        $region69: #{tpu_custom_call.1} parent=11 // pred_check
          %p788 = pneg %p590
        $region70: #{tpu_custom_call.1} parent=11 // pred_check_branch
          %790 = sbr.rel (%p788) target = $region72
        $region71: #{tpu_custom_call.1} parent=11 // pred_region
          _
        $region72: #{tpu_custom_call.1} parent=11 // pred_fallthru
          _
        // Predicated region
        $region73: #{tpu_custom_call.1} parent=11 // pred_check
          %p791 = pneg %p611
        $region74: #{tpu_custom_call.1} parent=11 // pred_check_branch
          %793 = sbr.rel (%p791) target = $region76
        $region75: #{tpu_custom_call.1} parent=11 // pred_region
          _
        $region76: #{tpu_custom_call.1} parent=11 // pred_fallthru
          _
      $region12: #{tpu_custom_call.1} parent=5 // pred_fallthru
        _
      %p794 = scmp.lt.s32.totalorder %s47, 2
      // Predicated region
      $region77: #{tpu_custom_call.1} parent=5 // pred_check
        %p795 = pneg %p794
      $region78: #{tpu_custom_call.1} parent=5 // pred_check_branch
        %797 = sbr.rel (%p795) target = $region80
      $region79: #{tpu_custom_call.1} parent=5 // pred_region
        // Predicated region
        $region81: #{tpu_custom_call.1} parent=79 // pred_check
          %p798 = pneg %p81
        $region82: #{tpu_custom_call.1} parent=79 // pred_check_branch
          %800 = sbr.rel (%p798) target = $region84
        $region83: #{tpu_custom_call.1} parent=79 // pred_region
          %p801 = scmp.lt.s32.totalorder %s54, 1
          %s802 = scalar_select %p801, %s54, 1
          %p803 = scmp.lt.s32.totalorder %s55, 0
          %s804 = scalar_select %p803, %s55, 0
          %s805 = sadd.s32 %s804, %s802
          %s806 = smul.addr %s805, 8
          %s807 = scalar_lea.vmem %s0, %s806
        $region84: #{tpu_custom_call.1} parent=79 // pred_fallthru
          _
        // Predicated region
        $region85: #{tpu_custom_call.1} parent=79 // pred_check
          %p808 = pneg %p109
        $region86: #{tpu_custom_call.1} parent=79 // pred_check_branch
          %810 = sbr.rel (%p808) target = $region88
        $region87: #{tpu_custom_call.1} parent=79 // pred_region
          %p811 = scmp.lt.s32.totalorder %s54, 1
          %s812 = scalar_select %p811, %s54, 1
          %p813 = scmp.lt.s32.totalorder %s55, 0
          %s814 = scalar_select %p813, %s55, 0
          %s815 = smul.addr %s812, 4
          %s816 = sadd.s32 %s814, %s815
          %s817 = smul.addr %s816, 4
          %s818 = scalar_lea.vmem %s1, %s817
        $region88: #{tpu_custom_call.1} parent=79 // pred_fallthru
          _
        // Predicated region
        $region89: #{tpu_custom_call.1} parent=79 // pred_check
          %p819 = pneg %p135
        $region90: #{tpu_custom_call.1} parent=79 // pred_check_branch
          %821 = sbr.rel (%p819) target = $region92
        $region91: #{tpu_custom_call.1} parent=79 // pred_region
          %p822 = scmp.lt.s32.totalorder %s54, 1
          %s823 = scalar_select %p822, %s54, 1
          %s824 = smul.addr %s823, 4
          %s825 = smul.addr %s824, 4
          %s826 = scalar_lea.vmem %s2, %s825
        $region92: #{tpu_custom_call.1} parent=79 // pred_fallthru
          _
        // Predicated region
        $region93: #{tpu_custom_call.1} parent=79 // pred_check
          %p827 = pneg %p161
        $region94: #{tpu_custom_call.1} parent=79 // pred_check_branch
          %829 = sbr.rel (%p827) target = $region96
        $region95: #{tpu_custom_call.1} parent=79 // pred_region
          %p830 = scmp.lt.s32.totalorder %s54, 1
          %s831 = scalar_select %p830, %s54, 1
          %s832 = smul.addr %s831, 4
          %s833 = smul.addr %s832, 4
          %s834 = scalar_lea.vmem %s3, %s833
        $region96: #{tpu_custom_call.1} parent=79 // pred_fallthru
          _
        // Predicated region
        $region97: #{tpu_custom_call.1} parent=79 // pred_check
          %p835 = pneg %p187
        $region98: #{tpu_custom_call.1} parent=79 // pred_check_branch
          %837 = sbr.rel (%p835) target = $region100
        $region99: #{tpu_custom_call.1} parent=79 // pred_region
          %s838 = sand.u32 %s177, 1
          %s839 = scalar_lea.sflag [#allocation3], %s838
          %s840 = sand.u32 %s177, 1
          %s841 = smul.addr %s840, 16
          %s842 = scalar_lea.vmem [#allocation2], %s841
          %s844 = ssub.s32 256, 256
          %845 = vsyncadd %s839, %s844
          %s846 = smul.addr %s54, 4
          %s847 = smul.addr %s846, 64
          %s848 = scalar_lea.hbm %s4, %s847
          %s849 = sshll.u32 %s842, 4
          %s850 = int_to_ptr.vmem [resolvable:$true] %s849
          %855 = dma.hbm_to_vmem [thread:$0]  %s848, 256, %s850, %s839, 64, 64, 4
        $region100: #{tpu_custom_call.1} parent=79 // pred_fallthru
          _
        // Predicated region
        $region101: #{tpu_custom_call.1} parent=79 // pred_check
          %p856 = pneg %p213
        $region102: #{tpu_custom_call.1} parent=79 // pred_check_branch
          %858 = sbr.rel (%p856) target = $region104
        $region103: #{tpu_custom_call.1} parent=79 // pred_region
          %p859 = scmp.lt.s32.totalorder %s54, 1
          %s860 = scalar_select %p859, %s54, 1
          %s861 = smul.addr %s860, 8
          %s862 = smul.addr %s861, 4
          %s863 = scalar_lea.vmem %s5, %s862
        $region104: #{tpu_custom_call.1} parent=79 // pred_fallthru
          _
        // Predicated region
        $region105: #{tpu_custom_call.1} parent=79 // pred_check
          %p864 = pneg %p241
        $region106: #{tpu_custom_call.1} parent=79 // pred_check_branch
          %866 = sbr.rel (%p864) target = $region108
        $region107: #{tpu_custom_call.1} parent=79 // pred_region
          %s867 = sand.u32 %s47, 1
          %s868 = scalar_lea.sflag [#allocation6], %s867
          %s869 = sand.u32 %s231, 1
          %s870 = smul.addr %s869, 8
          %s871 = scalar_lea.vmem [#allocation5], %s870
          %s873 = ssub.s32 128, 128
          %874 = vsyncadd %s868, %s873
          %s875 = sadd.s32 %s55, %s54
          %s876 = smul.addr %s875, 128
          %s877 = scalar_lea.hbm %s6, %s876
          %s879 = sshll.u32 %s871, 4
          %s880 = int_to_ptr.vmem [resolvable:$true] %s879
          %882 = dma.hbm_to_vmem [thread:$0]  %s877, 128, %s880, %s868
        $region108: #{tpu_custom_call.1} parent=79 // pred_fallthru
          _
        // Predicated region
        $region109: #{tpu_custom_call.1} parent=79 // pred_check
          %p883 = pneg %p269
        $region110: #{tpu_custom_call.1} parent=79 // pred_check_branch
          %885 = sbr.rel (%p883) target = $region112
        $region111: #{tpu_custom_call.1} parent=79 // pred_region
          %s886 = sand.u32 %s47, 1
          %s887 = scalar_lea.sflag [#allocation6], %s886
          %s888 = sand.u32 %s259, 1
          %s889 = smul.addr %s888, 8
          %s890 = scalar_lea.vmem [#allocation7], %s889
          %s892 = ssub.s32 128, 128
          %893 = vsyncadd %s887, %s892
          %s894 = sadd.s32 %s55, %s54
          %s895 = smul.addr %s894, 128
          %s896 = scalar_lea.hbm %s7, %s895
          %s898 = sshll.u32 %s890, 4
          %s899 = int_to_ptr.vmem [resolvable:$true] %s898
          %901 = dma.hbm_to_vmem [thread:$0]  %s896, 128, %s899, %s887
        $region112: #{tpu_custom_call.1} parent=79 // pred_fallthru
          _
      $region80: #{tpu_custom_call.1} parent=5 // pred_fallthru
        _
      %p902 = scmp.le.s32.totalorder 1, %s47
      %p903 = scmp.lt.s32.totalorder %s47, 3
      %p904 = pnand %p902, %p903
      %p905 = pneg %p904
      // Predicated region
      $region113: #{tpu_custom_call.1} parent=5 // pred_check
        _
      $region114: #{tpu_custom_call.1} parent=5 // pred_check_branch
        %907 = sbr.rel (%p904) target = $region116
      $region115: #{tpu_custom_call.1} parent=5 // pred_region
        %s908 = ssub.s32 %s47, 1
        %s909 = sand.u32 %s180, 1
        %s910 = scalar_lea.sflag [#allocation3], %s909
        %s911 = sand.u32 %s180, 1
        %s912 = smul.addr %s911, 16
        %s913 = scalar_lea.vmem [#allocation2], %s912
        // Predicated region
        $region117: #{tpu_custom_call.1} parent=115 // pred_check
          %p914 = pneg %p193
        $region118: #{tpu_custom_call.1} parent=115 // pred_check_branch
          %916 = sbr.rel (%p914) target = $region120
        $region119: #{tpu_custom_call.1} parent=115 // pred_region
          %917 = dma.done %s910, 256
        $region120: #{tpu_custom_call.1} parent=115 // pred_fallthru
          _
        %s918 = sand.u32 %s52, 1
        %s919 = scalar_lea.sflag [#allocation6], %s918
        %s920 = sand.u32 %s234, 1
        %s921 = smul.addr %s920, 8
        %s922 = scalar_lea.vmem [#allocation5], %s921
        // Predicated region
        $region121: #{tpu_custom_call.1} parent=115 // pred_check
          %p923 = pneg %p247
        $region122: #{tpu_custom_call.1} parent=115 // pred_check_branch
          %925 = sbr.rel (%p923) target = $region124
        $region123: #{tpu_custom_call.1} parent=115 // pred_region
          %926 = dma.done %s919, 128
        $region124: #{tpu_custom_call.1} parent=115 // pred_fallthru
          _
        %s927 = sand.u32 %s52, 1
        %s928 = scalar_lea.sflag [#allocation6], %s927
        %s929 = sand.u32 %s262, 1
        %s930 = smul.addr %s929, 8
        %s931 = scalar_lea.vmem [#allocation7], %s930
        // Predicated region
        $region125: #{tpu_custom_call.1} parent=115 // pred_check
          %p932 = pneg %p275
        $region126: #{tpu_custom_call.1} parent=115 // pred_check_branch
          %934 = sbr.rel (%p932) target = $region128
        $region127: #{tpu_custom_call.1} parent=115 // pred_region
          %935 = dma.done %s928, 128
        $region128: #{tpu_custom_call.1} parent=115 // pred_fallthru
          _
        // Predicated region
        $region129: #{tpu_custom_call.1} parent=115 // pred_check
          %p936 = pneg %p296
        $region130: #{tpu_custom_call.1} parent=115 // pred_check_branch
          %938 = sbr.rel (%p936) target = $region132
        $region131: #{tpu_custom_call.1} parent=115 // pred_region
          %939 = dma.done [#allocation9], 256
        $region132: #{tpu_custom_call.1} parent=115 // pred_fallthru
          _
        // Predicated region
        $region133: #{tpu_custom_call.1} parent=115 // pred_check
          %p940 = pneg %p359
        $region134: #{tpu_custom_call.1} parent=115 // pred_check_branch
          %942 = sbr.rel (%p940) target = $region136
        $region135: #{tpu_custom_call.1} parent=115 // pred_region
          %943 = dma.done [#allocation9], 16
        $region136: #{tpu_custom_call.1} parent=115 // pred_fallthru
          _
        // Predicated region
        $region137: #{tpu_custom_call.1} parent=115 // pred_check
          %p944 = pneg %p380
        $region138: #{tpu_custom_call.1} parent=115 // pred_check_branch
          %946 = sbr.rel (%p944) target = $region140
        $region139: #{tpu_custom_call.1} parent=115 // pred_region
          %947 = dma.done [#allocation12], 256
        $region140: #{tpu_custom_call.1} parent=115 // pred_fallthru
          _
        // Predicated region
        $region141: #{tpu_custom_call.1} parent=115 // pred_check
          %p948 = pneg %p401
        $region142: #{tpu_custom_call.1} parent=115 // pred_check_branch
          %950 = sbr.rel (%p948) target = $region144
        $region143: #{tpu_custom_call.1} parent=115 // pred_region
          %951 = dma.done [#allocation12], 16
        $region144: #{tpu_custom_call.1} parent=115 // pred_fallthru
          _
        %p952 = scmp.lt.s32.totalorder %s56, 1
        %s953 = scalar_select %p952, %s56, 1
        %p954 = scmp.lt.s32.totalorder %s57, 0
        %s955 = scalar_select %p954, %s57, 0
        %s956 = sadd.s32 %s955, %s953
        %s957 = smul.addr %s956, 8
        %s958 = scalar_lea.vmem %s0, %s957
        %p959 = pneg %p87
        %p960 = pneg %p84
        %p961 = scmp.lt.s32.totalorder %s56, 1
        %s962 = scalar_select %p961, %s56, 1
        %p963 = scmp.lt.s32.totalorder %s57, 0
        %s964 = scalar_select %p963, %s57, 0
        %s965 = smul.addr %s962, 4
        %s966 = sadd.s32 %s964, %s965
        %s967 = smul.addr %s966, 4
        %s968 = scalar_lea.vmem %s1, %s967
        %p969 = pneg %p115
        %p970 = pneg %p112
        %p971 = scmp.lt.s32.totalorder %s56, 1
        %s972 = scalar_select %p971, %s56, 1
        %s973 = smul.addr %s972, 4
        %s974 = smul.addr %s973, 4
        %s975 = scalar_lea.vmem %s2, %s974
        %p976 = pneg %p141
        %p977 = pneg %p138
        %p978 = scmp.lt.s32.totalorder %s56, 1
        %s979 = scalar_select %p978, %s56, 1
        %s980 = smul.addr %s979, 4
        %s981 = smul.addr %s980, 4
        %s982 = scalar_lea.vmem %s3, %s981
        %p983 = pneg %p167
        %p984 = pneg %p164
        %s985 = sand.u32 %s180, 1
        %s986 = scalar_lea.sflag [#allocation3], %s985
        %s987 = sand.u32 %s180, 1
        %s988 = smul.addr %s987, 16
        %s989 = scalar_lea.vmem [#allocation2], %s988
        %p990 = pneg %p193
        %p991 = pneg %p190
        %p992 = scmp.lt.s32.totalorder %s56, 1
        %s993 = scalar_select %p992, %s56, 1
        %s994 = smul.addr %s993, 8
        %s995 = smul.addr %s994, 4
        %s996 = scalar_lea.vmem %s5, %s995
        %p997 = pneg %p219
        %p998 = pneg %p216
        %s999 = sand.u32 %s52, 1
        %s1000 = scalar_lea.sflag [#allocation6], %s999
        %s1001 = sand.u32 %s234, 1
        %s1002 = smul.addr %s1001, 8
        %s1003 = scalar_lea.vmem [#allocation5], %s1002
        %p1004 = pneg %p247
        %p1005 = pneg %p244
        %s1006 = sand.u32 %s52, 1
        %s1007 = scalar_lea.sflag [#allocation6], %s1006
        %s1008 = sand.u32 %s262, 1
        %s1009 = smul.addr %s1008, 8
        %s1010 = scalar_lea.vmem [#allocation7], %s1009
        %p1011 = pneg %p275
        %p1012 = pneg %p272
        %p1013 = pneg %p296
        %p1014 = pneg %p293
        %p1015 = pneg %p317
        %p1016 = pneg %p314
        %p1017 = pneg %p338
        %p1018 = pneg %p335
        %p1019 = pneg %p359
        %p1020 = pneg %p356
        %p1021 = pneg %p380
        %p1022 = pneg %p377
        %p1023 = pneg %p401
        %p1024 = pneg %p398
        %p1025 = pneg %p422
        %p1026 = pneg %p419
        %p1027 = pneg %p443
        %p1028 = pneg %p440
        %p1029 = pneg %p464
        %p1030 = pneg %p461
        %p1031 = pneg %p485
        %p1032 = pneg %p482
        %p1033 = pneg %p506
        %p1034 = pneg %p503
        %p1035 = pneg %p527
        %p1036 = pneg %p524
        %p1037 = pneg %p548
        %p1038 = pneg %p545
        %p1039 = pneg %p569
        %p1040 = pneg %p566
        %p1041 = pneg %p590
        %p1042 = pneg %p587
        %p1043 = pneg %p611
        %p1044 = pneg %p608
        %p1045 = pneg %p639
        %p1046 = pneg %p636
        %s1047 = sand.u32 %s626, 1
        %s1048 = scalar_lea.sflag [#allocation4], %s1047
        %s1049 = sand.u32 %s626, 1
        %s1050 = smul.addr %s1049, 8
        %s1051 = scalar_lea.vmem [#allocation14], %s1050
        %p1052 = pneg %p667
        %p1053 = pneg %p664
        %s1054 = sand.u32 %s52, 1
        %s1055 = scalar_lea.sflag [#allocation16], %s1054
        %s1056 = sand.u32 %s654, 1
        %s1057 = smul.addr %s1056, 32
        %s1058 = scalar_lea.vmem [#allocation15], %s1057
        %p1059 = pneg %p695
        %p1060 = pneg %p692
        %s1061 = sand.u32 %s52, 1
        %s1062 = scalar_lea.sflag [#allocation16], %s1061
        %s1063 = sand.u32 %s682, 1
        %s1064 = smul.addr %s1063, 32
        %s1065 = scalar_lea.vmem [#allocation17], %s1064
        %p1066 = scmp.lt.s32.totalorder %s56, 1
        %s1067 = scalar_select %p1066, %s56, 1
        %p1068 = scmp.lt.s32.totalorder %s57, 0
        %s1069 = scalar_select %p1068, %s57, 0
        %s1070 = sadd.s32 %s1069, %s1067
        %s1071 = smul.addr %s1070, 8
        %s1072 = scalar_lea.vmem %s0, %s1071
        %p1073 = scmp.lt.s32.totalorder %s56, 1
        %s1074 = scalar_select %p1073, %s56, 1
        %p1075 = scmp.lt.s32.totalorder %s57, 0
        %s1076 = scalar_select %p1075, %s57, 0
        %s1077 = smul.addr %s1074, 4
        %s1078 = sadd.s32 %s1076, %s1077
        %s1079 = smul.addr %s1078, 4
        %s1080 = scalar_lea.vmem %s1, %s1079
        %p1081 = scmp.lt.s32.totalorder %s56, 1
        %s1082 = scalar_select %p1081, %s56, 1
        %s1083 = smul.addr %s1082, 4
        %s1084 = smul.addr %s1083, 4
        %s1085 = scalar_lea.vmem %s2, %s1084
        %p1086 = scmp.lt.s32.totalorder %s56, 1
        %s1087 = scalar_select %p1086, %s56, 1
        %s1088 = smul.addr %s1087, 4
        %s1089 = smul.addr %s1088, 4
        %s1090 = scalar_lea.vmem %s3, %s1089
        %p1091 = scmp.lt.s32.totalorder %s56, 1
        %s1092 = scalar_select %p1091, %s56, 1
        %s1093 = smul.addr %s1092, 8
        %s1094 = smul.addr %s1093, 4
        %s1095 = scalar_lea.vmem %s5, %s1094
        %v1097 = vld [vmem:[%s1072] sm:$0xff]
        %v1098 = vld [vmem:[%s1080] sm:$0xf]
        %v1099 = vld [vmem:[%s1080 + $0x4] sm:$0xf]
        %v1100 = vld [vmem:[%s1080 + $0x8] sm:$0xf]
        %v1101 = vld [vmem:[%s1080 + $0xc] sm:$0xf]
        %v1102 = vld [vmem:[%s1085] sm:$0xf]
        %v1103 = vld [vmem:[%s1085 + $0x4] sm:$0xf]
        %v1104 = vld [vmem:[%s1085 + $0x8] sm:$0xf]
        %v1105 = vld [vmem:[%s1085 + $0xc] sm:$0xf]
        %v1106 = vld [vmem:[%s1090] sm:$0xf]
        %v1107 = vld [vmem:[%s1090 + $0x4] sm:$0xf]
        %v1108 = vld [vmem:[%s1090 + $0x8] sm:$0xf]
        %v1109 = vld [vmem:[%s1090 + $0xc] sm:$0xf]
        %v1110 = vld [vmem:[%s922] sm:$0xff]
        %vm1111 = vcmask 64512
        %v1113 = vsel %vm1111, %v1098, 0
        %vm1115 = vcmask 1043456
        %v1117 = vsel %vm1115, %v1102, 0
        %1119 = vmatprep.subr.bf16.mxu0 0
        %1120 = vmatpush1.bf16.msra.mxu0 %v1117
        %1121 = vmatprep.subr.bf16.mxu0 0
        %1122 = vmatpush1.bf16.msra.mxu0 0
        %1123 = vmatprep.subr.bf16.mxu0 0
        %1124 = vmatpush1.bf16.msra.mxu0 0
        %1125 = vmatprep.subr.bf16.mxu0 0
        %1126 = vmatpush1.bf16.msra.mxu0 0
        %1127 = vmatprep.subr.bf16.mxu0 0
        %1128 = vmatpush1.bf16.msra.mxu0 0
        %1129 = vmatprep.subr.bf16.mxu0 0
        %1130 = vmatpush1.bf16.msra.mxu0 0
        %1131 = vmatprep.subr.bf16.mxu0 0
        %1132 = vmatpush1.bf16.msra.mxu0 0
        %1133 = vmatprep.subr.bf16.mxu0 0
        %1134 = vmatpush1.bf16.msra.mxu0 0
        %1135 = vmatprep.subr.bf16.mxu0 0
        %1136 = vmatpush1.bf16.msra.mxu0 0
        %1137 = vmatprep.subr.bf16.mxu0 0
        %1138 = vmatpush1.bf16.msra.mxu0 0
        %1139 = vmatprep.subr.bf16.mxu0 0
        %1140 = vmatpush1.bf16.msra.mxu0 0
        %1141 = vmatprep.subr.bf16.mxu0 0
        %1142 = vmatpush1.bf16.msra.mxu0 0
        %1143 = vmatprep.subr.bf16.mxu0 0
        %1144 = vmatpush1.bf16.msra.mxu0 0
        %1145 = vmatprep.subr.bf16.mxu0 0
        %1146 = vmatpush1.bf16.msra.mxu0 0
        %1147 = vmatprep.subr.bf16.mxu0 0
        %1148 = vmatpush1.bf16.msra.mxu0 0
        %1149 = vmatprep.subr.bf16.mxu0 0
        %1150 = vmatpush1.bf16.msra.mxu0 0
        %1151 = vmatprep.mubr.bf16.mxu0 0
        %1152 = vmatmul.mubr.bf16.gmra.mrb[0].mxu0 %v1113
        %v1153 = vpop.f32.mrb[0].mxu0
        %v1154 = vadd.f32 %v1110, %v1153
        %v1155 = vpop.f32.mrb[0].mxu0
        %v1156 = vpop.f32.mrb[0].mxu0
        %v1157 = vpop.f32.mrb[0].mxu0
        %1158 = vdwg.mxu0
        %v1160 = vsel %vm1111, %v1099, 0
        %v1163 = vsel %vm1115, %v1103, 0
        %1165 = vmatprep.subr.bf16.mxu0 0
        %1166 = vmatpush1.bf16.msra.mxu0 %v1163
        %1167 = vmatprep.subr.bf16.mxu0 0
        %1168 = vmatpush1.bf16.msra.mxu0 0
        %1169 = vmatprep.subr.bf16.mxu0 0
        %1170 = vmatpush1.bf16.msra.mxu0 0
        %1171 = vmatprep.subr.bf16.mxu0 0
        %1172 = vmatpush1.bf16.msra.mxu0 0
        %1173 = vmatprep.subr.bf16.mxu0 0
        %1174 = vmatpush1.bf16.msra.mxu0 0
        %1175 = vmatprep.subr.bf16.mxu0 0
        %1176 = vmatpush1.bf16.msra.mxu0 0
        %1177 = vmatprep.subr.bf16.mxu0 0
        %1178 = vmatpush1.bf16.msra.mxu0 0
        %1179 = vmatprep.subr.bf16.mxu0 0
        %1180 = vmatpush1.bf16.msra.mxu0 0
        %1181 = vmatprep.subr.bf16.mxu0 0
        %1182 = vmatpush1.bf16.msra.mxu0 0
        %1183 = vmatprep.subr.bf16.mxu0 0
        %1184 = vmatpush1.bf16.msra.mxu0 0
        %1185 = vmatprep.subr.bf16.mxu0 0
        %1186 = vmatpush1.bf16.msra.mxu0 0
        %1187 = vmatprep.subr.bf16.mxu0 0
        %1188 = vmatpush1.bf16.msra.mxu0 0
        %1189 = vmatprep.subr.bf16.mxu0 0
        %1190 = vmatpush1.bf16.msra.mxu0 0
        %1191 = vmatprep.subr.bf16.mxu0 0
        %1192 = vmatpush1.bf16.msra.mxu0 0
        %1193 = vmatprep.subr.bf16.mxu0 0
        %1194 = vmatpush1.bf16.msra.mxu0 0
        %1195 = vmatprep.subr.bf16.mxu0 0
        %1196 = vmatpush1.bf16.msra.mxu0 0
        %1197 = vmatprep.mubr.bf16.mxu0 0
        %1198 = vmatmul.mubr.bf16.gmra.mrb[0].mxu0 %v1160
        %v1199 = vpop.f32.mrb[0].mxu0
        %v1200 = vadd.f32 %v1110, %v1199
        %v1201 = vpop.f32.mrb[0].mxu0
        %v1202 = vpop.f32.mrb[0].mxu0
        %v1203 = vpop.f32.mrb[0].mxu0
        %1204 = vdwg.mxu0
        %v1206 = vsel %vm1111, %v1100, 0
        %v1209 = vsel %vm1115, %v1104, 0
        %1211 = vmatprep.subr.bf16.mxu0 0
        %1212 = vmatpush1.bf16.msra.mxu0 %v1209
        %1213 = vmatprep.subr.bf16.mxu0 0
        %1214 = vmatpush1.bf16.msra.mxu0 0
        %1215 = vmatprep.subr.bf16.mxu0 0
        %1216 = vmatpush1.bf16.msra.mxu0 0
        %1217 = vmatprep.subr.bf16.mxu0 0
        %1218 = vmatpush1.bf16.msra.mxu0 0
        %1219 = vmatprep.subr.bf16.mxu0 0
        %1220 = vmatpush1.bf16.msra.mxu0 0
        %1221 = vmatprep.subr.bf16.mxu0 0
        %1222 = vmatpush1.bf16.msra.mxu0 0
        %1223 = vmatprep.subr.bf16.mxu0 0
        %1224 = vmatpush1.bf16.msra.mxu0 0
        %1225 = vmatprep.subr.bf16.mxu0 0
        %1226 = vmatpush1.bf16.msra.mxu0 0
        %1227 = vmatprep.subr.bf16.mxu0 0
        %1228 = vmatpush1.bf16.msra.mxu0 0
        %1229 = vmatprep.subr.bf16.mxu0 0
        %1230 = vmatpush1.bf16.msra.mxu0 0
        %1231 = vmatprep.subr.bf16.mxu0 0
        %1232 = vmatpush1.bf16.msra.mxu0 0
        %1233 = vmatprep.subr.bf16.mxu0 0
        %1234 = vmatpush1.bf16.msra.mxu0 0
        %1235 = vmatprep.subr.bf16.mxu0 0
        %1236 = vmatpush1.bf16.msra.mxu0 0
        %1237 = vmatprep.subr.bf16.mxu0 0
        %1238 = vmatpush1.bf16.msra.mxu0 0
        %1239 = vmatprep.subr.bf16.mxu0 0
        %1240 = vmatpush1.bf16.msra.mxu0 0
        %1241 = vmatprep.subr.bf16.mxu0 0
        %1242 = vmatpush1.bf16.msra.mxu0 0
        %1243 = vmatprep.mubr.bf16.mxu0 0
        %1244 = vmatmul.mubr.bf16.gmra.mrb[0].mxu0 %v1206
        %v1245 = vpop.f32.mrb[0].mxu0
        %v1246 = vadd.f32 %v1110, %v1245
        %v1247 = vpop.f32.mrb[0].mxu0
        %v1248 = vpop.f32.mrb[0].mxu0
        %v1249 = vpop.f32.mrb[0].mxu0
        %1250 = vdwg.mxu0
        %v1252 = vsel %vm1111, %v1101, 0
        %v1255 = vsel %vm1115, %v1105, 0
        %1257 = vmatprep.subr.bf16.mxu0 0
        %1258 = vmatpush1.bf16.msra.mxu0 %v1255
        %1259 = vmatprep.subr.bf16.mxu0 0
        %1260 = vmatpush1.bf16.msra.mxu0 0
        %1261 = vmatprep.subr.bf16.mxu0 0
        %1262 = vmatpush1.bf16.msra.mxu0 0
        %1263 = vmatprep.subr.bf16.mxu0 0
        %1264 = vmatpush1.bf16.msra.mxu0 0
        %1265 = vmatprep.subr.bf16.mxu0 0
        %1266 = vmatpush1.bf16.msra.mxu0 0
        %1267 = vmatprep.subr.bf16.mxu0 0
        %1268 = vmatpush1.bf16.msra.mxu0 0
        %1269 = vmatprep.subr.bf16.mxu0 0
        %1270 = vmatpush1.bf16.msra.mxu0 0
        %1271 = vmatprep.subr.bf16.mxu0 0
        %1272 = vmatpush1.bf16.msra.mxu0 0
        %1273 = vmatprep.subr.bf16.mxu0 0
        %1274 = vmatpush1.bf16.msra.mxu0 0
        %1275 = vmatprep.subr.bf16.mxu0 0
        %1276 = vmatpush1.bf16.msra.mxu0 0
        %1277 = vmatprep.subr.bf16.mxu0 0
        %1278 = vmatpush1.bf16.msra.mxu0 0
        %1279 = vmatprep.subr.bf16.mxu0 0
        %1280 = vmatpush1.bf16.msra.mxu0 0
        %1281 = vmatprep.subr.bf16.mxu0 0
        %1282 = vmatpush1.bf16.msra.mxu0 0
        %1283 = vmatprep.subr.bf16.mxu0 0
        %1284 = vmatpush1.bf16.msra.mxu0 0
        %1285 = vmatprep.subr.bf16.mxu0 0
        %1286 = vmatpush1.bf16.msra.mxu0 0
        %1287 = vmatprep.subr.bf16.mxu0 0
        %1288 = vmatpush1.bf16.msra.mxu0 0
        %1289 = vmatprep.mubr.bf16.mxu0 0
        %1290 = vmatmul.mubr.bf16.gmra.mrb[0].mxu0 %v1252
        %v1291 = vpop.f32.mrb[0].mxu0
        %v1292 = vadd.f32 %v1110, %v1291
        %v1293 = vpop.f32.mrb[0].mxu0
        %v1294 = vpop.f32.mrb[0].mxu0
        %v1295 = vpop.f32.mrb[0].mxu0
        %1296 = vdwg.mxu0
        %v1297 = vsel %vm1111, %v1154, -inf
        %1298 = vmax.xlane.f32.xlu0 %v1297
        %v1299 = vpop.xlane.xlu0 %1298
        %v1300 = vsel %vm1111, %v1200, -inf
        %1301 = vmax.xlane.f32.xlu0 %v1300
        %v1302 = vpop.xlane.xlu0 %1301
        %v1303 = vsel %vm1111, %v1246, -inf
        %1304 = vmax.xlane.f32.xlu0 %v1303
        %v1305 = vpop.xlane.xlu0 %1304
        %v1306 = vsel %vm1111, %v1292, -inf
        %1307 = vmax.xlane.f32.xlu0 %v1306
        %v1308 = vpop.xlane.xlu0 %1307
        %v1309 = vsub.f32 %v1154, %v1299
        %v1310 = vsub.f32 %v1200, %v1302
        %v1311 = vsub.f32 %v1246, %v1305
        %v1312 = vsub.f32 %v1292, %v1308
        %v1313 = vmul.f32 %v1309, 1.442695
        %v1314 = vpow.pop %v1313
        %v1315 = vmul.f32 %v1310, 1.442695
        %v1316 = vpow.pop %v1315
        %v1317 = vmul.f32 %v1311, 1.442695
        %v1318 = vpow.pop %v1317
        %v1319 = vmul.f32 %v1312, 1.442695
        %v1320 = vpow.pop %v1319
        %v1321 = vsel %vm1111, %v1314, 0.0
        %1322 = vadd.xlane.f32.xlu0 %v1321
        %v1323 = vpop.xlane.xlu0 %1322
        %v1324 = vsel %vm1111, %v1316, 0.0
        %1325 = vadd.xlane.f32.xlu0 %v1324
        %v1326 = vpop.xlane.xlu0 %1325
        %v1327 = vsel %vm1111, %v1318, 0.0
        %1328 = vadd.xlane.f32.xlu0 %v1327
        %v1329 = vpop.xlane.xlu0 %1328
        %v1330 = vsel %vm1111, %v1320, 0.0
        %1331 = vadd.xlane.f32.xlu0 %v1330
        %v1332 = vpop.xlane.xlu0 %1331
        %v1333 = vrcp.pop %v1323
        %v1334 = vrcp.pop %v1326
        %v1335 = vrcp.pop %v1329
        %v1336 = vrcp.pop %v1332
        %v1337 = vmul.f32 %v1314, %v1333
        %v1338 = vmul.f32 %v1316, %v1334
        %v1339 = vmul.f32 %v1318, %v1335
        %v1340 = vmul.f32 %v1320, %v1336
        %1341 = vst.msk [vmem:[%s1058] sm:$0xff] %vm1111, %v1337
        %1342 = vst.msk [vmem:[%s1058 + $0x8] sm:$0xff] %vm1111, %v1338
        %1343 = vst.msk [vmem:[%s1058 + $0x10] sm:$0xff] %vm1111, %v1339
        %1344 = vst.msk [vmem:[%s1058 + $0x18] sm:$0xff] %vm1111, %v1340
        %v1345 = vpack.c.bf16 %v1337, %v1337
        %v1346 = vpack.c.bf16 %v1338, %v1338
        %v1347 = vpack.c.bf16 %v1339, %v1339
        %v1348 = vpack.c.bf16 %v1340, %v1340
        %v1350 = vsel %vm1111, %v1345, 0
        %v1353 = vsel %vm1115, %v1106, 0
        %1355 = vmatprep.subr.bf16.mxu0 0
        %1356 = vmatpush1.bf16.msra.mxu0 %v1353
        %1357 = vmatprep.subr.bf16.mxu0 0
        %1358 = vmatpush1.bf16.msra.mxu0 0
        %1359 = vmatprep.subr.bf16.mxu0 0
        %1360 = vmatpush1.bf16.msra.mxu0 0
        %1361 = vmatprep.subr.bf16.mxu0 0
        %1362 = vmatpush1.bf16.msra.mxu0 0
        %1363 = vmatprep.subr.bf16.mxu0 0
        %1364 = vmatpush1.bf16.msra.mxu0 0
        %1365 = vmatprep.subr.bf16.mxu0 0
        %1366 = vmatpush1.bf16.msra.mxu0 0
        %1367 = vmatprep.subr.bf16.mxu0 0
        %1368 = vmatpush1.bf16.msra.mxu0 0
        %1369 = vmatprep.subr.bf16.mxu0 0
        %1370 = vmatpush1.bf16.msra.mxu0 0
        %1371 = vmatprep.subr.bf16.mxu0 0
        %1372 = vmatpush1.bf16.msra.mxu0 0
        %1373 = vmatprep.subr.bf16.mxu0 0
        %1374 = vmatpush1.bf16.msra.mxu0 0
        %1375 = vmatprep.subr.bf16.mxu0 0
        %1376 = vmatpush1.bf16.msra.mxu0 0
        %1377 = vmatprep.subr.bf16.mxu0 0
        %1378 = vmatpush1.bf16.msra.mxu0 0
        %1379 = vmatprep.subr.bf16.mxu0 0
        %1380 = vmatpush1.bf16.msra.mxu0 0
        %1381 = vmatprep.subr.bf16.mxu0 0
        %1382 = vmatpush1.bf16.msra.mxu0 0
        %1383 = vmatprep.subr.bf16.mxu0 0
        %1384 = vmatpush1.bf16.msra.mxu0 0
        %1385 = vmatprep.subr.bf16.mxu0 0
        %1386 = vmatpush1.bf16.msra.mxu0 0
        %1387 = vmatprep.mubr.bf16.mxu0 0
        %1388 = vmatmul.mubr.bf16.gmra.mrb[0].mxu0 %v1350
        %v1389 = vpop.f32.mrb[0].mxu0
        %v1390 = vadd.f32 0.0, %v1389
        %v1391 = vpop.f32.mrb[0].mxu0
        %v1392 = vpop.f32.mrb[0].mxu0
        %v1393 = vpop.f32.mrb[0].mxu0
        %1394 = vdwg.mxu0
        %v1396 = vsel %vm1111, %v1346, 0
        %v1399 = vsel %vm1115, %v1107, 0
        %1401 = vmatprep.subr.bf16.mxu0 0
        %1402 = vmatpush1.bf16.msra.mxu0 %v1399
        %1403 = vmatprep.subr.bf16.mxu0 0
        %1404 = vmatpush1.bf16.msra.mxu0 0
        %1405 = vmatprep.subr.bf16.mxu0 0
        %1406 = vmatpush1.bf16.msra.mxu0 0
        %1407 = vmatprep.subr.bf16.mxu0 0
        %1408 = vmatpush1.bf16.msra.mxu0 0
        %1409 = vmatprep.subr.bf16.mxu0 0
        %1410 = vmatpush1.bf16.msra.mxu0 0
        %1411 = vmatprep.subr.bf16.mxu0 0
        %1412 = vmatpush1.bf16.msra.mxu0 0
        %1413 = vmatprep.subr.bf16.mxu0 0
        %1414 = vmatpush1.bf16.msra.mxu0 0
        %1415 = vmatprep.subr.bf16.mxu0 0
        %1416 = vmatpush1.bf16.msra.mxu0 0
        %1417 = vmatprep.subr.bf16.mxu0 0
        %1418 = vmatpush1.bf16.msra.mxu0 0
        %1419 = vmatprep.subr.bf16.mxu0 0
        %1420 = vmatpush1.bf16.msra.mxu0 0
        %1421 = vmatprep.subr.bf16.mxu0 0
        %1422 = vmatpush1.bf16.msra.mxu0 0
        %1423 = vmatprep.subr.bf16.mxu0 0
        %1424 = vmatpush1.bf16.msra.mxu0 0
        %1425 = vmatprep.subr.bf16.mxu0 0
        %1426 = vmatpush1.bf16.msra.mxu0 0
        %1427 = vmatprep.subr.bf16.mxu0 0
        %1428 = vmatpush1.bf16.msra.mxu0 0
        %1429 = vmatprep.subr.bf16.mxu0 0
        %1430 = vmatpush1.bf16.msra.mxu0 0
        %1431 = vmatprep.subr.bf16.mxu0 0
        %1432 = vmatpush1.bf16.msra.mxu0 0
        %1433 = vmatprep.mubr.bf16.mxu0 0
        %1434 = vmatmul.mubr.bf16.gmra.mrb[0].mxu0 %v1396
        %v1435 = vpop.f32.mrb[0].mxu0
        %v1436 = vadd.f32 0.0, %v1435
        %v1437 = vpop.f32.mrb[0].mxu0
        %v1438 = vpop.f32.mrb[0].mxu0
        %v1439 = vpop.f32.mrb[0].mxu0
        %1440 = vdwg.mxu0
        %v1442 = vsel %vm1111, %v1347, 0
        %v1445 = vsel %vm1115, %v1108, 0
        %1447 = vmatprep.subr.bf16.mxu0 0
        %1448 = vmatpush1.bf16.msra.mxu0 %v1445
        %1449 = vmatprep.subr.bf16.mxu0 0
        %1450 = vmatpush1.bf16.msra.mxu0 0
        %1451 = vmatprep.subr.bf16.mxu0 0
        %1452 = vmatpush1.bf16.msra.mxu0 0
        %1453 = vmatprep.subr.bf16.mxu0 0
        %1454 = vmatpush1.bf16.msra.mxu0 0
        %1455 = vmatprep.subr.bf16.mxu0 0
        %1456 = vmatpush1.bf16.msra.mxu0 0
        %1457 = vmatprep.subr.bf16.mxu0 0
        %1458 = vmatpush1.bf16.msra.mxu0 0
        %1459 = vmatprep.subr.bf16.mxu0 0
        %1460 = vmatpush1.bf16.msra.mxu0 0
        %1461 = vmatprep.subr.bf16.mxu0 0
        %1462 = vmatpush1.bf16.msra.mxu0 0
        %1463 = vmatprep.subr.bf16.mxu0 0
        %1464 = vmatpush1.bf16.msra.mxu0 0
        %1465 = vmatprep.subr.bf16.mxu0 0
        %1466 = vmatpush1.bf16.msra.mxu0 0
        %1467 = vmatprep.subr.bf16.mxu0 0
        %1468 = vmatpush1.bf16.msra.mxu0 0
        %1469 = vmatprep.subr.bf16.mxu0 0
        %1470 = vmatpush1.bf16.msra.mxu0 0
        %1471 = vmatprep.subr.bf16.mxu0 0
        %1472 = vmatpush1.bf16.msra.mxu0 0
        %1473 = vmatprep.subr.bf16.mxu0 0
        %1474 = vmatpush1.bf16.msra.mxu0 0
        %1475 = vmatprep.subr.bf16.mxu0 0
        %1476 = vmatpush1.bf16.msra.mxu0 0
        %1477 = vmatprep.subr.bf16.mxu0 0
        %1478 = vmatpush1.bf16.msra.mxu0 0
        %1479 = vmatprep.mubr.bf16.mxu0 0
        %1480 = vmatmul.mubr.bf16.gmra.mrb[0].mxu0 %v1442
        %v1481 = vpop.f32.mrb[0].mxu0
        %v1482 = vadd.f32 0.0, %v1481
        %v1483 = vpop.f32.mrb[0].mxu0
        %v1484 = vpop.f32.mrb[0].mxu0
        %v1485 = vpop.f32.mrb[0].mxu0
        %1486 = vdwg.mxu0
        %v1488 = vsel %vm1111, %v1348, 0
        %v1491 = vsel %vm1115, %v1109, 0
        %1493 = vmatprep.subr.bf16.mxu0 0
        %1494 = vmatpush1.bf16.msra.mxu0 %v1491
        %1495 = vmatprep.subr.bf16.mxu0 0
        %1496 = vmatpush1.bf16.msra.mxu0 0
        %1497 = vmatprep.subr.bf16.mxu0 0
        %1498 = vmatpush1.bf16.msra.mxu0 0
        %1499 = vmatprep.subr.bf16.mxu0 0
        %1500 = vmatpush1.bf16.msra.mxu0 0
        %1501 = vmatprep.subr.bf16.mxu0 0
        %1502 = vmatpush1.bf16.msra.mxu0 0
        %1503 = vmatprep.subr.bf16.mxu0 0
        %1504 = vmatpush1.bf16.msra.mxu0 0
        %1505 = vmatprep.subr.bf16.mxu0 0
        %1506 = vmatpush1.bf16.msra.mxu0 0
        %1507 = vmatprep.subr.bf16.mxu0 0
        %1508 = vmatpush1.bf16.msra.mxu0 0
        %1509 = vmatprep.subr.bf16.mxu0 0
        %1510 = vmatpush1.bf16.msra.mxu0 0
        %1511 = vmatprep.subr.bf16.mxu0 0
        %1512 = vmatpush1.bf16.msra.mxu0 0
        %1513 = vmatprep.subr.bf16.mxu0 0
        %1514 = vmatpush1.bf16.msra.mxu0 0
        %1515 = vmatprep.subr.bf16.mxu0 0
        %1516 = vmatpush1.bf16.msra.mxu0 0
        %1517 = vmatprep.subr.bf16.mxu0 0
        %1518 = vmatpush1.bf16.msra.mxu0 0
        %1519 = vmatprep.subr.bf16.mxu0 0
        %1520 = vmatpush1.bf16.msra.mxu0 0
        %1521 = vmatprep.subr.bf16.mxu0 0
        %1522 = vmatpush1.bf16.msra.mxu0 0
        %1523 = vmatprep.subr.bf16.mxu0 0
        %1524 = vmatpush1.bf16.msra.mxu0 0
        %1525 = vmatprep.mubr.bf16.mxu0 0
        %1526 = vmatmul.mubr.bf16.gmra.mrb[0].mxu0 %v1488
        %v1527 = vpop.f32.mrb[0].mxu0
        %v1528 = vadd.f32 0.0, %v1527
        %v1529 = vpop.f32.mrb[0].mxu0
        %v1530 = vpop.f32.mrb[0].mxu0
        %v1531 = vpop.f32.mrb[0].mxu0
        %1532 = vdwg.mxu0
        %1534 = vrot.lane.b32.xlu0 %v1436, 8
        %v1535 = vpop.permute.xlu0 %1534
        %1538 = vrot.lane.b32.xlu0 %v1482, 16
        %v1539 = vpop.permute.xlu0 %1538
        %1542 = vrot.lane.b32.xlu0 %v1528, 24
        %v1543 = vpop.permute.xlu0 %1542
        %v1545 = vsel %vm1111, %v1390, %v1535
        %vm1546 = vcmask 130048
        %v1547 = vsel %vm1546, %v1545, %v1539
        %vm1548 = vcmask 195584
        %v1549 = vsel %vm1548, %v1547, %v1543
        %v1550 = vpack.c.bf16 %v1549, %v1549
        %v1551 = vld [vmem:[#allocation8] sm:$0xf]
        %v1552 = vld [vmem:[#allocation8 + $0x4] sm:$0xf]
        %v1553 = vld [vmem:[#allocation8 + $0x8] sm:$0xf]
        %v1554 = vld [vmem:[#allocation8 + $0xc] sm:$0xf]
        %v1555 = vld [vmem:[%s9] sm:$0x1]
        %v1557 = vlaneseq
        %v1558 = vshrl.u32 %v1557, 7
        %v1559 = vsub.s32 0, %v1558
        %v1560 = vrot.slane %v1555, %v1559
        %v1566 = vunpack.c.l.b16 %v1551
        %v1567 = vunpack.c.l.b16 %v1552
        %v1568 = vunpack.c.l.b16 %v1553
        %v1569 = vunpack.c.l.b16 %v1554
        %v1570 = vpack.c.b16 %v1567, %v1566
        %v1571 = vpack.c.b16 %v1569, %v1568
        %vm1574 = vcmask 261120
        %v1576 = vsel %vm1574, %v1550, 0
        %1578 = vmatprep.subr.bf16.mxu0 0
        %1579 = vmatpush1.bf16.msra.mxu0 %v1570
        %1580 = vmatprep.subr.bf16.mxu0 0
        %1581 = vmatpush1.bf16.msra.mxu0 %v1571
        %1582 = vmatprep.subr.bf16.mxu0 0
        %1583 = vmatpush1.bf16.msra.mxu0 0
        %1584 = vmatprep.subr.bf16.mxu0 0
        %1585 = vmatpush1.bf16.msra.mxu0 0
        %1586 = vmatprep.subr.bf16.mxu0 0
        %1587 = vmatpush1.bf16.msra.mxu0 0
        %1588 = vmatprep.subr.bf16.mxu0 0
        %1589 = vmatpush1.bf16.msra.mxu0 0
        %1590 = vmatprep.subr.bf16.mxu0 0
        %1591 = vmatpush1.bf16.msra.mxu0 0
        %1592 = vmatprep.subr.bf16.mxu0 0
        %1593 = vmatpush1.bf16.msra.mxu0 0
        %1594 = vmatprep.subr.bf16.mxu0 0
        %1595 = vmatpush1.bf16.msra.mxu0 0
        %1596 = vmatprep.subr.bf16.mxu0 0
        %1597 = vmatpush1.bf16.msra.mxu0 0
        %1598 = vmatprep.subr.bf16.mxu0 0
        %1599 = vmatpush1.bf16.msra.mxu0 0
        %1600 = vmatprep.subr.bf16.mxu0 0
        %1601 = vmatpush1.bf16.msra.mxu0 0
        %1602 = vmatprep.subr.bf16.mxu0 0
        %1603 = vmatpush1.bf16.msra.mxu0 0
        %1604 = vmatprep.subr.bf16.mxu0 0
        %1605 = vmatpush1.bf16.msra.mxu0 0
        %1606 = vmatprep.subr.bf16.mxu0 0
        %1607 = vmatpush1.bf16.msra.mxu0 0
        %1608 = vmatprep.subr.bf16.mxu0 0
        %1609 = vmatpush1.bf16.msra.mxu0 0
        %1610 = vmatprep.mubr.bf16.mxu0 0
        %1611 = vmatmul.mubr.bf16.gmra.mrb[0].mxu0 %v1576
        %v1612 = vpop.f32.mrb[0].mxu0
        %v1613 = vadd.f32 %v1560, %v1612
        %v1614 = vpop.f32.mrb[0].mxu0
        %v1615 = vpop.f32.mrb[0].mxu0
        %v1616 = vpop.f32.mrb[0].mxu0
        %1617 = vdwg.mxu0
        %v1618 = vadd.f32 %v1097, %v1613
        %v1619 = vld [vmem:[%s18] sm:$0x1]
        %v1620 = vld [vmem:[%s19] sm:$0x1]
        %v1621 = vsel %vm1574, %v1618, 0.0
        %1622 = vadd.xlane.f32.xlu0 %v1621
        %v1623 = vpop.xlane.xlu0 %1622
        %v1624 = vrcp.pop 32.0
        %v1625 = vmul.f32 %v1623, %v1624
        %v1626 = vsub.f32 %v1618, %v1625
        %v1627 = vmul.f32 %v1626, %v1626
        %v1628 = vsel %vm1574, %v1627, 0.0
        %1629 = vadd.xlane.f32.xlu0 %v1628
        %v1630 = vpop.xlane.xlu0 %1629
        %v1631 = vmul.f32 %v1630, %v1624
        %v1632 = vadd.f32 %v1631, 1e-05
        %v1633 = vrsqrt.pop %v1632
        %v1634 = vmul.f32 %v1626, %v1633
        %v1636 = vlaneseq
        %v1637 = vshrl.u32 %v1636, 7
        %v1638 = vsub.s32 0, %v1637
        %v1639 = vrot.slane %v1619, %v1638
        %v1641 = vmul.f32 %v1634, %v1639
        %v1643 = vlaneseq
        %v1644 = vshrl.u32 %v1643, 7
        %v1645 = vsub.s32 0, %v1644
        %v1646 = vrot.slane %v1620, %v1645
        %v1648 = vadd.f32 %v1641, %v1646
        %v1649 = vpack.c.bf16 %v1648, %v1648
        %v1650 = vld [vmem:[%s10] sm:$0xf]
        %v1651 = vld [vmem:[%s10 + $0x4] sm:$0xf]
        %v1652 = vld [vmem:[%s10 + $0x8] sm:$0xf]
        %v1653 = vld [vmem:[%s10 + $0xc] sm:$0xf]
        %v1654 = vld [vmem:[#allocation10] sm:$0x1]
        %v1656 = vlaneseq
        %v1657 = vshrl.u32 %v1656, 7
        %v1658 = vsub.s32 0, %v1657
        %v1659 = vrot.slane %v1654, %v1658
        %v1665 = vunpack.c.l.b16 %v1650
        %v1666 = vunpack.c.l.b16 %v1651
        %v1667 = vunpack.c.l.b16 %v1652
        %v1668 = vunpack.c.l.b16 %v1653
        %v1669 = vpack.c.b16 %v1666, %v1665
        %v1670 = vpack.c.b16 %v1668, %v1667
        %v1674 = vsel %vm1574, %v1649, 0
        %1676 = vmatprep.subr.bf16.mxu0 0
        %1677 = vmatpush1.bf16.msra.mxu0 %v1669
        %1678 = vmatprep.subr.bf16.mxu0 0
        %1679 = vmatpush1.bf16.msra.mxu0 %v1670
        %1680 = vmatprep.subr.bf16.mxu0 0
        %1681 = vmatpush1.bf16.msra.mxu0 0
        %1682 = vmatprep.subr.bf16.mxu0 0
        %1683 = vmatpush1.bf16.msra.mxu0 0
        %1684 = vmatprep.subr.bf16.mxu0 0
        %1685 = vmatpush1.bf16.msra.mxu0 0
        %1686 = vmatprep.subr.bf16.mxu0 0
        %1687 = vmatpush1.bf16.msra.mxu0 0
        %1688 = vmatprep.subr.bf16.mxu0 0
        %1689 = vmatpush1.bf16.msra.mxu0 0
        %1690 = vmatprep.subr.bf16.mxu0 0
        %1691 = vmatpush1.bf16.msra.mxu0 0
        %1692 = vmatprep.subr.bf16.mxu0 0
        %1693 = vmatpush1.bf16.msra.mxu0 0
        %1694 = vmatprep.subr.bf16.mxu0 0
        %1695 = vmatpush1.bf16.msra.mxu0 0
        %1696 = vmatprep.subr.bf16.mxu0 0
        %1697 = vmatpush1.bf16.msra.mxu0 0
        %1698 = vmatprep.subr.bf16.mxu0 0
        %1699 = vmatpush1.bf16.msra.mxu0 0
        %1700 = vmatprep.subr.bf16.mxu0 0
        %1701 = vmatpush1.bf16.msra.mxu0 0
        %1702 = vmatprep.subr.bf16.mxu0 0
        %1703 = vmatpush1.bf16.msra.mxu0 0
        %1704 = vmatprep.subr.bf16.mxu0 0
        %1705 = vmatpush1.bf16.msra.mxu0 0
        %1706 = vmatprep.subr.bf16.mxu0 0
        %1707 = vmatpush1.bf16.msra.mxu0 0
        %1708 = vmatprep.mubr.bf16.mxu0 0
        %1709 = vmatmul.mubr.bf16.gmra.mrb[0].mxu0 %v1674
        %v1710 = vpop.f32.mrb[0].mxu0
        %v1711 = vadd.f32 %v1659, %v1710
        %v1712 = vpop.f32.mrb[0].mxu0
        %v1713 = vpop.f32.mrb[0].mxu0
        %v1714 = vpop.f32.mrb[0].mxu0
        %1715 = vdwg.mxu0
        %1717 = vrot.lane.b32.xlu0 %v1711, 120
        %v1718 = vpop.permute.xlu0 %1717
        %1720 = vrot.lane.b32.xlu0 %v1711, 112
        %v1721 = vpop.permute.xlu0 %1720
        %1723 = vrot.lane.b32.xlu0 %v1711, 104
        %v1724 = vpop.permute.xlu0 %1723
        %v1726 = vpack.c.bf16 %v1711, %v1711
        %v1727 = vpack.c.bf16 %v1718, %v1718
        %v1728 = vpack.c.bf16 %v1721, %v1721
        %v1729 = vpack.c.bf16 %v1724, %v1724
        %v1730 = vld [vmem:[%s913] sm:$0xf]
        %v1731 = vld [vmem:[%s913 + $0x4] sm:$0xf]
        %v1732 = vld [vmem:[%s913 + $0x8] sm:$0xf]
        %v1733 = vld [vmem:[%s913 + $0xc] sm:$0xf]
        %v1734 = vld [vmem:[%s1095] sm:$0xf]
        %v1735 = vld [vmem:[%s1095 + $0x4] sm:$0xf]
        %v1736 = vld [vmem:[%s1095 + $0x8] sm:$0xf]
        %v1737 = vld [vmem:[%s1095 + $0xc] sm:$0xf]
        %v1738 = vld [vmem:[%s1095 + $0x10] sm:$0xf]
        %v1739 = vld [vmem:[%s1095 + $0x14] sm:$0xf]
        %v1740 = vld [vmem:[%s1095 + $0x18] sm:$0xf]
        %v1741 = vld [vmem:[%s1095 + $0x1c] sm:$0xf]
        %v1742 = vld [vmem:[%s931] sm:$0xff]
        %v1744 = vsel %vm1111, %v1726, 0
        %v1747 = vsel %vm1115, %v1730, 0
        %1749 = vmatprep.subr.bf16.mxu0 0
        %1750 = vmatpush1.bf16.msra.mxu0 %v1747
        %1751 = vmatprep.subr.bf16.mxu0 0
        %1752 = vmatpush1.bf16.msra.mxu0 0
        %1753 = vmatprep.subr.bf16.mxu0 0
        %1754 = vmatpush1.bf16.msra.mxu0 0
        %1755 = vmatprep.subr.bf16.mxu0 0
        %1756 = vmatpush1.bf16.msra.mxu0 0
        %1757 = vmatprep.subr.bf16.mxu0 0
        %1758 = vmatpush1.bf16.msra.mxu0 0
        %1759 = vmatprep.subr.bf16.mxu0 0
        %1760 = vmatpush1.bf16.msra.mxu0 0
        %1761 = vmatprep.subr.bf16.mxu0 0
        %1762 = vmatpush1.bf16.msra.mxu0 0
        %1763 = vmatprep.subr.bf16.mxu0 0
        %1764 = vmatpush1.bf16.msra.mxu0 0
        %1765 = vmatprep.subr.bf16.mxu0 0
        %1766 = vmatpush1.bf16.msra.mxu0 0
        %1767 = vmatprep.subr.bf16.mxu0 0
        %1768 = vmatpush1.bf16.msra.mxu0 0
        %1769 = vmatprep.subr.bf16.mxu0 0
        %1770 = vmatpush1.bf16.msra.mxu0 0
        %1771 = vmatprep.subr.bf16.mxu0 0
        %1772 = vmatpush1.bf16.msra.mxu0 0
        %1773 = vmatprep.subr.bf16.mxu0 0
        %1774 = vmatpush1.bf16.msra.mxu0 0
        %1775 = vmatprep.subr.bf16.mxu0 0
        %1776 = vmatpush1.bf16.msra.mxu0 0
        %1777 = vmatprep.subr.bf16.mxu0 0
        %1778 = vmatpush1.bf16.msra.mxu0 0
        %1779 = vmatprep.subr.bf16.mxu0 0
        %1780 = vmatpush1.bf16.msra.mxu0 0
        %1781 = vmatprep.mubr.bf16.mxu0 0
        %1782 = vmatmul.mubr.bf16.gmra.mrb[0].mxu0 %v1744
        %v1783 = vpop.f32.mrb[0].mxu0
        %v1784 = vadd.f32 %v1742, %v1783
        %v1785 = vpop.f32.mrb[0].mxu0
        %v1786 = vpop.f32.mrb[0].mxu0
        %v1787 = vpop.f32.mrb[0].mxu0
        %1788 = vdwg.mxu0
        %v1790 = vsel %vm1111, %v1727, 0
        %v1793 = vsel %vm1115, %v1731, 0
        %1795 = vmatprep.subr.bf16.mxu0 0
        %1796 = vmatpush1.bf16.msra.mxu0 %v1793
        %1797 = vmatprep.subr.bf16.mxu0 0
        %1798 = vmatpush1.bf16.msra.mxu0 0
        %1799 = vmatprep.subr.bf16.mxu0 0
        %1800 = vmatpush1.bf16.msra.mxu0 0
        %1801 = vmatprep.subr.bf16.mxu0 0
        %1802 = vmatpush1.bf16.msra.mxu0 0
        %1803 = vmatprep.subr.bf16.mxu0 0
        %1804 = vmatpush1.bf16.msra.mxu0 0
        %1805 = vmatprep.subr.bf16.mxu0 0
        %1806 = vmatpush1.bf16.msra.mxu0 0
        %1807 = vmatprep.subr.bf16.mxu0 0
        %1808 = vmatpush1.bf16.msra.mxu0 0
        %1809 = vmatprep.subr.bf16.mxu0 0
        %1810 = vmatpush1.bf16.msra.mxu0 0
        %1811 = vmatprep.subr.bf16.mxu0 0
        %1812 = vmatpush1.bf16.msra.mxu0 0
        %1813 = vmatprep.subr.bf16.mxu0 0
        %1814 = vmatpush1.bf16.msra.mxu0 0
        %1815 = vmatprep.subr.bf16.mxu0 0
        %1816 = vmatpush1.bf16.msra.mxu0 0
        %1817 = vmatprep.subr.bf16.mxu0 0
        %1818 = vmatpush1.bf16.msra.mxu0 0
        %1819 = vmatprep.subr.bf16.mxu0 0
        %1820 = vmatpush1.bf16.msra.mxu0 0
        %1821 = vmatprep.subr.bf16.mxu0 0
        %1822 = vmatpush1.bf16.msra.mxu0 0
        %1823 = vmatprep.subr.bf16.mxu0 0
        %1824 = vmatpush1.bf16.msra.mxu0 0
        %1825 = vmatprep.subr.bf16.mxu0 0
        %1826 = vmatpush1.bf16.msra.mxu0 0
        %1827 = vmatprep.mubr.bf16.mxu0 0
        %1828 = vmatmul.mubr.bf16.gmra.mrb[0].mxu0 %v1790
        %v1829 = vpop.f32.mrb[0].mxu0
        %v1830 = vadd.f32 %v1742, %v1829
        %v1831 = vpop.f32.mrb[0].mxu0
        %v1832 = vpop.f32.mrb[0].mxu0
        %v1833 = vpop.f32.mrb[0].mxu0
        %1834 = vdwg.mxu0
        %v1836 = vsel %vm1111, %v1728, 0
        %v1839 = vsel %vm1115, %v1732, 0
        %1841 = vmatprep.subr.bf16.mxu0 0
        %1842 = vmatpush1.bf16.msra.mxu0 %v1839
        %1843 = vmatprep.subr.bf16.mxu0 0
        %1844 = vmatpush1.bf16.msra.mxu0 0
        %1845 = vmatprep.subr.bf16.mxu0 0
        %1846 = vmatpush1.bf16.msra.mxu0 0
        %1847 = vmatprep.subr.bf16.mxu0 0
        %1848 = vmatpush1.bf16.msra.mxu0 0
        %1849 = vmatprep.subr.bf16.mxu0 0
        %1850 = vmatpush1.bf16.msra.mxu0 0
        %1851 = vmatprep.subr.bf16.mxu0 0
        %1852 = vmatpush1.bf16.msra.mxu0 0
        %1853 = vmatprep.subr.bf16.mxu0 0
        %1854 = vmatpush1.bf16.msra.mxu0 0
        %1855 = vmatprep.subr.bf16.mxu0 0
        %1856 = vmatpush1.bf16.msra.mxu0 0
        %1857 = vmatprep.subr.bf16.mxu0 0
        %1858 = vmatpush1.bf16.msra.mxu0 0
        %1859 = vmatprep.subr.bf16.mxu0 0
        %1860 = vmatpush1.bf16.msra.mxu0 0
        %1861 = vmatprep.subr.bf16.mxu0 0
        %1862 = vmatpush1.bf16.msra.mxu0 0
        %1863 = vmatprep.subr.bf16.mxu0 0
        %1864 = vmatpush1.bf16.msra.mxu0 0
        %1865 = vmatprep.subr.bf16.mxu0 0
        %1866 = vmatpush1.bf16.msra.mxu0 0
        %1867 = vmatprep.subr.bf16.mxu0 0
        %1868 = vmatpush1.bf16.msra.mxu0 0
        %1869 = vmatprep.subr.bf16.mxu0 0
        %1870 = vmatpush1.bf16.msra.mxu0 0
        %1871 = vmatprep.subr.bf16.mxu0 0
        %1872 = vmatpush1.bf16.msra.mxu0 0
        %1873 = vmatprep.mubr.bf16.mxu0 0
        %1874 = vmatmul.mubr.bf16.gmra.mrb[0].mxu0 %v1836
        %v1875 = vpop.f32.mrb[0].mxu0
        %v1876 = vadd.f32 %v1742, %v1875
        %v1877 = vpop.f32.mrb[0].mxu0
        %v1878 = vpop.f32.mrb[0].mxu0
        %v1879 = vpop.f32.mrb[0].mxu0
        %1880 = vdwg.mxu0
        %v1882 = vsel %vm1111, %v1729, 0
        %v1885 = vsel %vm1115, %v1733, 0
        %1887 = vmatprep.subr.bf16.mxu0 0
        %1888 = vmatpush1.bf16.msra.mxu0 %v1885
        %1889 = vmatprep.subr.bf16.mxu0 0
        %1890 = vmatpush1.bf16.msra.mxu0 0
        %1891 = vmatprep.subr.bf16.mxu0 0
        %1892 = vmatpush1.bf16.msra.mxu0 0
        %1893 = vmatprep.subr.bf16.mxu0 0
        %1894 = vmatpush1.bf16.msra.mxu0 0
        %1895 = vmatprep.subr.bf16.mxu0 0
        %1896 = vmatpush1.bf16.msra.mxu0 0
        %1897 = vmatprep.subr.bf16.mxu0 0
        %1898 = vmatpush1.bf16.msra.mxu0 0
        %1899 = vmatprep.subr.bf16.mxu0 0
        %1900 = vmatpush1.bf16.msra.mxu0 0
        %1901 = vmatprep.subr.bf16.mxu0 0
        %1902 = vmatpush1.bf16.msra.mxu0 0
        %1903 = vmatprep.subr.bf16.mxu0 0
        %1904 = vmatpush1.bf16.msra.mxu0 0
        %1905 = vmatprep.subr.bf16.mxu0 0
        %1906 = vmatpush1.bf16.msra.mxu0 0
        %1907 = vmatprep.subr.bf16.mxu0 0
        %1908 = vmatpush1.bf16.msra.mxu0 0
        %1909 = vmatprep.subr.bf16.mxu0 0
        %1910 = vmatpush1.bf16.msra.mxu0 0
        %1911 = vmatprep.subr.bf16.mxu0 0
        %1912 = vmatpush1.bf16.msra.mxu0 0
        %1913 = vmatprep.subr.bf16.mxu0 0
        %1914 = vmatpush1.bf16.msra.mxu0 0
        %1915 = vmatprep.subr.bf16.mxu0 0
        %1916 = vmatpush1.bf16.msra.mxu0 0
        %1917 = vmatprep.subr.bf16.mxu0 0
        %1918 = vmatpush1.bf16.msra.mxu0 0
        %1919 = vmatprep.mubr.bf16.mxu0 0
        %1920 = vmatmul.mubr.bf16.gmra.mrb[0].mxu0 %v1882
        %v1921 = vpop.f32.mrb[0].mxu0
        %v1922 = vadd.f32 %v1742, %v1921
        %v1923 = vpop.f32.mrb[0].mxu0
        %v1924 = vpop.f32.mrb[0].mxu0
        %v1925 = vpop.f32.mrb[0].mxu0
        %1926 = vdwg.mxu0
        %v1927 = vsel %vm1546, %v1784, -inf
        %1928 = vmax.xlane.f32.xlu0 %v1927
        %v1929 = vpop.xlane.xlu0 %1928
        %v1930 = vsel %vm1546, %v1830, -inf
        %1931 = vmax.xlane.f32.xlu0 %v1930
        %v1932 = vpop.xlane.xlu0 %1931
        %v1933 = vsel %vm1546, %v1876, -inf
        %1934 = vmax.xlane.f32.xlu0 %v1933
        %v1935 = vpop.xlane.xlu0 %1934
        %v1936 = vsel %vm1546, %v1922, -inf
        %1937 = vmax.xlane.f32.xlu0 %v1936
        %v1938 = vpop.xlane.xlu0 %1937
        %v1939 = vsub.f32 %v1784, %v1929
        %v1940 = vsub.f32 %v1830, %v1932
        %v1941 = vsub.f32 %v1876, %v1935
        %v1942 = vsub.f32 %v1922, %v1938
        %v1943 = vmul.f32 %v1939, 1.442695
        %v1944 = vpow.pop %v1943
        %v1945 = vmul.f32 %v1940, 1.442695
        %v1946 = vpow.pop %v1945
        %v1947 = vmul.f32 %v1941, 1.442695
        %v1948 = vpow.pop %v1947
        %v1949 = vmul.f32 %v1942, 1.442695
        %v1950 = vpow.pop %v1949
        %v1951 = vsel %vm1546, %v1944, 0.0
        %1952 = vadd.xlane.f32.xlu0 %v1951
        %v1953 = vpop.xlane.xlu0 %1952
        %v1954 = vsel %vm1546, %v1946, 0.0
        %1955 = vadd.xlane.f32.xlu0 %v1954
        %v1956 = vpop.xlane.xlu0 %1955
        %v1957 = vsel %vm1546, %v1948, 0.0
        %1958 = vadd.xlane.f32.xlu0 %v1957
        %v1959 = vpop.xlane.xlu0 %1958
        %v1960 = vsel %vm1546, %v1950, 0.0
        %1961 = vadd.xlane.f32.xlu0 %v1960
        %v1962 = vpop.xlane.xlu0 %1961
        %v1963 = vrcp.pop %v1953
        %v1964 = vrcp.pop %v1956
        %v1965 = vrcp.pop %v1959
        %v1966 = vrcp.pop %v1962
        %v1967 = vmul.f32 %v1944, %v1963
        %v1968 = vmul.f32 %v1946, %v1964
        %v1969 = vmul.f32 %v1948, %v1965
        %v1970 = vmul.f32 %v1950, %v1966
        %1971 = vst.msk [vmem:[%s1065] sm:$0xff] %vm1546, %v1967
        %1972 = vst.msk [vmem:[%s1065 + $0x8] sm:$0xff] %vm1546, %v1968
        %1973 = vst.msk [vmem:[%s1065 + $0x10] sm:$0xff] %vm1546, %v1969
        %1974 = vst.msk [vmem:[%s1065 + $0x18] sm:$0xff] %vm1546, %v1970
        %v1975 = vpack.c.bf16 %v1967, %v1967
        %v1976 = vpack.c.bf16 %v1968, %v1968
        %v1977 = vpack.c.bf16 %v1969, %v1969
        %v1978 = vpack.c.bf16 %v1970, %v1970
        %v1981 = vunpack.c.l.b16 %v1734
        %v1982 = vunpack.c.l.b16 %v1735
        %v1983 = vpack.c.b16 %v1982, %v1981
        %v1986 = vsel %vm1546, %v1975, 0
        %1988 = vmatprep.subr.bf16.mxu0 0
        %1989 = vmatpush1.bf16.msra.mxu0 %v1983
        %1990 = vmatprep.subr.bf16.mxu0 0
        %1991 = vmatpush1.bf16.msra.mxu0 0
        %1992 = vmatprep.subr.bf16.mxu0 0
        %1993 = vmatpush1.bf16.msra.mxu0 0
        %1994 = vmatprep.subr.bf16.mxu0 0
        %1995 = vmatpush1.bf16.msra.mxu0 0
        %1996 = vmatprep.subr.bf16.mxu0 0
        %1997 = vmatpush1.bf16.msra.mxu0 0
        %1998 = vmatprep.subr.bf16.mxu0 0
        %1999 = vmatpush1.bf16.msra.mxu0 0
        %2000 = vmatprep.subr.bf16.mxu0 0
        %2001 = vmatpush1.bf16.msra.mxu0 0
        %2002 = vmatprep.subr.bf16.mxu0 0
        %2003 = vmatpush1.bf16.msra.mxu0 0
        %2004 = vmatprep.subr.bf16.mxu0 0
        %2005 = vmatpush1.bf16.msra.mxu0 0
        %2006 = vmatprep.subr.bf16.mxu0 0
        %2007 = vmatpush1.bf16.msra.mxu0 0
        %2008 = vmatprep.subr.bf16.mxu0 0
        %2009 = vmatpush1.bf16.msra.mxu0 0
        %2010 = vmatprep.subr.bf16.mxu0 0
        %2011 = vmatpush1.bf16.msra.mxu0 0
        %2012 = vmatprep.subr.bf16.mxu0 0
        %2013 = vmatpush1.bf16.msra.mxu0 0
        %2014 = vmatprep.subr.bf16.mxu0 0
        %2015 = vmatpush1.bf16.msra.mxu0 0
        %2016 = vmatprep.subr.bf16.mxu0 0
        %2017 = vmatpush1.bf16.msra.mxu0 0
        %2018 = vmatprep.subr.bf16.mxu0 0
        %2019 = vmatpush1.bf16.msra.mxu0 0
        %2020 = vmatprep.mubr.bf16.mxu0 0
        %2021 = vmatmul.mubr.bf16.gmra.mrb[0].mxu0 %v1986
        %v2022 = vpop.f32.mrb[0].mxu0
        %v2023 = vadd.f32 0.0, %v2022
        %v2024 = vpop.f32.mrb[0].mxu0
        %v2025 = vpop.f32.mrb[0].mxu0
        %v2026 = vpop.f32.mrb[0].mxu0
        %2027 = vdwg.mxu0
        %v2030 = vunpack.c.l.b16 %v1736
        %v2031 = vunpack.c.l.b16 %v1737
        %v2032 = vpack.c.b16 %v2031, %v2030
        %v2035 = vsel %vm1546, %v1976, 0
        %2037 = vmatprep.subr.bf16.mxu0 0
        %2038 = vmatpush1.bf16.msra.mxu0 %v2032
        %2039 = vmatprep.subr.bf16.mxu0 0
        %2040 = vmatpush1.bf16.msra.mxu0 0
        %2041 = vmatprep.subr.bf16.mxu0 0
        %2042 = vmatpush1.bf16.msra.mxu0 0
        %2043 = vmatprep.subr.bf16.mxu0 0
        %2044 = vmatpush1.bf16.msra.mxu0 0
        %2045 = vmatprep.subr.bf16.mxu0 0
        %2046 = vmatpush1.bf16.msra.mxu0 0
        %2047 = vmatprep.subr.bf16.mxu0 0
        %2048 = vmatpush1.bf16.msra.mxu0 0
        %2049 = vmatprep.subr.bf16.mxu0 0
        %2050 = vmatpush1.bf16.msra.mxu0 0
        %2051 = vmatprep.subr.bf16.mxu0 0
        %2052 = vmatpush1.bf16.msra.mxu0 0
        %2053 = vmatprep.subr.bf16.mxu0 0
        %2054 = vmatpush1.bf16.msra.mxu0 0
        %2055 = vmatprep.subr.bf16.mxu0 0
        %2056 = vmatpush1.bf16.msra.mxu0 0
        %2057 = vmatprep.subr.bf16.mxu0 0
        %2058 = vmatpush1.bf16.msra.mxu0 0
        %2059 = vmatprep.subr.bf16.mxu0 0
        %2060 = vmatpush1.bf16.msra.mxu0 0
        %2061 = vmatprep.subr.bf16.mxu0 0
        %2062 = vmatpush1.bf16.msra.mxu0 0
        %2063 = vmatprep.subr.bf16.mxu0 0
        %2064 = vmatpush1.bf16.msra.mxu0 0
        %2065 = vmatprep.subr.bf16.mxu0 0
        %2066 = vmatpush1.bf16.msra.mxu0 0
        %2067 = vmatprep.subr.bf16.mxu0 0
        %2068 = vmatpush1.bf16.msra.mxu0 0
        %2069 = vmatprep.mubr.bf16.mxu0 0
        %2070 = vmatmul.mubr.bf16.gmra.mrb[0].mxu0 %v2035
        %v2071 = vpop.f32.mrb[0].mxu0
        %v2072 = vadd.f32 0.0, %v2071
        %v2073 = vpop.f32.mrb[0].mxu0
        %v2074 = vpop.f32.mrb[0].mxu0
        %v2075 = vpop.f32.mrb[0].mxu0
        %2076 = vdwg.mxu0
        %v2079 = vunpack.c.l.b16 %v1738
        %v2080 = vunpack.c.l.b16 %v1739
        %v2081 = vpack.c.b16 %v2080, %v2079
        %v2084 = vsel %vm1546, %v1977, 0
        %2086 = vmatprep.subr.bf16.mxu0 0
        %2087 = vmatpush1.bf16.msra.mxu0 %v2081
        %2088 = vmatprep.subr.bf16.mxu0 0
        %2089 = vmatpush1.bf16.msra.mxu0 0
        %2090 = vmatprep.subr.bf16.mxu0 0
        %2091 = vmatpush1.bf16.msra.mxu0 0
        %2092 = vmatprep.subr.bf16.mxu0 0
        %2093 = vmatpush1.bf16.msra.mxu0 0
        %2094 = vmatprep.subr.bf16.mxu0 0
        %2095 = vmatpush1.bf16.msra.mxu0 0
        %2096 = vmatprep.subr.bf16.mxu0 0
        %2097 = vmatpush1.bf16.msra.mxu0 0
        %2098 = vmatprep.subr.bf16.mxu0 0
        %2099 = vmatpush1.bf16.msra.mxu0 0
        %2100 = vmatprep.subr.bf16.mxu0 0
        %2101 = vmatpush1.bf16.msra.mxu0 0
        %2102 = vmatprep.subr.bf16.mxu0 0
        %2103 = vmatpush1.bf16.msra.mxu0 0
        %2104 = vmatprep.subr.bf16.mxu0 0
        %2105 = vmatpush1.bf16.msra.mxu0 0
        %2106 = vmatprep.subr.bf16.mxu0 0
        %2107 = vmatpush1.bf16.msra.mxu0 0
        %2108 = vmatprep.subr.bf16.mxu0 0
        %2109 = vmatpush1.bf16.msra.mxu0 0
        %2110 = vmatprep.subr.bf16.mxu0 0
        %2111 = vmatpush1.bf16.msra.mxu0 0
        %2112 = vmatprep.subr.bf16.mxu0 0
        %2113 = vmatpush1.bf16.msra.mxu0 0
        %2114 = vmatprep.subr.bf16.mxu0 0
        %2115 = vmatpush1.bf16.msra.mxu0 0
        %2116 = vmatprep.subr.bf16.mxu0 0
        %2117 = vmatpush1.bf16.msra.mxu0 0
        %2118 = vmatprep.mubr.bf16.mxu0 0
        %2119 = vmatmul.mubr.bf16.gmra.mrb[0].mxu0 %v2084
        %v2120 = vpop.f32.mrb[0].mxu0
        %v2121 = vadd.f32 0.0, %v2120
        %v2122 = vpop.f32.mrb[0].mxu0
        %v2123 = vpop.f32.mrb[0].mxu0
        %v2124 = vpop.f32.mrb[0].mxu0
        %2125 = vdwg.mxu0
        %v2128 = vunpack.c.l.b16 %v1740
        %v2129 = vunpack.c.l.b16 %v1741
        %v2130 = vpack.c.b16 %v2129, %v2128
        %v2133 = vsel %vm1546, %v1978, 0
        %2135 = vmatprep.subr.bf16.mxu0 0
        %2136 = vmatpush1.bf16.msra.mxu0 %v2130
        %2137 = vmatprep.subr.bf16.mxu0 0
        %2138 = vmatpush1.bf16.msra.mxu0 0
        %2139 = vmatprep.subr.bf16.mxu0 0
        %2140 = vmatpush1.bf16.msra.mxu0 0
        %2141 = vmatprep.subr.bf16.mxu0 0
        %2142 = vmatpush1.bf16.msra.mxu0 0
        %2143 = vmatprep.subr.bf16.mxu0 0
        %2144 = vmatpush1.bf16.msra.mxu0 0
        %2145 = vmatprep.subr.bf16.mxu0 0
        %2146 = vmatpush1.bf16.msra.mxu0 0
        %2147 = vmatprep.subr.bf16.mxu0 0
        %2148 = vmatpush1.bf16.msra.mxu0 0
        %2149 = vmatprep.subr.bf16.mxu0 0
        %2150 = vmatpush1.bf16.msra.mxu0 0
        %2151 = vmatprep.subr.bf16.mxu0 0
        %2152 = vmatpush1.bf16.msra.mxu0 0
        %2153 = vmatprep.subr.bf16.mxu0 0
        %2154 = vmatpush1.bf16.msra.mxu0 0
        %2155 = vmatprep.subr.bf16.mxu0 0
        %2156 = vmatpush1.bf16.msra.mxu0 0
        %2157 = vmatprep.subr.bf16.mxu0 0
        %2158 = vmatpush1.bf16.msra.mxu0 0
        %2159 = vmatprep.subr.bf16.mxu0 0
        %2160 = vmatpush1.bf16.msra.mxu0 0
        %2161 = vmatprep.subr.bf16.mxu0 0
        %2162 = vmatpush1.bf16.msra.mxu0 0
        %2163 = vmatprep.subr.bf16.mxu0 0
        %2164 = vmatpush1.bf16.msra.mxu0 0
        %2165 = vmatprep.subr.bf16.mxu0 0
        %2166 = vmatpush1.bf16.msra.mxu0 0
        %2167 = vmatprep.mubr.bf16.mxu0 0
        %2168 = vmatmul.mubr.bf16.gmra.mrb[0].mxu0 %v2133
        %v2169 = vpop.f32.mrb[0].mxu0
        %v2170 = vadd.f32 0.0, %v2169
        %v2171 = vpop.f32.mrb[0].mxu0
        %v2172 = vpop.f32.mrb[0].mxu0
        %v2173 = vpop.f32.mrb[0].mxu0
        %2174 = vdwg.mxu0
        %2176 = vrot.lane.b32.xlu0 %v2072, 8
        %v2177 = vpop.permute.xlu0 %2176
        %2180 = vrot.lane.b32.xlu0 %v2121, 16
        %v2181 = vpop.permute.xlu0 %2180
        %2184 = vrot.lane.b32.xlu0 %v2170, 24
        %v2185 = vpop.permute.xlu0 %2184
        %v2187 = vsel %vm1111, %v2023, %v2177
        %v2188 = vsel %vm1546, %v2187, %v2181
        %v2189 = vsel %vm1548, %v2188, %v2185
        %v2190 = vpack.c.bf16 %v2189, %v2189
        %v2191 = vld [vmem:[#allocation11] sm:$0xf]
        %v2192 = vld [vmem:[#allocation11 + $0x4] sm:$0xf]
        %v2193 = vld [vmem:[#allocation11 + $0x8] sm:$0xf]
        %v2194 = vld [vmem:[#allocation11 + $0xc] sm:$0xf]
        %v2195 = vld [vmem:[#allocation13] sm:$0x1]
        %v2197 = vlaneseq
        %v2198 = vshrl.u32 %v2197, 7
        %v2199 = vsub.s32 0, %v2198
        %v2200 = vrot.slane %v2195, %v2199
        %v2206 = vunpack.c.l.b16 %v2191
        %v2207 = vunpack.c.l.b16 %v2192
        %v2208 = vunpack.c.l.b16 %v2193
        %v2209 = vunpack.c.l.b16 %v2194
        %v2210 = vpack.c.b16 %v2207, %v2206
        %v2211 = vpack.c.b16 %v2209, %v2208
        %v2215 = vsel %vm1574, %v2190, 0
        %2217 = vmatprep.subr.bf16.mxu0 0
        %2218 = vmatpush1.bf16.msra.mxu0 %v2210
        %2219 = vmatprep.subr.bf16.mxu0 0
        %2220 = vmatpush1.bf16.msra.mxu0 %v2211
        %2221 = vmatprep.subr.bf16.mxu0 0
        %2222 = vmatpush1.bf16.msra.mxu0 0
        %2223 = vmatprep.subr.bf16.mxu0 0
        %2224 = vmatpush1.bf16.msra.mxu0 0
        %2225 = vmatprep.subr.bf16.mxu0 0
        %2226 = vmatpush1.bf16.msra.mxu0 0
        %2227 = vmatprep.subr.bf16.mxu0 0
        %2228 = vmatpush1.bf16.msra.mxu0 0
        %2229 = vmatprep.subr.bf16.mxu0 0
        %2230 = vmatpush1.bf16.msra.mxu0 0
        %2231 = vmatprep.subr.bf16.mxu0 0
        %2232 = vmatpush1.bf16.msra.mxu0 0
        %2233 = vmatprep.subr.bf16.mxu0 0
        %2234 = vmatpush1.bf16.msra.mxu0 0
        %2235 = vmatprep.subr.bf16.mxu0 0
        %2236 = vmatpush1.bf16.msra.mxu0 0
        %2237 = vmatprep.subr.bf16.mxu0 0
        %2238 = vmatpush1.bf16.msra.mxu0 0
        %2239 = vmatprep.subr.bf16.mxu0 0
        %2240 = vmatpush1.bf16.msra.mxu0 0
        %2241 = vmatprep.subr.bf16.mxu0 0
        %2242 = vmatpush1.bf16.msra.mxu0 0
        %2243 = vmatprep.subr.bf16.mxu0 0
        %2244 = vmatpush1.bf16.msra.mxu0 0
        %2245 = vmatprep.subr.bf16.mxu0 0
        %2246 = vmatpush1.bf16.msra.mxu0 0
        %2247 = vmatprep.subr.bf16.mxu0 0
        %2248 = vmatpush1.bf16.msra.mxu0 0
        %2249 = vmatprep.mubr.bf16.mxu0 0
        %2250 = vmatmul.mubr.bf16.gmra.mrb[0].mxu0 %v2215
        %v2251 = vpop.f32.mrb[0].mxu0
        %v2252 = vadd.f32 %v2200, %v2251
        %v2253 = vpop.f32.mrb[0].mxu0
        %v2254 = vpop.f32.mrb[0].mxu0
        %v2255 = vpop.f32.mrb[0].mxu0
        %2256 = vdwg.mxu0
        %v2257 = vadd.f32 %v1648, %v2252
        %v2258 = vld [vmem:[%s20] sm:$0x1]
        %v2259 = vld [vmem:[%s21] sm:$0x1]
        %v2260 = vsel %vm1574, %v2257, 0.0
        %2261 = vadd.xlane.f32.xlu0 %v2260
        %v2262 = vpop.xlane.xlu0 %2261
        %v2263 = vmul.f32 %v2262, %v1624
        %v2264 = vsub.f32 %v2257, %v2263
        %v2265 = vmul.f32 %v2264, %v2264
        %v2266 = vsel %vm1574, %v2265, 0.0
        %2267 = vadd.xlane.f32.xlu0 %v2266
        %v2268 = vpop.xlane.xlu0 %2267
        %v2269 = vmul.f32 %v2268, %v1624
        %v2270 = vadd.f32 %v2269, 1e-05
        %v2271 = vrsqrt.pop %v2270
        %v2272 = vmul.f32 %v2264, %v2271
        %v2274 = vlaneseq
        %v2275 = vshrl.u32 %v2274, 7
        %v2276 = vsub.s32 0, %v2275
        %v2277 = vrot.slane %v2258, %v2276
        %v2279 = vmul.f32 %v2272, %v2277
        %v2281 = vlaneseq
        %v2282 = vshrl.u32 %v2281, 7
        %v2283 = vsub.s32 0, %v2282
        %v2284 = vrot.slane %v2259, %v2283
        %v2286 = vadd.f32 %v2279, %v2284
        %v2287 = vpack.c.bf16 %v2286, %v2286
        %v2288 = vld [vmem:[%s14] sm:$0xf]
        %v2289 = vld [vmem:[%s14 + $0x4] sm:$0xf]
        %v2290 = vld [vmem:[%s14 + $0x8] sm:$0xf]
        %v2291 = vld [vmem:[%s14 + $0xc] sm:$0xf]
        %v2292 = vld [vmem:[%s15] sm:$0x1]
        %v2294 = vlaneseq
        %v2295 = vshrl.u32 %v2294, 7
        %v2296 = vsub.s32 0, %v2295
        %v2297 = vrot.slane %v2292, %v2296
        %v2303 = vunpack.c.l.b16 %v2288
        %v2304 = vunpack.c.l.b16 %v2289
        %v2305 = vunpack.c.l.b16 %v2290
        %v2306 = vunpack.c.l.b16 %v2291
        %v2307 = vpack.c.b16 %v2304, %v2303
        %v2308 = vpack.c.b16 %v2306, %v2305
        %v2312 = vsel %vm1574, %v2287, 0
        %2314 = vmatprep.subr.bf16.mxu0 0
        %2315 = vmatpush1.bf16.msra.mxu0 %v2307
        %2316 = vmatprep.subr.bf16.mxu0 0
        %2317 = vmatpush1.bf16.msra.mxu0 %v2308
        %2318 = vmatprep.subr.bf16.mxu0 0
        %2319 = vmatpush1.bf16.msra.mxu0 0
        %2320 = vmatprep.subr.bf16.mxu0 0
        %2321 = vmatpush1.bf16.msra.mxu0 0
        %2322 = vmatprep.subr.bf16.mxu0 0
        %2323 = vmatpush1.bf16.msra.mxu0 0
        %2324 = vmatprep.subr.bf16.mxu0 0
        %2325 = vmatpush1.bf16.msra.mxu0 0
        %2326 = vmatprep.subr.bf16.mxu0 0
        %2327 = vmatpush1.bf16.msra.mxu0 0
        %2328 = vmatprep.subr.bf16.mxu0 0
        %2329 = vmatpush1.bf16.msra.mxu0 0
        %2330 = vmatprep.subr.bf16.mxu0 0
        %2331 = vmatpush1.bf16.msra.mxu0 0
        %2332 = vmatprep.subr.bf16.mxu0 0
        %2333 = vmatpush1.bf16.msra.mxu0 0
        %2334 = vmatprep.subr.bf16.mxu0 0
        %2335 = vmatpush1.bf16.msra.mxu0 0
        %2336 = vmatprep.subr.bf16.mxu0 0
        %2337 = vmatpush1.bf16.msra.mxu0 0
        %2338 = vmatprep.subr.bf16.mxu0 0
        %2339 = vmatpush1.bf16.msra.mxu0 0
        %2340 = vmatprep.subr.bf16.mxu0 0
        %2341 = vmatpush1.bf16.msra.mxu0 0
        %2342 = vmatprep.subr.bf16.mxu0 0
        %2343 = vmatpush1.bf16.msra.mxu0 0
        %2344 = vmatprep.subr.bf16.mxu0 0
        %2345 = vmatpush1.bf16.msra.mxu0 0
        %2346 = vmatprep.mubr.bf16.mxu0 0
        %2347 = vmatmul.mubr.bf16.gmra.mrb[0].mxu0 %v2312
        %v2348 = vpop.f32.mrb[0].mxu0
        %v2349 = vadd.f32 %v2297, %v2348
        %v2350 = vpop.f32.mrb[0].mxu0
        %v2351 = vpop.f32.mrb[0].mxu0
        %v2352 = vpop.f32.mrb[0].mxu0
        %2353 = vdwg.mxu0
        %v2354 = vmax.f32 %v2349, 0.0
        %v2355 = vpack.c.bf16 %v2354, %v2354
        %v2356 = vld [vmem:[%s16] sm:$0xf]
        %v2357 = vld [vmem:[%s16 + $0x4] sm:$0xf]
        %v2358 = vld [vmem:[%s16 + $0x8] sm:$0xf]
        %v2359 = vld [vmem:[%s16 + $0xc] sm:$0xf]
        %v2360 = vld [vmem:[%s16 + $0x10] sm:$0xf]
        %v2361 = vld [vmem:[%s16 + $0x14] sm:$0xf]
        %v2362 = vld [vmem:[%s16 + $0x18] sm:$0xf]
        %v2363 = vld [vmem:[%s16 + $0x1c] sm:$0xf]
        %v2364 = vld [vmem:[%s17] sm:$0x1]
        %v2366 = vlaneseq
        %v2367 = vshrl.u32 %v2366, 7
        %v2368 = vsub.s32 0, %v2367
        %v2369 = vrot.slane %v2364, %v2368
        %v2379 = vunpack.c.l.b16 %v2356
        %v2380 = vunpack.c.l.b16 %v2357
        %v2381 = vunpack.c.l.b16 %v2358
        %v2382 = vunpack.c.l.b16 %v2359
        %v2383 = vunpack.c.l.b16 %v2360
        %v2384 = vunpack.c.l.b16 %v2361
        %v2385 = vunpack.c.l.b16 %v2362
        %v2386 = vunpack.c.l.b16 %v2363
        %v2387 = vpack.c.b16 %v2380, %v2379
        %v2388 = vpack.c.b16 %v2382, %v2381
        %v2389 = vpack.c.b16 %v2384, %v2383
        %v2390 = vpack.c.b16 %v2386, %v2385
        %vm2395 = vcmask 523264
        %v2397 = vsel %vm2395, %v2355, 0
        %2399 = vmatprep.subr.bf16.mxu0 0
        %2400 = vmatpush1.bf16.msra.mxu0 %v2387
        %2401 = vmatprep.subr.bf16.mxu0 0
        %2402 = vmatpush1.bf16.msra.mxu0 %v2388
        %2403 = vmatprep.subr.bf16.mxu0 0
        %2404 = vmatpush1.bf16.msra.mxu0 %v2389
        %2405 = vmatprep.subr.bf16.mxu0 0
        %2406 = vmatpush1.bf16.msra.mxu0 %v2390
        %2407 = vmatprep.subr.bf16.mxu0 0
        %2408 = vmatpush1.bf16.msra.mxu0 0
        %2409 = vmatprep.subr.bf16.mxu0 0
        %2410 = vmatpush1.bf16.msra.mxu0 0
        %2411 = vmatprep.subr.bf16.mxu0 0
        %2412 = vmatpush1.bf16.msra.mxu0 0
        %2413 = vmatprep.subr.bf16.mxu0 0
        %2414 = vmatpush1.bf16.msra.mxu0 0
        %2415 = vmatprep.subr.bf16.mxu0 0
        %2416 = vmatpush1.bf16.msra.mxu0 0
        %2417 = vmatprep.subr.bf16.mxu0 0
        %2418 = vmatpush1.bf16.msra.mxu0 0
        %2419 = vmatprep.subr.bf16.mxu0 0
        %2420 = vmatpush1.bf16.msra.mxu0 0
        %2421 = vmatprep.subr.bf16.mxu0 0
        %2422 = vmatpush1.bf16.msra.mxu0 0
        %2423 = vmatprep.subr.bf16.mxu0 0
        %2424 = vmatpush1.bf16.msra.mxu0 0
        %2425 = vmatprep.subr.bf16.mxu0 0
        %2426 = vmatpush1.bf16.msra.mxu0 0
        %2427 = vmatprep.subr.bf16.mxu0 0
        %2428 = vmatpush1.bf16.msra.mxu0 0
        %2429 = vmatprep.subr.bf16.mxu0 0
        %2430 = vmatpush1.bf16.msra.mxu0 0
        %2431 = vmatprep.mubr.bf16.mxu0 0
        %2432 = vmatmul.mubr.bf16.gmra.mrb[0].mxu0 %v2397
        %v2433 = vpop.f32.mrb[0].mxu0
        %v2434 = vadd.f32 %v2369, %v2433
        %v2435 = vpop.f32.mrb[0].mxu0
        %v2436 = vpop.f32.mrb[0].mxu0
        %v2437 = vpop.f32.mrb[0].mxu0
        %2438 = vdwg.mxu0
        %v2439 = vadd.f32 %v2286, %v2434
        %v2440 = vld [vmem:[%s22] sm:$0x1]
        %v2441 = vld [vmem:[%s23] sm:$0x1]
        %v2442 = vsel %vm1574, %v2439, 0.0
        %2443 = vadd.xlane.f32.xlu0 %v2442
        %v2444 = vpop.xlane.xlu0 %2443
        %v2445 = vmul.f32 %v2444, %v1624
        %v2446 = vsub.f32 %v2439, %v2445
        %v2447 = vmul.f32 %v2446, %v2446
        %v2448 = vsel %vm1574, %v2447, 0.0
        %2449 = vadd.xlane.f32.xlu0 %v2448
        %v2450 = vpop.xlane.xlu0 %2449
        %v2451 = vmul.f32 %v2450, %v1624
        %v2452 = vadd.f32 %v2451, 1e-05
        %v2453 = vrsqrt.pop %v2452
        %v2454 = vmul.f32 %v2446, %v2453
        %v2456 = vlaneseq
        %v2457 = vshrl.u32 %v2456, 7
        %v2458 = vsub.s32 0, %v2457
        %v2459 = vrot.slane %v2440, %v2458
        %v2461 = vmul.f32 %v2454, %v2459
        %v2463 = vlaneseq
        %v2464 = vshrl.u32 %v2463, 7
        %v2465 = vsub.s32 0, %v2464
        %v2466 = vrot.slane %v2441, %v2465
        %v2468 = vadd.f32 %v2461, %v2466
        %2469 = vst.msk [vmem:[%s1051] sm:$0xff] %vm1574, %v2468
        %s2470 = sand.u32 %s626, 1
        %s2471 = scalar_lea.sflag [#allocation4], %s2470
        %s2472 = sand.u32 %s626, 1
        %s2473 = smul.addr %s2472, 8
        %s2474 = scalar_lea.vmem [#allocation14], %s2473
        %s2475 = sand.u32 %s52, 1
        %s2476 = scalar_lea.sflag [#allocation16], %s2475
        %s2477 = sand.u32 %s654, 1
        %s2478 = smul.addr %s2477, 32
        %s2479 = scalar_lea.vmem [#allocation15], %s2478
        %s2480 = sand.u32 %s52, 1
        %s2481 = scalar_lea.sflag [#allocation16], %s2480
        %s2482 = sand.u32 %s682, 1
        %s2483 = smul.addr %s2482, 32
        %s2484 = scalar_lea.vmem [#allocation17], %s2483
        // Predicated region
        $region145: #{tpu_custom_call.1} parent=115 // pred_check
          %p2485 = pneg %p636
        $region146: #{tpu_custom_call.1} parent=115 // pred_check_branch
          %2487 = sbr.rel (%p2485) target = $region148
        $region147: #{tpu_custom_call.1} parent=115 // pred_region
          %s2489 = ssub.s32 128, 128
          %2490 = vsyncadd %s2471, %s2489
          %s2491 = sadd.s32 %s57, %s56
          %s2492 = smul.addr %s2491, 128
          %s2493 = scalar_lea.hbm %s24, %s2492
          %s2495 = sshll.u32 %s2474, 4
          %s2496 = int_to_ptr.vmem [resolvable:$true] %s2495
          %2498 = dma.vmem_to_hbm [thread:$0]  %s2496, 128, %s2493, %s2471
        $region148: #{tpu_custom_call.1} parent=115 // pred_fallthru
          _
        // Predicated region
        $region149: #{tpu_custom_call.1} parent=115 // pred_check
          %p2499 = pneg %p664
        $region150: #{tpu_custom_call.1} parent=115 // pred_check_branch
          %2501 = sbr.rel (%p2499) target = $region152
        $region151: #{tpu_custom_call.1} parent=115 // pred_region
          %s2503 = ssub.s32 512, 512
          %2504 = vsyncadd %s2476, %s2503
          %s2505 = smul.addr %s56, 4
          %s2506 = sadd.s32 %s57, %s2505
          %s2507 = smul.addr %s2506, 128
          %s2508 = scalar_lea.hbm %s25, %s2507
          %s2509 = sshll.u32 %s2479, 4
          %s2510 = int_to_ptr.vmem [resolvable:$true] %s2509
          %2515 = dma.vmem_to_hbm [thread:$0]  %s2510, 512, %s2508, %s2476, 128, 128, 8
        $region152: #{tpu_custom_call.1} parent=115 // pred_fallthru
          _
        // Predicated region
        $region153: #{tpu_custom_call.1} parent=115 // pred_check
          %p2516 = pneg %p692
        $region154: #{tpu_custom_call.1} parent=115 // pred_check_branch
          %2518 = sbr.rel (%p2516) target = $region156
        $region155: #{tpu_custom_call.1} parent=115 // pred_region
          %s2520 = ssub.s32 512, 512
          %2521 = vsyncadd %s2481, %s2520
          %s2522 = smul.addr %s56, 4
          %s2523 = sadd.s32 %s57, %s2522
          %s2524 = smul.addr %s2523, 128
          %s2525 = scalar_lea.hbm %s26, %s2524
          %s2526 = sshll.u32 %s2484, 4
          %s2527 = int_to_ptr.vmem [resolvable:$true] %s2526
          %2532 = dma.vmem_to_hbm [thread:$0]  %s2527, 512, %s2525, %s2481, 128, 128, 8
        $region156: #{tpu_custom_call.1} parent=115 // pred_fallthru
          _
      $region116: #{tpu_custom_call.1} parent=5 // pred_fallthru
        _
      %p2533 = scmp.le.s32.totalorder 2, %s47
      // Predicated region
      $region157: #{tpu_custom_call.1} parent=5 // pred_check
        %p2534 = pneg %p2533
      $region158: #{tpu_custom_call.1} parent=5 // pred_check_branch
        %2536 = sbr.rel (%p2534) target = $region160
      $region159: #{tpu_custom_call.1} parent=5 // pred_region
        %s2537 = ssub.s32 %s47, 2
        // Predicated region
        $region161: #{tpu_custom_call.1} parent=159 // pred_check
          %p2538 = pneg %p642
        $region162: #{tpu_custom_call.1} parent=159 // pred_check_branch
          %2540 = sbr.rel (%p2538) target = $region164
        $region163: #{tpu_custom_call.1} parent=159 // pred_region
          %s2541 = sand.u32 %s627, 1
          %s2542 = scalar_lea.sflag [#allocation4], %s2541
          %s2543 = sand.u32 %s627, 1
          %s2544 = smul.addr %s2543, 8
          %s2545 = scalar_lea.vmem [#allocation14], %s2544
          %2546 = dma.done %s2542, 128
        $region164: #{tpu_custom_call.1} parent=159 // pred_fallthru
          _
        // Predicated region
        $region165: #{tpu_custom_call.1} parent=159 // pred_check
          %p2547 = pneg %p670
        $region166: #{tpu_custom_call.1} parent=159 // pred_check_branch
          %2549 = sbr.rel (%p2547) target = $region168
        $region167: #{tpu_custom_call.1} parent=159 // pred_region
          %s2550 = sand.u32 %s53, 1
          %s2551 = scalar_lea.sflag [#allocation16], %s2550
          %s2552 = sand.u32 %s655, 1
          %s2553 = smul.addr %s2552, 32
          %s2554 = scalar_lea.vmem [#allocation15], %s2553
          %2555 = dma.done %s2551, 512
        $region168: #{tpu_custom_call.1} parent=159 // pred_fallthru
          _
        // Predicated region
        $region169: #{tpu_custom_call.1} parent=159 // pred_check
          %p2556 = pneg %p698
        $region170: #{tpu_custom_call.1} parent=159 // pred_check_branch
          %2558 = sbr.rel (%p2556) target = $region172
        $region171: #{tpu_custom_call.1} parent=159 // pred_region
          %s2559 = sand.u32 %s53, 1
          %s2560 = scalar_lea.sflag [#allocation16], %s2559
          %s2561 = sand.u32 %s683, 1
          %s2562 = smul.addr %s2561, 32
          %s2563 = scalar_lea.vmem [#allocation17], %s2562
          %2564 = dma.done %s2560, 512
        $region172: #{tpu_custom_call.1} parent=159 // pred_fallthru
          _
      $region160: #{tpu_custom_call.1} parent=5 // pred_fallthru
        _
    $region6: #{tpu_custom_call.1} parent=1 // loop_footer
      %s51 = sadd.s32 1, %s47
    $region7: #{tpu_custom_call.1} parent=1 // loop_footer_branch
      %46 = sbr.rel target = $region3
    $region8: #{tpu_custom_call.1} parent=1 // loop_exit
      _
    %2565 = vsyncpa [#allocation3], 1
    %s2566 = scalar_lea.sflag [#allocation3], 1
    %2567 = vsyncpa %s2566, 1
    %2568 = vsyncpa [#allocation6], 1
    %s2569 = scalar_lea.sflag [#allocation6], 1
    %2570 = vsyncpa %s2569, 1
    %2571 = vsyncpa [#allocation9], 1
    %2572 = vsyncpa [#allocation12], 1
    %2573 = vsyncpa [#allocation4], 1
    %s2574 = scalar_lea.sflag [#allocation4], 1
    %2575 = vsyncpa %s2574, 1
    %2576 = vsyncpa [#allocation16], 1
    %s2577 = scalar_lea.sflag [#allocation16], 1
    %2578 = vsyncpa %s2577, 1

</llo_original>
